<compile_context>
chip_gen: v7x
topology: tpu7x:2x2x1
jax: 0.10.0
libtpu: 0.0.40
codegen_flags: <defaults>
</compile_context>

<pallas_src>
import functools

import numpy as np
import jax
import jax.numpy as jnp
from jax.experimental import pallas as pl
from jax.experimental.pallas import tpu as pltpu


_PAD = 128   # lane-aligned halo on each side of the flattened (H*W) image


# ----------------------------------------------------------------------------
# Fused RFB kernel (channels-major activations: (C, H*W))
# ----------------------------------------------------------------------------
def _rfb_kernel(x_ref, wh_ref, wt_ref, wc_ref, b_ref, o_ref, sbuf, *, H, W, C):
    HW = H * W
    PAD = _PAD

    # Zero only the halo strips; the interior is fully overwritten below.
    # (Done every step so it is correct for any split of the parallel axis.)
    sbuf[:, 0:PAD] = jnp.zeros((4 * C, PAD), jnp.float32)
    sbuf[:, PAD + HW:PAD + HW + PAD] = jnp.zeros((4 * C, PAD), jnp.float32)

    # lane index -> x coordinate, for masking horizontal taps at row borders
    xi = jax.lax.broadcasted_iota(jnp.int32, (1, HW), 1) % W
    mask_cache = {}

    def wmask(dx):
        if dx not in mask_cache:
            ok = (xi >= -dx) if dx < 0 else (xi < W - dx)
            mask_cache[dx] = jnp.where(ok, 1.0, 0.0)
        return mask_cache[dx]

    def conv_taps(v, taps, w_of_tap, bias_row):
        """Small conv: v is (rows, HW) channels-major, taps = [(dy, dx), ...]."""
        rows = v.shape[0]
        sbuf[0:rows, PAD:PAD + HW] = v            # lane-aligned dense store
        acc = None
        for i, (dy, dx) in enumerate(taps):
            s = dy * W + dx
            xs = sbuf[0:rows, PAD + s:PAD + s + HW]
            if dx != 0:
                xs = xs * wmask(dx)               # kill row-boundary wraparound
            prod = jnp.dot(w_of_tap(i), xs, preferred_element_type=jnp.float32)
            acc = prod if acc is None else acc + prod
        return acc + b_ref[bias_row:bias_row + C, :]

    x2t = x_ref[0]                                # (Cin, HW)

    # Fused 1x1 convs: 4 branch heads + conv_res in one (5C, Cin) matmul.
    heads = (jnp.dot(wh_ref[...], x2t, preferred_element_type=jnp.float32)
             + b_ref[0:5 * C, :])                 # (5C, HW)

    tap_base = 0
    bias_base = 5 * C
    cat_parts = [heads[0:C, :]]                   # branch0 output = its 1x1 head
    for bi, (kb, d) in enumerate(((3, 3), (5, 5), (7, 7))):
        p = kb // 2
        a = heads[(bi + 1) * C:(bi + 2) * C, :]

        # 1 x kb, pad (0, p)
        a = conv_taps(a, [(0, t - p) for t in range(kb)],
                      lambda i, _o=tap_base: wt_ref[_o + i], bias_base)
        tap_base += kb; bias_base += C

        # kb x 1, pad (p, 0)
        a = conv_taps(a, [(t - p, 0) for t in range(kb)],
                      lambda i, _o=tap_base: wt_ref[_o + i], bias_base)
        tap_base += kb; bias_base += C

        # 3 x 3, dilation d, pad d
        a = conv_taps(a, [((kh - 1) * d, (kw - 1) * d)
                          for kh in range(3) for kw in range(3)],
                      lambda i, _o=tap_base: wt_ref[_o + i], bias_base)
        tap_base += 9; bias_base += C

        cat_parts.append(a)

    x_cat = jnp.concatenate(cat_parts, axis=0)    # (4C, HW), PyTorch cat order

    # conv_cat: 3x3 pad 1 over the 4C concatenated channels (9 K=4C matmuls)
    y = conv_taps(x_cat,
                  [(kh - 1, kw - 1) for kh in range(3) for kw in range(3)],
                  lambda i: wc_ref[i], bias_base)

    # + residual (rows 4C:5C of the fused head matmul), ReLU, lane-dense store
    o_ref[0] = jnp.maximum(y + heads[4 * C:5 * C, :], 0.0).astype(o_ref.dtype)


def _rfb_pallas_call(x2, packed, *, H, W, C, Cin, N):
    HW = H * W
    kernel = functools.partial(_rfb_kernel, H=H, W=W, C=C)
    params = [packed["w_head"], packed["w_taps"], packed["w_cat"], packed["b_all"]]

    def _full(arr):
        return pl.BlockSpec(arr.shape, lambda n, _r=arr.ndim: (0,) * _r)

    return pl.pallas_call(
        kernel,
        out_shape=jax.ShapeDtypeStruct((N, C, HW), x2.dtype),
        grid=(N,),
        in_specs=[pl.BlockSpec((1, Cin, HW), lambda n: (n, 0, 0))]
                 + [_full(a) for a in params],
        out_specs=pl.BlockSpec((1, C, HW), lambda n: (n, 0, 0)),
        scratch_shapes=[pltpu.VMEM((4 * C, 2 * _PAD + HW), jnp.float32)],
        compiler_params=pltpu.CompilerParams(
            dimension_semantics=("parallel",)),
    )(x2, *params)


# ----------------------------------------------------------------------------
# Raw parameters (PyTorch-equivalent, OIHW) + kernel-ready packing
# ----------------------------------------------------------------------------
# Per-branch layer configs: ((kh, kw), (pad_h, pad_w), dilation)
BRANCH_CFGS = [
    [((1, 1), (0, 0), 1)],
    [((1, 1), (0, 0), 1), ((1, 3), (0, 1), 1), ((3, 1), (1, 0), 1), ((3, 3), (3, 3), 3)],
    [((1, 1), (0, 0), 1), ((1, 5), (0, 2), 1), ((5, 1), (2, 0), 1), ((3, 3), (5, 5), 5)],
    [((1, 1), (0, 0), 1), ((1, 7), (0, 3), 1), ((7, 1), (3, 0), 1), ((3, 3), (7, 7), 7)],
]


def _conv_init(key, cout, cin, kh, kw):
    kkey, bkey = jax.random.split(key)
    fan_in = cin * kh * kw
    bound = 1.0 / np.sqrt(fan_in)
    w = jax.random.uniform(kkey, (cout, cin, kh, kw), jnp.float32, -bound, bound)
    b = jax.random.uniform(bkey, (cout,), jnp.float32, -bound, bound)
    return w, b


def init_rfb_params(key, in_ch, out_ch):
    keys = iter(jax.random.split(key, 16))
    branches = []
    for cfg in BRANCH_CFGS:
        layers, cin = [], in_ch
        for (kh, kw), _, _ in cfg:
            layers.append(_conv_init(next(keys), out_ch, cin, kh, kw))
            cin = out_ch
        branches.append(layers)
    return {"branches": branches,
            "conv_cat": _conv_init(next(keys), out_ch, 4 * out_ch, 3, 3),
            "conv_res": _conv_init(next(keys), out_ch, in_ch, 1, 1)}


def pack_rfb_params(params, in_ch, out_ch):
    """Host-side repack of raw OIHW weights into kernel-friendly blobs."""
    C = out_ch
    br = params["branches"]
    w_res, b_res = params["conv_res"]

    # fused 1x1s: rows = [head0 | head1 | head2 | head3 | conv_res]
    w_head = jnp.concatenate(
        [br[b][0][0].reshape(C, in_ch) for b in range(4)]
        + [w_res.reshape(C, in_ch)], axis=0)                       # (5C, Cin)

    taps = []
    biases = [br[b][0][1] for b in range(4)] + [b_res]
    for b in range(1, 4):
        (wA, bA), (wB, bB), (wC, bC) = br[b][1], br[b][2], br[b][3]
        kb = wA.shape[3]
        taps += [wA[:, :, 0, t] for t in range(kb)]                # 1 x kb
        taps += [wB[:, :, t, 0] for t in range(kb)]                # kb x 1
        taps += [wC[:, :, kh, kw] for kh in range(3) for kw in range(3)]
        biases += [bA, bB, bC]
    w_taps = jnp.stack(taps, axis=0)                               # (57, C, C)

    w_cat, b_cat = params["conv_cat"]                              # (C, 4C, 3, 3)
    w_cat_taps = jnp.stack([w_cat[:, :, kh, kw]
                            for kh in range(3) for kw in range(3)], axis=0)  # (9, C, 4C)
    biases.append(b_cat)
    b_all = jnp.concatenate(biases, axis=0).reshape(-1, 1)         # (120, 1)

    return {"w_head": w_head, "w_taps": w_taps,
            "w_cat": w_cat_taps, "b_all": b_all}


@jax.jit
def rfb_forward(packed, x):
    """x: NCHW (like the PyTorch module). Returns NCHW."""
    N, Cin, H, W = x.shape
    C = packed["w_cat"].shape[1]
    out = _rfb_pallas_call(x.reshape(N, Cin, H * W), packed,
                           H=H, W=W, C=C, Cin=Cin, N=N)
    return out.reshape(N, C, H, W)


# ----------------------------------------------------------------------------
# Pure-JAX reference (numerical verification against the raw params)
# ----------------------------------------------------------------------------
def _ref_conv(x, w, b, padding, dilation=1):
    y = jax.lax.conv_general_dilated(
        x, w, window_strides=(1, 1),
        padding=[(padding[0], padding[0]), (padding[1], padding[1])],
        rhs_dilation=(dilation, dilation),
        dimension_numbers=("NCHW", "OIHW", "NCHW"))
    return y + b.reshape(1, -1, 1, 1)


def ref_forward(params, x):
    outs = []
    for layers, cfg in zip(params["branches"], BRANCH_CFGS):
        y = x
        for (w, b), (_, pad, dil) in zip(layers, cfg):
            y = _ref_conv(y, w, b, pad, dil)
        outs.append(y)
    x_cat = jnp.concatenate(outs, axis=1)
    w_cat, b_cat = params["conv_cat"]
    w_res, b_res = params["conv_res"]
    y = _ref_conv(x_cat, w_cat, b_cat, (1, 1)) + _ref_conv(x, w_res, b_res, (0, 0))
    return jnp.maximum(y, 0.0)


# ----------------------------------------------------------------------------
if __name__ == "__main__":
    key = jax.random.PRNGKey(0)
    k_x, k_p = jax.random.split(key)

    N, H, W = 2, 16, 16
    in_ch, out_ch = 4, 8

    x = jax.random.normal(k_x, (N, in_ch, H, W), jnp.float32)   # NCHW like PyTorch
    raw_params = init_rfb_params(k_p, in_ch, out_ch)
    packed_params = pack_rfb_params(raw_params, in_ch, out_ch)

    out = rfb_forward(packed_params, x)
    jax.block_until_ready(out)

    ref = ref_forward(raw_params, x)
    np.testing.assert_allclose(np.asarray(out), np.asarray(ref),
                               rtol=1e-3, atol=1e-3)

    print("KERNEL_OK")
</pallas_src>

<mosaic_0001>
module attributes {stable_mosaic.version = 11 : i64} {
  func.func @_rfb_kernel(%arg0: i32, %arg1: memref<1x4x256xf32, #tpu.memory_space<vmem>>, %arg2: memref<40x4xf32, #tpu.memory_space<vmem>>, %arg3: memref<57x8x8xf32, #tpu.memory_space<vmem>>, %arg4: memref<9x8x32xf32, #tpu.memory_space<vmem>>, %arg5: memref<120x1xf32, #tpu.memory_space<vmem>>, %arg6: memref<1x8x256xf32, #tpu.memory_space<vmem>>, %arg7: memref<32x512xf32, #tpu.memory_space<vmem>>) attributes {dimension_semantics = [#tpu.dimension_semantics<parallel>], iteration_bounds = array<i64: 2>, scalar_prefetch = 0 : i64, scratch_operands = 1 : i64, tpu.core_type = #tpu.core_type<tc>, window_params = [{transform_indices = @transform_0, window_bounds = array<i64: 1, 4, 256>}, {pipeline_mode = #tpu.pipeline_mode<synchronous>, transform_indices = @transform_1, window_bounds = array<i64: 40, 4>}, {pipeline_mode = #tpu.pipeline_mode<synchronous>, transform_indices = @transform_2, window_bounds = array<i64: 57, 8, 8>}, {pipeline_mode = #tpu.pipeline_mode<synchronous>, transform_indices = @transform_3, window_bounds = array<i64: 9, 8, 32>}, {pipeline_mode = #tpu.pipeline_mode<synchronous>, transform_indices = @transform_4, window_bounds = array<i64: 120, 1>}, {transform_indices = @transform_5, window_bounds = array<i64: 1, 8, 256>}]} {
    %cst = arith.constant 0.000000e+00 : f32
    %0 = vector.broadcast %cst : f32 to vector<32x128xf32>
    %c0 = arith.constant 0 : index
    %c0_0 = arith.constant 0 : index
    %1 = vector.load %arg7[%c0, %c0_0] : memref<32x512xf32, #tpu.memory_space<vmem>>, vector<32x128xf32>
    tpu.vector_store %arg7[%c0, %c0_0], %0 {strides = array<i32>} : memref<32x512xf32, #tpu.memory_space<vmem>>, vector<32x128xf32>,
    %cst_1 = arith.constant 0.000000e+00 : f32
    %2 = vector.broadcast %cst_1 : f32 to vector<32x128xf32>
    %c0_2 = arith.constant 0 : index
    %c384 = arith.constant 384 : index
    %3 = vector.load %arg7[%c0_2, %c384] : memref<32x512xf32, #tpu.memory_space<vmem>>, vector<32x128xf32>
    tpu.vector_store %arg7[%c0_2, %c384], %2 {strides = array<i32>} : memref<32x512xf32, #tpu.memory_space<vmem>>, vector<32x128xf32>,
    %4 = tpu.iota {dimensions = array<i32: 1>} : vector<1x256xi32>
    %c16_i32 = arith.constant 16 : i32
    %c0_i32 = arith.constant 0 : i32
    %5 = arith.cmpi eq, %c16_i32, %c0_i32 : i32
    %c1_i32 = arith.constant 1 : i32
    %6 = arith.select %5, %c1_i32, %c16_i32 : i32
    %7 = vector.broadcast %6 : i32 to vector<1x256xi32>
    %8 = arith.remsi %4, %7 : vector<1x256xi32>
    %c0_i32_3 = arith.constant 0 : i32
    %9 = vector.broadcast %c0_i32_3 : i32 to vector<1x256xi32>
    %10 = arith.cmpi ne, %8, %9 : vector<1x256xi32>
    %c0_i32_4 = arith.constant 0 : i32
    %11 = vector.broadcast %c0_i32_4 : i32 to vector<1x256xi32>
    %12 = arith.cmpi slt, %8, %11 : vector<1x256xi32>
    %c0_i32_5 = arith.constant 0 : i32
    %13 = arith.cmpi slt, %6, %c0_i32_5 : i32
    %14 = vector.broadcast %13 : i1 to vector<1x256xi1>
    %15 = vector.broadcast %14 : vector<1x256xi1> to vector<1x256xi1>
    %16 = arith.xori %12, %15 : vector<1x256xi1>
    %17 = arith.andi %16, %10 : vector<1x256xi1>
    %18 = vector.broadcast %6 : i32 to vector<1x256xi32>
    %19 = arith.addi %8, %18 : vector<1x256xi32>
    %20 = arith.select %17, %19, %8 : vector<1x256xi1>, vector<1x256xi32>
    %c0_6 = arith.constant 0 : index
    %c0_7 = arith.constant 0 : index
    %c0_8 = arith.constant 0 : index
    %21 = vector.load %arg1[%c0_6, %c0_7, %c0_8] : memref<1x4x256xf32, #tpu.memory_space<vmem>>, vector<1x4x256xf32>
    %22 = vector.shape_cast %21 : vector<1x4x256xf32> to vector<4x256xf32>
    %c0_9 = arith.constant 0 : index
    %c0_10 = arith.constant 0 : index
    %23 = vector.load %arg2[%c0_9, %c0_10] : memref<40x4xf32, #tpu.memory_space<vmem>>, vector<40x4xf32>
    %cst_11 = arith.constant dense<0.000000e+00> : vector<40x256xf32>
    %24 = tpu.matmul %23, %22, %cst_11 {dimension_numbers = #tpu.dot_dimension_numbers<[1], [0], [0], [1], [0, 0, 1, 1], [], []>} : vector<40x4xf32>, vector<4x256xf32>, vector<40x256xf32> -> vector<40x256xf32>
    %c0_12 = arith.constant 0 : index
    %c0_13 = arith.constant 0 : index
    %25 = vector.load %arg5[%c0_12, %c0_13] : memref<120x1xf32, #tpu.memory_space<vmem>>, vector<40x1xf32>
    %26 = vector.broadcast %25 : vector<40x1xf32> to vector<40x256xf32>
    %27 = arith.addf %24, %26 : vector<40x256xf32>
    %28 = vector.extract_strided_slice %27 {offsets = [0, 0], sizes = [8, 256], strides = [1, 1]} : vector<40x256xf32> to vector<8x256xf32>
    %29 = vector.extract_strided_slice %27 {offsets = [8, 0], sizes = [8, 256], strides = [1, 1]} : vector<40x256xf32> to vector<8x256xf32>
    %c0_14 = arith.constant 0 : index
    %c128 = arith.constant 128 : index
    %30 = vector.load %arg7[%c0_14, %c128] : memref<32x512xf32, #tpu.memory_space<vmem>>, vector<8x256xf32>
    tpu.vector_store %arg7[%c0_14, %c128], %29 {strides = array<i32>} : memref<32x512xf32, #tpu.memory_space<vmem>>, vector<8x256xf32>,
    %c0_15 = arith.constant 0 : index
    %c127 = arith.constant 127 : index
    %31 = vector.load %arg7[%c0_15, %c127] : memref<32x512xf32, #tpu.memory_space<vmem>>, vector<8x256xf32>
    %c1_i32_16 = arith.constant 1 : i32
    %32 = vector.broadcast %c1_i32_16 : i32 to vector<1x256xi32>
    %33 = arith.cmpi sge, %20, %32 : vector<1x256xi32>
    %cst_17 = arith.constant 1.000000e+00 : f32
    %cst_18 = arith.constant 0.000000e+00 : f32
    %34 = vector.broadcast %cst_17 : f32 to vector<1x256xf32>
    %35 = vector.broadcast %cst_18 : f32 to vector<1x256xf32>
    %36 = arith.select %33, %34, %35 : vector<1x256xi1>, vector<1x256xf32>
    %37 = vector.broadcast %36 : vector<1x256xf32> to vector<8x256xf32>
    %38 = arith.mulf %31, %37 : vector<8x256xf32>
    %c0_19 = arith.constant 0 : index
    %c0_20 = arith.constant 0 : index
    %c0_21 = arith.constant 0 : index
    %39 = vector.load %arg3[%c0_19, %c0_20, %c0_21] : memref<57x8x8xf32, #tpu.memory_space<vmem>>, vector<1x8x8xf32>
    %40 = vector.shape_cast %39 : vector<1x8x8xf32> to vector<8x8xf32>
    %cst_22 = arith.constant dense<0.000000e+00> : vector<8x256xf32>
    %41 = tpu.matmul %40, %38, %cst_22 {dimension_numbers = #tpu.dot_dimension_numbers<[1], [0], [0], [1], [0, 0, 1, 1], [], []>} : vector<8x8xf32>, vector<8x256xf32>, vector<8x256xf32> -> vector<8x256xf32>
    %c0_23 = arith.constant 0 : index
    %c128_24 = arith.constant 128 : index
    %42 = vector.load %arg7[%c0_23, %c128_24] : memref<32x512xf32, #tpu.memory_space<vmem>>, vector<8x256xf32>
    %c1 = arith.constant 1 : index
    %c0_25 = arith.constant 0 : index
    %c0_26 = arith.constant 0 : index
    %43 = vector.load %arg3[%c1, %c0_25, %c0_26] : memref<57x8x8xf32, #tpu.memory_space<vmem>>, vector<1x8x8xf32>
    %44 = vector.shape_cast %43 : vector<1x8x8xf32> to vector<8x8xf32>
    %cst_27 = arith.constant dense<0.000000e+00> : vector<8x256xf32>
    %45 = tpu.matmul %44, %42, %cst_27 {dimension_numbers = #tpu.dot_dimension_numbers<[1], [0], [0], [1], [0, 0, 1, 1], [], []>} : vector<8x8xf32>, vector<8x256xf32>, vector<8x256xf32> -> vector<8x256xf32>
    %46 = arith.addf %41, %45 : vector<8x256xf32>
    %c0_28 = arith.constant 0 : index
    %c129 = arith.constant 129 : index
    %47 = vector.load %arg7[%c0_28, %c129] : memref<32x512xf32, #tpu.memory_space<vmem>>, vector<8x256xf32>
    %c15_i32 = arith.constant 15 : i32
    %48 = vector.broadcast %c15_i32 : i32 to vector<1x256xi32>
    %49 = arith.cmpi slt, %20, %48 : vector<1x256xi32>
    %cst_29 = arith.constant 1.000000e+00 : f32
    %cst_30 = arith.constant 0.000000e+00 : f32
    %50 = vector.broadcast %cst_29 : f32 to vector<1x256xf32>
    %51 = vector.broadcast %cst_30 : f32 to vector<1x256xf32>
    %52 = arith.select %49, %50, %51 : vector<1x256xi1>, vector<1x256xf32>
    %53 = vector.broadcast %52 : vector<1x256xf32> to vector<8x256xf32>
    %54 = arith.mulf %47, %53 : vector<8x256xf32>
    %c2 = arith.constant 2 : index
    %c0_31 = arith.constant 0 : index
    %c0_32 = arith.constant 0 : index
    %55 = vector.load %arg3[%c2, %c0_31, %c0_32] : memref<57x8x8xf32, #tpu.memory_space<vmem>>, vector<1x8x8xf32>
    %56 = vector.shape_cast %55 : vector<1x8x8xf32> to vector<8x8xf32>
    %cst_33 = arith.constant dense<0.000000e+00> : vector<8x256xf32>
    %57 = tpu.matmul %56, %54, %cst_33 {dimension_numbers = #tpu.dot_dimension_numbers<[1], [0], [0], [1], [0, 0, 1, 1], [], []>} : vector<8x8xf32>, vector<8x256xf32>, vector<8x256xf32> -> vector<8x256xf32>
    %58 = arith.addf %46, %57 : vector<8x256xf32>
    %c40 = arith.constant 40 : index
    %c0_34 = arith.constant 0 : index
    %59 = vector.load %arg5[%c40, %c0_34] : memref<120x1xf32, #tpu.memory_space<vmem>>, vector<8x1xf32>
    %60 = vector.broadcast %59 : vector<8x1xf32> to vector<8x256xf32>
    %61 = arith.addf %58, %60 : vector<8x256xf32>
    %c0_35 = arith.constant 0 : index
    %c128_36 = arith.constant 128 : index
    %62 = vector.load %arg7[%c0_35, %c128_36] : memref<32x512xf32, #tpu.memory_space<vmem>>, vector<8x256xf32>
    tpu.vector_store %arg7[%c0_35, %c128_36], %61 {strides = array<i32>} : memref<32x512xf32, #tpu.memory_space<vmem>>, vector<8x256xf32>,
    %c0_37 = arith.constant 0 : index
    %c112 = arith.constant 112 : index
    %63 = vector.load %arg7[%c0_37, %c112] : memref<32x512xf32, #tpu.memory_space<vmem>>, vector<8x256xf32>
    %c3 = arith.constant 3 : index
    %c0_38 = arith.constant 0 : index
    %c0_39 = arith.constant 0 : index
    %64 = vector.load %arg3[%c3, %c0_38, %c0_39] : memref<57x8x8xf32, #tpu.memory_space<vmem>>, vector<1x8x8xf32>
    %65 = vector.shape_cast %64 : vector<1x8x8xf32> to vector<8x8xf32>
    %cst_40 = arith.constant dense<0.000000e+00> : vector<8x256xf32>
    %66 = tpu.matmul %65, %63, %cst_40 {dimension_numbers = #tpu.dot_dimension_numbers<[1], [0], [0], [1], [0, 0, 1, 1], [], []>} : vector<8x8xf32>, vector<8x256xf32>, vector<8x256xf32> -> vector<8x256xf32>
    %c0_41 = arith.constant 0 : index
    %c128_42 = arith.constant 128 : index
    %67 = vector.load %arg7[%c0_41, %c128_42] : memref<32x512xf32, #tpu.memory_space<vmem>>, vector<8x256xf32>
    %c4 = arith.constant 4 : index
    %c0_43 = arith.constant 0 : index
    %c0_44 = arith.constant 0 : index
    %68 = vector.load %arg3[%c4, %c0_43, %c0_44] : memref<57x8x8xf32, #tpu.memory_space<vmem>>, vector<1x8x8xf32>
    %69 = vector.shape_cast %68 : vector<1x8x8xf32> to vector<8x8xf32>
    %cst_45 = arith.constant dense<0.000000e+00> : vector<8x256xf32>
    %70 = tpu.matmul %69, %67, %cst_45 {dimension_numbers = #tpu.dot_dimension_numbers<[1], [0], [0], [1], [0, 0, 1, 1], [], []>} : vector<8x8xf32>, vector<8x256xf32>, vector<8x256xf32> -> vector<8x256xf32>
    %71 = arith.addf %66, %70 : vector<8x256xf32>
    %c0_46 = arith.constant 0 : index
    %c144 = arith.constant 144 : index
    %72 = vector.load %arg7[%c0_46, %c144] : memref<32x512xf32, #tpu.memory_space<vmem>>, vector<8x256xf32>
    %c5 = arith.constant 5 : index
    %c0_47 = arith.constant 0 : index
    %c0_48 = arith.constant 0 : index
    %73 = vector.load %arg3[%c5, %c0_47, %c0_48] : memref<57x8x8xf32, #tpu.memory_space<vmem>>, vector<1x8x8xf32>
    %74 = vector.shape_cast %73 : vector<1x8x8xf32> to vector<8x8xf32>
    %cst_49 = arith.constant dense<0.000000e+00> : vector<8x256xf32>
    %75 = tpu.matmul %74, %72, %cst_49 {dimension_numbers = #tpu.dot_dimension_numbers<[1], [0], [0], [1], [0, 0, 1, 1], [], []>} : vector<8x8xf32>, vector<8x256xf32>, vector<8x256xf32> -> vector<8x256xf32>
    %76 = arith.addf %71, %75 : vector<8x256xf32>
    %c48 = arith.constant 48 : index
    %c0_50 = arith.constant 0 : index
    %77 = vector.load %arg5[%c48, %c0_50] : memref<120x1xf32, #tpu.memory_space<vmem>>, vector<8x1xf32>
    %78 = vector.broadcast %77 : vector<8x1xf32> to vector<8x256xf32>
    %79 = arith.addf %76, %78 : vector<8x256xf32>
    %c0_51 = arith.constant 0 : index
    %c128_52 = arith.constant 128 : index
    %80 = vector.load %arg7[%c0_51, %c128_52] : memref<32x512xf32, #tpu.memory_space<vmem>>, vector<8x256xf32>
    tpu.vector_store %arg7[%c0_51, %c128_52], %79 {strides = array<i32>} : memref<32x512xf32, #tpu.memory_space<vmem>>, vector<8x256xf32>,
    %c0_53 = arith.constant 0 : index
    %c77 = arith.constant 77 : index
    %81 = vector.load %arg7[%c0_53, %c77] : memref<32x512xf32, #tpu.memory_space<vmem>>, vector<8x256xf32>
    %c3_i32 = arith.constant 3 : i32
    %82 = vector.broadcast %c3_i32 : i32 to vector<1x256xi32>
    %83 = arith.cmpi sge, %20, %82 : vector<1x256xi32>
    %cst_54 = arith.constant 1.000000e+00 : f32
    %cst_55 = arith.constant 0.000000e+00 : f32
    %84 = vector.broadcast %cst_54 : f32 to vector<1x256xf32>
    %85 = vector.broadcast %cst_55 : f32 to vector<1x256xf32>
    %86 = arith.select %83, %84, %85 : vector<1x256xi1>, vector<1x256xf32>
    %87 = vector.broadcast %86 : vector<1x256xf32> to vector<8x256xf32>
    %88 = arith.mulf %81, %87 : vector<8x256xf32>
    %c6 = arith.constant 6 : index
    %c0_56 = arith.constant 0 : index
    %c0_57 = arith.constant 0 : index
    %89 = vector.load %arg3[%c6, %c0_56, %c0_57] : memref<57x8x8xf32, #tpu.memory_space<vmem>>, vector<1x8x8xf32>
    %90 = vector.shape_cast %89 : vector<1x8x8xf32> to vector<8x8xf32>
    %cst_58 = arith.constant dense<0.000000e+00> : vector<8x256xf32>
    %91 = tpu.matmul %90, %88, %cst_58 {dimension_numbers = #tpu.dot_dimension_numbers<[1], [0], [0], [1], [0, 0, 1, 1], [], []>} : vector<8x8xf32>, vector<8x256xf32>, vector<8x256xf32> -> vector<8x256xf32>
    %c0_59 = arith.constant 0 : index
    %c80 = arith.constant 80 : index
    %92 = vector.load %arg7[%c0_59, %c80] : memref<32x512xf32, #tpu.memory_space<vmem>>, vector<8x256xf32>
    %c7 = arith.constant 7 : index
    %c0_60 = arith.constant 0 : index
    %c0_61 = arith.constant 0 : index
    %93 = vector.load %arg3[%c7, %c0_60, %c0_61] : memref<57x8x8xf32, #tpu.memory_space<vmem>>, vector<1x8x8xf32>
    %94 = vector.shape_cast %93 : vector<1x8x8xf32> to vector<8x8xf32>
    %cst_62 = arith.constant dense<0.000000e+00> : vector<8x256xf32>
    %95 = tpu.matmul %94, %92, %cst_62 {dimension_numbers = #tpu.dot_dimension_numbers<[1], [0], [0], [1], [0, 0, 1, 1], [], []>} : vector<8x8xf32>, vector<8x256xf32>, vector<8x256xf32> -> vector<8x256xf32>
    %96 = arith.addf %91, %95 : vector<8x256xf32>
    %c0_63 = arith.constant 0 : index
    %c83 = arith.constant 83 : index
    %97 = vector.load %arg7[%c0_63, %c83] : memref<32x512xf32, #tpu.memory_space<vmem>>, vector<8x256xf32>
    %c13_i32 = arith.constant 13 : i32
    %98 = vector.broadcast %c13_i32 : i32 to vector<1x256xi32>
    %99 = arith.cmpi slt, %20, %98 : vector<1x256xi32>
    %cst_64 = arith.constant 1.000000e+00 : f32
    %cst_65 = arith.constant 0.000000e+00 : f32
    %100 = vector.broadcast %cst_64 : f32 to vector<1x256xf32>
    %101 = vector.broadcast %cst_65 : f32 to vector<1x256xf32>
    %102 = arith.select %99, %100, %101 : vector<1x256xi1>, vector<1x256xf32>
    %103 = vector.broadcast %102 : vector<1x256xf32> to vector<8x256xf32>
    %104 = arith.mulf %97, %103 : vector<8x256xf32>
    %c8 = arith.constant 8 : index
    %c0_66 = arith.constant 0 : index
    %c0_67 = arith.constant 0 : index
    %105 = vector.load %arg3[%c8, %c0_66, %c0_67] : memref<57x8x8xf32, #tpu.memory_space<vmem>>, vector<1x8x8xf32>
    %106 = vector.shape_cast %105 : vector<1x8x8xf32> to vector<8x8xf32>
    %cst_68 = arith.constant dense<0.000000e+00> : vector<8x256xf32>
    %107 = tpu.matmul %106, %104, %cst_68 {dimension_numbers = #tpu.dot_dimension_numbers<[1], [0], [0], [1], [0, 0, 1, 1], [], []>} : vector<8x8xf32>, vector<8x256xf32>, vector<8x256xf32> -> vector<8x256xf32>
    %108 = arith.addf %96, %107 : vector<8x256xf32>
    %c0_69 = arith.constant 0 : index
    %c125 = arith.constant 125 : index
    %109 = vector.load %arg7[%c0_69, %c125] : memref<32x512xf32, #tpu.memory_space<vmem>>, vector<8x256xf32>
    %110 = vector.broadcast %86 : vector<1x256xf32> to vector<8x256xf32>
    %111 = arith.mulf %109, %110 : vector<8x256xf32>
    %c9 = arith.constant 9 : index
    %c0_70 = arith.constant 0 : index
    %c0_71 = arith.constant 0 : index
    %112 = vector.load %arg3[%c9, %c0_70, %c0_71] : memref<57x8x8xf32, #tpu.memory_space<vmem>>, vector<1x8x8xf32>
    %113 = vector.shape_cast %112 : vector<1x8x8xf32> to vector<8x8xf32>
    %cst_72 = arith.constant dense<0.000000e+00> : vector<8x256xf32>
    %114 = tpu.matmul %113, %111, %cst_72 {dimension_numbers = #tpu.dot_dimension_numbers<[1], [0], [0], [1], [0, 0, 1, 1], [], []>} : vector<8x8xf32>, vector<8x256xf32>, vector<8x256xf32> -> vector<8x256xf32>
    %115 = arith.addf %108, %114 : vector<8x256xf32>
    %c0_73 = arith.constant 0 : index
    %c128_74 = arith.constant 128 : index
    %116 = vector.load %arg7[%c0_73, %c128_74] : memref<32x512xf32, #tpu.memory_space<vmem>>, vector<8x256xf32>
    %c10 = arith.constant 10 : index
    %c0_75 = arith.constant 0 : index
    %c0_76 = arith.constant 0 : index
    %117 = vector.load %arg3[%c10, %c0_75, %c0_76] : memref<57x8x8xf32, #tpu.memory_space<vmem>>, vector<1x8x8xf32>
    %118 = vector.shape_cast %117 : vector<1x8x8xf32> to vector<8x8xf32>
    %cst_77 = arith.constant dense<0.000000e+00> : vector<8x256xf32>
    %119 = tpu.matmul %118, %116, %cst_77 {dimension_numbers = #tpu.dot_dimension_numbers<[1], [0], [0], [1], [0, 0, 1, 1], [], []>} : vector<8x8xf32>, vector<8x256xf32>, vector<8x256xf32> -> vector<8x256xf32>
    %120 = arith.addf %115, %119 : vector<8x256xf32>
    %c0_78 = arith.constant 0 : index
    %c131 = arith.constant 131 : index
    %121 = vector.load %arg7[%c0_78, %c131] : memref<32x512xf32, #tpu.memory_space<vmem>>, vector<8x256xf32>
    %122 = vector.broadcast %102 : vector<1x256xf32> to vector<8x256xf32>
    %123 = arith.mulf %121, %122 : vector<8x256xf32>
    %c11 = arith.constant 11 : index
    %c0_79 = arith.constant 0 : index
    %c0_80 = arith.constant 0 : index
    %124 = vector.load %arg3[%c11, %c0_79, %c0_80] : memref<57x8x8xf32, #tpu.memory_space<vmem>>, vector<1x8x8xf32>
    %125 = vector.shape_cast %124 : vector<1x8x8xf32> to vector<8x8xf32>
    %cst_81 = arith.constant dense<0.000000e+00> : vector<8x256xf32>
    %126 = tpu.matmul %125, %123, %cst_81 {dimension_numbers = #tpu.dot_dimension_numbers<[1], [0], [0], [1], [0, 0, 1, 1], [], []>} : vector<8x8xf32>, vector<8x256xf32>, vector<8x256xf32> -> vector<8x256xf32>
    %127 = arith.addf %120, %126 : vector<8x256xf32>
    %c0_82 = arith.constant 0 : index
    %c173 = arith.constant 173 : index
    %128 = vector.load %arg7[%c0_82, %c173] : memref<32x512xf32, #tpu.memory_space<vmem>>, vector<8x256xf32>
    %129 = vector.broadcast %86 : vector<1x256xf32> to vector<8x256xf32>
    %130 = arith.mulf %128, %129 : vector<8x256xf32>
    %c12 = arith.constant 12 : index
    %c0_83 = arith.constant 0 : index
    %c0_84 = arith.constant 0 : index
    %131 = vector.load %arg3[%c12, %c0_83, %c0_84] : memref<57x8x8xf32, #tpu.memory_space<vmem>>, vector<1x8x8xf32>
    %132 = vector.shape_cast %131 : vector<1x8x8xf32> to vector<8x8xf32>
    %cst_85 = arith.constant dense<0.000000e+00> : vector<8x256xf32>
    %133 = tpu.matmul %132, %130, %cst_85 {dimension_numbers = #tpu.dot_dimension_numbers<[1], [0], [0], [1], [0, 0, 1, 1], [], []>} : vector<8x8xf32>, vector<8x256xf32>, vector<8x256xf32> -> vector<8x256xf32>
    %134 = arith.addf %127, %133 : vector<8x256xf32>
    %c0_86 = arith.constant 0 : index
    %c176 = arith.constant 176 : index
    %135 = vector.load %arg7[%c0_86, %c176] : memref<32x512xf32, #tpu.memory_space<vmem>>, vector<8x256xf32>
    %c13 = arith.constant 13 : index
    %c0_87 = arith.constant 0 : index
    %c0_88 = arith.constant 0 : index
    %136 = vector.load %arg3[%c13, %c0_87, %c0_88] : memref<57x8x8xf32, #tpu.memory_space<vmem>>, vector<1x8x8xf32>
    %137 = vector.shape_cast %136 : vector<1x8x8xf32> to vector<8x8xf32>
    %cst_89 = arith.constant dense<0.000000e+00> : vector<8x256xf32>
    %138 = tpu.matmul %137, %135, %cst_89 {dimension_numbers = #tpu.dot_dimension_numbers<[1], [0], [0], [1], [0, 0, 1, 1], [], []>} : vector<8x8xf32>, vector<8x256xf32>, vector<8x256xf32> -> vector<8x256xf32>
    %139 = arith.addf %134, %138 : vector<8x256xf32>
    %c0_90 = arith.constant 0 : index
    %c179 = arith.constant 179 : index
    %140 = vector.load %arg7[%c0_90, %c179] : memref<32x512xf32, #tpu.memory_space<vmem>>, vector<8x256xf32>
    %141 = vector.broadcast %102 : vector<1x256xf32> to vector<8x256xf32>
    %142 = arith.mulf %140, %141 : vector<8x256xf32>
    %c14 = arith.constant 14 : index
    %c0_91 = arith.constant 0 : index
    %c0_92 = arith.constant 0 : index
    %143 = vector.load %arg3[%c14, %c0_91, %c0_92] : memref<57x8x8xf32, #tpu.memory_space<vmem>>, vector<1x8x8xf32>
    %144 = vector.shape_cast %143 : vector<1x8x8xf32> to vector<8x8xf32>
    %cst_93 = arith.constant dense<0.000000e+00> : vector<8x256xf32>
    %145 = tpu.matmul %144, %142, %cst_93 {dimension_numbers = #tpu.dot_dimension_numbers<[1], [0], [0], [1], [0, 0, 1, 1], [], []>} : vector<8x8xf32>, vector<8x256xf32>, vector<8x256xf32> -> vector<8x256xf32>
    %146 = arith.addf %139, %145 : vector<8x256xf32>
    %c56 = arith.constant 56 : index
    %c0_94 = arith.constant 0 : index
    %147 = vector.load %arg5[%c56, %c0_94] : memref<120x1xf32, #tpu.memory_space<vmem>>, vector<8x1xf32>
    %148 = vector.broadcast %147 : vector<8x1xf32> to vector<8x256xf32>
    %149 = arith.addf %146, %148 : vector<8x256xf32>
    %150 = vector.extract_strided_slice %27 {offsets = [16, 0], sizes = [8, 256], strides = [1, 1]} : vector<40x256xf32> to vector<8x256xf32>
    %c0_95 = arith.constant 0 : index
    %c128_96 = arith.constant 128 : index
    %151 = vector.load %arg7[%c0_95, %c128_96] : memref<32x512xf32, #tpu.memory_space<vmem>>, vector<8x256xf32>
    tpu.vector_store %arg7[%c0_95, %c128_96], %150 {strides = array<i32>} : memref<32x512xf32, #tpu.memory_space<vmem>>, vector<8x256xf32>,
    %c0_97 = arith.constant 0 : index
    %c126 = arith.constant 126 : index
    %152 = vector.load %arg7[%c0_97, %c126] : memref<32x512xf32, #tpu.memory_space<vmem>>, vector<8x256xf32>
    %c2_i32 = arith.constant 2 : i32
    %153 = vector.broadcast %c2_i32 : i32 to vector<1x256xi32>
    %154 = arith.cmpi sge, %20, %153 : vector<1x256xi32>
    %cst_98 = arith.constant 1.000000e+00 : f32
    %cst_99 = arith.constant 0.000000e+00 : f32
    %155 = vector.broadcast %cst_98 : f32 to vector<1x256xf32>
    %156 = vector.broadcast %cst_99 : f32 to vector<1x256xf32>
    %157 = arith.select %154, %155, %156 : vector<1x256xi1>, vector<1x256xf32>
    %158 = vector.broadcast %157 : vector<1x256xf32> to vector<8x256xf32>
    %159 = arith.mulf %152, %158 : vector<8x256xf32>
    %c15 = arith.constant 15 : index
    %c0_100 = arith.constant 0 : index
    %c0_101 = arith.constant 0 : index
    %160 = vector.load %arg3[%c15, %c0_100, %c0_101] : memref<57x8x8xf32, #tpu.memory_space<vmem>>, vector<1x8x8xf32>
    %161 = vector.shape_cast %160 : vector<1x8x8xf32> to vector<8x8xf32>
    %cst_102 = arith.constant dense<0.000000e+00> : vector<8x256xf32>
    %162 = tpu.matmul %161, %159, %cst_102 {dimension_numbers = #tpu.dot_dimension_numbers<[1], [0], [0], [1], [0, 0, 1, 1], [], []>} : vector<8x8xf32>, vector<8x256xf32>, vector<8x256xf32> -> vector<8x256xf32>
    %c0_103 = arith.constant 0 : index
    %c127_104 = arith.constant 127 : index
    %163 = vector.load %arg7[%c0_103, %c127_104] : memref<32x512xf32, #tpu.memory_space<vmem>>, vector<8x256xf32>
    %164 = vector.broadcast %36 : vector<1x256xf32> to vector<8x256xf32>
    %165 = arith.mulf %163, %164 : vector<8x256xf32>
    %c16 = arith.constant 16 : index
    %c0_105 = arith.constant 0 : index
    %c0_106 = arith.constant 0 : index
    %166 = vector.load %arg3[%c16, %c0_105, %c0_106] : memref<57x8x8xf32, #tpu.memory_space<vmem>>, vector<1x8x8xf32>
    %167 = vector.shape_cast %166 : vector<1x8x8xf32> to vector<8x8xf32>
    %cst_107 = arith.constant dense<0.000000e+00> : vector<8x256xf32>
    %168 = tpu.matmul %167, %165, %cst_107 {dimension_numbers = #tpu.dot_dimension_numbers<[1], [0], [0], [1], [0, 0, 1, 1], [], []>} : vector<8x8xf32>, vector<8x256xf32>, vector<8x256xf32> -> vector<8x256xf32>
    %169 = arith.addf %162, %168 : vector<8x256xf32>
    %c0_108 = arith.constant 0 : index
    %c128_109 = arith.constant 128 : index
    %170 = vector.load %arg7[%c0_108, %c128_109] : memref<32x512xf32, #tpu.memory_space<vmem>>, vector<8x256xf32>
    %c17 = arith.constant 17 : index
    %c0_110 = arith.constant 0 : index
    %c0_111 = arith.constant 0 : index
    %171 = vector.load %arg3[%c17, %c0_110, %c0_111] : memref<57x8x8xf32, #tpu.memory_space<vmem>>, vector<1x8x8xf32>
    %172 = vector.shape_cast %171 : vector<1x8x8xf32> to vector<8x8xf32>
    %cst_112 = arith.constant dense<0.000000e+00> : vector<8x256xf32>
    %173 = tpu.matmul %172, %170, %cst_112 {dimension_numbers = #tpu.dot_dimension_numbers<[1], [0], [0], [1], [0, 0, 1, 1], [], []>} : vector<8x8xf32>, vector<8x256xf32>, vector<8x256xf32> -> vector<8x256xf32>
    %174 = arith.addf %169, %173 : vector<8x256xf32>
    %c0_113 = arith.constant 0 : index
    %c129_114 = arith.constant 129 : index
    %175 = vector.load %arg7[%c0_113, %c129_114] : memref<32x512xf32, #tpu.memory_space<vmem>>, vector<8x256xf32>
    %176 = vector.broadcast %52 : vector<1x256xf32> to vector<8x256xf32>
    %177 = arith.mulf %175, %176 : vector<8x256xf32>
    %c18 = arith.constant 18 : index
    %c0_115 = arith.constant 0 : index
    %c0_116 = arith.constant 0 : index
    %178 = vector.load %arg3[%c18, %c0_115, %c0_116] : memref<57x8x8xf32, #tpu.memory_space<vmem>>, vector<1x8x8xf32>
    %179 = vector.shape_cast %178 : vector<1x8x8xf32> to vector<8x8xf32>
    %cst_117 = arith.constant dense<0.000000e+00> : vector<8x256xf32>
    %180 = tpu.matmul %179, %177, %cst_117 {dimension_numbers = #tpu.dot_dimension_numbers<[1], [0], [0], [1], [0, 0, 1, 1], [], []>} : vector<8x8xf32>, vector<8x256xf32>, vector<8x256xf32> -> vector<8x256xf32>
    %181 = arith.addf %174, %180 : vector<8x256xf32>
    %c0_118 = arith.constant 0 : index
    %c130 = arith.constant 130 : index
    %182 = vector.load %arg7[%c0_118, %c130] : memref<32x512xf32, #tpu.memory_space<vmem>>, vector<8x256xf32>
    %c14_i32 = arith.constant 14 : i32
    %183 = vector.broadcast %c14_i32 : i32 to vector<1x256xi32>
    %184 = arith.cmpi slt, %20, %183 : vector<1x256xi32>
    %cst_119 = arith.constant 1.000000e+00 : f32
    %cst_120 = arith.constant 0.000000e+00 : f32
    %185 = vector.broadcast %cst_119 : f32 to vector<1x256xf32>
    %186 = vector.broadcast %cst_120 : f32 to vector<1x256xf32>
    %187 = arith.select %184, %185, %186 : vector<1x256xi1>, vector<1x256xf32>
    %188 = vector.broadcast %187 : vector<1x256xf32> to vector<8x256xf32>
    %189 = arith.mulf %182, %188 : vector<8x256xf32>
    %c19 = arith.constant 19 : index
    %c0_121 = arith.constant 0 : index
    %c0_122 = arith.constant 0 : index
    %190 = vector.load %arg3[%c19, %c0_121, %c0_122] : memref<57x8x8xf32, #tpu.memory_space<vmem>>, vector<1x8x8xf32>
    %191 = vector.shape_cast %190 : vector<1x8x8xf32> to vector<8x8xf32>
    %cst_123 = arith.constant dense<0.000000e+00> : vector<8x256xf32>
    %192 = tpu.matmul %191, %189, %cst_123 {dimension_numbers = #tpu.dot_dimension_numbers<[1], [0], [0], [1], [0, 0, 1, 1], [], []>} : vector<8x8xf32>, vector<8x256xf32>, vector<8x256xf32> -> vector<8x256xf32>
    %193 = arith.addf %181, %192 : vector<8x256xf32>
    %c64 = arith.constant 64 : index
    %c0_124 = arith.constant 0 : index
    %194 = vector.load %arg5[%c64, %c0_124] : memref<120x1xf32, #tpu.memory_space<vmem>>, vector<8x1xf32>
    %195 = vector.broadcast %194 : vector<8x1xf32> to vector<8x256xf32>
    %196 = arith.addf %193, %195 : vector<8x256xf32>
    %c0_125 = arith.constant 0 : index
    %c128_126 = arith.constant 128 : index
    %197 = vector.load %arg7[%c0_125, %c128_126] : memref<32x512xf32, #tpu.memory_space<vmem>>, vector<8x256xf32>
    tpu.vector_store %arg7[%c0_125, %c128_126], %196 {strides = array<i32>} : memref<32x512xf32, #tpu.memory_space<vmem>>, vector<8x256xf32>,
    %c0_127 = arith.constant 0 : index
    %c96 = arith.constant 96 : index
    %198 = vector.load %arg7[%c0_127, %c96] : memref<32x512xf32, #tpu.memory_space<vmem>>, vector<8x256xf32>
    %c20 = arith.constant 20 : index
    %c0_128 = arith.constant 0 : index
    %c0_129 = arith.constant 0 : index
    %199 = vector.load %arg3[%c20, %c0_128, %c0_129] : memref<57x8x8xf32, #tpu.memory_space<vmem>>, vector<1x8x8xf32>
    %200 = vector.shape_cast %199 : vector<1x8x8xf32> to vector<8x8xf32>
    %cst_130 = arith.constant dense<0.000000e+00> : vector<8x256xf32>
    %201 = tpu.matmul %200, %198, %cst_130 {dimension_numbers = #tpu.dot_dimension_numbers<[1], [0], [0], [1], [0, 0, 1, 1], [], []>} : vector<8x8xf32>, vector<8x256xf32>, vector<8x256xf32> -> vector<8x256xf32>
    %c0_131 = arith.constant 0 : index
    %c112_132 = arith.constant 112 : index
    %202 = vector.load %arg7[%c0_131, %c112_132] : memref<32x512xf32, #tpu.memory_space<vmem>>, vector<8x256xf32>
    %c21 = arith.constant 21 : index
    %c0_133 = arith.constant 0 : index
    %c0_134 = arith.constant 0 : index
    %203 = vector.load %arg3[%c21, %c0_133, %c0_134] : memref<57x8x8xf32, #tpu.memory_space<vmem>>, vector<1x8x8xf32>
    %204 = vector.shape_cast %203 : vector<1x8x8xf32> to vector<8x8xf32>
    %cst_135 = arith.constant dense<0.000000e+00> : vector<8x256xf32>
    %205 = tpu.matmul %204, %202, %cst_135 {dimension_numbers = #tpu.dot_dimension_numbers<[1], [0], [0], [1], [0, 0, 1, 1], [], []>} : vector<8x8xf32>, vector<8x256xf32>, vector<8x256xf32> -> vector<8x256xf32>
    %206 = arith.addf %201, %205 : vector<8x256xf32>
    %c0_136 = arith.constant 0 : index
    %c128_137 = arith.constant 128 : index
    %207 = vector.load %arg7[%c0_136, %c128_137] : memref<32x512xf32, #tpu.memory_space<vmem>>, vector<8x256xf32>
    %c22 = arith.constant 22 : index
    %c0_138 = arith.constant 0 : index
    %c0_139 = arith.constant 0 : index
    %208 = vector.load %arg3[%c22, %c0_138, %c0_139] : memref<57x8x8xf32, #tpu.memory_space<vmem>>, vector<1x8x8xf32>
    %209 = vector.shape_cast %208 : vector<1x8x8xf32> to vector<8x8xf32>
    %cst_140 = arith.constant dense<0.000000e+00> : vector<8x256xf32>
    %210 = tpu.matmul %209, %207, %cst_140 {dimension_numbers = #tpu.dot_dimension_numbers<[1], [0], [0], [1], [0, 0, 1, 1], [], []>} : vector<8x8xf32>, vector<8x256xf32>, vector<8x256xf32> -> vector<8x256xf32>
    %211 = arith.addf %206, %210 : vector<8x256xf32>
    %c0_141 = arith.constant 0 : index
    %c144_142 = arith.constant 144 : index
    %212 = vector.load %arg7[%c0_141, %c144_142] : memref<32x512xf32, #tpu.memory_space<vmem>>, vector<8x256xf32>
    %c23 = arith.constant 23 : index
    %c0_143 = arith.constant 0 : index
    %c0_144 = arith.constant 0 : index
    %213 = vector.load %arg3[%c23, %c0_143, %c0_144] : memref<57x8x8xf32, #tpu.memory_space<vmem>>, vector<1x8x8xf32>
    %214 = vector.shape_cast %213 : vector<1x8x8xf32> to vector<8x8xf32>
    %cst_145 = arith.constant dense<0.000000e+00> : vector<8x256xf32>
    %215 = tpu.matmul %214, %212, %cst_145 {dimension_numbers = #tpu.dot_dimension_numbers<[1], [0], [0], [1], [0, 0, 1, 1], [], []>} : vector<8x8xf32>, vector<8x256xf32>, vector<8x256xf32> -> vector<8x256xf32>
    %216 = arith.addf %211, %215 : vector<8x256xf32>
    %c0_146 = arith.constant 0 : index
    %c160 = arith.constant 160 : index
    %217 = vector.load %arg7[%c0_146, %c160] : memref<32x512xf32, #tpu.memory_space<vmem>>, vector<8x256xf32>
    %c24 = arith.constant 24 : index
    %c0_147 = arith.constant 0 : index
    %c0_148 = arith.constant 0 : index
    %218 = vector.load %arg3[%c24, %c0_147, %c0_148] : memref<57x8x8xf32, #tpu.memory_space<vmem>>, vector<1x8x8xf32>
    %219 = vector.shape_cast %218 : vector<1x8x8xf32> to vector<8x8xf32>
    %cst_149 = arith.constant dense<0.000000e+00> : vector<8x256xf32>
    %220 = tpu.matmul %219, %217, %cst_149 {dimension_numbers = #tpu.dot_dimension_numbers<[1], [0], [0], [1], [0, 0, 1, 1], [], []>} : vector<8x8xf32>, vector<8x256xf32>, vector<8x256xf32> -> vector<8x256xf32>
    %221 = arith.addf %216, %220 : vector<8x256xf32>
    %c72 = arith.constant 72 : index
    %c0_150 = arith.constant 0 : index
    %222 = vector.load %arg5[%c72, %c0_150] : memref<120x1xf32, #tpu.memory_space<vmem>>, vector<8x1xf32>
    %223 = vector.broadcast %222 : vector<8x1xf32> to vector<8x256xf32>
    %224 = arith.addf %221, %223 : vector<8x256xf32>
    %c0_151 = arith.constant 0 : index
    %c128_152 = arith.constant 128 : index
    %225 = vector.load %arg7[%c0_151, %c128_152] : memref<32x512xf32, #tpu.memory_space<vmem>>, vector<8x256xf32>
    tpu.vector_store %arg7[%c0_151, %c128_152], %224 {strides = array<i32>} : memref<32x512xf32, #tpu.memory_space<vmem>>, vector<8x256xf32>,
    %c0_153 = arith.constant 0 : index
    %c43 = arith.constant 43 : index
    %226 = vector.load %arg7[%c0_153, %c43] : memref<32x512xf32, #tpu.memory_space<vmem>>, vector<8x256xf32>
    %c5_i32 = arith.constant 5 : i32
    %227 = vector.broadcast %c5_i32 : i32 to vector<1x256xi32>
    %228 = arith.cmpi sge, %20, %227 : vector<1x256xi32>
    %cst_154 = arith.constant 1.000000e+00 : f32
    %cst_155 = arith.constant 0.000000e+00 : f32
    %229 = vector.broadcast %cst_154 : f32 to vector<1x256xf32>
    %230 = vector.broadcast %cst_155 : f32 to vector<1x256xf32>
    %231 = arith.select %228, %229, %230 : vector<1x256xi1>, vector<1x256xf32>
    %232 = vector.broadcast %231 : vector<1x256xf32> to vector<8x256xf32>
    %233 = arith.mulf %226, %232 : vector<8x256xf32>
    %c25 = arith.constant 25 : index
    %c0_156 = arith.constant 0 : index
    %c0_157 = arith.constant 0 : index
    %234 = vector.load %arg3[%c25, %c0_156, %c0_157] : memref<57x8x8xf32, #tpu.memory_space<vmem>>, vector<1x8x8xf32>
    %235 = vector.shape_cast %234 : vector<1x8x8xf32> to vector<8x8xf32>
    %cst_158 = arith.constant dense<0.000000e+00> : vector<8x256xf32>
    %236 = tpu.matmul %235, %233, %cst_158 {dimension_numbers = #tpu.dot_dimension_numbers<[1], [0], [0], [1], [0, 0, 1, 1], [], []>} : vector<8x8xf32>, vector<8x256xf32>, vector<8x256xf32> -> vector<8x256xf32>
    %c0_159 = arith.constant 0 : index
    %c48_160 = arith.constant 48 : index
    %237 = vector.load %arg7[%c0_159, %c48_160] : memref<32x512xf32, #tpu.memory_space<vmem>>, vector<8x256xf32>
    %c26 = arith.constant 26 : index
    %c0_161 = arith.constant 0 : index
    %c0_162 = arith.constant 0 : index
    %238 = vector.load %arg3[%c26, %c0_161, %c0_162] : memref<57x8x8xf32, #tpu.memory_space<vmem>>, vector<1x8x8xf32>
    %239 = vector.shape_cast %238 : vector<1x8x8xf32> to vector<8x8xf32>
    %cst_163 = arith.constant dense<0.000000e+00> : vector<8x256xf32>
    %240 = tpu.matmul %239, %237, %cst_163 {dimension_numbers = #tpu.dot_dimension_numbers<[1], [0], [0], [1], [0, 0, 1, 1], [], []>} : vector<8x8xf32>, vector<8x256xf32>, vector<8x256xf32> -> vector<8x256xf32>
    %241 = arith.addf %236, %240 : vector<8x256xf32>
    %c0_164 = arith.constant 0 : index
    %c53 = arith.constant 53 : index
    %242 = vector.load %arg7[%c0_164, %c53] : memref<32x512xf32, #tpu.memory_space<vmem>>, vector<8x256xf32>
    %c11_i32 = arith.constant 11 : i32
    %243 = vector.broadcast %c11_i32 : i32 to vector<1x256xi32>
    %244 = arith.cmpi slt, %20, %243 : vector<1x256xi32>
    %cst_165 = arith.constant 1.000000e+00 : f32
    %cst_166 = arith.constant 0.000000e+00 : f32
    %245 = vector.broadcast %cst_165 : f32 to vector<1x256xf32>
    %246 = vector.broadcast %cst_166 : f32 to vector<1x256xf32>
    %247 = arith.select %244, %245, %246 : vector<1x256xi1>, vector<1x256xf32>
    %248 = vector.broadcast %247 : vector<1x256xf32> to vector<8x256xf32>
    %249 = arith.mulf %242, %248 : vector<8x256xf32>
    %c27 = arith.constant 27 : index
    %c0_167 = arith.constant 0 : index
    %c0_168 = arith.constant 0 : index
    %250 = vector.load %arg3[%c27, %c0_167, %c0_168] : memref<57x8x8xf32, #tpu.memory_space<vmem>>, vector<1x8x8xf32>
    %251 = vector.shape_cast %250 : vector<1x8x8xf32> to vector<8x8xf32>
    %cst_169 = arith.constant dense<0.000000e+00> : vector<8x256xf32>
    %252 = tpu.matmul %251, %249, %cst_169 {dimension_numbers = #tpu.dot_dimension_numbers<[1], [0], [0], [1], [0, 0, 1, 1], [], []>} : vector<8x8xf32>, vector<8x256xf32>, vector<8x256xf32> -> vector<8x256xf32>
    %253 = arith.addf %241, %252 : vector<8x256xf32>
    %c0_170 = arith.constant 0 : index
    %c123 = arith.constant 123 : index
    %254 = vector.load %arg7[%c0_170, %c123] : memref<32x512xf32, #tpu.memory_space<vmem>>, vector<8x256xf32>
    %255 = vector.broadcast %231 : vector<1x256xf32> to vector<8x256xf32>
    %256 = arith.mulf %254, %255 : vector<8x256xf32>
    %c28 = arith.constant 28 : index
    %c0_171 = arith.constant 0 : index
    %c0_172 = arith.constant 0 : index
    %257 = vector.load %arg3[%c28, %c0_171, %c0_172] : memref<57x8x8xf32, #tpu.memory_space<vmem>>, vector<1x8x8xf32>
    %258 = vector.shape_cast %257 : vector<1x8x8xf32> to vector<8x8xf32>
    %cst_173 = arith.constant dense<0.000000e+00> : vector<8x256xf32>
    %259 = tpu.matmul %258, %256, %cst_173 {dimension_numbers = #tpu.dot_dimension_numbers<[1], [0], [0], [1], [0, 0, 1, 1], [], []>} : vector<8x8xf32>, vector<8x256xf32>, vector<8x256xf32> -> vector<8x256xf32>
    %260 = arith.addf %253, %259 : vector<8x256xf32>
    %c0_174 = arith.constant 0 : index
    %c128_175 = arith.constant 128 : index
    %261 = vector.load %arg7[%c0_174, %c128_175] : memref<32x512xf32, #tpu.memory_space<vmem>>, vector<8x256xf32>
    %c29 = arith.constant 29 : index
    %c0_176 = arith.constant 0 : index
    %c0_177 = arith.constant 0 : index
    %262 = vector.load %arg3[%c29, %c0_176, %c0_177] : memref<57x8x8xf32, #tpu.memory_space<vmem>>, vector<1x8x8xf32>
    %263 = vector.shape_cast %262 : vector<1x8x8xf32> to vector<8x8xf32>
    %cst_178 = arith.constant dense<0.000000e+00> : vector<8x256xf32>
    %264 = tpu.matmul %263, %261, %cst_178 {dimension_numbers = #tpu.dot_dimension_numbers<[1], [0], [0], [1], [0, 0, 1, 1], [], []>} : vector<8x8xf32>, vector<8x256xf32>, vector<8x256xf32> -> vector<8x256xf32>
    %265 = arith.addf %260, %264 : vector<8x256xf32>
    %c0_179 = arith.constant 0 : index
    %c133 = arith.constant 133 : index
    %266 = vector.load %arg7[%c0_179, %c133] : memref<32x512xf32, #tpu.memory_space<vmem>>, vector<8x256xf32>
    %267 = vector.broadcast %247 : vector<1x256xf32> to vector<8x256xf32>
    %268 = arith.mulf %266, %267 : vector<8x256xf32>
    %c30 = arith.constant 30 : index
    %c0_180 = arith.constant 0 : index
    %c0_181 = arith.constant 0 : index
    %269 = vector.load %arg3[%c30, %c0_180, %c0_181] : memref<57x8x8xf32, #tpu.memory_space<vmem>>, vector<1x8x8xf32>
    %270 = vector.shape_cast %269 : vector<1x8x8xf32> to vector<8x8xf32>
    %cst_182 = arith.constant dense<0.000000e+00> : vector<8x256xf32>
    %271 = tpu.matmul %270, %268, %cst_182 {dimension_numbers = #tpu.dot_dimension_numbers<[1], [0], [0], [1], [0, 0, 1, 1], [], []>} : vector<8x8xf32>, vector<8x256xf32>, vector<8x256xf32> -> vector<8x256xf32>
    %272 = arith.addf %265, %271 : vector<8x256xf32>
    %c0_183 = arith.constant 0 : index
    %c203 = arith.constant 203 : index
    %273 = vector.load %arg7[%c0_183, %c203] : memref<32x512xf32, #tpu.memory_space<vmem>>, vector<8x256xf32>
    %274 = vector.broadcast %231 : vector<1x256xf32> to vector<8x256xf32>
    %275 = arith.mulf %273, %274 : vector<8x256xf32>
    %c31 = arith.constant 31 : index
    %c0_184 = arith.constant 0 : index
    %c0_185 = arith.constant 0 : index
    %276 = vector.load %arg3[%c31, %c0_184, %c0_185] : memref<57x8x8xf32, #tpu.memory_space<vmem>>, vector<1x8x8xf32>
    %277 = vector.shape_cast %276 : vector<1x8x8xf32> to vector<8x8xf32>
    %cst_186 = arith.constant dense<0.000000e+00> : vector<8x256xf32>
    %278 = tpu.matmul %277, %275, %cst_186 {dimension_numbers = #tpu.dot_dimension_numbers<[1], [0], [0], [1], [0, 0, 1, 1], [], []>} : vector<8x8xf32>, vector<8x256xf32>, vector<8x256xf32> -> vector<8x256xf32>
    %279 = arith.addf %272, %278 : vector<8x256xf32>
    %c0_187 = arith.constant 0 : index
    %c208 = arith.constant 208 : index
    %280 = vector.load %arg7[%c0_187, %c208] : memref<32x512xf32, #tpu.memory_space<vmem>>, vector<8x256xf32>
    %c32 = arith.constant 32 : index
    %c0_188 = arith.constant 0 : index
    %c0_189 = arith.constant 0 : index
    %281 = vector.load %arg3[%c32, %c0_188, %c0_189] : memref<57x8x8xf32, #tpu.memory_space<vmem>>, vector<1x8x8xf32>
    %282 = vector.shape_cast %281 : vector<1x8x8xf32> to vector<8x8xf32>
    %cst_190 = arith.constant dense<0.000000e+00> : vector<8x256xf32>
    %283 = tpu.matmul %282, %280, %cst_190 {dimension_numbers = #tpu.dot_dimension_numbers<[1], [0], [0], [1], [0, 0, 1, 1], [], []>} : vector<8x8xf32>, vector<8x256xf32>, vector<8x256xf32> -> vector<8x256xf32>
    %284 = arith.addf %279, %283 : vector<8x256xf32>
    %c0_191 = arith.constant 0 : index
    %c213 = arith.constant 213 : index
    %285 = vector.load %arg7[%c0_191, %c213] : memref<32x512xf32, #tpu.memory_space<vmem>>, vector<8x256xf32>
    %286 = vector.broadcast %247 : vector<1x256xf32> to vector<8x256xf32>
    %287 = arith.mulf %285, %286 : vector<8x256xf32>
    %c33 = arith.constant 33 : index
    %c0_192 = arith.constant 0 : index
    %c0_193 = arith.constant 0 : index
    %288 = vector.load %arg3[%c33, %c0_192, %c0_193] : memref<57x8x8xf32, #tpu.memory_space<vmem>>, vector<1x8x8xf32>
    %289 = vector.shape_cast %288 : vector<1x8x8xf32> to vector<8x8xf32>
    %cst_194 = arith.constant dense<0.000000e+00> : vector<8x256xf32>
    %290 = tpu.matmul %289, %287, %cst_194 {dimension_numbers = #tpu.dot_dimension_numbers<[1], [0], [0], [1], [0, 0, 1, 1], [], []>} : vector<8x8xf32>, vector<8x256xf32>, vector<8x256xf32> -> vector<8x256xf32>
    %291 = arith.addf %284, %290 : vector<8x256xf32>
    %c80_195 = arith.constant 80 : index
    %c0_196 = arith.constant 0 : index
    %292 = vector.load %arg5[%c80_195, %c0_196] : memref<120x1xf32, #tpu.memory_space<vmem>>, vector<8x1xf32>
    %293 = vector.broadcast %292 : vector<8x1xf32> to vector<8x256xf32>
    %294 = arith.addf %291, %293 : vector<8x256xf32>
    %295 = vector.extract_strided_slice %27 {offsets = [24, 0], sizes = [8, 256], strides = [1, 1]} : vector<40x256xf32> to vector<8x256xf32>
    %c0_197 = arith.constant 0 : index
    %c128_198 = arith.constant 128 : index
    %296 = vector.load %arg7[%c0_197, %c128_198] : memref<32x512xf32, #tpu.memory_space<vmem>>, vector<8x256xf32>
    tpu.vector_store %arg7[%c0_197, %c128_198], %295 {strides = array<i32>} : memref<32x512xf32, #tpu.memory_space<vmem>>, vector<8x256xf32>,
    %c0_199 = arith.constant 0 : index
    %c125_200 = arith.constant 125 : index
    %297 = vector.load %arg7[%c0_199, %c125_200] : memref<32x512xf32, #tpu.memory_space<vmem>>, vector<8x256xf32>
    %298 = vector.broadcast %86 : vector<1x256xf32> to vector<8x256xf32>
    %299 = arith.mulf %297, %298 : vector<8x256xf32>
    %c34 = arith.constant 34 : index
    %c0_201 = arith.constant 0 : index
    %c0_202 = arith.constant 0 : index
    %300 = vector.load %arg3[%c34, %c0_201, %c0_202] : memref<57x8x8xf32, #tpu.memory_space<vmem>>, vector<1x8x8xf32>
    %301 = vector.shape_cast %300 : vector<1x8x8xf32> to vector<8x8xf32>
    %cst_203 = arith.constant dense<0.000000e+00> : vector<8x256xf32>
    %302 = tpu.matmul %301, %299, %cst_203 {dimension_numbers = #tpu.dot_dimension_numbers<[1], [0], [0], [1], [0, 0, 1, 1], [], []>} : vector<8x8xf32>, vector<8x256xf32>, vector<8x256xf32> -> vector<8x256xf32>
    %c0_204 = arith.constant 0 : index
    %c126_205 = arith.constant 126 : index
    %303 = vector.load %arg7[%c0_204, %c126_205] : memref<32x512xf32, #tpu.memory_space<vmem>>, vector<8x256xf32>
    %304 = vector.broadcast %157 : vector<1x256xf32> to vector<8x256xf32>
    %305 = arith.mulf %303, %304 : vector<8x256xf32>
    %c35 = arith.constant 35 : index
    %c0_206 = arith.constant 0 : index
    %c0_207 = arith.constant 0 : index
    %306 = vector.load %arg3[%c35, %c0_206, %c0_207] : memref<57x8x8xf32, #tpu.memory_space<vmem>>, vector<1x8x8xf32>
    %307 = vector.shape_cast %306 : vector<1x8x8xf32> to vector<8x8xf32>
    %cst_208 = arith.constant dense<0.000000e+00> : vector<8x256xf32>
    %308 = tpu.matmul %307, %305, %cst_208 {dimension_numbers = #tpu.dot_dimension_numbers<[1], [0], [0], [1], [0, 0, 1, 1], [], []>} : vector<8x8xf32>, vector<8x256xf32>, vector<8x256xf32> -> vector<8x256xf32>
    %309 = arith.addf %302, %308 : vector<8x256xf32>
    %c0_209 = arith.constant 0 : index
    %c127_210 = arith.constant 127 : index
    %310 = vector.load %arg7[%c0_209, %c127_210] : memref<32x512xf32, #tpu.memory_space<vmem>>, vector<8x256xf32>
    %311 = vector.broadcast %36 : vector<1x256xf32> to vector<8x256xf32>
    %312 = arith.mulf %310, %311 : vector<8x256xf32>
    %c36 = arith.constant 36 : index
    %c0_211 = arith.constant 0 : index
    %c0_212 = arith.constant 0 : index
    %313 = vector.load %arg3[%c36, %c0_211, %c0_212] : memref<57x8x8xf32, #tpu.memory_space<vmem>>, vector<1x8x8xf32>
    %314 = vector.shape_cast %313 : vector<1x8x8xf32> to vector<8x8xf32>
    %cst_213 = arith.constant dense<0.000000e+00> : vector<8x256xf32>
    %315 = tpu.matmul %314, %312, %cst_213 {dimension_numbers = #tpu.dot_dimension_numbers<[1], [0], [0], [1], [0, 0, 1, 1], [], []>} : vector<8x8xf32>, vector<8x256xf32>, vector<8x256xf32> -> vector<8x256xf32>
    %316 = arith.addf %309, %315 : vector<8x256xf32>
    %c0_214 = arith.constant 0 : index
    %c128_215 = arith.constant 128 : index
    %317 = vector.load %arg7[%c0_214, %c128_215] : memref<32x512xf32, #tpu.memory_space<vmem>>, vector<8x256xf32>
    %c37 = arith.constant 37 : index
    %c0_216 = arith.constant 0 : index
    %c0_217 = arith.constant 0 : index
    %318 = vector.load %arg3[%c37, %c0_216, %c0_217] : memref<57x8x8xf32, #tpu.memory_space<vmem>>, vector<1x8x8xf32>
    %319 = vector.shape_cast %318 : vector<1x8x8xf32> to vector<8x8xf32>
    %cst_218 = arith.constant dense<0.000000e+00> : vector<8x256xf32>
    %320 = tpu.matmul %319, %317, %cst_218 {dimension_numbers = #tpu.dot_dimension_numbers<[1], [0], [0], [1], [0, 0, 1, 1], [], []>} : vector<8x8xf32>, vector<8x256xf32>, vector<8x256xf32> -> vector<8x256xf32>
    %321 = arith.addf %316, %320 : vector<8x256xf32>
    %c0_219 = arith.constant 0 : index
    %c129_220 = arith.constant 129 : index
    %322 = vector.load %arg7[%c0_219, %c129_220] : memref<32x512xf32, #tpu.memory_space<vmem>>, vector<8x256xf32>
    %323 = vector.broadcast %52 : vector<1x256xf32> to vector<8x256xf32>
    %324 = arith.mulf %322, %323 : vector<8x256xf32>
    %c38 = arith.constant 38 : index
    %c0_221 = arith.constant 0 : index
    %c0_222 = arith.constant 0 : index
    %325 = vector.load %arg3[%c38, %c0_221, %c0_222] : memref<57x8x8xf32, #tpu.memory_space<vmem>>, vector<1x8x8xf32>
    %326 = vector.shape_cast %325 : vector<1x8x8xf32> to vector<8x8xf32>
    %cst_223 = arith.constant dense<0.000000e+00> : vector<8x256xf32>
    %327 = tpu.matmul %326, %324, %cst_223 {dimension_numbers = #tpu.dot_dimension_numbers<[1], [0], [0], [1], [0, 0, 1, 1], [], []>} : vector<8x8xf32>, vector<8x256xf32>, vector<8x256xf32> -> vector<8x256xf32>
    %328 = arith.addf %321, %327 : vector<8x256xf32>
    %c0_224 = arith.constant 0 : index
    %c130_225 = arith.constant 130 : index
    %329 = vector.load %arg7[%c0_224, %c130_225] : memref<32x512xf32, #tpu.memory_space<vmem>>, vector<8x256xf32>
    %330 = vector.broadcast %187 : vector<1x256xf32> to vector<8x256xf32>
    %331 = arith.mulf %329, %330 : vector<8x256xf32>
    %c39 = arith.constant 39 : index
    %c0_226 = arith.constant 0 : index
    %c0_227 = arith.constant 0 : index
    %332 = vector.load %arg3[%c39, %c0_226, %c0_227] : memref<57x8x8xf32, #tpu.memory_space<vmem>>, vector<1x8x8xf32>
    %333 = vector.shape_cast %332 : vector<1x8x8xf32> to vector<8x8xf32>
    %cst_228 = arith.constant dense<0.000000e+00> : vector<8x256xf32>
    %334 = tpu.matmul %333, %331, %cst_228 {dimension_numbers = #tpu.dot_dimension_numbers<[1], [0], [0], [1], [0, 0, 1, 1], [], []>} : vector<8x8xf32>, vector<8x256xf32>, vector<8x256xf32> -> vector<8x256xf32>
    %335 = arith.addf %328, %334 : vector<8x256xf32>
    %c0_229 = arith.constant 0 : index
    %c131_230 = arith.constant 131 : index
    %336 = vector.load %arg7[%c0_229, %c131_230] : memref<32x512xf32, #tpu.memory_space<vmem>>, vector<8x256xf32>
    %337 = vector.broadcast %102 : vector<1x256xf32> to vector<8x256xf32>
    %338 = arith.mulf %336, %337 : vector<8x256xf32>
    %c40_231 = arith.constant 40 : index
    %c0_232 = arith.constant 0 : index
    %c0_233 = arith.constant 0 : index
    %339 = vector.load %arg3[%c40_231, %c0_232, %c0_233] : memref<57x8x8xf32, #tpu.memory_space<vmem>>, vector<1x8x8xf32>
    %340 = vector.shape_cast %339 : vector<1x8x8xf32> to vector<8x8xf32>
    %cst_234 = arith.constant dense<0.000000e+00> : vector<8x256xf32>
    %341 = tpu.matmul %340, %338, %cst_234 {dimension_numbers = #tpu.dot_dimension_numbers<[1], [0], [0], [1], [0, 0, 1, 1], [], []>} : vector<8x8xf32>, vector<8x256xf32>, vector<8x256xf32> -> vector<8x256xf32>
    %342 = arith.addf %335, %341 : vector<8x256xf32>
    %c88 = arith.constant 88 : index
    %c0_235 = arith.constant 0 : index
    %343 = vector.load %arg5[%c88, %c0_235] : memref<120x1xf32, #tpu.memory_space<vmem>>, vector<8x1xf32>
    %344 = vector.broadcast %343 : vector<8x1xf32> to vector<8x256xf32>
    %345 = arith.addf %342, %344 : vector<8x256xf32>
    %c0_236 = arith.constant 0 : index
    %c128_237 = arith.constant 128 : index
    %346 = vector.load %arg7[%c0_236, %c128_237] : memref<32x512xf32, #tpu.memory_space<vmem>>, vector<8x256xf32>
    tpu.vector_store %arg7[%c0_236, %c128_237], %345 {strides = array<i32>} : memref<32x512xf32, #tpu.memory_space<vmem>>, vector<8x256xf32>,
    %c0_238 = arith.constant 0 : index
    %c80_239 = arith.constant 80 : index
    %347 = vector.load %arg7[%c0_238, %c80_239] : memref<32x512xf32, #tpu.memory_space<vmem>>, vector<8x256xf32>
    %c41 = arith.constant 41 : index
    %c0_240 = arith.constant 0 : index
    %c0_241 = arith.constant 0 : index
    %348 = vector.load %arg3[%c41, %c0_240, %c0_241] : memref<57x8x8xf32, #tpu.memory_space<vmem>>, vector<1x8x8xf32>
    %349 = vector.shape_cast %348 : vector<1x8x8xf32> to vector<8x8xf32>
    %cst_242 = arith.constant dense<0.000000e+00> : vector<8x256xf32>
    %350 = tpu.matmul %349, %347, %cst_242 {dimension_numbers = #tpu.dot_dimension_numbers<[1], [0], [0], [1], [0, 0, 1, 1], [], []>} : vector<8x8xf32>, vector<8x256xf32>, vector<8x256xf32> -> vector<8x256xf32>
    %c0_243 = arith.constant 0 : index
    %c96_244 = arith.constant 96 : index
    %351 = vector.load %arg7[%c0_243, %c96_244] : memref<32x512xf32, #tpu.memory_space<vmem>>, vector<8x256xf32>
    %c42 = arith.constant 42 : index
    %c0_245 = arith.constant 0 : index
    %c0_246 = arith.constant 0 : index
    %352 = vector.load %arg3[%c42, %c0_245, %c0_246] : memref<57x8x8xf32, #tpu.memory_space<vmem>>, vector<1x8x8xf32>
    %353 = vector.shape_cast %352 : vector<1x8x8xf32> to vector<8x8xf32>
    %cst_247 = arith.constant dense<0.000000e+00> : vector<8x256xf32>
    %354 = tpu.matmul %353, %351, %cst_247 {dimension_numbers = #tpu.dot_dimension_numbers<[1], [0], [0], [1], [0, 0, 1, 1], [], []>} : vector<8x8xf32>, vector<8x256xf32>, vector<8x256xf32> -> vector<8x256xf32>
    %355 = arith.addf %350, %354 : vector<8x256xf32>
    %c0_248 = arith.constant 0 : index
    %c112_249 = arith.constant 112 : index
    %356 = vector.load %arg7[%c0_248, %c112_249] : memref<32x512xf32, #tpu.memory_space<vmem>>, vector<8x256xf32>
    %c43_250 = arith.constant 43 : index
    %c0_251 = arith.constant 0 : index
    %c0_252 = arith.constant 0 : index
    %357 = vector.load %arg3[%c43_250, %c0_251, %c0_252] : memref<57x8x8xf32, #tpu.memory_space<vmem>>, vector<1x8x8xf32>
    %358 = vector.shape_cast %357 : vector<1x8x8xf32> to vector<8x8xf32>
    %cst_253 = arith.constant dense<0.000000e+00> : vector<8x256xf32>
    %359 = tpu.matmul %358, %356, %cst_253 {dimension_numbers = #tpu.dot_dimension_numbers<[1], [0], [0], [1], [0, 0, 1, 1], [], []>} : vector<8x8xf32>, vector<8x256xf32>, vector<8x256xf32> -> vector<8x256xf32>
    %360 = arith.addf %355, %359 : vector<8x256xf32>
    %c0_254 = arith.constant 0 : index
    %c128_255 = arith.constant 128 : index
    %361 = vector.load %arg7[%c0_254, %c128_255] : memref<32x512xf32, #tpu.memory_space<vmem>>, vector<8x256xf32>
    %c44 = arith.constant 44 : index
    %c0_256 = arith.constant 0 : index
    %c0_257 = arith.constant 0 : index
    %362 = vector.load %arg3[%c44, %c0_256, %c0_257] : memref<57x8x8xf32, #tpu.memory_space<vmem>>, vector<1x8x8xf32>
    %363 = vector.shape_cast %362 : vector<1x8x8xf32> to vector<8x8xf32>
    %cst_258 = arith.constant dense<0.000000e+00> : vector<8x256xf32>
    %364 = tpu.matmul %363, %361, %cst_258 {dimension_numbers = #tpu.dot_dimension_numbers<[1], [0], [0], [1], [0, 0, 1, 1], [], []>} : vector<8x8xf32>, vector<8x256xf32>, vector<8x256xf32> -> vector<8x256xf32>
    %365 = arith.addf %360, %364 : vector<8x256xf32>
    %c0_259 = arith.constant 0 : index
    %c144_260 = arith.constant 144 : index
    %366 = vector.load %arg7[%c0_259, %c144_260] : memref<32x512xf32, #tpu.memory_space<vmem>>, vector<8x256xf32>
    %c45 = arith.constant 45 : index
    %c0_261 = arith.constant 0 : index
    %c0_262 = arith.constant 0 : index
    %367 = vector.load %arg3[%c45, %c0_261, %c0_262] : memref<57x8x8xf32, #tpu.memory_space<vmem>>, vector<1x8x8xf32>
    %368 = vector.shape_cast %367 : vector<1x8x8xf32> to vector<8x8xf32>
    %cst_263 = arith.constant dense<0.000000e+00> : vector<8x256xf32>
    %369 = tpu.matmul %368, %366, %cst_263 {dimension_numbers = #tpu.dot_dimension_numbers<[1], [0], [0], [1], [0, 0, 1, 1], [], []>} : vector<8x8xf32>, vector<8x256xf32>, vector<8x256xf32> -> vector<8x256xf32>
    %370 = arith.addf %365, %369 : vector<8x256xf32>
    %c0_264 = arith.constant 0 : index
    %c160_265 = arith.constant 160 : index
    %371 = vector.load %arg7[%c0_264, %c160_265] : memref<32x512xf32, #tpu.memory_space<vmem>>, vector<8x256xf32>
    %c46 = arith.constant 46 : index
    %c0_266 = arith.constant 0 : index
    %c0_267 = arith.constant 0 : index
    %372 = vector.load %arg3[%c46, %c0_266, %c0_267] : memref<57x8x8xf32, #tpu.memory_space<vmem>>, vector<1x8x8xf32>
    %373 = vector.shape_cast %372 : vector<1x8x8xf32> to vector<8x8xf32>
    %cst_268 = arith.constant dense<0.000000e+00> : vector<8x256xf32>
    %374 = tpu.matmul %373, %371, %cst_268 {dimension_numbers = #tpu.dot_dimension_numbers<[1], [0], [0], [1], [0, 0, 1, 1], [], []>} : vector<8x8xf32>, vector<8x256xf32>, vector<8x256xf32> -> vector<8x256xf32>
    %375 = arith.addf %370, %374 : vector<8x256xf32>
    %c0_269 = arith.constant 0 : index
    %c176_270 = arith.constant 176 : index
    %376 = vector.load %arg7[%c0_269, %c176_270] : memref<32x512xf32, #tpu.memory_space<vmem>>, vector<8x256xf32>
    %c47 = arith.constant 47 : index
    %c0_271 = arith.constant 0 : index
    %c0_272 = arith.constant 0 : index
    %377 = vector.load %arg3[%c47, %c0_271, %c0_272] : memref<57x8x8xf32, #tpu.memory_space<vmem>>, vector<1x8x8xf32>
    %378 = vector.shape_cast %377 : vector<1x8x8xf32> to vector<8x8xf32>
    %cst_273 = arith.constant dense<0.000000e+00> : vector<8x256xf32>
    %379 = tpu.matmul %378, %376, %cst_273 {dimension_numbers = #tpu.dot_dimension_numbers<[1], [0], [0], [1], [0, 0, 1, 1], [], []>} : vector<8x8xf32>, vector<8x256xf32>, vector<8x256xf32> -> vector<8x256xf32>
    %380 = arith.addf %375, %379 : vector<8x256xf32>
    %c96_274 = arith.constant 96 : index
    %c0_275 = arith.constant 0 : index
    %381 = vector.load %arg5[%c96_274, %c0_275] : memref<120x1xf32, #tpu.memory_space<vmem>>, vector<8x1xf32>
    %382 = vector.broadcast %381 : vector<8x1xf32> to vector<8x256xf32>
    %383 = arith.addf %380, %382 : vector<8x256xf32>
    %c0_276 = arith.constant 0 : index
    %c128_277 = arith.constant 128 : index
    %384 = vector.load %arg7[%c0_276, %c128_277] : memref<32x512xf32, #tpu.memory_space<vmem>>, vector<8x256xf32>
    tpu.vector_store %arg7[%c0_276, %c128_277], %383 {strides = array<i32>} : memref<32x512xf32, #tpu.memory_space<vmem>>, vector<8x256xf32>,
    %c0_278 = arith.constant 0 : index
    %c9_279 = arith.constant 9 : index
    %385 = vector.load %arg7[%c0_278, %c9_279] : memref<32x512xf32, #tpu.memory_space<vmem>>, vector<8x256xf32>
    %c7_i32 = arith.constant 7 : i32
    %386 = vector.broadcast %c7_i32 : i32 to vector<1x256xi32>
    %387 = arith.cmpi sge, %20, %386 : vector<1x256xi32>
    %cst_280 = arith.constant 1.000000e+00 : f32
    %cst_281 = arith.constant 0.000000e+00 : f32
    %388 = vector.broadcast %cst_280 : f32 to vector<1x256xf32>
    %389 = vector.broadcast %cst_281 : f32 to vector<1x256xf32>
    %390 = arith.select %387, %388, %389 : vector<1x256xi1>, vector<1x256xf32>
    %391 = vector.broadcast %390 : vector<1x256xf32> to vector<8x256xf32>
    %392 = arith.mulf %385, %391 : vector<8x256xf32>
    %c48_282 = arith.constant 48 : index
    %c0_283 = arith.constant 0 : index
    %c0_284 = arith.constant 0 : index
    %393 = vector.load %arg3[%c48_282, %c0_283, %c0_284] : memref<57x8x8xf32, #tpu.memory_space<vmem>>, vector<1x8x8xf32>
    %394 = vector.shape_cast %393 : vector<1x8x8xf32> to vector<8x8xf32>
    %cst_285 = arith.constant dense<0.000000e+00> : vector<8x256xf32>
    %395 = tpu.matmul %394, %392, %cst_285 {dimension_numbers = #tpu.dot_dimension_numbers<[1], [0], [0], [1], [0, 0, 1, 1], [], []>} : vector<8x8xf32>, vector<8x256xf32>, vector<8x256xf32> -> vector<8x256xf32>
    %c0_286 = arith.constant 0 : index
    %c16_287 = arith.constant 16 : index
    %396 = vector.load %arg7[%c0_286, %c16_287] : memref<32x512xf32, #tpu.memory_space<vmem>>, vector<8x256xf32>
    %c49 = arith.constant 49 : index
    %c0_288 = arith.constant 0 : index
    %c0_289 = arith.constant 0 : index
    %397 = vector.load %arg3[%c49, %c0_288, %c0_289] : memref<57x8x8xf32, #tpu.memory_space<vmem>>, vector<1x8x8xf32>
    %398 = vector.shape_cast %397 : vector<1x8x8xf32> to vector<8x8xf32>
    %cst_290 = arith.constant dense<0.000000e+00> : vector<8x256xf32>
    %399 = tpu.matmul %398, %396, %cst_290 {dimension_numbers = #tpu.dot_dimension_numbers<[1], [0], [0], [1], [0, 0, 1, 1], [], []>} : vector<8x8xf32>, vector<8x256xf32>, vector<8x256xf32> -> vector<8x256xf32>
    %400 = arith.addf %395, %399 : vector<8x256xf32>
    %c0_291 = arith.constant 0 : index
    %c23_292 = arith.constant 23 : index
    %401 = vector.load %arg7[%c0_291, %c23_292] : memref<32x512xf32, #tpu.memory_space<vmem>>, vector<8x256xf32>
    %c9_i32 = arith.constant 9 : i32
    %402 = vector.broadcast %c9_i32 : i32 to vector<1x256xi32>
    %403 = arith.cmpi slt, %20, %402 : vector<1x256xi32>
    %cst_293 = arith.constant 1.000000e+00 : f32
    %cst_294 = arith.constant 0.000000e+00 : f32
    %404 = vector.broadcast %cst_293 : f32 to vector<1x256xf32>
    %405 = vector.broadcast %cst_294 : f32 to vector<1x256xf32>
    %406 = arith.select %403, %404, %405 : vector<1x256xi1>, vector<1x256xf32>
    %407 = vector.broadcast %406 : vector<1x256xf32> to vector<8x256xf32>
    %408 = arith.mulf %401, %407 : vector<8x256xf32>
    %c50 = arith.constant 50 : index
    %c0_295 = arith.constant 0 : index
    %c0_296 = arith.constant 0 : index
    %409 = vector.load %arg3[%c50, %c0_295, %c0_296] : memref<57x8x8xf32, #tpu.memory_space<vmem>>, vector<1x8x8xf32>
    %410 = vector.shape_cast %409 : vector<1x8x8xf32> to vector<8x8xf32>
    %cst_297 = arith.constant dense<0.000000e+00> : vector<8x256xf32>
    %411 = tpu.matmul %410, %408, %cst_297 {dimension_numbers = #tpu.dot_dimension_numbers<[1], [0], [0], [1], [0, 0, 1, 1], [], []>} : vector<8x8xf32>, vector<8x256xf32>, vector<8x256xf32> -> vector<8x256xf32>
    %412 = arith.addf %400, %411 : vector<8x256xf32>
    %c0_298 = arith.constant 0 : index
    %c121 = arith.constant 121 : index
    %413 = vector.load %arg7[%c0_298, %c121] : memref<32x512xf32, #tpu.memory_space<vmem>>, vector<8x256xf32>
    %414 = vector.broadcast %390 : vector<1x256xf32> to vector<8x256xf32>
    %415 = arith.mulf %413, %414 : vector<8x256xf32>
    %c51 = arith.constant 51 : index
    %c0_299 = arith.constant 0 : index
    %c0_300 = arith.constant 0 : index
    %416 = vector.load %arg3[%c51, %c0_299, %c0_300] : memref<57x8x8xf32, #tpu.memory_space<vmem>>, vector<1x8x8xf32>
    %417 = vector.shape_cast %416 : vector<1x8x8xf32> to vector<8x8xf32>
    %cst_301 = arith.constant dense<0.000000e+00> : vector<8x256xf32>
    %418 = tpu.matmul %417, %415, %cst_301 {dimension_numbers = #tpu.dot_dimension_numbers<[1], [0], [0], [1], [0, 0, 1, 1], [], []>} : vector<8x8xf32>, vector<8x256xf32>, vector<8x256xf32> -> vector<8x256xf32>
    %419 = arith.addf %412, %418 : vector<8x256xf32>
    %c0_302 = arith.constant 0 : index
    %c128_303 = arith.constant 128 : index
    %420 = vector.load %arg7[%c0_302, %c128_303] : memref<32x512xf32, #tpu.memory_space<vmem>>, vector<8x256xf32>
    %c52 = arith.constant 52 : index
    %c0_304 = arith.constant 0 : index
    %c0_305 = arith.constant 0 : index
    %421 = vector.load %arg3[%c52, %c0_304, %c0_305] : memref<57x8x8xf32, #tpu.memory_space<vmem>>, vector<1x8x8xf32>
    %422 = vector.shape_cast %421 : vector<1x8x8xf32> to vector<8x8xf32>
    %cst_306 = arith.constant dense<0.000000e+00> : vector<8x256xf32>
    %423 = tpu.matmul %422, %420, %cst_306 {dimension_numbers = #tpu.dot_dimension_numbers<[1], [0], [0], [1], [0, 0, 1, 1], [], []>} : vector<8x8xf32>, vector<8x256xf32>, vector<8x256xf32> -> vector<8x256xf32>
    %424 = arith.addf %419, %423 : vector<8x256xf32>
    %c0_307 = arith.constant 0 : index
    %c135 = arith.constant 135 : index
    %425 = vector.load %arg7[%c0_307, %c135] : memref<32x512xf32, #tpu.memory_space<vmem>>, vector<8x256xf32>
    %426 = vector.broadcast %406 : vector<1x256xf32> to vector<8x256xf32>
    %427 = arith.mulf %425, %426 : vector<8x256xf32>
    %c53_308 = arith.constant 53 : index
    %c0_309 = arith.constant 0 : index
    %c0_310 = arith.constant 0 : index
    %428 = vector.load %arg3[%c53_308, %c0_309, %c0_310] : memref<57x8x8xf32, #tpu.memory_space<vmem>>, vector<1x8x8xf32>
    %429 = vector.shape_cast %428 : vector<1x8x8xf32> to vector<8x8xf32>
    %cst_311 = arith.constant dense<0.000000e+00> : vector<8x256xf32>
    %430 = tpu.matmul %429, %427, %cst_311 {dimension_numbers = #tpu.dot_dimension_numbers<[1], [0], [0], [1], [0, 0, 1, 1], [], []>} : vector<8x8xf32>, vector<8x256xf32>, vector<8x256xf32> -> vector<8x256xf32>
    %431 = arith.addf %424, %430 : vector<8x256xf32>
    %c0_312 = arith.constant 0 : index
    %c233 = arith.constant 233 : index
    %432 = vector.load %arg7[%c0_312, %c233] : memref<32x512xf32, #tpu.memory_space<vmem>>, vector<8x256xf32>
    %433 = vector.broadcast %390 : vector<1x256xf32> to vector<8x256xf32>
    %434 = arith.mulf %432, %433 : vector<8x256xf32>
    %c54 = arith.constant 54 : index
    %c0_313 = arith.constant 0 : index
    %c0_314 = arith.constant 0 : index
    %435 = vector.load %arg3[%c54, %c0_313, %c0_314] : memref<57x8x8xf32, #tpu.memory_space<vmem>>, vector<1x8x8xf32>
    %436 = vector.shape_cast %435 : vector<1x8x8xf32> to vector<8x8xf32>
    %cst_315 = arith.constant dense<0.000000e+00> : vector<8x256xf32>
    %437 = tpu.matmul %436, %434, %cst_315 {dimension_numbers = #tpu.dot_dimension_numbers<[1], [0], [0], [1], [0, 0, 1, 1], [], []>} : vector<8x8xf32>, vector<8x256xf32>, vector<8x256xf32> -> vector<8x256xf32>
    %438 = arith.addf %431, %437 : vector<8x256xf32>
    %c0_316 = arith.constant 0 : index
    %c240 = arith.constant 240 : index
    %439 = vector.load %arg7[%c0_316, %c240] : memref<32x512xf32, #tpu.memory_space<vmem>>, vector<8x256xf32>
    %c55 = arith.constant 55 : index
    %c0_317 = arith.constant 0 : index
    %c0_318 = arith.constant 0 : index
    %440 = vector.load %arg3[%c55, %c0_317, %c0_318] : memref<57x8x8xf32, #tpu.memory_space<vmem>>, vector<1x8x8xf32>
    %441 = vector.shape_cast %440 : vector<1x8x8xf32> to vector<8x8xf32>
    %cst_319 = arith.constant dense<0.000000e+00> : vector<8x256xf32>
    %442 = tpu.matmul %441, %439, %cst_319 {dimension_numbers = #tpu.dot_dimension_numbers<[1], [0], [0], [1], [0, 0, 1, 1], [], []>} : vector<8x8xf32>, vector<8x256xf32>, vector<8x256xf32> -> vector<8x256xf32>
    %443 = arith.addf %438, %442 : vector<8x256xf32>
    %c0_320 = arith.constant 0 : index
    %c247 = arith.constant 247 : index
    %444 = vector.load %arg7[%c0_320, %c247] : memref<32x512xf32, #tpu.memory_space<vmem>>, vector<8x256xf32>
    %445 = vector.broadcast %406 : vector<1x256xf32> to vector<8x256xf32>
    %446 = arith.mulf %444, %445 : vector<8x256xf32>
    %c56_321 = arith.constant 56 : index
    %c0_322 = arith.constant 0 : index
    %c0_323 = arith.constant 0 : index
    %447 = vector.load %arg3[%c56_321, %c0_322, %c0_323] : memref<57x8x8xf32, #tpu.memory_space<vmem>>, vector<1x8x8xf32>
    %448 = vector.shape_cast %447 : vector<1x8x8xf32> to vector<8x8xf32>
    %cst_324 = arith.constant dense<0.000000e+00> : vector<8x256xf32>
    %449 = tpu.matmul %448, %446, %cst_324 {dimension_numbers = #tpu.dot_dimension_numbers<[1], [0], [0], [1], [0, 0, 1, 1], [], []>} : vector<8x8xf32>, vector<8x256xf32>, vector<8x256xf32> -> vector<8x256xf32>
    %450 = arith.addf %443, %449 : vector<8x256xf32>
    %c104 = arith.constant 104 : index
    %c0_325 = arith.constant 0 : index
    %451 = vector.load %arg5[%c104, %c0_325] : memref<120x1xf32, #tpu.memory_space<vmem>>, vector<8x1xf32>
    %452 = vector.broadcast %451 : vector<8x1xf32> to vector<8x256xf32>
    %453 = arith.addf %450, %452 : vector<8x256xf32>
    %454 = tpu.concatenate %28, %149, %294, %453 in 0 : vector<8x256xf32>, vector<8x256xf32>, vector<8x256xf32>, vector<8x256xf32> -> vector<32x256xf32>
    %c0_326 = arith.constant 0 : index
    %c128_327 = arith.constant 128 : index
    %455 = vector.load %arg7[%c0_326, %c128_327] : memref<32x512xf32, #tpu.memory_space<vmem>>, vector<32x256xf32>
    tpu.vector_store %arg7[%c0_326, %c128_327], %454 {strides = array<i32>} : memref<32x512xf32, #tpu.memory_space<vmem>>, vector<32x256xf32>,
    %c0_328 = arith.constant 0 : index
    %c111 = arith.constant 111 : index
    %456 = vector.load %arg7[%c0_328, %c111] : memref<32x512xf32, #tpu.memory_space<vmem>>, vector<32x256xf32>
    %457 = vector.broadcast %36 : vector<1x256xf32> to vector<32x256xf32>
    %458 = arith.mulf %456, %457 : vector<32x256xf32>
    %c0_329 = arith.constant 0 : index
    %c0_330 = arith.constant 0 : index
    %c0_331 = arith.constant 0 : index
    %459 = vector.load %arg4[%c0_329, %c0_330, %c0_331] : memref<9x8x32xf32, #tpu.memory_space<vmem>>, vector<1x8x32xf32>
    %460 = vector.shape_cast %459 : vector<1x8x32xf32> to vector<8x32xf32>
    %cst_332 = arith.constant dense<0.000000e+00> : vector<8x256xf32>
    %461 = tpu.matmul %460, %458, %cst_332 {dimension_numbers = #tpu.dot_dimension_numbers<[1], [0], [0], [1], [0, 0, 1, 1], [], []>} : vector<8x32xf32>, vector<32x256xf32>, vector<8x256xf32> -> vector<8x256xf32>
    %c0_333 = arith.constant 0 : index
    %c112_334 = arith.constant 112 : index
    %462 = vector.load %arg7[%c0_333, %c112_334] : memref<32x512xf32, #tpu.memory_space<vmem>>, vector<32x256xf32>
    %c1_335 = arith.constant 1 : index
    %c0_336 = arith.constant 0 : index
    %c0_337 = arith.constant 0 : index
    %463 = vector.load %arg4[%c1_335, %c0_336, %c0_337] : memref<9x8x32xf32, #tpu.memory_space<vmem>>, vector<1x8x32xf32>
    %464 = vector.shape_cast %463 : vector<1x8x32xf32> to vector<8x32xf32>
    %cst_338 = arith.constant dense<0.000000e+00> : vector<8x256xf32>
    %465 = tpu.matmul %464, %462, %cst_338 {dimension_numbers = #tpu.dot_dimension_numbers<[1], [0], [0], [1], [0, 0, 1, 1], [], []>} : vector<8x32xf32>, vector<32x256xf32>, vector<8x256xf32> -> vector<8x256xf32>
    %466 = arith.addf %461, %465 : vector<8x256xf32>
    %c0_339 = arith.constant 0 : index
    %c113 = arith.constant 113 : index
    %467 = vector.load %arg7[%c0_339, %c113] : memref<32x512xf32, #tpu.memory_space<vmem>>, vector<32x256xf32>
    %468 = vector.broadcast %52 : vector<1x256xf32> to vector<32x256xf32>
    %469 = arith.mulf %467, %468 : vector<32x256xf32>
    %c2_340 = arith.constant 2 : index
    %c0_341 = arith.constant 0 : index
    %c0_342 = arith.constant 0 : index
    %470 = vector.load %arg4[%c2_340, %c0_341, %c0_342] : memref<9x8x32xf32, #tpu.memory_space<vmem>>, vector<1x8x32xf32>
    %471 = vector.shape_cast %470 : vector<1x8x32xf32> to vector<8x32xf32>
    %cst_343 = arith.constant dense<0.000000e+00> : vector<8x256xf32>
    %472 = tpu.matmul %471, %469, %cst_343 {dimension_numbers = #tpu.dot_dimension_numbers<[1], [0], [0], [1], [0, 0, 1, 1], [], []>} : vector<8x32xf32>, vector<32x256xf32>, vector<8x256xf32> -> vector<8x256xf32>
    %473 = arith.addf %466, %472 : vector<8x256xf32>
    %c0_344 = arith.constant 0 : index
    %c127_345 = arith.constant 127 : index
    %474 = vector.load %arg7[%c0_344, %c127_345] : memref<32x512xf32, #tpu.memory_space<vmem>>, vector<32x256xf32>
    %475 = vector.broadcast %36 : vector<1x256xf32> to vector<32x256xf32>
    %476 = arith.mulf %474, %475 : vector<32x256xf32>
    %c3_346 = arith.constant 3 : index
    %c0_347 = arith.constant 0 : index
    %c0_348 = arith.constant 0 : index
    %477 = vector.load %arg4[%c3_346, %c0_347, %c0_348] : memref<9x8x32xf32, #tpu.memory_space<vmem>>, vector<1x8x32xf32>
    %478 = vector.shape_cast %477 : vector<1x8x32xf32> to vector<8x32xf32>
    %cst_349 = arith.constant dense<0.000000e+00> : vector<8x256xf32>
    %479 = tpu.matmul %478, %476, %cst_349 {dimension_numbers = #tpu.dot_dimension_numbers<[1], [0], [0], [1], [0, 0, 1, 1], [], []>} : vector<8x32xf32>, vector<32x256xf32>, vector<8x256xf32> -> vector<8x256xf32>
    %480 = arith.addf %473, %479 : vector<8x256xf32>
    %c0_350 = arith.constant 0 : index
    %c128_351 = arith.constant 128 : index
    %481 = vector.load %arg7[%c0_350, %c128_351] : memref<32x512xf32, #tpu.memory_space<vmem>>, vector<32x256xf32>
    %c4_352 = arith.constant 4 : index
    %c0_353 = arith.constant 0 : index
    %c0_354 = arith.constant 0 : index
    %482 = vector.load %arg4[%c4_352, %c0_353, %c0_354] : memref<9x8x32xf32, #tpu.memory_space<vmem>>, vector<1x8x32xf32>
    %483 = vector.shape_cast %482 : vector<1x8x32xf32> to vector<8x32xf32>
    %cst_355 = arith.constant dense<0.000000e+00> : vector<8x256xf32>
    %484 = tpu.matmul %483, %481, %cst_355 {dimension_numbers = #tpu.dot_dimension_numbers<[1], [0], [0], [1], [0, 0, 1, 1], [], []>} : vector<8x32xf32>, vector<32x256xf32>, vector<8x256xf32> -> vector<8x256xf32>
    %485 = arith.addf %480, %484 : vector<8x256xf32>
    %c0_356 = arith.constant 0 : index
    %c129_357 = arith.constant 129 : index
    %486 = vector.load %arg7[%c0_356, %c129_357] : memref<32x512xf32, #tpu.memory_space<vmem>>, vector<32x256xf32>
    %487 = vector.broadcast %52 : vector<1x256xf32> to vector<32x256xf32>
    %488 = arith.mulf %486, %487 : vector<32x256xf32>
    %c5_358 = arith.constant 5 : index
    %c0_359 = arith.constant 0 : index
    %c0_360 = arith.constant 0 : index
    %489 = vector.load %arg4[%c5_358, %c0_359, %c0_360] : memref<9x8x32xf32, #tpu.memory_space<vmem>>, vector<1x8x32xf32>
    %490 = vector.shape_cast %489 : vector<1x8x32xf32> to vector<8x32xf32>
    %cst_361 = arith.constant dense<0.000000e+00> : vector<8x256xf32>
    %491 = tpu.matmul %490, %488, %cst_361 {dimension_numbers = #tpu.dot_dimension_numbers<[1], [0], [0], [1], [0, 0, 1, 1], [], []>} : vector<8x32xf32>, vector<32x256xf32>, vector<8x256xf32> -> vector<8x256xf32>
    %492 = arith.addf %485, %491 : vector<8x256xf32>
    %c0_362 = arith.constant 0 : index
    %c143 = arith.constant 143 : index
    %493 = vector.load %arg7[%c0_362, %c143] : memref<32x512xf32, #tpu.memory_space<vmem>>, vector<32x256xf32>
    %494 = vector.broadcast %36 : vector<1x256xf32> to vector<32x256xf32>
    %495 = arith.mulf %493, %494 : vector<32x256xf32>
    %c6_363 = arith.constant 6 : index
    %c0_364 = arith.constant 0 : index
    %c0_365 = arith.constant 0 : index
    %496 = vector.load %arg4[%c6_363, %c0_364, %c0_365] : memref<9x8x32xf32, #tpu.memory_space<vmem>>, vector<1x8x32xf32>
    %497 = vector.shape_cast %496 : vector<1x8x32xf32> to vector<8x32xf32>
    %cst_366 = arith.constant dense<0.000000e+00> : vector<8x256xf32>
    %498 = tpu.matmul %497, %495, %cst_366 {dimension_numbers = #tpu.dot_dimension_numbers<[1], [0], [0], [1], [0, 0, 1, 1], [], []>} : vector<8x32xf32>, vector<32x256xf32>, vector<8x256xf32> -> vector<8x256xf32>
    %499 = arith.addf %492, %498 : vector<8x256xf32>
    %c0_367 = arith.constant 0 : index
    %c144_368 = arith.constant 144 : index
    %500 = vector.load %arg7[%c0_367, %c144_368] : memref<32x512xf32, #tpu.memory_space<vmem>>, vector<32x256xf32>
    %c7_369 = arith.constant 7 : index
    %c0_370 = arith.constant 0 : index
    %c0_371 = arith.constant 0 : index
    %501 = vector.load %arg4[%c7_369, %c0_370, %c0_371] : memref<9x8x32xf32, #tpu.memory_space<vmem>>, vector<1x8x32xf32>
    %502 = vector.shape_cast %501 : vector<1x8x32xf32> to vector<8x32xf32>
    %cst_372 = arith.constant dense<0.000000e+00> : vector<8x256xf32>
    %503 = tpu.matmul %502, %500, %cst_372 {dimension_numbers = #tpu.dot_dimension_numbers<[1], [0], [0], [1], [0, 0, 1, 1], [], []>} : vector<8x32xf32>, vector<32x256xf32>, vector<8x256xf32> -> vector<8x256xf32>
    %504 = arith.addf %499, %503 : vector<8x256xf32>
    %c0_373 = arith.constant 0 : index
    %c145 = arith.constant 145 : index
    %505 = vector.load %arg7[%c0_373, %c145] : memref<32x512xf32, #tpu.memory_space<vmem>>, vector<32x256xf32>
    %506 = vector.broadcast %52 : vector<1x256xf32> to vector<32x256xf32>
    %507 = arith.mulf %505, %506 : vector<32x256xf32>
    %c8_374 = arith.constant 8 : index
    %c0_375 = arith.constant 0 : index
    %c0_376 = arith.constant 0 : index
    %508 = vector.load %arg4[%c8_374, %c0_375, %c0_376] : memref<9x8x32xf32, #tpu.memory_space<vmem>>, vector<1x8x32xf32>
    %509 = vector.shape_cast %508 : vector<1x8x32xf32> to vector<8x32xf32>
    %cst_377 = arith.constant dense<0.000000e+00> : vector<8x256xf32>
    %510 = tpu.matmul %509, %507, %cst_377 {dimension_numbers = #tpu.dot_dimension_numbers<[1], [0], [0], [1], [0, 0, 1, 1], [], []>} : vector<8x32xf32>, vector<32x256xf32>, vector<8x256xf32> -> vector<8x256xf32>
    %511 = arith.addf %504, %510 : vector<8x256xf32>
    %c112_378 = arith.constant 112 : index
    %c0_379 = arith.constant 0 : index
    %512 = vector.load %arg5[%c112_378, %c0_379] : memref<120x1xf32, #tpu.memory_space<vmem>>, vector<8x1xf32>
    %513 = vector.broadcast %512 : vector<8x1xf32> to vector<8x256xf32>
    %514 = arith.addf %511, %513 : vector<8x256xf32>
    %515 = vector.extract_strided_slice %27 {offsets = [32, 0], sizes = [8, 256], strides = [1, 1]} : vector<40x256xf32> to vector<8x256xf32>
    %516 = arith.addf %514, %515 : vector<8x256xf32>
    %cst_380 = arith.constant 0.000000e+00 : f32
    %517 = vector.broadcast %cst_380 : f32 to vector<8x256xf32>
    %518 = arith.maximumf %516, %517 : vector<8x256xf32>
    %c0_381 = arith.constant 0 : index
    %c0_382 = arith.constant 0 : index
    %c0_383 = arith.constant 0 : index
    %519 = vector.load %arg6[%c0_381, %c0_382, %c0_383] : memref<1x8x256xf32, #tpu.memory_space<vmem>>, vector<1x8x256xf32>
    %520 = vector.shape_cast %519 : vector<1x8x256xf32> to vector<8x256xf32>
    %521 = vector.shape_cast %518 : vector<8x256xf32> to vector<1x8x256xf32>
    tpu.vector_store %arg6[%c0_381, %c0_382, %c0_383], %521 {strides = array<i32>} : memref<1x8x256xf32, #tpu.memory_space<vmem>>, vector<1x8x256xf32>,
    return
  }
  func.func @transform_0(%arg0: i32) -> (i32, i32, i32) {
    %c0_i32 = arith.constant 0 : i32
    %c0_i32_0 = arith.constant 0 : i32
    %c0_i32_1 = arith.constant 0 : i32
    return %arg0, %c0_i32, %c0_i32_0 : i32, i32, i32
  }
  func.func @transform_1(%arg0: i32) -> (i32, i32) {
    %c0_i32 = arith.constant 0 : i32
    %c0_i32_0 = arith.constant 0 : i32
    %c0_i32_1 = arith.constant 0 : i32
    return %c0_i32, %c0_i32_0 : i32, i32
  }
  func.func @transform_2(%arg0: i32) -> (i32, i32, i32) {
    %c0_i32 = arith.constant 0 : i32
    %c0_i32_0 = arith.constant 0 : i32
    %c0_i32_1 = arith.constant 0 : i32
    %c0_i32_2 = arith.constant 0 : i32
    return %c0_i32, %c0_i32_0, %c0_i32_1 : i32, i32, i32
  }
  func.func @transform_3(%arg0: i32) -> (i32, i32, i32) {
    %c0_i32 = arith.constant 0 : i32
    %c0_i32_0 = arith.constant 0 : i32
    %c0_i32_1 = arith.constant 0 : i32
    %c0_i32_2 = arith.constant 0 : i32
    return %c0_i32, %c0_i32_0, %c0_i32_1 : i32, i32, i32
  }
  func.func @transform_4(%arg0: i32) -> (i32, i32) {
    %c0_i32 = arith.constant 0 : i32
    %c0_i32_0 = arith.constant 0 : i32
    %c0_i32_1 = arith.constant 0 : i32
    return %c0_i32, %c0_i32_0 : i32, i32
  }
  func.func @transform_5(%arg0: i32) -> (i32, i32, i32) {
    %c0_i32 = arith.constant 0 : i32
    %c0_i32_0 = arith.constant 0 : i32
    %c0_i32_1 = arith.constant 0 : i32
    return %arg0, %c0_i32, %c0_i32_0 : i32, i32, i32
  }
}

</mosaic_0001>

<llo_original>
// kernel: rfb_forward.1
$region0: #{rfb_forward.1}
  #allocation0 [shape = 'u32[]', space=smem, size = 0x4, offset = 0x4, fixed_abs, tag = 'smem constant byte address 0x4 - core index']
  #allocation1 [shape = 'u32[144,128]{1,0:T(1,128)}', space=vmem, size = 0x12000, scoped, tag = 'internal scratch']
  #allocation2 [shape = 'f32[32,512]{1,0:T(8,128)}', space=vmem, size = 0x10000, scoped, tag = 'scratch operand']
  %s0 = inlined_call_operand.vmem [shape: f32[2,4,256], index: 0, kind: input, shape index: {}]
  %s1 = inlined_call_operand.vmem [shape: f32[40,4], index: 1, kind: input, shape index: {}]
  %s2 = inlined_call_operand.vmem [shape: f32[57,8,8], index: 2, kind: input, shape index: {}]
  %s3 = inlined_call_operand.vmem [shape: f32[9,8,32], index: 3, kind: input, shape index: {}]
  %s4 = inlined_call_operand.vmem [shape: f32[120,1], index: 4, kind: input, shape index: {}]
  %s5 = inlined_call_operand.vmem [shape: f32[2,8,256], index: 5, kind: output, shape index: {}]
  %s6 = sld [smem:[#allocation0]]
  $region53: #{rfb_forward.1} parent=0
    _
  %s8 = ssub.s32 1, %s6
  %s9 = scalar_select 0, %s8, %s6
  loop: start=0, step=1, limit=4
  $region2: #{rfb_forward.1} parent=0 // loop_pre_header
    _
  $region3: #{rfb_forward.1} parent=0 // loop_header
    %s11 = sphi 0, %s15
    %p12 = scmp.ge.s32.totalorder %s11, 4
    %s21 = sphi 0, %s23
    %s24 = sphi 0, %s21
    %s25 = sphi 0, %s24
    %s41 = sphi 0, %s25
    %s45 = sphi 0, %s45
    %s47 = sphi 0, %s45
    %s48 = sphi 0, %s47
    %s62 = sphi 0, %s48
    %s66 = sphi 0, %s66
    %s68 = sphi 0, %s66
    %s69 = sphi 0, %s68
    %s83 = sphi 0, %s69
    %s87 = sphi 0, %s87
    %s89 = sphi 0, %s87
    %s90 = sphi 0, %s89
    %s104 = sphi 0, %s90
    %s108 = sphi 0, %s108
    %s110 = sphi 0, %s108
    %s111 = sphi 0, %s110
    %s125 = sphi 0, %s111
    %s131 = sphi 0, %s133
    %s134 = sphi 0, %s131
    %s135 = sphi 0, %s134
    %s151 = sphi 0, %s135
  $region4: #{rfb_forward.1} parent=0 // loop_header_branch
    %14 = sbr.rel (%p12) target = $region8
  $region5: #{rfb_forward.1} parent=0 // loop_body
    %s16 = ssub.s32 %s11, 1
    %s17 = ssub.s32 %s11, 2
    %s18 = sadd.s32 %s11, 1
    %s19 = ssub.s32 %s11, %s18
    %p20 = scmp.eq.s32.totalorder %s19, 0
    %s22 = sadd.s32 %s21, 1
    %s23 = scalar_select %p20, %s21, %s22
    %p26 = pneg %p20
    %p27 = scmp.eq.s32.totalorder %s11, 1
    %p28 = por %p26, %p27
    %p29 = scmp.ne.s32.totalorder %s21, %s24
    %p30 = scmp.eq.s32.totalorder %s11, 0
    %p31 = por %p29, %p30
    %p32 = scmp.ne.s32.totalorder %s21, %s24
    %p33 = scmp.eq.s32.totalorder %s16, 1
    %p34 = por %p32, %p33
    %p35 = scmp.ne.s32.totalorder %s24, %s25
    %p36 = scmp.eq.s32.totalorder %s16, 0
    %p37 = por %p35, %p36
    %p38 = scmp.ne.s32.totalorder %s24, %s25
    %p39 = scmp.eq.s32.totalorder %s17, 1
    %p40 = por %p38, %p39
    %p42 = scmp.ne.s32.totalorder %s25, %s41
    %p43 = scmp.eq.s32.totalorder %s17, 0
    %p44 = por %p42, %p43
    %s46 = sadd.s32 %s45, 1
    %p49 = scmp.eq.s32.totalorder %s11, 1
    %p50 = scmp.ne.s32.totalorder %s45, %s47
    %p51 = scmp.eq.s32.totalorder %s11, 0
    %p52 = por %p50, %p51
    %p53 = scmp.ne.s32.totalorder %s45, %s47
    %p54 = scmp.eq.s32.totalorder %s16, 1
    %p55 = por %p53, %p54
    %p56 = scmp.ne.s32.totalorder %s47, %s48
    %p57 = scmp.eq.s32.totalorder %s16, 0
    %p58 = por %p56, %p57
    %p59 = scmp.ne.s32.totalorder %s47, %s48
    %p60 = scmp.eq.s32.totalorder %s17, 1
    %p61 = por %p59, %p60
    %p63 = scmp.ne.s32.totalorder %s48, %s62
    %p64 = scmp.eq.s32.totalorder %s17, 0
    %p65 = por %p63, %p64
    %s67 = sadd.s32 %s66, 1
    %p70 = scmp.eq.s32.totalorder %s11, 1
    %p71 = scmp.ne.s32.totalorder %s66, %s68
    %p72 = scmp.eq.s32.totalorder %s11, 0
    %p73 = por %p71, %p72
    %p74 = scmp.ne.s32.totalorder %s66, %s68
    %p75 = scmp.eq.s32.totalorder %s16, 1
    %p76 = por %p74, %p75
    %p77 = scmp.ne.s32.totalorder %s68, %s69
    %p78 = scmp.eq.s32.totalorder %s16, 0
    %p79 = por %p77, %p78
    %p80 = scmp.ne.s32.totalorder %s68, %s69
    %p81 = scmp.eq.s32.totalorder %s17, 1
    %p82 = por %p80, %p81
    %p84 = scmp.ne.s32.totalorder %s69, %s83
    %p85 = scmp.eq.s32.totalorder %s17, 0
    %p86 = por %p84, %p85
    %s88 = sadd.s32 %s87, 1
    %p91 = scmp.eq.s32.totalorder %s11, 1
    %p92 = scmp.ne.s32.totalorder %s87, %s89
    %p93 = scmp.eq.s32.totalorder %s11, 0
    %p94 = por %p92, %p93
    %p95 = scmp.ne.s32.totalorder %s87, %s89
    %p96 = scmp.eq.s32.totalorder %s16, 1
    %p97 = por %p95, %p96
    %p98 = scmp.ne.s32.totalorder %s89, %s90
    %p99 = scmp.eq.s32.totalorder %s16, 0
    %p100 = por %p98, %p99
    %p101 = scmp.ne.s32.totalorder %s89, %s90
    %p102 = scmp.eq.s32.totalorder %s17, 1
    %p103 = por %p101, %p102
    %p105 = scmp.ne.s32.totalorder %s90, %s104
    %p106 = scmp.eq.s32.totalorder %s17, 0
    %p107 = por %p105, %p106
    %s109 = sadd.s32 %s108, 1
    %p112 = scmp.eq.s32.totalorder %s11, 1
    %p113 = scmp.ne.s32.totalorder %s108, %s110
    %p114 = scmp.eq.s32.totalorder %s11, 0
    %p115 = por %p113, %p114
    %p116 = scmp.ne.s32.totalorder %s108, %s110
    %p117 = scmp.eq.s32.totalorder %s16, 1
    %p118 = por %p116, %p117
    %p119 = scmp.ne.s32.totalorder %s110, %s111
    %p120 = scmp.eq.s32.totalorder %s16, 0
    %p121 = por %p119, %p120
    %p122 = scmp.ne.s32.totalorder %s110, %s111
    %p123 = scmp.eq.s32.totalorder %s17, 1
    %p124 = por %p122, %p123
    %p126 = scmp.ne.s32.totalorder %s111, %s125
    %p127 = scmp.eq.s32.totalorder %s17, 0
    %p128 = por %p126, %p127
    %s129 = ssub.s32 %s11, %s18
    %p130 = scmp.eq.s32.totalorder %s129, 0
    %s132 = sadd.s32 %s131, 1
    %s133 = scalar_select %p130, %s131, %s132
    %p136 = pneg %p130
    %p137 = scmp.eq.s32.totalorder %s11, 1
    %p138 = por %p136, %p137
    %p139 = scmp.ne.s32.totalorder %s131, %s134
    %p140 = scmp.eq.s32.totalorder %s11, 0
    %p141 = por %p139, %p140
    %p142 = scmp.ne.s32.totalorder %s131, %s134
    %p143 = scmp.eq.s32.totalorder %s16, 1
    %p144 = por %p142, %p143
    %p145 = scmp.ne.s32.totalorder %s134, %s135
    %p146 = scmp.eq.s32.totalorder %s16, 0
    %p147 = por %p145, %p146
    %p148 = scmp.ne.s32.totalorder %s134, %s135
    %p149 = scmp.eq.s32.totalorder %s17, 1
    %p150 = por %p148, %p149
    %p152 = scmp.ne.s32.totalorder %s135, %s151
    %p153 = scmp.eq.s32.totalorder %s17, 0
    %p154 = por %p152, %p153
    %p155 = scmp.le.s32.totalorder 1, %s11
    %p156 = scmp.lt.s32.totalorder %s11, 3
    %p157 = pnand %p155, %p156
    %p158 = pneg %p157
    // Predicated region
    $region9: #{rfb_forward.1} parent=5 // pred_check
      _
    $region10: #{rfb_forward.1} parent=5 // pred_check_branch
      %160 = sbr.rel (%p157) target = $region12
    $region11: #{rfb_forward.1} parent=5 // pred_region
      %s161 = ssub.s32 %s11, 1
      // Predicated region
      $region13: #{rfb_forward.1} parent=11 // pred_check
        %p162 = pneg %p58
      $region14: #{rfb_forward.1} parent=11 // pred_check_branch
        %164 = sbr.rel (%p162) target = $region16
      $region15: #{rfb_forward.1} parent=11 // pred_region
        _
      $region16: #{rfb_forward.1} parent=11 // pred_fallthru
        _
      // Predicated region
      $region17: #{rfb_forward.1} parent=11 // pred_check
        %p165 = pneg %p79
      $region18: #{rfb_forward.1} parent=11 // pred_check_branch
        %167 = sbr.rel (%p165) target = $region20
      $region19: #{rfb_forward.1} parent=11 // pred_region
        _
      $region20: #{rfb_forward.1} parent=11 // pred_fallthru
        _
      // Predicated region
      $region21: #{rfb_forward.1} parent=11 // pred_check
        %p168 = pneg %p100
      $region22: #{rfb_forward.1} parent=11 // pred_check_branch
        %170 = sbr.rel (%p168) target = $region24
      $region23: #{rfb_forward.1} parent=11 // pred_region
        _
      $region24: #{rfb_forward.1} parent=11 // pred_fallthru
        _
      // Predicated region
      $region25: #{rfb_forward.1} parent=11 // pred_check
        %p171 = pneg %p121
      $region26: #{rfb_forward.1} parent=11 // pred_check_branch
        %173 = sbr.rel (%p171) target = $region28
      $region27: #{rfb_forward.1} parent=11 // pred_region
        _
      $region28: #{rfb_forward.1} parent=11 // pred_fallthru
        _
    $region12: #{rfb_forward.1} parent=5 // pred_fallthru
      _
    %p174 = scmp.lt.s32.totalorder %s11, 2
    // Predicated region
    $region29: #{rfb_forward.1} parent=5 // pred_check
      %p175 = pneg %p174
    $region30: #{rfb_forward.1} parent=5 // pred_check_branch
      %177 = sbr.rel (%p175) target = $region32
    $region31: #{rfb_forward.1} parent=5 // pred_region
      // Predicated region
      $region33: #{rfb_forward.1} parent=31 // pred_check
        %p178 = pneg %p31
      $region34: #{rfb_forward.1} parent=31 // pred_check_branch
        %180 = sbr.rel (%p178) target = $region36
      $region35: #{rfb_forward.1} parent=31 // pred_region
        %p181 = scmp.lt.s32.totalorder %s11, 1
        %s182 = scalar_select %p181, %s11, 1
        %s183 = smul.addr %s182, 2
        %s184 = smul.addr %s183, 4
        %s185 = scalar_lea.vmem %s0, %s184
      $region36: #{rfb_forward.1} parent=31 // pred_fallthru
        _
    $region32: #{rfb_forward.1} parent=5 // pred_fallthru
      _
    %p186 = scmp.le.s32.totalorder 1, %s11
    %p187 = scmp.lt.s32.totalorder %s11, 3
    %p188 = pnand %p186, %p187
    %p189 = pneg %p188
    // Predicated region
    $region37: #{rfb_forward.1} parent=5 // pred_check
      _
    $region38: #{rfb_forward.1} parent=5 // pred_check_branch
      %191 = sbr.rel (%p188) target = $region40
    $region39: #{rfb_forward.1} parent=5 // pred_region
      %s192 = ssub.s32 %s11, 1
      %p193 = scmp.lt.s32.totalorder %s16, 1
      %s194 = scalar_select %p193, %s16, 1
      %s195 = smul.addr %s194, 2
      %s196 = smul.addr %s195, 4
      %s197 = scalar_lea.vmem %s0, %s196
      %p198 = pneg %p37
      %p199 = pneg %p34
      %p200 = pneg %p58
      %p201 = pneg %p55
      %p202 = pneg %p79
      %p203 = pneg %p76
      %p204 = pneg %p100
      %p205 = pneg %p97
      %p206 = pneg %p121
      %p207 = pneg %p118
      %p208 = pneg %p147
      %p209 = pneg %p144
      %p210 = scmp.lt.s32.totalorder %s16, 1
      %s211 = scalar_select %p210, %s16, 1
      %s212 = smul.addr %s211, 2
      %s213 = smul.addr %s212, 8
      %s214 = scalar_lea.vmem %s5, %s213
      %p215 = scmp.lt.s32.totalorder %s16, 1
      %s216 = scalar_select %p215, %s16, 1
      %s217 = smul.addr %s216, 2
      %s218 = smul.addr %s217, 4
      %s219 = scalar_lea.vmem %s0, %s218
      %p220 = scmp.lt.s32.totalorder %s16, 1
      %s221 = scalar_select %p220, %s16, 1
      %s222 = smul.addr %s221, 2
      %s223 = smul.addr %s222, 8
      %s224 = scalar_lea.vmem %s5, %s223
      %225 = vst [vmem:[#allocation2] sm:$0xff] 0.0
      %226 = vst [vmem:[#allocation2 + $0x20] sm:$0xff] 0.0
      %227 = vst [vmem:[#allocation2 + $0x40] sm:$0xff] 0.0
      %228 = vst [vmem:[#allocation2 + $0x60] sm:$0xff] 0.0
      %229 = vst [vmem:[#allocation2 + $0x18] sm:$0xff] 0.0
      %230 = vst [vmem:[#allocation2 + $0x38] sm:$0xff] 0.0
      %231 = vst [vmem:[#allocation2 + $0x58] sm:$0xff] 0.0
      %232 = vst [vmem:[#allocation2 + $0x78] sm:$0xff] 0.0
      %v233 = vlaneseq
      %v234 = vand.u32 %v233, 127
      %v235 = vadd.s32 %v234, 128
      %vm236 = vcmp.lt.s32.totalorder %v234, 0
      %v237 = vsub.s32 0, %v234
      %v238 = vsel %vm236, %v237, %v234
      %v239 = vshrl.u32 %v238, 4
      %v240 = vand.u32 %v238, 15
      %v241 = vsub.s32 0, %v240
      %v242 = vsel %vm236, %v241, %v240
      %vm243 = vcmp.lt.s32.totalorder %v235, 0
      %v244 = vsub.s32 0, %v235
      %v245 = vsel %vm243, %v244, %v235
      %v246 = vshrl.u32 %v245, 4
      %v247 = vand.u32 %v245, 15
      %v248 = vsub.s32 0, %v247
      %v249 = vsel %vm243, %v248, %v247
      %vm250 = vcmp.ne.s32.totalorder %v242, 0
      %vm251 = vcmp.ne.s32.totalorder %v249, 0
      %vm252 = vcmp.lt.s32.totalorder %v242, 0
      %vm253 = vcmp.lt.s32.totalorder %v249, 0
      %vm254 = vmand %vm252, %vm250
      %vm255 = vmand %vm253, %vm251
      %v256 = vadd.s32 %v242, 16
      %v257 = vadd.s32 %v249, 16
      %v258 = vsel %vm254, %v256, %v242
      %v259 = vsel %vm255, %v257, %v249
      %v260 = vld [vmem:[%s219] sm:$0xff]
      %v261 = vld [vmem:[%s1] sm:$0xff]
      %v262 = vld [vmem:[%s1 + $0x8] sm:$0xff]
      %v263 = vld [vmem:[%s1 + $0x10] sm:$0xff]
      %v264 = vld [vmem:[%s1 + $0x18] sm:$0xff]
      %v265 = vld [vmem:[%s1 + $0x20] sm:$0xff]
      %v266 = vld [vmem:[%s4] sm:$0xff]
      %v267 = vld [vmem:[%s4 + $0x8] sm:$0xff]
      %v268 = vld [vmem:[%s4 + $0x10] sm:$0xff]
      %v269 = vld [vmem:[%s4 + $0x18] sm:$0xff]
      %v270 = vld [vmem:[%s4 + $0x20] sm:$0xff]
      %272 = vset.pattern.permute.xlu0 0
      %273 = vperm.xlu0 %272, %v266
      %v274 = vpop.permute.xlu0 %273
      %277 = vset.pattern.permute.xlu0 0
      %278 = vperm.xlu0 %277, %v267
      %v279 = vpop.permute.xlu0 %278
      %282 = vset.pattern.permute.xlu0 0
      %283 = vperm.xlu0 %282, %v268
      %v284 = vpop.permute.xlu0 %283
      %287 = vset.pattern.permute.xlu0 0
      %288 = vperm.xlu0 %287, %v269
      %v289 = vpop.permute.xlu0 %288
      %292 = vset.pattern.permute.xlu0 0
      %293 = vperm.xlu0 %292, %v270
      %v294 = vpop.permute.xlu0 %293
      %v297 = vcombine.high %v260, %v260
      %vm298 = vcmask 31744
      %v300 = vsel %vm298, %v261, 0
      %v303 = vsel %vm298, %v262, 0
      %v306 = vsel %vm298, %v263, 0
      %v309 = vsel %vm298, %v264, 0
      %v312 = vsel %vm298, %v265, 0
      %vm314 = vcmask 1043456
      %v315 = vsel %vm314, %v260, 0
      %v317 = vsel %vm314, %v297, 0
      %319 = vmatprep.subr.mxu0 %v317
      %320 = vmatpush1.msra.mxu0 %v315
      %321 = vmatprep.subr.mxu0 0.0
      %322 = vmatpush1.msra.mxu0 0.0
      %323 = vmatprep.subr.mxu0 0.0
      %324 = vmatpush1.msra.mxu0 0.0
      %325 = vmatprep.subr.mxu0 0.0
      %326 = vmatpush1.msra.mxu0 0.0
      %327 = vmatprep.subr.mxu0 0.0
      %328 = vmatpush1.msra.mxu0 0.0
      %329 = vmatprep.subr.mxu0 0.0
      %330 = vmatpush1.msra.mxu0 0.0
      %331 = vmatprep.subr.mxu0 0.0
      %332 = vmatpush1.msra.mxu0 0.0
      %333 = vmatprep.subr.mxu0 0.0
      %334 = vmatpush1.msra.mxu0 0.0
      %335 = vmatprep.subr.mxu0 0.0
      %336 = vmatpush1.msra.mxu0 0.0
      %337 = vmatprep.subr.mxu0 0.0
      %338 = vmatpush1.msra.mxu0 0.0
      %339 = vmatprep.subr.mxu0 0.0
      %340 = vmatpush1.msra.mxu0 0.0
      %341 = vmatprep.subr.mxu0 0.0
      %342 = vmatpush1.msra.mxu0 0.0
      %343 = vmatprep.subr.mxu0 0.0
      %344 = vmatpush1.msra.mxu0 0.0
      %345 = vmatprep.subr.mxu0 0.0
      %346 = vmatpush1.msra.mxu0 0.0
      %347 = vmatprep.subr.mxu0 0.0
      %348 = vmatpush1.msra.mxu0 0.0
      %349 = vmatprep.subr.mxu0 0.0
      %350 = vmatpush1.msra.mxu0 0.0
      %351 = vmatprep.subr.mxu0 0.0
      %352 = vmatpush1.msra.mxu0 0.0
      %353 = vmatprep.subr.mxu0 0.0
      %354 = vmatpush1.msra.mxu0 0.0
      %355 = vmatprep.subr.mxu0 0.0
      %356 = vmatpush1.msra.mxu0 0.0
      %357 = vmatprep.subr.mxu0 0.0
      %358 = vmatpush1.msra.mxu0 0.0
      %359 = vmatprep.subr.mxu0 0.0
      %360 = vmatpush1.msra.mxu0 0.0
      %361 = vmatprep.subr.mxu0 0.0
      %362 = vmatpush1.msra.mxu0 0.0
      %363 = vmatprep.subr.mxu0 0.0
      %364 = vmatpush1.msra.mxu0 0.0
      %365 = vmatprep.subr.mxu0 0.0
      %366 = vmatpush1.msra.mxu0 0.0
      %367 = vmatprep.subr.mxu0 0.0
      %368 = vmatpush1.msra.mxu0 0.0
      %369 = vmatprep.subr.mxu0 0.0
      %370 = vmatpush1.msra.mxu0 0.0
      %371 = vmatprep.subr.mxu0 0.0
      %372 = vmatpush1.msra.mxu0 0.0
      %373 = vmatprep.subr.mxu0 0.0
      %374 = vmatpush1.msra.mxu0 0.0
      %375 = vmatprep.subr.mxu0 0.0
      %376 = vmatpush1.msra.mxu0 0.0
      %377 = vmatprep.subr.mxu0 0.0
      %378 = vmatpush1.msra.mxu0 0.0
      %379 = vmatprep.subr.mxu0 0.0
      %380 = vmatpush1.msra.mxu0 0.0
      %381 = vmatprep.subr.mxu0 0.0
      %382 = vmatpush1.msra.mxu0 0.0
      %383 = vmatprep.mubr.f32.mxu0 0.0
      %384 = vmatmul.mubr.f32.gmra.mrb[0].mxu0 %v300
      %v385 = vpop.f32.mrb[0].mxu0
      %v386 = vadd.f32 %v274, %v385
      %v387 = vpop.f32.mrb[0].mxu0
      %v388 = vadd.f32 %v274, %v387
      %389 = vmatprep.mubr.f32.mxu0 0.0
      %390 = vmatmul.mubr.f32.gmra.mrb[0].mxu0 %v303
      %v391 = vpop.f32.mrb[0].mxu0
      %v392 = vadd.f32 %v279, %v391
      %v393 = vpop.f32.mrb[0].mxu0
      %v394 = vadd.f32 %v279, %v393
      %395 = vmatprep.mubr.f32.mxu0 0.0
      %396 = vmatmul.mubr.f32.gmra.mrb[0].mxu0 %v306
      %v397 = vpop.f32.mrb[0].mxu0
      %v398 = vadd.f32 %v284, %v397
      %v399 = vpop.f32.mrb[0].mxu0
      %v400 = vadd.f32 %v284, %v399
      %401 = vmatprep.mubr.f32.mxu0 0.0
      %402 = vmatmul.mubr.f32.gmra.mrb[0].mxu0 %v309
      %v403 = vpop.f32.mrb[0].mxu0
      %v404 = vadd.f32 %v289, %v403
      %v405 = vpop.f32.mrb[0].mxu0
      %v406 = vadd.f32 %v289, %v405
      %407 = vmatprep.mubr.f32.mxu0 0.0
      %408 = vmatmul.mubr.f32.gmra.mrb[0].mxu0 %v312
      %v409 = vpop.f32.mrb[0].mxu0
      %v410 = vadd.f32 %v294, %v409
      %v411 = vpop.f32.mrb[0].mxu0
      %v412 = vadd.f32 %v294, %v411
      %413 = vdwg.mxu0
      %414 = vst [vmem:[#allocation2 + $0x8] sm:$0xff] %v392
      %415 = vst [vmem:[#allocation2 + $0x10] sm:$0xff] %v394
      %v416 = vld [vmem:[#allocation2] sm:$0xff]
      %v417 = vld [vmem:[#allocation2 + $0x8] sm:$0xff]
      %v418 = vld [vmem:[#allocation2 + $0x10] sm:$0xff]
      %vm419 = vcmp.ge.s32.totalorder %v258, 1
      %vm420 = vcmp.ge.s32.totalorder %v259, 1
      %v421 = vsel %vm419, 1.0, 0.0
      %v422 = vsel %vm420, 1.0, 0.0
      %425 = vrot.lane.b32.xlu0 %v421, 127
      %v426 = vpop.permute.xlu0 %425
      %427 = vrot.lane.b32.xlu0 %v422, 127
      %v428 = vpop.permute.xlu0 %427
      %vm429 = vcmask 1039360
      %v430 = vsel %vm429, %v426, %v428
      %v434 = vmul.f32 %v416, %v426
      %v435 = vmul.f32 %v417, %v430
      %v436 = vmul.f32 %v418, %v428
      %v437 = vld [vmem:[%s2] sm:$0xff]
      %s438 = scalar_lea.vmem %s2, 8
      %v439 = vld [vmem:[%s438] sm:$0xff]
      %vm440 = vcmask 64512
      %v442 = vsel %vm440, %v439, 0
      %444 = vmatprep.subr.mxu0 %v418
      %445 = vmatpush1.msra.mxu0 %v417
      %446 = vmatprep.subr.mxu0 0.0
      %447 = vmatpush1.msra.mxu0 0.0
      %448 = vmatprep.subr.mxu0 0.0
      %449 = vmatpush1.msra.mxu0 0.0
      %450 = vmatprep.subr.mxu0 0.0
      %451 = vmatpush1.msra.mxu0 0.0
      %452 = vmatprep.subr.mxu0 0.0
      %453 = vmatpush1.msra.mxu0 0.0
      %454 = vmatprep.subr.mxu0 0.0
      %455 = vmatpush1.msra.mxu0 0.0
      %456 = vmatprep.subr.mxu0 0.0
      %457 = vmatpush1.msra.mxu0 0.0
      %458 = vmatprep.subr.mxu0 0.0
      %459 = vmatpush1.msra.mxu0 0.0
      %460 = vmatprep.subr.mxu0 0.0
      %461 = vmatpush1.msra.mxu0 0.0
      %462 = vmatprep.subr.mxu0 0.0
      %463 = vmatpush1.msra.mxu0 0.0
      %464 = vmatprep.subr.mxu0 0.0
      %465 = vmatpush1.msra.mxu0 0.0
      %466 = vmatprep.subr.mxu0 0.0
      %467 = vmatpush1.msra.mxu0 0.0
      %468 = vmatprep.subr.mxu0 0.0
      %469 = vmatpush1.msra.mxu0 0.0
      %470 = vmatprep.subr.mxu0 0.0
      %471 = vmatpush1.msra.mxu0 0.0
      %472 = vmatprep.subr.mxu0 0.0
      %473 = vmatpush1.msra.mxu0 0.0
      %474 = vmatprep.subr.mxu0 0.0
      %475 = vmatpush1.msra.mxu0 0.0
      %476 = vmatprep.subr.mxu0 0.0
      %477 = vmatpush1.msra.mxu0 0.0
      %478 = vmatprep.subr.mxu0 0.0
      %479 = vmatpush1.msra.mxu0 0.0
      %480 = vmatprep.subr.mxu0 0.0
      %481 = vmatpush1.msra.mxu0 0.0
      %482 = vmatprep.subr.mxu0 0.0
      %483 = vmatpush1.msra.mxu0 0.0
      %484 = vmatprep.subr.mxu0 0.0
      %485 = vmatpush1.msra.mxu0 0.0
      %486 = vmatprep.subr.mxu0 0.0
      %487 = vmatpush1.msra.mxu0 0.0
      %488 = vmatprep.subr.mxu0 0.0
      %489 = vmatpush1.msra.mxu0 0.0
      %490 = vmatprep.subr.mxu0 0.0
      %491 = vmatpush1.msra.mxu0 0.0
      %492 = vmatprep.subr.mxu0 0.0
      %493 = vmatpush1.msra.mxu0 0.0
      %494 = vmatprep.subr.mxu0 0.0
      %495 = vmatpush1.msra.mxu0 0.0
      %496 = vmatprep.subr.mxu0 0.0
      %497 = vmatpush1.msra.mxu0 0.0
      %498 = vmatprep.subr.mxu0 0.0
      %499 = vmatpush1.msra.mxu0 0.0
      %500 = vmatprep.subr.mxu0 0.0
      %501 = vmatpush1.msra.mxu0 0.0
      %502 = vmatprep.subr.mxu0 0.0
      %503 = vmatpush1.msra.mxu0 0.0
      %504 = vmatprep.subr.mxu0 0.0
      %505 = vmatpush1.msra.mxu0 0.0
      %506 = vmatprep.subr.mxu0 0.0
      %507 = vmatpush1.msra.mxu0 0.0
      %508 = vmatprep.mubr.f32.mxu0 0.0
      %509 = vmatmul.mubr.f32.gmra.mrb[0].mxu0 %v442
      %v510 = vpop.f32.mrb[0].mxu0
      %v511 = vadd.f32 0.0, %v510
      %v512 = vpop.f32.mrb[0].mxu0
      %v513 = vadd.f32 0.0, %v512
      %514 = vdwg.mxu0
      %518 = vrot.lane.b32.xlu0 %v434, 1
      %v519 = vpop.permute.xlu0 %518
      %520 = vrot.lane.b32.xlu0 %v435, 1
      %v521 = vpop.permute.xlu0 %520
      %522 = vrot.lane.b32.xlu0 %v436, 1
      %v523 = vpop.permute.xlu0 %522
      %vm524 = vcmask 7168
      %v525 = vsel %vm524, %v519, %v521
      %v526 = vsel %vm524, %v521, %v523
      %v530 = vsel %vm440, %v437, 0
      %532 = vmatprep.subr.mxu0 %v526
      %533 = vmatpush1.msra.mxu0 %v525
      %534 = vmatprep.subr.mxu0 0.0
      %535 = vmatpush1.msra.mxu0 0.0
      %536 = vmatprep.subr.mxu0 0.0
      %537 = vmatpush1.msra.mxu0 0.0
      %538 = vmatprep.subr.mxu0 0.0
      %539 = vmatpush1.msra.mxu0 0.0
      %540 = vmatprep.subr.mxu0 0.0
      %541 = vmatpush1.msra.mxu0 0.0
      %542 = vmatprep.subr.mxu0 0.0
      %543 = vmatpush1.msra.mxu0 0.0
      %544 = vmatprep.subr.mxu0 0.0
      %545 = vmatpush1.msra.mxu0 0.0
      %546 = vmatprep.subr.mxu0 0.0
      %547 = vmatpush1.msra.mxu0 0.0
      %548 = vmatprep.subr.mxu0 0.0
      %549 = vmatpush1.msra.mxu0 0.0
      %550 = vmatprep.subr.mxu0 0.0
      %551 = vmatpush1.msra.mxu0 0.0
      %552 = vmatprep.subr.mxu0 0.0
      %553 = vmatpush1.msra.mxu0 0.0
      %554 = vmatprep.subr.mxu0 0.0
      %555 = vmatpush1.msra.mxu0 0.0
      %556 = vmatprep.subr.mxu0 0.0
      %557 = vmatpush1.msra.mxu0 0.0
      %558 = vmatprep.subr.mxu0 0.0
      %559 = vmatpush1.msra.mxu0 0.0
      %560 = vmatprep.subr.mxu0 0.0
      %561 = vmatpush1.msra.mxu0 0.0
      %562 = vmatprep.subr.mxu0 0.0
      %563 = vmatpush1.msra.mxu0 0.0
      %564 = vmatprep.subr.mxu0 0.0
      %565 = vmatpush1.msra.mxu0 0.0
      %566 = vmatprep.subr.mxu0 0.0
      %567 = vmatpush1.msra.mxu0 0.0
      %568 = vmatprep.subr.mxu0 0.0
      %569 = vmatpush1.msra.mxu0 0.0
      %570 = vmatprep.subr.mxu0 0.0
      %571 = vmatpush1.msra.mxu0 0.0
      %572 = vmatprep.subr.mxu0 0.0
      %573 = vmatpush1.msra.mxu0 0.0
      %574 = vmatprep.subr.mxu0 0.0
      %575 = vmatpush1.msra.mxu0 0.0
      %576 = vmatprep.subr.mxu0 0.0
      %577 = vmatpush1.msra.mxu0 0.0
      %578 = vmatprep.subr.mxu0 0.0
      %579 = vmatpush1.msra.mxu0 0.0
      %580 = vmatprep.subr.mxu0 0.0
      %581 = vmatpush1.msra.mxu0 0.0
      %582 = vmatprep.subr.mxu0 0.0
      %583 = vmatpush1.msra.mxu0 0.0
      %584 = vmatprep.subr.mxu0 0.0
      %585 = vmatpush1.msra.mxu0 0.0
      %586 = vmatprep.subr.mxu0 0.0
      %587 = vmatpush1.msra.mxu0 0.0
      %588 = vmatprep.subr.mxu0 0.0
      %589 = vmatpush1.msra.mxu0 0.0
      %590 = vmatprep.subr.mxu0 0.0
      %591 = vmatpush1.msra.mxu0 0.0
      %592 = vmatprep.subr.mxu0 0.0
      %593 = vmatpush1.msra.mxu0 0.0
      %594 = vmatprep.subr.mxu0 0.0
      %595 = vmatpush1.msra.mxu0 0.0
      %596 = vmatprep.mubr.f32.mxu0 0.0
      %597 = vmatmul.mubr.f32.gmra.mrb[0].mxu0 %v530
      %v598 = vpop.f32.mrb[0].mxu0
      %v599 = vadd.f32 %v511, %v598
      %v600 = vpop.f32.mrb[0].mxu0
      %v601 = vadd.f32 %v513, %v600
      %602 = vdwg.mxu0
      %v603 = vld [vmem:[#allocation2 + $0x8] sm:$0xff]
      %v604 = vld [vmem:[#allocation2 + $0x10] sm:$0xff]
      %v605 = vld [vmem:[#allocation2 + $0x18] sm:$0xff]
      %vm606 = vcmp.lt.s32.totalorder %v258, 15
      %vm607 = vcmp.lt.s32.totalorder %v259, 15
      %v608 = vsel %vm606, 1.0, 0.0
      %v609 = vsel %vm607, 1.0, 0.0
      %612 = vrot.lane.b32.xlu0 %v608, 1
      %v613 = vpop.permute.xlu0 %612
      %614 = vrot.lane.b32.xlu0 %v609, 1
      %v615 = vpop.permute.xlu0 %614
      %v616 = vsel %vm524, %v613, %v615
      %v620 = vmul.f32 %v603, %v613
      %v621 = vmul.f32 %v604, %v616
      %v622 = vmul.f32 %v605, %v615
      %s623 = scalar_lea.vmem %s2, 16
      %v624 = vld [vmem:[%s623] sm:$0xff]
      %628 = vrot.lane.b32.xlu0 %v620, 127
      %v629 = vpop.permute.xlu0 %628
      %630 = vrot.lane.b32.xlu0 %v621, 127
      %v631 = vpop.permute.xlu0 %630
      %632 = vrot.lane.b32.xlu0 %v622, 127
      %v633 = vpop.permute.xlu0 %632
      %v634 = vsel %vm429, %v629, %v631
      %v635 = vsel %vm429, %v631, %v633
      %v639 = vsel %vm440, %v624, 0
      %641 = vmatprep.subr.mxu0 %v635
      %642 = vmatpush1.msra.mxu0 %v634
      %643 = vmatprep.subr.mxu0 0.0
      %644 = vmatpush1.msra.mxu0 0.0
      %645 = vmatprep.subr.mxu0 0.0
      %646 = vmatpush1.msra.mxu0 0.0
      %647 = vmatprep.subr.mxu0 0.0
      %648 = vmatpush1.msra.mxu0 0.0
      %649 = vmatprep.subr.mxu0 0.0
      %650 = vmatpush1.msra.mxu0 0.0
      %651 = vmatprep.subr.mxu0 0.0
      %652 = vmatpush1.msra.mxu0 0.0
      %653 = vmatprep.subr.mxu0 0.0
      %654 = vmatpush1.msra.mxu0 0.0
      %655 = vmatprep.subr.mxu0 0.0
      %656 = vmatpush1.msra.mxu0 0.0
      %657 = vmatprep.subr.mxu0 0.0
      %658 = vmatpush1.msra.mxu0 0.0
      %659 = vmatprep.subr.mxu0 0.0
      %660 = vmatpush1.msra.mxu0 0.0
      %661 = vmatprep.subr.mxu0 0.0
      %662 = vmatpush1.msra.mxu0 0.0
      %663 = vmatprep.subr.mxu0 0.0
      %664 = vmatpush1.msra.mxu0 0.0
      %665 = vmatprep.subr.mxu0 0.0
      %666 = vmatpush1.msra.mxu0 0.0
      %667 = vmatprep.subr.mxu0 0.0
      %668 = vmatpush1.msra.mxu0 0.0
      %669 = vmatprep.subr.mxu0 0.0
      %670 = vmatpush1.msra.mxu0 0.0
      %671 = vmatprep.subr.mxu0 0.0
      %672 = vmatpush1.msra.mxu0 0.0
      %673 = vmatprep.subr.mxu0 0.0
      %674 = vmatpush1.msra.mxu0 0.0
      %675 = vmatprep.subr.mxu0 0.0
      %676 = vmatpush1.msra.mxu0 0.0
      %677 = vmatprep.subr.mxu0 0.0
      %678 = vmatpush1.msra.mxu0 0.0
      %679 = vmatprep.subr.mxu0 0.0
      %680 = vmatpush1.msra.mxu0 0.0
      %681 = vmatprep.subr.mxu0 0.0
      %682 = vmatpush1.msra.mxu0 0.0
      %683 = vmatprep.subr.mxu0 0.0
      %684 = vmatpush1.msra.mxu0 0.0
      %685 = vmatprep.subr.mxu0 0.0
      %686 = vmatpush1.msra.mxu0 0.0
      %687 = vmatprep.subr.mxu0 0.0
      %688 = vmatpush1.msra.mxu0 0.0
      %689 = vmatprep.subr.mxu0 0.0
      %690 = vmatpush1.msra.mxu0 0.0
      %691 = vmatprep.subr.mxu0 0.0
      %692 = vmatpush1.msra.mxu0 0.0
      %693 = vmatprep.subr.mxu0 0.0
      %694 = vmatpush1.msra.mxu0 0.0
      %695 = vmatprep.subr.mxu0 0.0
      %696 = vmatpush1.msra.mxu0 0.0
      %697 = vmatprep.subr.mxu0 0.0
      %698 = vmatpush1.msra.mxu0 0.0
      %699 = vmatprep.subr.mxu0 0.0
      %700 = vmatpush1.msra.mxu0 0.0
      %701 = vmatprep.subr.mxu0 0.0
      %702 = vmatpush1.msra.mxu0 0.0
      %703 = vmatprep.subr.mxu0 0.0
      %704 = vmatpush1.msra.mxu0 0.0
      %705 = vmatprep.mubr.f32.mxu0 0.0
      %706 = vmatmul.mubr.f32.gmra.mrb[0].mxu0 %v639
      %v707 = vpop.f32.mrb[0].mxu0
      %v708 = vadd.f32 0.0, %v707
      %v709 = vpop.f32.mrb[0].mxu0
      %v710 = vadd.f32 0.0, %v709
      %711 = vdwg.mxu0
      %v712 = vadd.f32 %v599, %v708
      %v713 = vadd.f32 %v601, %v710
      %v714 = vld [vmem:[%s4 + $0x28] sm:$0xff]
      %716 = vset.pattern.permute.xlu0 0
      %717 = vperm.xlu0 %716, %v714
      %v718 = vpop.permute.xlu0 %717
      %v720 = vadd.f32 %v712, %v718
      %v721 = vadd.f32 %v713, %v718
      %722 = vst [vmem:[#allocation2 + $0x8] sm:$0xff] %v720
      %723 = vst [vmem:[#allocation2 + $0x10] sm:$0xff] %v721
      %v724 = vld [vmem:[#allocation2] sm:$0xff]
      %v725 = vld [vmem:[#allocation2 + $0x8] sm:$0xff]
      %v726 = vld [vmem:[#allocation2 + $0x10] sm:$0xff]
      %s727 = scalar_lea.vmem %s2, 24
      %v728 = vld [vmem:[%s727] sm:$0xff]
      %s729 = scalar_lea.vmem %s2, 32
      %v730 = vld [vmem:[%s729] sm:$0xff]
      %v732 = vsel %vm440, %v730, 0
      %734 = vmatprep.subr.mxu0 %v726
      %735 = vmatpush1.msra.mxu0 %v725
      %736 = vmatprep.subr.mxu0 0.0
      %737 = vmatpush1.msra.mxu0 0.0
      %738 = vmatprep.subr.mxu0 0.0
      %739 = vmatpush1.msra.mxu0 0.0
      %740 = vmatprep.subr.mxu0 0.0
      %741 = vmatpush1.msra.mxu0 0.0
      %742 = vmatprep.subr.mxu0 0.0
      %743 = vmatpush1.msra.mxu0 0.0
      %744 = vmatprep.subr.mxu0 0.0
      %745 = vmatpush1.msra.mxu0 0.0
      %746 = vmatprep.subr.mxu0 0.0
      %747 = vmatpush1.msra.mxu0 0.0
      %748 = vmatprep.subr.mxu0 0.0
      %749 = vmatpush1.msra.mxu0 0.0
      %750 = vmatprep.subr.mxu0 0.0
      %751 = vmatpush1.msra.mxu0 0.0
      %752 = vmatprep.subr.mxu0 0.0
      %753 = vmatpush1.msra.mxu0 0.0
      %754 = vmatprep.subr.mxu0 0.0
      %755 = vmatpush1.msra.mxu0 0.0
      %756 = vmatprep.subr.mxu0 0.0
      %757 = vmatpush1.msra.mxu0 0.0
      %758 = vmatprep.subr.mxu0 0.0
      %759 = vmatpush1.msra.mxu0 0.0
      %760 = vmatprep.subr.mxu0 0.0
      %761 = vmatpush1.msra.mxu0 0.0
      %762 = vmatprep.subr.mxu0 0.0
      %763 = vmatpush1.msra.mxu0 0.0
      %764 = vmatprep.subr.mxu0 0.0
      %765 = vmatpush1.msra.mxu0 0.0
      %766 = vmatprep.subr.mxu0 0.0
      %767 = vmatpush1.msra.mxu0 0.0
      %768 = vmatprep.subr.mxu0 0.0
      %769 = vmatpush1.msra.mxu0 0.0
      %770 = vmatprep.subr.mxu0 0.0
      %771 = vmatpush1.msra.mxu0 0.0
      %772 = vmatprep.subr.mxu0 0.0
      %773 = vmatpush1.msra.mxu0 0.0
      %774 = vmatprep.subr.mxu0 0.0
      %775 = vmatpush1.msra.mxu0 0.0
      %776 = vmatprep.subr.mxu0 0.0
      %777 = vmatpush1.msra.mxu0 0.0
      %778 = vmatprep.subr.mxu0 0.0
      %779 = vmatpush1.msra.mxu0 0.0
      %780 = vmatprep.subr.mxu0 0.0
      %781 = vmatpush1.msra.mxu0 0.0
      %782 = vmatprep.subr.mxu0 0.0
      %783 = vmatpush1.msra.mxu0 0.0
      %784 = vmatprep.subr.mxu0 0.0
      %785 = vmatpush1.msra.mxu0 0.0
      %786 = vmatprep.subr.mxu0 0.0
      %787 = vmatpush1.msra.mxu0 0.0
      %788 = vmatprep.subr.mxu0 0.0
      %789 = vmatpush1.msra.mxu0 0.0
      %790 = vmatprep.subr.mxu0 0.0
      %791 = vmatpush1.msra.mxu0 0.0
      %792 = vmatprep.subr.mxu0 0.0
      %793 = vmatpush1.msra.mxu0 0.0
      %794 = vmatprep.subr.mxu0 0.0
      %795 = vmatpush1.msra.mxu0 0.0
      %796 = vmatprep.subr.mxu0 0.0
      %797 = vmatpush1.msra.mxu0 0.0
      %798 = vmatprep.mubr.f32.mxu0 0.0
      %799 = vmatmul.mubr.f32.gmra.mrb[0].mxu0 %v732
      %v800 = vpop.f32.mrb[0].mxu0
      %v801 = vadd.f32 0.0, %v800
      %v802 = vpop.f32.mrb[0].mxu0
      %v803 = vadd.f32 0.0, %v802
      %804 = vdwg.mxu0
      %808 = vrot.lane.b32.xlu0 %v724, 16
      %v809 = vpop.permute.xlu0 %808
      %810 = vrot.lane.b32.xlu0 %v725, 16
      %v811 = vpop.permute.xlu0 %810
      %812 = vrot.lane.b32.xlu0 %v726, 16
      %v813 = vpop.permute.xlu0 %812
      %vm814 = vcmask 130048
      %v815 = vsel %vm814, %v809, %v811
      %v816 = vsel %vm814, %v811, %v813
      %v820 = vsel %vm440, %v728, 0
      %822 = vmatprep.subr.mxu0 %v816
      %823 = vmatpush1.msra.mxu0 %v815
      %824 = vmatprep.subr.mxu0 0.0
      %825 = vmatpush1.msra.mxu0 0.0
      %826 = vmatprep.subr.mxu0 0.0
      %827 = vmatpush1.msra.mxu0 0.0
      %828 = vmatprep.subr.mxu0 0.0
      %829 = vmatpush1.msra.mxu0 0.0
      %830 = vmatprep.subr.mxu0 0.0
      %831 = vmatpush1.msra.mxu0 0.0
      %832 = vmatprep.subr.mxu0 0.0
      %833 = vmatpush1.msra.mxu0 0.0
      %834 = vmatprep.subr.mxu0 0.0
      %835 = vmatpush1.msra.mxu0 0.0
      %836 = vmatprep.subr.mxu0 0.0
      %837 = vmatpush1.msra.mxu0 0.0
      %838 = vmatprep.subr.mxu0 0.0
      %839 = vmatpush1.msra.mxu0 0.0
      %840 = vmatprep.subr.mxu0 0.0
      %841 = vmatpush1.msra.mxu0 0.0
      %842 = vmatprep.subr.mxu0 0.0
      %843 = vmatpush1.msra.mxu0 0.0
      %844 = vmatprep.subr.mxu0 0.0
      %845 = vmatpush1.msra.mxu0 0.0
      %846 = vmatprep.subr.mxu0 0.0
      %847 = vmatpush1.msra.mxu0 0.0
      %848 = vmatprep.subr.mxu0 0.0
      %849 = vmatpush1.msra.mxu0 0.0
      %850 = vmatprep.subr.mxu0 0.0
      %851 = vmatpush1.msra.mxu0 0.0
      %852 = vmatprep.subr.mxu0 0.0
      %853 = vmatpush1.msra.mxu0 0.0
      %854 = vmatprep.subr.mxu0 0.0
      %855 = vmatpush1.msra.mxu0 0.0
      %856 = vmatprep.subr.mxu0 0.0
      %857 = vmatpush1.msra.mxu0 0.0
      %858 = vmatprep.subr.mxu0 0.0
      %859 = vmatpush1.msra.mxu0 0.0
      %860 = vmatprep.subr.mxu0 0.0
      %861 = vmatpush1.msra.mxu0 0.0
      %862 = vmatprep.subr.mxu0 0.0
      %863 = vmatpush1.msra.mxu0 0.0
      %864 = vmatprep.subr.mxu0 0.0
      %865 = vmatpush1.msra.mxu0 0.0
      %866 = vmatprep.subr.mxu0 0.0
      %867 = vmatpush1.msra.mxu0 0.0
      %868 = vmatprep.subr.mxu0 0.0
      %869 = vmatpush1.msra.mxu0 0.0
      %870 = vmatprep.subr.mxu0 0.0
      %871 = vmatpush1.msra.mxu0 0.0
      %872 = vmatprep.subr.mxu0 0.0
      %873 = vmatpush1.msra.mxu0 0.0
      %874 = vmatprep.subr.mxu0 0.0
      %875 = vmatpush1.msra.mxu0 0.0
      %876 = vmatprep.subr.mxu0 0.0
      %877 = vmatpush1.msra.mxu0 0.0
      %878 = vmatprep.subr.mxu0 0.0
      %879 = vmatpush1.msra.mxu0 0.0
      %880 = vmatprep.subr.mxu0 0.0
      %881 = vmatpush1.msra.mxu0 0.0
      %882 = vmatprep.subr.mxu0 0.0
      %883 = vmatpush1.msra.mxu0 0.0
      %884 = vmatprep.subr.mxu0 0.0
      %885 = vmatpush1.msra.mxu0 0.0
      %886 = vmatprep.mubr.f32.mxu0 0.0
      %887 = vmatmul.mubr.f32.gmra.mrb[0].mxu0 %v820
      %v888 = vpop.f32.mrb[0].mxu0
      %v889 = vadd.f32 %v801, %v888
      %v890 = vpop.f32.mrb[0].mxu0
      %v891 = vadd.f32 %v803, %v890
      %892 = vdwg.mxu0
      %v893 = vld [vmem:[#allocation2 + $0x8] sm:$0xff]
      %v894 = vld [vmem:[#allocation2 + $0x10] sm:$0xff]
      %v895 = vld [vmem:[#allocation2 + $0x18] sm:$0xff]
      %s896 = scalar_lea.vmem %s2, 40
      %v897 = vld [vmem:[%s896] sm:$0xff]
      %901 = vrot.lane.b32.xlu0 %v893, 112
      %v902 = vpop.permute.xlu0 %901
      %903 = vrot.lane.b32.xlu0 %v894, 112
      %v904 = vpop.permute.xlu0 %903
      %905 = vrot.lane.b32.xlu0 %v895, 112
      %v906 = vpop.permute.xlu0 %905
      %vm907 = vcmask 916480
      %v908 = vsel %vm907, %v902, %v904
      %v909 = vsel %vm907, %v904, %v906
      %v913 = vsel %vm440, %v897, 0
      %915 = vmatprep.subr.mxu0 %v909
      %916 = vmatpush1.msra.mxu0 %v908
      %917 = vmatprep.subr.mxu0 0.0
      %918 = vmatpush1.msra.mxu0 0.0
      %919 = vmatprep.subr.mxu0 0.0
      %920 = vmatpush1.msra.mxu0 0.0
      %921 = vmatprep.subr.mxu0 0.0
      %922 = vmatpush1.msra.mxu0 0.0
      %923 = vmatprep.subr.mxu0 0.0
      %924 = vmatpush1.msra.mxu0 0.0
      %925 = vmatprep.subr.mxu0 0.0
      %926 = vmatpush1.msra.mxu0 0.0
      %927 = vmatprep.subr.mxu0 0.0
      %928 = vmatpush1.msra.mxu0 0.0
      %929 = vmatprep.subr.mxu0 0.0
      %930 = vmatpush1.msra.mxu0 0.0
      %931 = vmatprep.subr.mxu0 0.0
      %932 = vmatpush1.msra.mxu0 0.0
      %933 = vmatprep.subr.mxu0 0.0
      %934 = vmatpush1.msra.mxu0 0.0
      %935 = vmatprep.subr.mxu0 0.0
      %936 = vmatpush1.msra.mxu0 0.0
      %937 = vmatprep.subr.mxu0 0.0
      %938 = vmatpush1.msra.mxu0 0.0
      %939 = vmatprep.subr.mxu0 0.0
      %940 = vmatpush1.msra.mxu0 0.0
      %941 = vmatprep.subr.mxu0 0.0
      %942 = vmatpush1.msra.mxu0 0.0
      %943 = vmatprep.subr.mxu0 0.0
      %944 = vmatpush1.msra.mxu0 0.0
      %945 = vmatprep.subr.mxu0 0.0
      %946 = vmatpush1.msra.mxu0 0.0
      %947 = vmatprep.subr.mxu0 0.0
      %948 = vmatpush1.msra.mxu0 0.0
      %949 = vmatprep.subr.mxu0 0.0
      %950 = vmatpush1.msra.mxu0 0.0
      %951 = vmatprep.subr.mxu0 0.0
      %952 = vmatpush1.msra.mxu0 0.0
      %953 = vmatprep.subr.mxu0 0.0
      %954 = vmatpush1.msra.mxu0 0.0
      %955 = vmatprep.subr.mxu0 0.0
      %956 = vmatpush1.msra.mxu0 0.0
      %957 = vmatprep.subr.mxu0 0.0
      %958 = vmatpush1.msra.mxu0 0.0
      %959 = vmatprep.subr.mxu0 0.0
      %960 = vmatpush1.msra.mxu0 0.0
      %961 = vmatprep.subr.mxu0 0.0
      %962 = vmatpush1.msra.mxu0 0.0
      %963 = vmatprep.subr.mxu0 0.0
      %964 = vmatpush1.msra.mxu0 0.0
      %965 = vmatprep.subr.mxu0 0.0
      %966 = vmatpush1.msra.mxu0 0.0
      %967 = vmatprep.subr.mxu0 0.0
      %968 = vmatpush1.msra.mxu0 0.0
      %969 = vmatprep.subr.mxu0 0.0
      %970 = vmatpush1.msra.mxu0 0.0
      %971 = vmatprep.subr.mxu0 0.0
      %972 = vmatpush1.msra.mxu0 0.0
      %973 = vmatprep.subr.mxu0 0.0
      %974 = vmatpush1.msra.mxu0 0.0
      %975 = vmatprep.subr.mxu0 0.0
      %976 = vmatpush1.msra.mxu0 0.0
      %977 = vmatprep.subr.mxu0 0.0
      %978 = vmatpush1.msra.mxu0 0.0
      %979 = vmatprep.mubr.f32.mxu0 0.0
      %980 = vmatmul.mubr.f32.gmra.mrb[0].mxu0 %v913
      %v981 = vpop.f32.mrb[0].mxu0
      %v982 = vadd.f32 0.0, %v981
      %v983 = vpop.f32.mrb[0].mxu0
      %v984 = vadd.f32 0.0, %v983
      %985 = vdwg.mxu0
      %v986 = vadd.f32 %v889, %v982
      %v987 = vadd.f32 %v891, %v984
      %v988 = vld [vmem:[%s4 + $0x30] sm:$0xff]
      %990 = vset.pattern.permute.xlu0 0
      %991 = vperm.xlu0 %990, %v988
      %v992 = vpop.permute.xlu0 %991
      %v994 = vadd.f32 %v986, %v992
      %v995 = vadd.f32 %v987, %v992
      %996 = vst [vmem:[#allocation2 + $0x8] sm:$0xff] %v994
      %997 = vst [vmem:[#allocation2 + $0x10] sm:$0xff] %v995
      %v998 = vld [vmem:[#allocation2] sm:$0xff]
      %v999 = vld [vmem:[#allocation2 + $0x8] sm:$0xff]
      %v1000 = vld [vmem:[#allocation2 + $0x10] sm:$0xff]
      %vm1001 = vcmp.ge.s32.totalorder %v258, 3
      %vm1002 = vcmp.ge.s32.totalorder %v259, 3
      %v1003 = vsel %vm1001, 1.0, 0.0
      %v1004 = vsel %vm1002, 1.0, 0.0
      %1007 = vrot.lane.b32.xlu0 %v1003, 77
      %v1008 = vpop.permute.xlu0 %1007
      %1009 = vrot.lane.b32.xlu0 %v1004, 77
      %v1010 = vpop.permute.xlu0 %1009
      %vm1011 = vcmask 629760
      %v1012 = vsel %vm1011, %v1008, %v1010
      %v1016 = vmul.f32 %v998, %v1008
      %v1017 = vmul.f32 %v999, %v1012
      %v1018 = vmul.f32 %v1000, %v1010
      %s1019 = scalar_lea.vmem %s2, 48
      %v1020 = vld [vmem:[%s1019] sm:$0xff]
      %s1021 = scalar_lea.vmem %s2, 56
      %v1022 = vld [vmem:[%s1021] sm:$0xff]
      %1026 = vrot.lane.b32.xlu0 %v998, 48
      %v1027 = vpop.permute.xlu0 %1026
      %1028 = vrot.lane.b32.xlu0 %v999, 48
      %v1029 = vpop.permute.xlu0 %1028
      %1030 = vrot.lane.b32.xlu0 %v1000, 48
      %v1031 = vpop.permute.xlu0 %1030
      %vm1032 = vcmask 392192
      %v1033 = vsel %vm1032, %v1027, %v1029
      %v1034 = vsel %vm1032, %v1029, %v1031
      %v1038 = vsel %vm440, %v1022, 0
      %1040 = vmatprep.subr.mxu0 %v1034
      %1041 = vmatpush1.msra.mxu0 %v1033
      %1042 = vmatprep.subr.mxu0 0.0
      %1043 = vmatpush1.msra.mxu0 0.0
      %1044 = vmatprep.subr.mxu0 0.0
      %1045 = vmatpush1.msra.mxu0 0.0
      %1046 = vmatprep.subr.mxu0 0.0
      %1047 = vmatpush1.msra.mxu0 0.0
      %1048 = vmatprep.subr.mxu0 0.0
      %1049 = vmatpush1.msra.mxu0 0.0
      %1050 = vmatprep.subr.mxu0 0.0
      %1051 = vmatpush1.msra.mxu0 0.0
      %1052 = vmatprep.subr.mxu0 0.0
      %1053 = vmatpush1.msra.mxu0 0.0
      %1054 = vmatprep.subr.mxu0 0.0
      %1055 = vmatpush1.msra.mxu0 0.0
      %1056 = vmatprep.subr.mxu0 0.0
      %1057 = vmatpush1.msra.mxu0 0.0
      %1058 = vmatprep.subr.mxu0 0.0
      %1059 = vmatpush1.msra.mxu0 0.0
      %1060 = vmatprep.subr.mxu0 0.0
      %1061 = vmatpush1.msra.mxu0 0.0
      %1062 = vmatprep.subr.mxu0 0.0
      %1063 = vmatpush1.msra.mxu0 0.0
      %1064 = vmatprep.subr.mxu0 0.0
      %1065 = vmatpush1.msra.mxu0 0.0
      %1066 = vmatprep.subr.mxu0 0.0
      %1067 = vmatpush1.msra.mxu0 0.0
      %1068 = vmatprep.subr.mxu0 0.0
      %1069 = vmatpush1.msra.mxu0 0.0
      %1070 = vmatprep.subr.mxu0 0.0
      %1071 = vmatpush1.msra.mxu0 0.0
      %1072 = vmatprep.subr.mxu0 0.0
      %1073 = vmatpush1.msra.mxu0 0.0
      %1074 = vmatprep.subr.mxu0 0.0
      %1075 = vmatpush1.msra.mxu0 0.0
      %1076 = vmatprep.subr.mxu0 0.0
      %1077 = vmatpush1.msra.mxu0 0.0
      %1078 = vmatprep.subr.mxu0 0.0
      %1079 = vmatpush1.msra.mxu0 0.0
      %1080 = vmatprep.subr.mxu0 0.0
      %1081 = vmatpush1.msra.mxu0 0.0
      %1082 = vmatprep.subr.mxu0 0.0
      %1083 = vmatpush1.msra.mxu0 0.0
      %1084 = vmatprep.subr.mxu0 0.0
      %1085 = vmatpush1.msra.mxu0 0.0
      %1086 = vmatprep.subr.mxu0 0.0
      %1087 = vmatpush1.msra.mxu0 0.0
      %1088 = vmatprep.subr.mxu0 0.0
      %1089 = vmatpush1.msra.mxu0 0.0
      %1090 = vmatprep.subr.mxu0 0.0
      %1091 = vmatpush1.msra.mxu0 0.0
      %1092 = vmatprep.subr.mxu0 0.0
      %1093 = vmatpush1.msra.mxu0 0.0
      %1094 = vmatprep.subr.mxu0 0.0
      %1095 = vmatpush1.msra.mxu0 0.0
      %1096 = vmatprep.subr.mxu0 0.0
      %1097 = vmatpush1.msra.mxu0 0.0
      %1098 = vmatprep.subr.mxu0 0.0
      %1099 = vmatpush1.msra.mxu0 0.0
      %1100 = vmatprep.subr.mxu0 0.0
      %1101 = vmatpush1.msra.mxu0 0.0
      %1102 = vmatprep.subr.mxu0 0.0
      %1103 = vmatpush1.msra.mxu0 0.0
      %1104 = vmatprep.mubr.f32.mxu0 0.0
      %1105 = vmatmul.mubr.f32.gmra.mrb[0].mxu0 %v1038
      %v1106 = vpop.f32.mrb[0].mxu0
      %v1107 = vadd.f32 0.0, %v1106
      %v1108 = vpop.f32.mrb[0].mxu0
      %v1109 = vadd.f32 0.0, %v1108
      %1110 = vdwg.mxu0
      %1114 = vrot.lane.b32.xlu0 %v1016, 51
      %v1115 = vpop.permute.xlu0 %1114
      %1116 = vrot.lane.b32.xlu0 %v1017, 51
      %v1117 = vpop.permute.xlu0 %1116
      %1118 = vrot.lane.b32.xlu0 %v1018, 51
      %v1119 = vpop.permute.xlu0 %1118
      %vm1120 = vcmask 416768
      %v1121 = vsel %vm1120, %v1115, %v1117
      %v1122 = vsel %vm1120, %v1117, %v1119
      %v1126 = vsel %vm440, %v1020, 0
      %1128 = vmatprep.subr.mxu0 %v1122
      %1129 = vmatpush1.msra.mxu0 %v1121
      %1130 = vmatprep.subr.mxu0 0.0
      %1131 = vmatpush1.msra.mxu0 0.0
      %1132 = vmatprep.subr.mxu0 0.0
      %1133 = vmatpush1.msra.mxu0 0.0
      %1134 = vmatprep.subr.mxu0 0.0
      %1135 = vmatpush1.msra.mxu0 0.0
      %1136 = vmatprep.subr.mxu0 0.0
      %1137 = vmatpush1.msra.mxu0 0.0
      %1138 = vmatprep.subr.mxu0 0.0
      %1139 = vmatpush1.msra.mxu0 0.0
      %1140 = vmatprep.subr.mxu0 0.0
      %1141 = vmatpush1.msra.mxu0 0.0
      %1142 = vmatprep.subr.mxu0 0.0
      %1143 = vmatpush1.msra.mxu0 0.0
      %1144 = vmatprep.subr.mxu0 0.0
      %1145 = vmatpush1.msra.mxu0 0.0
      %1146 = vmatprep.subr.mxu0 0.0
      %1147 = vmatpush1.msra.mxu0 0.0
      %1148 = vmatprep.subr.mxu0 0.0
      %1149 = vmatpush1.msra.mxu0 0.0
      %1150 = vmatprep.subr.mxu0 0.0
      %1151 = vmatpush1.msra.mxu0 0.0
      %1152 = vmatprep.subr.mxu0 0.0
      %1153 = vmatpush1.msra.mxu0 0.0
      %1154 = vmatprep.subr.mxu0 0.0
      %1155 = vmatpush1.msra.mxu0 0.0
      %1156 = vmatprep.subr.mxu0 0.0
      %1157 = vmatpush1.msra.mxu0 0.0
      %1158 = vmatprep.subr.mxu0 0.0
      %1159 = vmatpush1.msra.mxu0 0.0
      %1160 = vmatprep.subr.mxu0 0.0
      %1161 = vmatpush1.msra.mxu0 0.0
      %1162 = vmatprep.subr.mxu0 0.0
      %1163 = vmatpush1.msra.mxu0 0.0
      %1164 = vmatprep.subr.mxu0 0.0
      %1165 = vmatpush1.msra.mxu0 0.0
      %1166 = vmatprep.subr.mxu0 0.0
      %1167 = vmatpush1.msra.mxu0 0.0
      %1168 = vmatprep.subr.mxu0 0.0
      %1169 = vmatpush1.msra.mxu0 0.0
      %1170 = vmatprep.subr.mxu0 0.0
      %1171 = vmatpush1.msra.mxu0 0.0
      %1172 = vmatprep.subr.mxu0 0.0
      %1173 = vmatpush1.msra.mxu0 0.0
      %1174 = vmatprep.subr.mxu0 0.0
      %1175 = vmatpush1.msra.mxu0 0.0
      %1176 = vmatprep.subr.mxu0 0.0
      %1177 = vmatpush1.msra.mxu0 0.0
      %1178 = vmatprep.subr.mxu0 0.0
      %1179 = vmatpush1.msra.mxu0 0.0
      %1180 = vmatprep.subr.mxu0 0.0
      %1181 = vmatpush1.msra.mxu0 0.0
      %1182 = vmatprep.subr.mxu0 0.0
      %1183 = vmatpush1.msra.mxu0 0.0
      %1184 = vmatprep.subr.mxu0 0.0
      %1185 = vmatpush1.msra.mxu0 0.0
      %1186 = vmatprep.subr.mxu0 0.0
      %1187 = vmatpush1.msra.mxu0 0.0
      %1188 = vmatprep.subr.mxu0 0.0
      %1189 = vmatpush1.msra.mxu0 0.0
      %1190 = vmatprep.subr.mxu0 0.0
      %1191 = vmatpush1.msra.mxu0 0.0
      %1192 = vmatprep.mubr.f32.mxu0 0.0
      %1193 = vmatmul.mubr.f32.gmra.mrb[0].mxu0 %v1126
      %v1194 = vpop.f32.mrb[0].mxu0
      %v1195 = vadd.f32 %v1107, %v1194
      %v1196 = vpop.f32.mrb[0].mxu0
      %v1197 = vadd.f32 %v1109, %v1196
      %1198 = vdwg.mxu0
      %vm1199 = vcmp.lt.s32.totalorder %v258, 13
      %vm1200 = vcmp.lt.s32.totalorder %v259, 13
      %v1201 = vsel %vm1199, 1.0, 0.0
      %v1202 = vsel %vm1200, 1.0, 0.0
      %1205 = vrot.lane.b32.xlu0 %v1201, 83
      %v1206 = vpop.permute.xlu0 %1205
      %1207 = vrot.lane.b32.xlu0 %v1202, 83
      %v1208 = vpop.permute.xlu0 %1207
      %vm1209 = vcmask 678912
      %v1210 = vsel %vm1209, %v1206, %v1208
      %v1214 = vmul.f32 %v998, %v1206
      %v1215 = vmul.f32 %v999, %v1210
      %v1216 = vmul.f32 %v1000, %v1208
      %s1217 = scalar_lea.vmem %s2, 64
      %v1218 = vld [vmem:[%s1217] sm:$0xff]
      %1222 = vrot.lane.b32.xlu0 %v1214, 45
      %v1223 = vpop.permute.xlu0 %1222
      %1224 = vrot.lane.b32.xlu0 %v1215, 45
      %v1225 = vpop.permute.xlu0 %1224
      %1226 = vrot.lane.b32.xlu0 %v1216, 45
      %v1227 = vpop.permute.xlu0 %1226
      %vm1228 = vcmask 367616
      %v1229 = vsel %vm1228, %v1223, %v1225
      %v1230 = vsel %vm1228, %v1225, %v1227
      %v1234 = vsel %vm440, %v1218, 0
      %1236 = vmatprep.subr.mxu0 %v1230
      %1237 = vmatpush1.msra.mxu0 %v1229
      %1238 = vmatprep.subr.mxu0 0.0
      %1239 = vmatpush1.msra.mxu0 0.0
      %1240 = vmatprep.subr.mxu0 0.0
      %1241 = vmatpush1.msra.mxu0 0.0
      %1242 = vmatprep.subr.mxu0 0.0
      %1243 = vmatpush1.msra.mxu0 0.0
      %1244 = vmatprep.subr.mxu0 0.0
      %1245 = vmatpush1.msra.mxu0 0.0
      %1246 = vmatprep.subr.mxu0 0.0
      %1247 = vmatpush1.msra.mxu0 0.0
      %1248 = vmatprep.subr.mxu0 0.0
      %1249 = vmatpush1.msra.mxu0 0.0
      %1250 = vmatprep.subr.mxu0 0.0
      %1251 = vmatpush1.msra.mxu0 0.0
      %1252 = vmatprep.subr.mxu0 0.0
      %1253 = vmatpush1.msra.mxu0 0.0
      %1254 = vmatprep.subr.mxu0 0.0
      %1255 = vmatpush1.msra.mxu0 0.0
      %1256 = vmatprep.subr.mxu0 0.0
      %1257 = vmatpush1.msra.mxu0 0.0
      %1258 = vmatprep.subr.mxu0 0.0
      %1259 = vmatpush1.msra.mxu0 0.0
      %1260 = vmatprep.subr.mxu0 0.0
      %1261 = vmatpush1.msra.mxu0 0.0
      %1262 = vmatprep.subr.mxu0 0.0
      %1263 = vmatpush1.msra.mxu0 0.0
      %1264 = vmatprep.subr.mxu0 0.0
      %1265 = vmatpush1.msra.mxu0 0.0
      %1266 = vmatprep.subr.mxu0 0.0
      %1267 = vmatpush1.msra.mxu0 0.0
      %1268 = vmatprep.subr.mxu0 0.0
      %1269 = vmatpush1.msra.mxu0 0.0
      %1270 = vmatprep.subr.mxu0 0.0
      %1271 = vmatpush1.msra.mxu0 0.0
      %1272 = vmatprep.subr.mxu0 0.0
      %1273 = vmatpush1.msra.mxu0 0.0
      %1274 = vmatprep.subr.mxu0 0.0
      %1275 = vmatpush1.msra.mxu0 0.0
      %1276 = vmatprep.subr.mxu0 0.0
      %1277 = vmatpush1.msra.mxu0 0.0
      %1278 = vmatprep.subr.mxu0 0.0
      %1279 = vmatpush1.msra.mxu0 0.0
      %1280 = vmatprep.subr.mxu0 0.0
      %1281 = vmatpush1.msra.mxu0 0.0
      %1282 = vmatprep.subr.mxu0 0.0
      %1283 = vmatpush1.msra.mxu0 0.0
      %1284 = vmatprep.subr.mxu0 0.0
      %1285 = vmatpush1.msra.mxu0 0.0
      %1286 = vmatprep.subr.mxu0 0.0
      %1287 = vmatpush1.msra.mxu0 0.0
      %1288 = vmatprep.subr.mxu0 0.0
      %1289 = vmatpush1.msra.mxu0 0.0
      %1290 = vmatprep.subr.mxu0 0.0
      %1291 = vmatpush1.msra.mxu0 0.0
      %1292 = vmatprep.subr.mxu0 0.0
      %1293 = vmatpush1.msra.mxu0 0.0
      %1294 = vmatprep.subr.mxu0 0.0
      %1295 = vmatpush1.msra.mxu0 0.0
      %1296 = vmatprep.subr.mxu0 0.0
      %1297 = vmatpush1.msra.mxu0 0.0
      %1298 = vmatprep.subr.mxu0 0.0
      %1299 = vmatpush1.msra.mxu0 0.0
      %1300 = vmatprep.mubr.f32.mxu0 0.0
      %1301 = vmatmul.mubr.f32.gmra.mrb[0].mxu0 %v1234
      %v1302 = vpop.f32.mrb[0].mxu0
      %v1303 = vadd.f32 0.0, %v1302
      %v1304 = vpop.f32.mrb[0].mxu0
      %v1305 = vadd.f32 0.0, %v1304
      %1306 = vdwg.mxu0
      %v1307 = vadd.f32 %v1195, %v1303
      %v1308 = vadd.f32 %v1197, %v1305
      %1309 = vrot.lane.b32.xlu0 %v1003, 125
      %v1310 = vpop.permute.xlu0 %1309
      %1311 = vrot.lane.b32.xlu0 %v1004, 125
      %v1312 = vpop.permute.xlu0 %1311
      %vm1313 = vcmask 1022976
      %v1314 = vsel %vm1313, %v1310, %v1312
      %v1318 = vmul.f32 %v998, %v1310
      %v1319 = vmul.f32 %v999, %v1314
      %v1320 = vmul.f32 %v1000, %v1312
      %s1321 = scalar_lea.vmem %s2, 72
      %v1322 = vld [vmem:[%s1321] sm:$0xff]
      %1326 = vrot.lane.b32.xlu0 %v1318, 3
      %v1327 = vpop.permute.xlu0 %1326
      %1328 = vrot.lane.b32.xlu0 %v1319, 3
      %v1329 = vpop.permute.xlu0 %1328
      %1330 = vrot.lane.b32.xlu0 %v1320, 3
      %v1331 = vpop.permute.xlu0 %1330
      %vm1332 = vcmask 23552
      %v1333 = vsel %vm1332, %v1327, %v1329
      %v1334 = vsel %vm1332, %v1329, %v1331
      %v1338 = vsel %vm440, %v1322, 0
      %1340 = vmatprep.subr.mxu0 %v1334
      %1341 = vmatpush1.msra.mxu0 %v1333
      %1342 = vmatprep.subr.mxu0 0.0
      %1343 = vmatpush1.msra.mxu0 0.0
      %1344 = vmatprep.subr.mxu0 0.0
      %1345 = vmatpush1.msra.mxu0 0.0
      %1346 = vmatprep.subr.mxu0 0.0
      %1347 = vmatpush1.msra.mxu0 0.0
      %1348 = vmatprep.subr.mxu0 0.0
      %1349 = vmatpush1.msra.mxu0 0.0
      %1350 = vmatprep.subr.mxu0 0.0
      %1351 = vmatpush1.msra.mxu0 0.0
      %1352 = vmatprep.subr.mxu0 0.0
      %1353 = vmatpush1.msra.mxu0 0.0
      %1354 = vmatprep.subr.mxu0 0.0
      %1355 = vmatpush1.msra.mxu0 0.0
      %1356 = vmatprep.subr.mxu0 0.0
      %1357 = vmatpush1.msra.mxu0 0.0
      %1358 = vmatprep.subr.mxu0 0.0
      %1359 = vmatpush1.msra.mxu0 0.0
      %1360 = vmatprep.subr.mxu0 0.0
      %1361 = vmatpush1.msra.mxu0 0.0
      %1362 = vmatprep.subr.mxu0 0.0
      %1363 = vmatpush1.msra.mxu0 0.0
      %1364 = vmatprep.subr.mxu0 0.0
      %1365 = vmatpush1.msra.mxu0 0.0
      %1366 = vmatprep.subr.mxu0 0.0
      %1367 = vmatpush1.msra.mxu0 0.0
      %1368 = vmatprep.subr.mxu0 0.0
      %1369 = vmatpush1.msra.mxu0 0.0
      %1370 = vmatprep.subr.mxu0 0.0
      %1371 = vmatpush1.msra.mxu0 0.0
      %1372 = vmatprep.subr.mxu0 0.0
      %1373 = vmatpush1.msra.mxu0 0.0
      %1374 = vmatprep.subr.mxu0 0.0
      %1375 = vmatpush1.msra.mxu0 0.0
      %1376 = vmatprep.subr.mxu0 0.0
      %1377 = vmatpush1.msra.mxu0 0.0
      %1378 = vmatprep.subr.mxu0 0.0
      %1379 = vmatpush1.msra.mxu0 0.0
      %1380 = vmatprep.subr.mxu0 0.0
      %1381 = vmatpush1.msra.mxu0 0.0
      %1382 = vmatprep.subr.mxu0 0.0
      %1383 = vmatpush1.msra.mxu0 0.0
      %1384 = vmatprep.subr.mxu0 0.0
      %1385 = vmatpush1.msra.mxu0 0.0
      %1386 = vmatprep.subr.mxu0 0.0
      %1387 = vmatpush1.msra.mxu0 0.0
      %1388 = vmatprep.subr.mxu0 0.0
      %1389 = vmatpush1.msra.mxu0 0.0
      %1390 = vmatprep.subr.mxu0 0.0
      %1391 = vmatpush1.msra.mxu0 0.0
      %1392 = vmatprep.subr.mxu0 0.0
      %1393 = vmatpush1.msra.mxu0 0.0
      %1394 = vmatprep.subr.mxu0 0.0
      %1395 = vmatpush1.msra.mxu0 0.0
      %1396 = vmatprep.subr.mxu0 0.0
      %1397 = vmatpush1.msra.mxu0 0.0
      %1398 = vmatprep.subr.mxu0 0.0
      %1399 = vmatpush1.msra.mxu0 0.0
      %1400 = vmatprep.subr.mxu0 0.0
      %1401 = vmatpush1.msra.mxu0 0.0
      %1402 = vmatprep.subr.mxu0 0.0
      %1403 = vmatpush1.msra.mxu0 0.0
      %1404 = vmatprep.mubr.f32.mxu0 0.0
      %1405 = vmatmul.mubr.f32.gmra.mrb[0].mxu0 %v1338
      %v1406 = vpop.f32.mrb[0].mxu0
      %v1407 = vadd.f32 0.0, %v1406
      %v1408 = vpop.f32.mrb[0].mxu0
      %v1409 = vadd.f32 0.0, %v1408
      %1410 = vdwg.mxu0
      %v1411 = vadd.f32 %v1307, %v1407
      %v1412 = vadd.f32 %v1308, %v1409
      %s1413 = scalar_lea.vmem %s2, 80
      %v1414 = vld [vmem:[%s1413] sm:$0xff]
      %v1416 = vsel %vm440, %v1414, 0
      %1418 = vmatprep.subr.mxu0 %v1000
      %1419 = vmatpush1.msra.mxu0 %v999
      %1420 = vmatprep.subr.mxu0 0.0
      %1421 = vmatpush1.msra.mxu0 0.0
      %1422 = vmatprep.subr.mxu0 0.0
      %1423 = vmatpush1.msra.mxu0 0.0
      %1424 = vmatprep.subr.mxu0 0.0
      %1425 = vmatpush1.msra.mxu0 0.0
      %1426 = vmatprep.subr.mxu0 0.0
      %1427 = vmatpush1.msra.mxu0 0.0
      %1428 = vmatprep.subr.mxu0 0.0
      %1429 = vmatpush1.msra.mxu0 0.0
      %1430 = vmatprep.subr.mxu0 0.0
      %1431 = vmatpush1.msra.mxu0 0.0
      %1432 = vmatprep.subr.mxu0 0.0
      %1433 = vmatpush1.msra.mxu0 0.0
      %1434 = vmatprep.subr.mxu0 0.0
      %1435 = vmatpush1.msra.mxu0 0.0
      %1436 = vmatprep.subr.mxu0 0.0
      %1437 = vmatpush1.msra.mxu0 0.0
      %1438 = vmatprep.subr.mxu0 0.0
      %1439 = vmatpush1.msra.mxu0 0.0
      %1440 = vmatprep.subr.mxu0 0.0
      %1441 = vmatpush1.msra.mxu0 0.0
      %1442 = vmatprep.subr.mxu0 0.0
      %1443 = vmatpush1.msra.mxu0 0.0
      %1444 = vmatprep.subr.mxu0 0.0
      %1445 = vmatpush1.msra.mxu0 0.0
      %1446 = vmatprep.subr.mxu0 0.0
      %1447 = vmatpush1.msra.mxu0 0.0
      %1448 = vmatprep.subr.mxu0 0.0
      %1449 = vmatpush1.msra.mxu0 0.0
      %1450 = vmatprep.subr.mxu0 0.0
      %1451 = vmatpush1.msra.mxu0 0.0
      %1452 = vmatprep.subr.mxu0 0.0
      %1453 = vmatpush1.msra.mxu0 0.0
      %1454 = vmatprep.subr.mxu0 0.0
      %1455 = vmatpush1.msra.mxu0 0.0
      %1456 = vmatprep.subr.mxu0 0.0
      %1457 = vmatpush1.msra.mxu0 0.0
      %1458 = vmatprep.subr.mxu0 0.0
      %1459 = vmatpush1.msra.mxu0 0.0
      %1460 = vmatprep.subr.mxu0 0.0
      %1461 = vmatpush1.msra.mxu0 0.0
      %1462 = vmatprep.subr.mxu0 0.0
      %1463 = vmatpush1.msra.mxu0 0.0
      %1464 = vmatprep.subr.mxu0 0.0
      %1465 = vmatpush1.msra.mxu0 0.0
      %1466 = vmatprep.subr.mxu0 0.0
      %1467 = vmatpush1.msra.mxu0 0.0
      %1468 = vmatprep.subr.mxu0 0.0
      %1469 = vmatpush1.msra.mxu0 0.0
      %1470 = vmatprep.subr.mxu0 0.0
      %1471 = vmatpush1.msra.mxu0 0.0
      %1472 = vmatprep.subr.mxu0 0.0
      %1473 = vmatpush1.msra.mxu0 0.0
      %1474 = vmatprep.subr.mxu0 0.0
      %1475 = vmatpush1.msra.mxu0 0.0
      %1476 = vmatprep.subr.mxu0 0.0
      %1477 = vmatpush1.msra.mxu0 0.0
      %1478 = vmatprep.subr.mxu0 0.0
      %1479 = vmatpush1.msra.mxu0 0.0
      %1480 = vmatprep.subr.mxu0 0.0
      %1481 = vmatpush1.msra.mxu0 0.0
      %1482 = vmatprep.mubr.f32.mxu0 0.0
      %1483 = vmatmul.mubr.f32.gmra.mrb[0].mxu0 %v1416
      %v1484 = vpop.f32.mrb[0].mxu0
      %v1485 = vadd.f32 0.0, %v1484
      %v1486 = vpop.f32.mrb[0].mxu0
      %v1487 = vadd.f32 0.0, %v1486
      %1488 = vdwg.mxu0
      %v1489 = vadd.f32 %v1411, %v1485
      %v1490 = vadd.f32 %v1412, %v1487
      %v1491 = vld [vmem:[#allocation2 + $0x8] sm:$0xff]
      %v1492 = vld [vmem:[#allocation2 + $0x10] sm:$0xff]
      %v1493 = vld [vmem:[#allocation2 + $0x18] sm:$0xff]
      %1494 = vrot.lane.b32.xlu0 %v1201, 3
      %v1495 = vpop.permute.xlu0 %1494
      %1496 = vrot.lane.b32.xlu0 %v1202, 3
      %v1497 = vpop.permute.xlu0 %1496
      %v1498 = vsel %vm1332, %v1495, %v1497
      %v1502 = vmul.f32 %v1491, %v1495
      %v1503 = vmul.f32 %v1492, %v1498
      %v1504 = vmul.f32 %v1493, %v1497
      %s1505 = scalar_lea.vmem %s2, 88
      %v1506 = vld [vmem:[%s1505] sm:$0xff]
      %1510 = vrot.lane.b32.xlu0 %v1502, 125
      %v1511 = vpop.permute.xlu0 %1510
      %1512 = vrot.lane.b32.xlu0 %v1503, 125
      %v1513 = vpop.permute.xlu0 %1512
      %1514 = vrot.lane.b32.xlu0 %v1504, 125
      %v1515 = vpop.permute.xlu0 %1514
      %v1516 = vsel %vm1313, %v1511, %v1513
      %v1517 = vsel %vm1313, %v1513, %v1515
      %v1521 = vsel %vm440, %v1506, 0
      %1523 = vmatprep.subr.mxu0 %v1517
      %1524 = vmatpush1.msra.mxu0 %v1516
      %1525 = vmatprep.subr.mxu0 0.0
      %1526 = vmatpush1.msra.mxu0 0.0
      %1527 = vmatprep.subr.mxu0 0.0
      %1528 = vmatpush1.msra.mxu0 0.0
      %1529 = vmatprep.subr.mxu0 0.0
      %1530 = vmatpush1.msra.mxu0 0.0
      %1531 = vmatprep.subr.mxu0 0.0
      %1532 = vmatpush1.msra.mxu0 0.0
      %1533 = vmatprep.subr.mxu0 0.0
      %1534 = vmatpush1.msra.mxu0 0.0
      %1535 = vmatprep.subr.mxu0 0.0
      %1536 = vmatpush1.msra.mxu0 0.0
      %1537 = vmatprep.subr.mxu0 0.0
      %1538 = vmatpush1.msra.mxu0 0.0
      %1539 = vmatprep.subr.mxu0 0.0
      %1540 = vmatpush1.msra.mxu0 0.0
      %1541 = vmatprep.subr.mxu0 0.0
      %1542 = vmatpush1.msra.mxu0 0.0
      %1543 = vmatprep.subr.mxu0 0.0
      %1544 = vmatpush1.msra.mxu0 0.0
      %1545 = vmatprep.subr.mxu0 0.0
      %1546 = vmatpush1.msra.mxu0 0.0
      %1547 = vmatprep.subr.mxu0 0.0
      %1548 = vmatpush1.msra.mxu0 0.0
      %1549 = vmatprep.subr.mxu0 0.0
      %1550 = vmatpush1.msra.mxu0 0.0
      %1551 = vmatprep.subr.mxu0 0.0
      %1552 = vmatpush1.msra.mxu0 0.0
      %1553 = vmatprep.subr.mxu0 0.0
      %1554 = vmatpush1.msra.mxu0 0.0
      %1555 = vmatprep.subr.mxu0 0.0
      %1556 = vmatpush1.msra.mxu0 0.0
      %1557 = vmatprep.subr.mxu0 0.0
      %1558 = vmatpush1.msra.mxu0 0.0
      %1559 = vmatprep.subr.mxu0 0.0
      %1560 = vmatpush1.msra.mxu0 0.0
      %1561 = vmatprep.subr.mxu0 0.0
      %1562 = vmatpush1.msra.mxu0 0.0
      %1563 = vmatprep.subr.mxu0 0.0
      %1564 = vmatpush1.msra.mxu0 0.0
      %1565 = vmatprep.subr.mxu0 0.0
      %1566 = vmatpush1.msra.mxu0 0.0
      %1567 = vmatprep.subr.mxu0 0.0
      %1568 = vmatpush1.msra.mxu0 0.0
      %1569 = vmatprep.subr.mxu0 0.0
      %1570 = vmatpush1.msra.mxu0 0.0
      %1571 = vmatprep.subr.mxu0 0.0
      %1572 = vmatpush1.msra.mxu0 0.0
      %1573 = vmatprep.subr.mxu0 0.0
      %1574 = vmatpush1.msra.mxu0 0.0
      %1575 = vmatprep.subr.mxu0 0.0
      %1576 = vmatpush1.msra.mxu0 0.0
      %1577 = vmatprep.subr.mxu0 0.0
      %1578 = vmatpush1.msra.mxu0 0.0
      %1579 = vmatprep.subr.mxu0 0.0
      %1580 = vmatpush1.msra.mxu0 0.0
      %1581 = vmatprep.subr.mxu0 0.0
      %1582 = vmatpush1.msra.mxu0 0.0
      %1583 = vmatprep.subr.mxu0 0.0
      %1584 = vmatpush1.msra.mxu0 0.0
      %1585 = vmatprep.subr.mxu0 0.0
      %1586 = vmatpush1.msra.mxu0 0.0
      %1587 = vmatprep.mubr.f32.mxu0 0.0
      %1588 = vmatmul.mubr.f32.gmra.mrb[0].mxu0 %v1521
      %v1589 = vpop.f32.mrb[0].mxu0
      %v1590 = vadd.f32 0.0, %v1589
      %v1591 = vpop.f32.mrb[0].mxu0
      %v1592 = vadd.f32 0.0, %v1591
      %1593 = vdwg.mxu0
      %v1594 = vadd.f32 %v1489, %v1590
      %v1595 = vadd.f32 %v1490, %v1592
      %1596 = vrot.lane.b32.xlu0 %v1003, 45
      %v1597 = vpop.permute.xlu0 %1596
      %1598 = vrot.lane.b32.xlu0 %v1004, 45
      %v1599 = vpop.permute.xlu0 %1598
      %v1600 = vsel %vm1228, %v1597, %v1599
      %v1604 = vmul.f32 %v1491, %v1597
      %v1605 = vmul.f32 %v1492, %v1600
      %v1606 = vmul.f32 %v1493, %v1599
      %s1607 = scalar_lea.vmem %s2, 96
      %v1608 = vld [vmem:[%s1607] sm:$0xff]
      %1612 = vrot.lane.b32.xlu0 %v1604, 83
      %v1613 = vpop.permute.xlu0 %1612
      %1614 = vrot.lane.b32.xlu0 %v1605, 83
      %v1615 = vpop.permute.xlu0 %1614
      %1616 = vrot.lane.b32.xlu0 %v1606, 83
      %v1617 = vpop.permute.xlu0 %1616
      %v1618 = vsel %vm1209, %v1613, %v1615
      %v1619 = vsel %vm1209, %v1615, %v1617
      %v1623 = vsel %vm440, %v1608, 0
      %1625 = vmatprep.subr.mxu0 %v1619
      %1626 = vmatpush1.msra.mxu0 %v1618
      %1627 = vmatprep.subr.mxu0 0.0
      %1628 = vmatpush1.msra.mxu0 0.0
      %1629 = vmatprep.subr.mxu0 0.0
      %1630 = vmatpush1.msra.mxu0 0.0
      %1631 = vmatprep.subr.mxu0 0.0
      %1632 = vmatpush1.msra.mxu0 0.0
      %1633 = vmatprep.subr.mxu0 0.0
      %1634 = vmatpush1.msra.mxu0 0.0
      %1635 = vmatprep.subr.mxu0 0.0
      %1636 = vmatpush1.msra.mxu0 0.0
      %1637 = vmatprep.subr.mxu0 0.0
      %1638 = vmatpush1.msra.mxu0 0.0
      %1639 = vmatprep.subr.mxu0 0.0
      %1640 = vmatpush1.msra.mxu0 0.0
      %1641 = vmatprep.subr.mxu0 0.0
      %1642 = vmatpush1.msra.mxu0 0.0
      %1643 = vmatprep.subr.mxu0 0.0
      %1644 = vmatpush1.msra.mxu0 0.0
      %1645 = vmatprep.subr.mxu0 0.0
      %1646 = vmatpush1.msra.mxu0 0.0
      %1647 = vmatprep.subr.mxu0 0.0
      %1648 = vmatpush1.msra.mxu0 0.0
      %1649 = vmatprep.subr.mxu0 0.0
      %1650 = vmatpush1.msra.mxu0 0.0
      %1651 = vmatprep.subr.mxu0 0.0
      %1652 = vmatpush1.msra.mxu0 0.0
      %1653 = vmatprep.subr.mxu0 0.0
      %1654 = vmatpush1.msra.mxu0 0.0
      %1655 = vmatprep.subr.mxu0 0.0
      %1656 = vmatpush1.msra.mxu0 0.0
      %1657 = vmatprep.subr.mxu0 0.0
      %1658 = vmatpush1.msra.mxu0 0.0
      %1659 = vmatprep.subr.mxu0 0.0
      %1660 = vmatpush1.msra.mxu0 0.0
      %1661 = vmatprep.subr.mxu0 0.0
      %1662 = vmatpush1.msra.mxu0 0.0
      %1663 = vmatprep.subr.mxu0 0.0
      %1664 = vmatpush1.msra.mxu0 0.0
      %1665 = vmatprep.subr.mxu0 0.0
      %1666 = vmatpush1.msra.mxu0 0.0
      %1667 = vmatprep.subr.mxu0 0.0
      %1668 = vmatpush1.msra.mxu0 0.0
      %1669 = vmatprep.subr.mxu0 0.0
      %1670 = vmatpush1.msra.mxu0 0.0
      %1671 = vmatprep.subr.mxu0 0.0
      %1672 = vmatpush1.msra.mxu0 0.0
      %1673 = vmatprep.subr.mxu0 0.0
      %1674 = vmatpush1.msra.mxu0 0.0
      %1675 = vmatprep.subr.mxu0 0.0
      %1676 = vmatpush1.msra.mxu0 0.0
      %1677 = vmatprep.subr.mxu0 0.0
      %1678 = vmatpush1.msra.mxu0 0.0
      %1679 = vmatprep.subr.mxu0 0.0
      %1680 = vmatpush1.msra.mxu0 0.0
      %1681 = vmatprep.subr.mxu0 0.0
      %1682 = vmatpush1.msra.mxu0 0.0
      %1683 = vmatprep.subr.mxu0 0.0
      %1684 = vmatpush1.msra.mxu0 0.0
      %1685 = vmatprep.subr.mxu0 0.0
      %1686 = vmatpush1.msra.mxu0 0.0
      %1687 = vmatprep.subr.mxu0 0.0
      %1688 = vmatpush1.msra.mxu0 0.0
      %1689 = vmatprep.mubr.f32.mxu0 0.0
      %1690 = vmatmul.mubr.f32.gmra.mrb[0].mxu0 %v1623
      %v1691 = vpop.f32.mrb[0].mxu0
      %v1692 = vadd.f32 0.0, %v1691
      %v1693 = vpop.f32.mrb[0].mxu0
      %v1694 = vadd.f32 0.0, %v1693
      %1695 = vdwg.mxu0
      %v1696 = vadd.f32 %v1594, %v1692
      %v1697 = vadd.f32 %v1595, %v1694
      %s1698 = scalar_lea.vmem %s2, 104
      %v1699 = vld [vmem:[%s1698] sm:$0xff]
      %1703 = vrot.lane.b32.xlu0 %v1491, 80
      %v1704 = vpop.permute.xlu0 %1703
      %1705 = vrot.lane.b32.xlu0 %v1492, 80
      %v1706 = vpop.permute.xlu0 %1705
      %1707 = vrot.lane.b32.xlu0 %v1493, 80
      %v1708 = vpop.permute.xlu0 %1707
      %vm1709 = vcmask 654336
      %v1710 = vsel %vm1709, %v1704, %v1706
      %v1711 = vsel %vm1709, %v1706, %v1708
      %v1715 = vsel %vm440, %v1699, 0
      %1717 = vmatprep.subr.mxu0 %v1711
      %1718 = vmatpush1.msra.mxu0 %v1710
      %1719 = vmatprep.subr.mxu0 0.0
      %1720 = vmatpush1.msra.mxu0 0.0
      %1721 = vmatprep.subr.mxu0 0.0
      %1722 = vmatpush1.msra.mxu0 0.0
      %1723 = vmatprep.subr.mxu0 0.0
      %1724 = vmatpush1.msra.mxu0 0.0
      %1725 = vmatprep.subr.mxu0 0.0
      %1726 = vmatpush1.msra.mxu0 0.0
      %1727 = vmatprep.subr.mxu0 0.0
      %1728 = vmatpush1.msra.mxu0 0.0
      %1729 = vmatprep.subr.mxu0 0.0
      %1730 = vmatpush1.msra.mxu0 0.0
      %1731 = vmatprep.subr.mxu0 0.0
      %1732 = vmatpush1.msra.mxu0 0.0
      %1733 = vmatprep.subr.mxu0 0.0
      %1734 = vmatpush1.msra.mxu0 0.0
      %1735 = vmatprep.subr.mxu0 0.0
      %1736 = vmatpush1.msra.mxu0 0.0
      %1737 = vmatprep.subr.mxu0 0.0
      %1738 = vmatpush1.msra.mxu0 0.0
      %1739 = vmatprep.subr.mxu0 0.0
      %1740 = vmatpush1.msra.mxu0 0.0
      %1741 = vmatprep.subr.mxu0 0.0
      %1742 = vmatpush1.msra.mxu0 0.0
      %1743 = vmatprep.subr.mxu0 0.0
      %1744 = vmatpush1.msra.mxu0 0.0
      %1745 = vmatprep.subr.mxu0 0.0
      %1746 = vmatpush1.msra.mxu0 0.0
      %1747 = vmatprep.subr.mxu0 0.0
      %1748 = vmatpush1.msra.mxu0 0.0
      %1749 = vmatprep.subr.mxu0 0.0
      %1750 = vmatpush1.msra.mxu0 0.0
      %1751 = vmatprep.subr.mxu0 0.0
      %1752 = vmatpush1.msra.mxu0 0.0
      %1753 = vmatprep.subr.mxu0 0.0
      %1754 = vmatpush1.msra.mxu0 0.0
      %1755 = vmatprep.subr.mxu0 0.0
      %1756 = vmatpush1.msra.mxu0 0.0
      %1757 = vmatprep.subr.mxu0 0.0
      %1758 = vmatpush1.msra.mxu0 0.0
      %1759 = vmatprep.subr.mxu0 0.0
      %1760 = vmatpush1.msra.mxu0 0.0
      %1761 = vmatprep.subr.mxu0 0.0
      %1762 = vmatpush1.msra.mxu0 0.0
      %1763 = vmatprep.subr.mxu0 0.0
      %1764 = vmatpush1.msra.mxu0 0.0
      %1765 = vmatprep.subr.mxu0 0.0
      %1766 = vmatpush1.msra.mxu0 0.0
      %1767 = vmatprep.subr.mxu0 0.0
      %1768 = vmatpush1.msra.mxu0 0.0
      %1769 = vmatprep.subr.mxu0 0.0
      %1770 = vmatpush1.msra.mxu0 0.0
      %1771 = vmatprep.subr.mxu0 0.0
      %1772 = vmatpush1.msra.mxu0 0.0
      %1773 = vmatprep.subr.mxu0 0.0
      %1774 = vmatpush1.msra.mxu0 0.0
      %1775 = vmatprep.subr.mxu0 0.0
      %1776 = vmatpush1.msra.mxu0 0.0
      %1777 = vmatprep.subr.mxu0 0.0
      %1778 = vmatpush1.msra.mxu0 0.0
      %1779 = vmatprep.subr.mxu0 0.0
      %1780 = vmatpush1.msra.mxu0 0.0
      %1781 = vmatprep.mubr.f32.mxu0 0.0
      %1782 = vmatmul.mubr.f32.gmra.mrb[0].mxu0 %v1715
      %v1783 = vpop.f32.mrb[0].mxu0
      %v1784 = vadd.f32 0.0, %v1783
      %v1785 = vpop.f32.mrb[0].mxu0
      %v1786 = vadd.f32 0.0, %v1785
      %1787 = vdwg.mxu0
      %v1788 = vadd.f32 %v1696, %v1784
      %v1789 = vadd.f32 %v1697, %v1786
      %1790 = vrot.lane.b32.xlu0 %v1201, 51
      %v1791 = vpop.permute.xlu0 %1790
      %1792 = vrot.lane.b32.xlu0 %v1202, 51
      %v1793 = vpop.permute.xlu0 %1792
      %v1794 = vsel %vm1120, %v1791, %v1793
      %v1798 = vmul.f32 %v1491, %v1791
      %v1799 = vmul.f32 %v1492, %v1794
      %v1800 = vmul.f32 %v1493, %v1793
      %s1801 = scalar_lea.vmem %s2, 112
      %v1802 = vld [vmem:[%s1801] sm:$0xff]
      %1806 = vrot.lane.b32.xlu0 %v1798, 77
      %v1807 = vpop.permute.xlu0 %1806
      %1808 = vrot.lane.b32.xlu0 %v1799, 77
      %v1809 = vpop.permute.xlu0 %1808
      %1810 = vrot.lane.b32.xlu0 %v1800, 77
      %v1811 = vpop.permute.xlu0 %1810
      %v1812 = vsel %vm1011, %v1807, %v1809
      %v1813 = vsel %vm1011, %v1809, %v1811
      %v1817 = vsel %vm440, %v1802, 0
      %1819 = vmatprep.subr.mxu0 %v1813
      %1820 = vmatpush1.msra.mxu0 %v1812
      %1821 = vmatprep.subr.mxu0 0.0
      %1822 = vmatpush1.msra.mxu0 0.0
      %1823 = vmatprep.subr.mxu0 0.0
      %1824 = vmatpush1.msra.mxu0 0.0
      %1825 = vmatprep.subr.mxu0 0.0
      %1826 = vmatpush1.msra.mxu0 0.0
      %1827 = vmatprep.subr.mxu0 0.0
      %1828 = vmatpush1.msra.mxu0 0.0
      %1829 = vmatprep.subr.mxu0 0.0
      %1830 = vmatpush1.msra.mxu0 0.0
      %1831 = vmatprep.subr.mxu0 0.0
      %1832 = vmatpush1.msra.mxu0 0.0
      %1833 = vmatprep.subr.mxu0 0.0
      %1834 = vmatpush1.msra.mxu0 0.0
      %1835 = vmatprep.subr.mxu0 0.0
      %1836 = vmatpush1.msra.mxu0 0.0
      %1837 = vmatprep.subr.mxu0 0.0
      %1838 = vmatpush1.msra.mxu0 0.0
      %1839 = vmatprep.subr.mxu0 0.0
      %1840 = vmatpush1.msra.mxu0 0.0
      %1841 = vmatprep.subr.mxu0 0.0
      %1842 = vmatpush1.msra.mxu0 0.0
      %1843 = vmatprep.subr.mxu0 0.0
      %1844 = vmatpush1.msra.mxu0 0.0
      %1845 = vmatprep.subr.mxu0 0.0
      %1846 = vmatpush1.msra.mxu0 0.0
      %1847 = vmatprep.subr.mxu0 0.0
      %1848 = vmatpush1.msra.mxu0 0.0
      %1849 = vmatprep.subr.mxu0 0.0
      %1850 = vmatpush1.msra.mxu0 0.0
      %1851 = vmatprep.subr.mxu0 0.0
      %1852 = vmatpush1.msra.mxu0 0.0
      %1853 = vmatprep.subr.mxu0 0.0
      %1854 = vmatpush1.msra.mxu0 0.0
      %1855 = vmatprep.subr.mxu0 0.0
      %1856 = vmatpush1.msra.mxu0 0.0
      %1857 = vmatprep.subr.mxu0 0.0
      %1858 = vmatpush1.msra.mxu0 0.0
      %1859 = vmatprep.subr.mxu0 0.0
      %1860 = vmatpush1.msra.mxu0 0.0
      %1861 = vmatprep.subr.mxu0 0.0
      %1862 = vmatpush1.msra.mxu0 0.0
      %1863 = vmatprep.subr.mxu0 0.0
      %1864 = vmatpush1.msra.mxu0 0.0
      %1865 = vmatprep.subr.mxu0 0.0
      %1866 = vmatpush1.msra.mxu0 0.0
      %1867 = vmatprep.subr.mxu0 0.0
      %1868 = vmatpush1.msra.mxu0 0.0
      %1869 = vmatprep.subr.mxu0 0.0
      %1870 = vmatpush1.msra.mxu0 0.0
      %1871 = vmatprep.subr.mxu0 0.0
      %1872 = vmatpush1.msra.mxu0 0.0
      %1873 = vmatprep.subr.mxu0 0.0
      %1874 = vmatpush1.msra.mxu0 0.0
      %1875 = vmatprep.subr.mxu0 0.0
      %1876 = vmatpush1.msra.mxu0 0.0
      %1877 = vmatprep.subr.mxu0 0.0
      %1878 = vmatpush1.msra.mxu0 0.0
      %1879 = vmatprep.subr.mxu0 0.0
      %1880 = vmatpush1.msra.mxu0 0.0
      %1881 = vmatprep.subr.mxu0 0.0
      %1882 = vmatpush1.msra.mxu0 0.0
      %1883 = vmatprep.mubr.f32.mxu0 0.0
      %1884 = vmatmul.mubr.f32.gmra.mrb[0].mxu0 %v1817
      %v1885 = vpop.f32.mrb[0].mxu0
      %v1886 = vadd.f32 0.0, %v1885
      %v1887 = vpop.f32.mrb[0].mxu0
      %v1888 = vadd.f32 0.0, %v1887
      %1889 = vdwg.mxu0
      %v1890 = vadd.f32 %v1788, %v1886
      %v1891 = vadd.f32 %v1789, %v1888
      %v1892 = vld [vmem:[%s4 + $0x38] sm:$0xff]
      %1894 = vset.pattern.permute.xlu0 0
      %1895 = vperm.xlu0 %1894, %v1892
      %v1896 = vpop.permute.xlu0 %1895
      %v1898 = vadd.f32 %v1890, %v1896
      %v1899 = vadd.f32 %v1891, %v1896
      %1900 = vst [vmem:[#allocation2 + $0x8] sm:$0xff] %v398
      %1901 = vst [vmem:[#allocation2 + $0x10] sm:$0xff] %v400
      %v1902 = vld [vmem:[#allocation2] sm:$0xff]
      %v1903 = vld [vmem:[#allocation2 + $0x8] sm:$0xff]
      %v1904 = vld [vmem:[#allocation2 + $0x10] sm:$0xff]
      %vm1905 = vcmp.ge.s32.totalorder %v258, 2
      %vm1906 = vcmp.ge.s32.totalorder %v259, 2
      %v1907 = vsel %vm1905, 1.0, 0.0
      %v1908 = vsel %vm1906, 1.0, 0.0
      %1911 = vrot.lane.b32.xlu0 %v1907, 126
      %v1912 = vpop.permute.xlu0 %1911
      %1913 = vrot.lane.b32.xlu0 %v1908, 126
      %v1914 = vpop.permute.xlu0 %1913
      %vm1915 = vcmask 1031168
      %v1916 = vsel %vm1915, %v1912, %v1914
      %v1920 = vmul.f32 %v1902, %v1912
      %v1921 = vmul.f32 %v1903, %v1916
      %v1922 = vmul.f32 %v1904, %v1914
      %s1923 = scalar_lea.vmem %s2, 120
      %v1924 = vld [vmem:[%s1923] sm:$0xff]
      %v1925 = vmul.f32 %v1902, %v426
      %v1926 = vmul.f32 %v1903, %v430
      %v1927 = vmul.f32 %v1904, %v428
      %s1928 = scalar_lea.vmem %s2, 128
      %v1929 = vld [vmem:[%s1928] sm:$0xff]
      %1933 = vrot.lane.b32.xlu0 %v1925, 1
      %v1934 = vpop.permute.xlu0 %1933
      %1935 = vrot.lane.b32.xlu0 %v1926, 1
      %v1936 = vpop.permute.xlu0 %1935
      %1937 = vrot.lane.b32.xlu0 %v1927, 1
      %v1938 = vpop.permute.xlu0 %1937
      %v1939 = vsel %vm524, %v1934, %v1936
      %v1940 = vsel %vm524, %v1936, %v1938
      %v1944 = vsel %vm440, %v1929, 0
      %1946 = vmatprep.subr.mxu0 %v1940
      %1947 = vmatpush1.msra.mxu0 %v1939
      %1948 = vmatprep.subr.mxu0 0.0
      %1949 = vmatpush1.msra.mxu0 0.0
      %1950 = vmatprep.subr.mxu0 0.0
      %1951 = vmatpush1.msra.mxu0 0.0
      %1952 = vmatprep.subr.mxu0 0.0
      %1953 = vmatpush1.msra.mxu0 0.0
      %1954 = vmatprep.subr.mxu0 0.0
      %1955 = vmatpush1.msra.mxu0 0.0
      %1956 = vmatprep.subr.mxu0 0.0
      %1957 = vmatpush1.msra.mxu0 0.0
      %1958 = vmatprep.subr.mxu0 0.0
      %1959 = vmatpush1.msra.mxu0 0.0
      %1960 = vmatprep.subr.mxu0 0.0
      %1961 = vmatpush1.msra.mxu0 0.0
      %1962 = vmatprep.subr.mxu0 0.0
      %1963 = vmatpush1.msra.mxu0 0.0
      %1964 = vmatprep.subr.mxu0 0.0
      %1965 = vmatpush1.msra.mxu0 0.0
      %1966 = vmatprep.subr.mxu0 0.0
      %1967 = vmatpush1.msra.mxu0 0.0
      %1968 = vmatprep.subr.mxu0 0.0
      %1969 = vmatpush1.msra.mxu0 0.0
      %1970 = vmatprep.subr.mxu0 0.0
      %1971 = vmatpush1.msra.mxu0 0.0
      %1972 = vmatprep.subr.mxu0 0.0
      %1973 = vmatpush1.msra.mxu0 0.0
      %1974 = vmatprep.subr.mxu0 0.0
      %1975 = vmatpush1.msra.mxu0 0.0
      %1976 = vmatprep.subr.mxu0 0.0
      %1977 = vmatpush1.msra.mxu0 0.0
      %1978 = vmatprep.subr.mxu0 0.0
      %1979 = vmatpush1.msra.mxu0 0.0
      %1980 = vmatprep.subr.mxu0 0.0
      %1981 = vmatpush1.msra.mxu0 0.0
      %1982 = vmatprep.subr.mxu0 0.0
      %1983 = vmatpush1.msra.mxu0 0.0
      %1984 = vmatprep.subr.mxu0 0.0
      %1985 = vmatpush1.msra.mxu0 0.0
      %1986 = vmatprep.subr.mxu0 0.0
      %1987 = vmatpush1.msra.mxu0 0.0
      %1988 = vmatprep.subr.mxu0 0.0
      %1989 = vmatpush1.msra.mxu0 0.0
      %1990 = vmatprep.subr.mxu0 0.0
      %1991 = vmatpush1.msra.mxu0 0.0
      %1992 = vmatprep.subr.mxu0 0.0
      %1993 = vmatpush1.msra.mxu0 0.0
      %1994 = vmatprep.subr.mxu0 0.0
      %1995 = vmatpush1.msra.mxu0 0.0
      %1996 = vmatprep.subr.mxu0 0.0
      %1997 = vmatpush1.msra.mxu0 0.0
      %1998 = vmatprep.subr.mxu0 0.0
      %1999 = vmatpush1.msra.mxu0 0.0
      %2000 = vmatprep.subr.mxu0 0.0
      %2001 = vmatpush1.msra.mxu0 0.0
      %2002 = vmatprep.subr.mxu0 0.0
      %2003 = vmatpush1.msra.mxu0 0.0
      %2004 = vmatprep.subr.mxu0 0.0
      %2005 = vmatpush1.msra.mxu0 0.0
      %2006 = vmatprep.subr.mxu0 0.0
      %2007 = vmatpush1.msra.mxu0 0.0
      %2008 = vmatprep.subr.mxu0 0.0
      %2009 = vmatpush1.msra.mxu0 0.0
      %2010 = vmatprep.mubr.f32.mxu0 0.0
      %2011 = vmatmul.mubr.f32.gmra.mrb[0].mxu0 %v1944
      %v2012 = vpop.f32.mrb[0].mxu0
      %v2013 = vadd.f32 0.0, %v2012
      %v2014 = vpop.f32.mrb[0].mxu0
      %v2015 = vadd.f32 0.0, %v2014
      %2016 = vdwg.mxu0
      %2020 = vrot.lane.b32.xlu0 %v1920, 2
      %v2021 = vpop.permute.xlu0 %2020
      %2022 = vrot.lane.b32.xlu0 %v1921, 2
      %v2023 = vpop.permute.xlu0 %2022
      %2024 = vrot.lane.b32.xlu0 %v1922, 2
      %v2025 = vpop.permute.xlu0 %2024
      %vm2026 = vcmask 15360
      %v2027 = vsel %vm2026, %v2021, %v2023
      %v2028 = vsel %vm2026, %v2023, %v2025
      %v2032 = vsel %vm440, %v1924, 0
      %2034 = vmatprep.subr.mxu0 %v2028
      %2035 = vmatpush1.msra.mxu0 %v2027
      %2036 = vmatprep.subr.mxu0 0.0
      %2037 = vmatpush1.msra.mxu0 0.0
      %2038 = vmatprep.subr.mxu0 0.0
      %2039 = vmatpush1.msra.mxu0 0.0
      %2040 = vmatprep.subr.mxu0 0.0
      %2041 = vmatpush1.msra.mxu0 0.0
      %2042 = vmatprep.subr.mxu0 0.0
      %2043 = vmatpush1.msra.mxu0 0.0
      %2044 = vmatprep.subr.mxu0 0.0
      %2045 = vmatpush1.msra.mxu0 0.0
      %2046 = vmatprep.subr.mxu0 0.0
      %2047 = vmatpush1.msra.mxu0 0.0
      %2048 = vmatprep.subr.mxu0 0.0
      %2049 = vmatpush1.msra.mxu0 0.0
      %2050 = vmatprep.subr.mxu0 0.0
      %2051 = vmatpush1.msra.mxu0 0.0
      %2052 = vmatprep.subr.mxu0 0.0
      %2053 = vmatpush1.msra.mxu0 0.0
      %2054 = vmatprep.subr.mxu0 0.0
      %2055 = vmatpush1.msra.mxu0 0.0
      %2056 = vmatprep.subr.mxu0 0.0
      %2057 = vmatpush1.msra.mxu0 0.0
      %2058 = vmatprep.subr.mxu0 0.0
      %2059 = vmatpush1.msra.mxu0 0.0
      %2060 = vmatprep.subr.mxu0 0.0
      %2061 = vmatpush1.msra.mxu0 0.0
      %2062 = vmatprep.subr.mxu0 0.0
      %2063 = vmatpush1.msra.mxu0 0.0
      %2064 = vmatprep.subr.mxu0 0.0
      %2065 = vmatpush1.msra.mxu0 0.0
      %2066 = vmatprep.subr.mxu0 0.0
      %2067 = vmatpush1.msra.mxu0 0.0
      %2068 = vmatprep.subr.mxu0 0.0
      %2069 = vmatpush1.msra.mxu0 0.0
      %2070 = vmatprep.subr.mxu0 0.0
      %2071 = vmatpush1.msra.mxu0 0.0
      %2072 = vmatprep.subr.mxu0 0.0
      %2073 = vmatpush1.msra.mxu0 0.0
      %2074 = vmatprep.subr.mxu0 0.0
      %2075 = vmatpush1.msra.mxu0 0.0
      %2076 = vmatprep.subr.mxu0 0.0
      %2077 = vmatpush1.msra.mxu0 0.0
      %2078 = vmatprep.subr.mxu0 0.0
      %2079 = vmatpush1.msra.mxu0 0.0
      %2080 = vmatprep.subr.mxu0 0.0
      %2081 = vmatpush1.msra.mxu0 0.0
      %2082 = vmatprep.subr.mxu0 0.0
      %2083 = vmatpush1.msra.mxu0 0.0
      %2084 = vmatprep.subr.mxu0 0.0
      %2085 = vmatpush1.msra.mxu0 0.0
      %2086 = vmatprep.subr.mxu0 0.0
      %2087 = vmatpush1.msra.mxu0 0.0
      %2088 = vmatprep.subr.mxu0 0.0
      %2089 = vmatpush1.msra.mxu0 0.0
      %2090 = vmatprep.subr.mxu0 0.0
      %2091 = vmatpush1.msra.mxu0 0.0
      %2092 = vmatprep.subr.mxu0 0.0
      %2093 = vmatpush1.msra.mxu0 0.0
      %2094 = vmatprep.subr.mxu0 0.0
      %2095 = vmatpush1.msra.mxu0 0.0
      %2096 = vmatprep.subr.mxu0 0.0
      %2097 = vmatpush1.msra.mxu0 0.0
      %2098 = vmatprep.mubr.f32.mxu0 0.0
      %2099 = vmatmul.mubr.f32.gmra.mrb[0].mxu0 %v2032
      %v2100 = vpop.f32.mrb[0].mxu0
      %v2101 = vadd.f32 %v2013, %v2100
      %v2102 = vpop.f32.mrb[0].mxu0
      %v2103 = vadd.f32 %v2015, %v2102
      %2104 = vdwg.mxu0
      %s2105 = scalar_lea.vmem %s2, 136
      %v2106 = vld [vmem:[%s2105] sm:$0xff]
      %v2108 = vsel %vm440, %v2106, 0
      %2110 = vmatprep.subr.mxu0 %v1904
      %2111 = vmatpush1.msra.mxu0 %v1903
      %2112 = vmatprep.subr.mxu0 0.0
      %2113 = vmatpush1.msra.mxu0 0.0
      %2114 = vmatprep.subr.mxu0 0.0
      %2115 = vmatpush1.msra.mxu0 0.0
      %2116 = vmatprep.subr.mxu0 0.0
      %2117 = vmatpush1.msra.mxu0 0.0
      %2118 = vmatprep.subr.mxu0 0.0
      %2119 = vmatpush1.msra.mxu0 0.0
      %2120 = vmatprep.subr.mxu0 0.0
      %2121 = vmatpush1.msra.mxu0 0.0
      %2122 = vmatprep.subr.mxu0 0.0
      %2123 = vmatpush1.msra.mxu0 0.0
      %2124 = vmatprep.subr.mxu0 0.0
      %2125 = vmatpush1.msra.mxu0 0.0
      %2126 = vmatprep.subr.mxu0 0.0
      %2127 = vmatpush1.msra.mxu0 0.0
      %2128 = vmatprep.subr.mxu0 0.0
      %2129 = vmatpush1.msra.mxu0 0.0
      %2130 = vmatprep.subr.mxu0 0.0
      %2131 = vmatpush1.msra.mxu0 0.0
      %2132 = vmatprep.subr.mxu0 0.0
      %2133 = vmatpush1.msra.mxu0 0.0
      %2134 = vmatprep.subr.mxu0 0.0
      %2135 = vmatpush1.msra.mxu0 0.0
      %2136 = vmatprep.subr.mxu0 0.0
      %2137 = vmatpush1.msra.mxu0 0.0
      %2138 = vmatprep.subr.mxu0 0.0
      %2139 = vmatpush1.msra.mxu0 0.0
      %2140 = vmatprep.subr.mxu0 0.0
      %2141 = vmatpush1.msra.mxu0 0.0
      %2142 = vmatprep.subr.mxu0 0.0
      %2143 = vmatpush1.msra.mxu0 0.0
      %2144 = vmatprep.subr.mxu0 0.0
      %2145 = vmatpush1.msra.mxu0 0.0
      %2146 = vmatprep.subr.mxu0 0.0
      %2147 = vmatpush1.msra.mxu0 0.0
      %2148 = vmatprep.subr.mxu0 0.0
      %2149 = vmatpush1.msra.mxu0 0.0
      %2150 = vmatprep.subr.mxu0 0.0
      %2151 = vmatpush1.msra.mxu0 0.0
      %2152 = vmatprep.subr.mxu0 0.0
      %2153 = vmatpush1.msra.mxu0 0.0
      %2154 = vmatprep.subr.mxu0 0.0
      %2155 = vmatpush1.msra.mxu0 0.0
      %2156 = vmatprep.subr.mxu0 0.0
      %2157 = vmatpush1.msra.mxu0 0.0
      %2158 = vmatprep.subr.mxu0 0.0
      %2159 = vmatpush1.msra.mxu0 0.0
      %2160 = vmatprep.subr.mxu0 0.0
      %2161 = vmatpush1.msra.mxu0 0.0
      %2162 = vmatprep.subr.mxu0 0.0
      %2163 = vmatpush1.msra.mxu0 0.0
      %2164 = vmatprep.subr.mxu0 0.0
      %2165 = vmatpush1.msra.mxu0 0.0
      %2166 = vmatprep.subr.mxu0 0.0
      %2167 = vmatpush1.msra.mxu0 0.0
      %2168 = vmatprep.subr.mxu0 0.0
      %2169 = vmatpush1.msra.mxu0 0.0
      %2170 = vmatprep.subr.mxu0 0.0
      %2171 = vmatpush1.msra.mxu0 0.0
      %2172 = vmatprep.subr.mxu0 0.0
      %2173 = vmatpush1.msra.mxu0 0.0
      %2174 = vmatprep.mubr.f32.mxu0 0.0
      %2175 = vmatmul.mubr.f32.gmra.mrb[0].mxu0 %v2108
      %v2176 = vpop.f32.mrb[0].mxu0
      %v2177 = vadd.f32 0.0, %v2176
      %v2178 = vpop.f32.mrb[0].mxu0
      %v2179 = vadd.f32 0.0, %v2178
      %2180 = vdwg.mxu0
      %v2181 = vadd.f32 %v2101, %v2177
      %v2182 = vadd.f32 %v2103, %v2179
      %v2183 = vld [vmem:[#allocation2 + $0x8] sm:$0xff]
      %v2184 = vld [vmem:[#allocation2 + $0x10] sm:$0xff]
      %v2185 = vld [vmem:[#allocation2 + $0x18] sm:$0xff]
      %v2186 = vmul.f32 %v2183, %v613
      %v2187 = vmul.f32 %v2184, %v616
      %v2188 = vmul.f32 %v2185, %v615
      %s2189 = scalar_lea.vmem %s2, 144
      %v2190 = vld [vmem:[%s2189] sm:$0xff]
      %2194 = vrot.lane.b32.xlu0 %v2186, 127
      %v2195 = vpop.permute.xlu0 %2194
      %2196 = vrot.lane.b32.xlu0 %v2187, 127
      %v2197 = vpop.permute.xlu0 %2196
      %2198 = vrot.lane.b32.xlu0 %v2188, 127
      %v2199 = vpop.permute.xlu0 %2198
      %v2200 = vsel %vm429, %v2195, %v2197
      %v2201 = vsel %vm429, %v2197, %v2199
      %v2205 = vsel %vm440, %v2190, 0
      %2207 = vmatprep.subr.mxu0 %v2201
      %2208 = vmatpush1.msra.mxu0 %v2200
      %2209 = vmatprep.subr.mxu0 0.0
      %2210 = vmatpush1.msra.mxu0 0.0
      %2211 = vmatprep.subr.mxu0 0.0
      %2212 = vmatpush1.msra.mxu0 0.0
      %2213 = vmatprep.subr.mxu0 0.0
      %2214 = vmatpush1.msra.mxu0 0.0
      %2215 = vmatprep.subr.mxu0 0.0
      %2216 = vmatpush1.msra.mxu0 0.0
      %2217 = vmatprep.subr.mxu0 0.0
      %2218 = vmatpush1.msra.mxu0 0.0
      %2219 = vmatprep.subr.mxu0 0.0
      %2220 = vmatpush1.msra.mxu0 0.0
      %2221 = vmatprep.subr.mxu0 0.0
      %2222 = vmatpush1.msra.mxu0 0.0
      %2223 = vmatprep.subr.mxu0 0.0
      %2224 = vmatpush1.msra.mxu0 0.0
      %2225 = vmatprep.subr.mxu0 0.0
      %2226 = vmatpush1.msra.mxu0 0.0
      %2227 = vmatprep.subr.mxu0 0.0
      %2228 = vmatpush1.msra.mxu0 0.0
      %2229 = vmatprep.subr.mxu0 0.0
      %2230 = vmatpush1.msra.mxu0 0.0
      %2231 = vmatprep.subr.mxu0 0.0
      %2232 = vmatpush1.msra.mxu0 0.0
      %2233 = vmatprep.subr.mxu0 0.0
      %2234 = vmatpush1.msra.mxu0 0.0
      %2235 = vmatprep.subr.mxu0 0.0
      %2236 = vmatpush1.msra.mxu0 0.0
      %2237 = vmatprep.subr.mxu0 0.0
      %2238 = vmatpush1.msra.mxu0 0.0
      %2239 = vmatprep.subr.mxu0 0.0
      %2240 = vmatpush1.msra.mxu0 0.0
      %2241 = vmatprep.subr.mxu0 0.0
      %2242 = vmatpush1.msra.mxu0 0.0
      %2243 = vmatprep.subr.mxu0 0.0
      %2244 = vmatpush1.msra.mxu0 0.0
      %2245 = vmatprep.subr.mxu0 0.0
      %2246 = vmatpush1.msra.mxu0 0.0
      %2247 = vmatprep.subr.mxu0 0.0
      %2248 = vmatpush1.msra.mxu0 0.0
      %2249 = vmatprep.subr.mxu0 0.0
      %2250 = vmatpush1.msra.mxu0 0.0
      %2251 = vmatprep.subr.mxu0 0.0
      %2252 = vmatpush1.msra.mxu0 0.0
      %2253 = vmatprep.subr.mxu0 0.0
      %2254 = vmatpush1.msra.mxu0 0.0
      %2255 = vmatprep.subr.mxu0 0.0
      %2256 = vmatpush1.msra.mxu0 0.0
      %2257 = vmatprep.subr.mxu0 0.0
      %2258 = vmatpush1.msra.mxu0 0.0
      %2259 = vmatprep.subr.mxu0 0.0
      %2260 = vmatpush1.msra.mxu0 0.0
      %2261 = vmatprep.subr.mxu0 0.0
      %2262 = vmatpush1.msra.mxu0 0.0
      %2263 = vmatprep.subr.mxu0 0.0
      %2264 = vmatpush1.msra.mxu0 0.0
      %2265 = vmatprep.subr.mxu0 0.0
      %2266 = vmatpush1.msra.mxu0 0.0
      %2267 = vmatprep.subr.mxu0 0.0
      %2268 = vmatpush1.msra.mxu0 0.0
      %2269 = vmatprep.subr.mxu0 0.0
      %2270 = vmatpush1.msra.mxu0 0.0
      %2271 = vmatprep.mubr.f32.mxu0 0.0
      %2272 = vmatmul.mubr.f32.gmra.mrb[0].mxu0 %v2205
      %v2273 = vpop.f32.mrb[0].mxu0
      %v2274 = vadd.f32 0.0, %v2273
      %v2275 = vpop.f32.mrb[0].mxu0
      %v2276 = vadd.f32 0.0, %v2275
      %2277 = vdwg.mxu0
      %v2278 = vadd.f32 %v2181, %v2274
      %v2279 = vadd.f32 %v2182, %v2276
      %vm2280 = vcmp.lt.s32.totalorder %v258, 14
      %vm2281 = vcmp.lt.s32.totalorder %v259, 14
      %v2282 = vsel %vm2280, 1.0, 0.0
      %v2283 = vsel %vm2281, 1.0, 0.0
      %2286 = vrot.lane.b32.xlu0 %v2282, 2
      %v2287 = vpop.permute.xlu0 %2286
      %2288 = vrot.lane.b32.xlu0 %v2283, 2
      %v2289 = vpop.permute.xlu0 %2288
      %v2290 = vsel %vm2026, %v2287, %v2289
      %v2294 = vmul.f32 %v2183, %v2287
      %v2295 = vmul.f32 %v2184, %v2290
      %v2296 = vmul.f32 %v2185, %v2289
      %s2297 = scalar_lea.vmem %s2, 152
      %v2298 = vld [vmem:[%s2297] sm:$0xff]
      %2302 = vrot.lane.b32.xlu0 %v2294, 126
      %v2303 = vpop.permute.xlu0 %2302
      %2304 = vrot.lane.b32.xlu0 %v2295, 126
      %v2305 = vpop.permute.xlu0 %2304
      %2306 = vrot.lane.b32.xlu0 %v2296, 126
      %v2307 = vpop.permute.xlu0 %2306
      %v2308 = vsel %vm1915, %v2303, %v2305
      %v2309 = vsel %vm1915, %v2305, %v2307
      %v2313 = vsel %vm440, %v2298, 0
      %2315 = vmatprep.subr.mxu0 %v2309
      %2316 = vmatpush1.msra.mxu0 %v2308
      %2317 = vmatprep.subr.mxu0 0.0
      %2318 = vmatpush1.msra.mxu0 0.0
      %2319 = vmatprep.subr.mxu0 0.0
      %2320 = vmatpush1.msra.mxu0 0.0
      %2321 = vmatprep.subr.mxu0 0.0
      %2322 = vmatpush1.msra.mxu0 0.0
      %2323 = vmatprep.subr.mxu0 0.0
      %2324 = vmatpush1.msra.mxu0 0.0
      %2325 = vmatprep.subr.mxu0 0.0
      %2326 = vmatpush1.msra.mxu0 0.0
      %2327 = vmatprep.subr.mxu0 0.0
      %2328 = vmatpush1.msra.mxu0 0.0
      %2329 = vmatprep.subr.mxu0 0.0
      %2330 = vmatpush1.msra.mxu0 0.0
      %2331 = vmatprep.subr.mxu0 0.0
      %2332 = vmatpush1.msra.mxu0 0.0
      %2333 = vmatprep.subr.mxu0 0.0
      %2334 = vmatpush1.msra.mxu0 0.0
      %2335 = vmatprep.subr.mxu0 0.0
      %2336 = vmatpush1.msra.mxu0 0.0
      %2337 = vmatprep.subr.mxu0 0.0
      %2338 = vmatpush1.msra.mxu0 0.0
      %2339 = vmatprep.subr.mxu0 0.0
      %2340 = vmatpush1.msra.mxu0 0.0
      %2341 = vmatprep.subr.mxu0 0.0
      %2342 = vmatpush1.msra.mxu0 0.0
      %2343 = vmatprep.subr.mxu0 0.0
      %2344 = vmatpush1.msra.mxu0 0.0
      %2345 = vmatprep.subr.mxu0 0.0
      %2346 = vmatpush1.msra.mxu0 0.0
      %2347 = vmatprep.subr.mxu0 0.0
      %2348 = vmatpush1.msra.mxu0 0.0
      %2349 = vmatprep.subr.mxu0 0.0
      %2350 = vmatpush1.msra.mxu0 0.0
      %2351 = vmatprep.subr.mxu0 0.0
      %2352 = vmatpush1.msra.mxu0 0.0
      %2353 = vmatprep.subr.mxu0 0.0
      %2354 = vmatpush1.msra.mxu0 0.0
      %2355 = vmatprep.subr.mxu0 0.0
      %2356 = vmatpush1.msra.mxu0 0.0
      %2357 = vmatprep.subr.mxu0 0.0
      %2358 = vmatpush1.msra.mxu0 0.0
      %2359 = vmatprep.subr.mxu0 0.0
      %2360 = vmatpush1.msra.mxu0 0.0
      %2361 = vmatprep.subr.mxu0 0.0
      %2362 = vmatpush1.msra.mxu0 0.0
      %2363 = vmatprep.subr.mxu0 0.0
      %2364 = vmatpush1.msra.mxu0 0.0
      %2365 = vmatprep.subr.mxu0 0.0
      %2366 = vmatpush1.msra.mxu0 0.0
      %2367 = vmatprep.subr.mxu0 0.0
      %2368 = vmatpush1.msra.mxu0 0.0
      %2369 = vmatprep.subr.mxu0 0.0
      %2370 = vmatpush1.msra.mxu0 0.0
      %2371 = vmatprep.subr.mxu0 0.0
      %2372 = vmatpush1.msra.mxu0 0.0
      %2373 = vmatprep.subr.mxu0 0.0
      %2374 = vmatpush1.msra.mxu0 0.0
      %2375 = vmatprep.subr.mxu0 0.0
      %2376 = vmatpush1.msra.mxu0 0.0
      %2377 = vmatprep.subr.mxu0 0.0
      %2378 = vmatpush1.msra.mxu0 0.0
      %2379 = vmatprep.mubr.f32.mxu0 0.0
      %2380 = vmatmul.mubr.f32.gmra.mrb[0].mxu0 %v2313
      %v2381 = vpop.f32.mrb[0].mxu0
      %v2382 = vadd.f32 0.0, %v2381
      %v2383 = vpop.f32.mrb[0].mxu0
      %v2384 = vadd.f32 0.0, %v2383
      %2385 = vdwg.mxu0
      %v2386 = vadd.f32 %v2278, %v2382
      %v2387 = vadd.f32 %v2279, %v2384
      %v2388 = vld [vmem:[%s4 + $0x40] sm:$0xff]
      %2390 = vset.pattern.permute.xlu0 0
      %2391 = vperm.xlu0 %2390, %v2388
      %v2392 = vpop.permute.xlu0 %2391
      %v2394 = vadd.f32 %v2386, %v2392
      %v2395 = vadd.f32 %v2387, %v2392
      %2396 = vst [vmem:[#allocation2 + $0x8] sm:$0xff] %v2394
      %2397 = vst [vmem:[#allocation2 + $0x10] sm:$0xff] %v2395
      %v2398 = vld [vmem:[#allocation2] sm:$0xff]
      %v2399 = vld [vmem:[#allocation2 + $0x8] sm:$0xff]
      %v2400 = vld [vmem:[#allocation2 + $0x10] sm:$0xff]
      %s2401 = scalar_lea.vmem %s2, 160
      %v2402 = vld [vmem:[%s2401] sm:$0xff]
      %s2403 = scalar_lea.vmem %s2, 168
      %v2404 = vld [vmem:[%s2403] sm:$0xff]
      %2408 = vrot.lane.b32.xlu0 %v2398, 16
      %v2409 = vpop.permute.xlu0 %2408
      %2410 = vrot.lane.b32.xlu0 %v2399, 16
      %v2411 = vpop.permute.xlu0 %2410
      %2412 = vrot.lane.b32.xlu0 %v2400, 16
      %v2413 = vpop.permute.xlu0 %2412
      %v2414 = vsel %vm814, %v2409, %v2411
      %v2415 = vsel %vm814, %v2411, %v2413
      %v2419 = vsel %vm440, %v2404, 0
      %2421 = vmatprep.subr.mxu0 %v2415
      %2422 = vmatpush1.msra.mxu0 %v2414
      %2423 = vmatprep.subr.mxu0 0.0
      %2424 = vmatpush1.msra.mxu0 0.0
      %2425 = vmatprep.subr.mxu0 0.0
      %2426 = vmatpush1.msra.mxu0 0.0
      %2427 = vmatprep.subr.mxu0 0.0
      %2428 = vmatpush1.msra.mxu0 0.0
      %2429 = vmatprep.subr.mxu0 0.0
      %2430 = vmatpush1.msra.mxu0 0.0
      %2431 = vmatprep.subr.mxu0 0.0
      %2432 = vmatpush1.msra.mxu0 0.0
      %2433 = vmatprep.subr.mxu0 0.0
      %2434 = vmatpush1.msra.mxu0 0.0
      %2435 = vmatprep.subr.mxu0 0.0
      %2436 = vmatpush1.msra.mxu0 0.0
      %2437 = vmatprep.subr.mxu0 0.0
      %2438 = vmatpush1.msra.mxu0 0.0
      %2439 = vmatprep.subr.mxu0 0.0
      %2440 = vmatpush1.msra.mxu0 0.0
      %2441 = vmatprep.subr.mxu0 0.0
      %2442 = vmatpush1.msra.mxu0 0.0
      %2443 = vmatprep.subr.mxu0 0.0
      %2444 = vmatpush1.msra.mxu0 0.0
      %2445 = vmatprep.subr.mxu0 0.0
      %2446 = vmatpush1.msra.mxu0 0.0
      %2447 = vmatprep.subr.mxu0 0.0
      %2448 = vmatpush1.msra.mxu0 0.0
      %2449 = vmatprep.subr.mxu0 0.0
      %2450 = vmatpush1.msra.mxu0 0.0
      %2451 = vmatprep.subr.mxu0 0.0
      %2452 = vmatpush1.msra.mxu0 0.0
      %2453 = vmatprep.subr.mxu0 0.0
      %2454 = vmatpush1.msra.mxu0 0.0
      %2455 = vmatprep.subr.mxu0 0.0
      %2456 = vmatpush1.msra.mxu0 0.0
      %2457 = vmatprep.subr.mxu0 0.0
      %2458 = vmatpush1.msra.mxu0 0.0
      %2459 = vmatprep.subr.mxu0 0.0
      %2460 = vmatpush1.msra.mxu0 0.0
      %2461 = vmatprep.subr.mxu0 0.0
      %2462 = vmatpush1.msra.mxu0 0.0
      %2463 = vmatprep.subr.mxu0 0.0
      %2464 = vmatpush1.msra.mxu0 0.0
      %2465 = vmatprep.subr.mxu0 0.0
      %2466 = vmatpush1.msra.mxu0 0.0
      %2467 = vmatprep.subr.mxu0 0.0
      %2468 = vmatpush1.msra.mxu0 0.0
      %2469 = vmatprep.subr.mxu0 0.0
      %2470 = vmatpush1.msra.mxu0 0.0
      %2471 = vmatprep.subr.mxu0 0.0
      %2472 = vmatpush1.msra.mxu0 0.0
      %2473 = vmatprep.subr.mxu0 0.0
      %2474 = vmatpush1.msra.mxu0 0.0
      %2475 = vmatprep.subr.mxu0 0.0
      %2476 = vmatpush1.msra.mxu0 0.0
      %2477 = vmatprep.subr.mxu0 0.0
      %2478 = vmatpush1.msra.mxu0 0.0
      %2479 = vmatprep.subr.mxu0 0.0
      %2480 = vmatpush1.msra.mxu0 0.0
      %2481 = vmatprep.subr.mxu0 0.0
      %2482 = vmatpush1.msra.mxu0 0.0
      %2483 = vmatprep.subr.mxu0 0.0
      %2484 = vmatpush1.msra.mxu0 0.0
      %2485 = vmatprep.mubr.f32.mxu0 0.0
      %2486 = vmatmul.mubr.f32.gmra.mrb[0].mxu0 %v2419
      %v2487 = vpop.f32.mrb[0].mxu0
      %v2488 = vadd.f32 0.0, %v2487
      %v2489 = vpop.f32.mrb[0].mxu0
      %v2490 = vadd.f32 0.0, %v2489
      %2491 = vdwg.mxu0
      %2492 = vrot.lane.b32.xlu0 %v2398, 32
      %v2493 = vpop.permute.xlu0 %2492
      %2494 = vrot.lane.b32.xlu0 %v2399, 32
      %v2495 = vpop.permute.xlu0 %2494
      %2496 = vrot.lane.b32.xlu0 %v2400, 32
      %v2497 = vpop.permute.xlu0 %2496
      %vm2498 = vcmask 261120
      %v2499 = vsel %vm2498, %v2493, %v2495
      %v2500 = vsel %vm2498, %v2495, %v2497
      %v2504 = vsel %vm440, %v2402, 0
      %2506 = vmatprep.subr.mxu0 %v2500
      %2507 = vmatpush1.msra.mxu0 %v2499
      %2508 = vmatprep.subr.mxu0 0.0
      %2509 = vmatpush1.msra.mxu0 0.0
      %2510 = vmatprep.subr.mxu0 0.0
      %2511 = vmatpush1.msra.mxu0 0.0
      %2512 = vmatprep.subr.mxu0 0.0
      %2513 = vmatpush1.msra.mxu0 0.0
      %2514 = vmatprep.subr.mxu0 0.0
      %2515 = vmatpush1.msra.mxu0 0.0
      %2516 = vmatprep.subr.mxu0 0.0
      %2517 = vmatpush1.msra.mxu0 0.0
      %2518 = vmatprep.subr.mxu0 0.0
      %2519 = vmatpush1.msra.mxu0 0.0
      %2520 = vmatprep.subr.mxu0 0.0
      %2521 = vmatpush1.msra.mxu0 0.0
      %2522 = vmatprep.subr.mxu0 0.0
      %2523 = vmatpush1.msra.mxu0 0.0
      %2524 = vmatprep.subr.mxu0 0.0
      %2525 = vmatpush1.msra.mxu0 0.0
      %2526 = vmatprep.subr.mxu0 0.0
      %2527 = vmatpush1.msra.mxu0 0.0
      %2528 = vmatprep.subr.mxu0 0.0
      %2529 = vmatpush1.msra.mxu0 0.0
      %2530 = vmatprep.subr.mxu0 0.0
      %2531 = vmatpush1.msra.mxu0 0.0
      %2532 = vmatprep.subr.mxu0 0.0
      %2533 = vmatpush1.msra.mxu0 0.0
      %2534 = vmatprep.subr.mxu0 0.0
      %2535 = vmatpush1.msra.mxu0 0.0
      %2536 = vmatprep.subr.mxu0 0.0
      %2537 = vmatpush1.msra.mxu0 0.0
      %2538 = vmatprep.subr.mxu0 0.0
      %2539 = vmatpush1.msra.mxu0 0.0
      %2540 = vmatprep.subr.mxu0 0.0
      %2541 = vmatpush1.msra.mxu0 0.0
      %2542 = vmatprep.subr.mxu0 0.0
      %2543 = vmatpush1.msra.mxu0 0.0
      %2544 = vmatprep.subr.mxu0 0.0
      %2545 = vmatpush1.msra.mxu0 0.0
      %2546 = vmatprep.subr.mxu0 0.0
      %2547 = vmatpush1.msra.mxu0 0.0
      %2548 = vmatprep.subr.mxu0 0.0
      %2549 = vmatpush1.msra.mxu0 0.0
      %2550 = vmatprep.subr.mxu0 0.0
      %2551 = vmatpush1.msra.mxu0 0.0
      %2552 = vmatprep.subr.mxu0 0.0
      %2553 = vmatpush1.msra.mxu0 0.0
      %2554 = vmatprep.subr.mxu0 0.0
      %2555 = vmatpush1.msra.mxu0 0.0
      %2556 = vmatprep.subr.mxu0 0.0
      %2557 = vmatpush1.msra.mxu0 0.0
      %2558 = vmatprep.subr.mxu0 0.0
      %2559 = vmatpush1.msra.mxu0 0.0
      %2560 = vmatprep.subr.mxu0 0.0
      %2561 = vmatpush1.msra.mxu0 0.0
      %2562 = vmatprep.subr.mxu0 0.0
      %2563 = vmatpush1.msra.mxu0 0.0
      %2564 = vmatprep.subr.mxu0 0.0
      %2565 = vmatpush1.msra.mxu0 0.0
      %2566 = vmatprep.subr.mxu0 0.0
      %2567 = vmatpush1.msra.mxu0 0.0
      %2568 = vmatprep.subr.mxu0 0.0
      %2569 = vmatpush1.msra.mxu0 0.0
      %2570 = vmatprep.mubr.f32.mxu0 0.0
      %2571 = vmatmul.mubr.f32.gmra.mrb[0].mxu0 %v2504
      %v2572 = vpop.f32.mrb[0].mxu0
      %v2573 = vadd.f32 %v2488, %v2572
      %v2574 = vpop.f32.mrb[0].mxu0
      %v2575 = vadd.f32 %v2490, %v2574
      %2576 = vdwg.mxu0
      %s2577 = scalar_lea.vmem %s2, 176
      %v2578 = vld [vmem:[%s2577] sm:$0xff]
      %v2580 = vsel %vm440, %v2578, 0
      %2582 = vmatprep.subr.mxu0 %v2400
      %2583 = vmatpush1.msra.mxu0 %v2399
      %2584 = vmatprep.subr.mxu0 0.0
      %2585 = vmatpush1.msra.mxu0 0.0
      %2586 = vmatprep.subr.mxu0 0.0
      %2587 = vmatpush1.msra.mxu0 0.0
      %2588 = vmatprep.subr.mxu0 0.0
      %2589 = vmatpush1.msra.mxu0 0.0
      %2590 = vmatprep.subr.mxu0 0.0
      %2591 = vmatpush1.msra.mxu0 0.0
      %2592 = vmatprep.subr.mxu0 0.0
      %2593 = vmatpush1.msra.mxu0 0.0
      %2594 = vmatprep.subr.mxu0 0.0
      %2595 = vmatpush1.msra.mxu0 0.0
      %2596 = vmatprep.subr.mxu0 0.0
      %2597 = vmatpush1.msra.mxu0 0.0
      %2598 = vmatprep.subr.mxu0 0.0
      %2599 = vmatpush1.msra.mxu0 0.0
      %2600 = vmatprep.subr.mxu0 0.0
      %2601 = vmatpush1.msra.mxu0 0.0
      %2602 = vmatprep.subr.mxu0 0.0
      %2603 = vmatpush1.msra.mxu0 0.0
      %2604 = vmatprep.subr.mxu0 0.0
      %2605 = vmatpush1.msra.mxu0 0.0
      %2606 = vmatprep.subr.mxu0 0.0
      %2607 = vmatpush1.msra.mxu0 0.0
      %2608 = vmatprep.subr.mxu0 0.0
      %2609 = vmatpush1.msra.mxu0 0.0
      %2610 = vmatprep.subr.mxu0 0.0
      %2611 = vmatpush1.msra.mxu0 0.0
      %2612 = vmatprep.subr.mxu0 0.0
      %2613 = vmatpush1.msra.mxu0 0.0
      %2614 = vmatprep.subr.mxu0 0.0
      %2615 = vmatpush1.msra.mxu0 0.0
      %2616 = vmatprep.subr.mxu0 0.0
      %2617 = vmatpush1.msra.mxu0 0.0
      %2618 = vmatprep.subr.mxu0 0.0
      %2619 = vmatpush1.msra.mxu0 0.0
      %2620 = vmatprep.subr.mxu0 0.0
      %2621 = vmatpush1.msra.mxu0 0.0
      %2622 = vmatprep.subr.mxu0 0.0
      %2623 = vmatpush1.msra.mxu0 0.0
      %2624 = vmatprep.subr.mxu0 0.0
      %2625 = vmatpush1.msra.mxu0 0.0
      %2626 = vmatprep.subr.mxu0 0.0
      %2627 = vmatpush1.msra.mxu0 0.0
      %2628 = vmatprep.subr.mxu0 0.0
      %2629 = vmatpush1.msra.mxu0 0.0
      %2630 = vmatprep.subr.mxu0 0.0
      %2631 = vmatpush1.msra.mxu0 0.0
      %2632 = vmatprep.subr.mxu0 0.0
      %2633 = vmatpush1.msra.mxu0 0.0
      %2634 = vmatprep.subr.mxu0 0.0
      %2635 = vmatpush1.msra.mxu0 0.0
      %2636 = vmatprep.subr.mxu0 0.0
      %2637 = vmatpush1.msra.mxu0 0.0
      %2638 = vmatprep.subr.mxu0 0.0
      %2639 = vmatpush1.msra.mxu0 0.0
      %2640 = vmatprep.subr.mxu0 0.0
      %2641 = vmatpush1.msra.mxu0 0.0
      %2642 = vmatprep.subr.mxu0 0.0
      %2643 = vmatpush1.msra.mxu0 0.0
      %2644 = vmatprep.subr.mxu0 0.0
      %2645 = vmatpush1.msra.mxu0 0.0
      %2646 = vmatprep.mubr.f32.mxu0 0.0
      %2647 = vmatmul.mubr.f32.gmra.mrb[0].mxu0 %v2580
      %v2648 = vpop.f32.mrb[0].mxu0
      %v2649 = vadd.f32 0.0, %v2648
      %v2650 = vpop.f32.mrb[0].mxu0
      %v2651 = vadd.f32 0.0, %v2650
      %2652 = vdwg.mxu0
      %v2653 = vadd.f32 %v2573, %v2649
      %v2654 = vadd.f32 %v2575, %v2651
      %v2655 = vld [vmem:[#allocation2 + $0x8] sm:$0xff]
      %v2656 = vld [vmem:[#allocation2 + $0x10] sm:$0xff]
      %v2657 = vld [vmem:[#allocation2 + $0x18] sm:$0xff]
      %s2658 = scalar_lea.vmem %s2, 184
      %v2659 = vld [vmem:[%s2658] sm:$0xff]
      %2663 = vrot.lane.b32.xlu0 %v2655, 112
      %v2664 = vpop.permute.xlu0 %2663
      %2665 = vrot.lane.b32.xlu0 %v2656, 112
      %v2666 = vpop.permute.xlu0 %2665
      %2667 = vrot.lane.b32.xlu0 %v2657, 112
      %v2668 = vpop.permute.xlu0 %2667
      %v2669 = vsel %vm907, %v2664, %v2666
      %v2670 = vsel %vm907, %v2666, %v2668
      %v2674 = vsel %vm440, %v2659, 0
      %2676 = vmatprep.subr.mxu0 %v2670
      %2677 = vmatpush1.msra.mxu0 %v2669
      %2678 = vmatprep.subr.mxu0 0.0
      %2679 = vmatpush1.msra.mxu0 0.0
      %2680 = vmatprep.subr.mxu0 0.0
      %2681 = vmatpush1.msra.mxu0 0.0
      %2682 = vmatprep.subr.mxu0 0.0
      %2683 = vmatpush1.msra.mxu0 0.0
      %2684 = vmatprep.subr.mxu0 0.0
      %2685 = vmatpush1.msra.mxu0 0.0
      %2686 = vmatprep.subr.mxu0 0.0
      %2687 = vmatpush1.msra.mxu0 0.0
      %2688 = vmatprep.subr.mxu0 0.0
      %2689 = vmatpush1.msra.mxu0 0.0
      %2690 = vmatprep.subr.mxu0 0.0
      %2691 = vmatpush1.msra.mxu0 0.0
      %2692 = vmatprep.subr.mxu0 0.0
      %2693 = vmatpush1.msra.mxu0 0.0
      %2694 = vmatprep.subr.mxu0 0.0
      %2695 = vmatpush1.msra.mxu0 0.0
      %2696 = vmatprep.subr.mxu0 0.0
      %2697 = vmatpush1.msra.mxu0 0.0
      %2698 = vmatprep.subr.mxu0 0.0
      %2699 = vmatpush1.msra.mxu0 0.0
      %2700 = vmatprep.subr.mxu0 0.0
      %2701 = vmatpush1.msra.mxu0 0.0
      %2702 = vmatprep.subr.mxu0 0.0
      %2703 = vmatpush1.msra.mxu0 0.0
      %2704 = vmatprep.subr.mxu0 0.0
      %2705 = vmatpush1.msra.mxu0 0.0
      %2706 = vmatprep.subr.mxu0 0.0
      %2707 = vmatpush1.msra.mxu0 0.0
      %2708 = vmatprep.subr.mxu0 0.0
      %2709 = vmatpush1.msra.mxu0 0.0
      %2710 = vmatprep.subr.mxu0 0.0
      %2711 = vmatpush1.msra.mxu0 0.0
      %2712 = vmatprep.subr.mxu0 0.0
      %2713 = vmatpush1.msra.mxu0 0.0
      %2714 = vmatprep.subr.mxu0 0.0
      %2715 = vmatpush1.msra.mxu0 0.0
      %2716 = vmatprep.subr.mxu0 0.0
      %2717 = vmatpush1.msra.mxu0 0.0
      %2718 = vmatprep.subr.mxu0 0.0
      %2719 = vmatpush1.msra.mxu0 0.0
      %2720 = vmatprep.subr.mxu0 0.0
      %2721 = vmatpush1.msra.mxu0 0.0
      %2722 = vmatprep.subr.mxu0 0.0
      %2723 = vmatpush1.msra.mxu0 0.0
      %2724 = vmatprep.subr.mxu0 0.0
      %2725 = vmatpush1.msra.mxu0 0.0
      %2726 = vmatprep.subr.mxu0 0.0
      %2727 = vmatpush1.msra.mxu0 0.0
      %2728 = vmatprep.subr.mxu0 0.0
      %2729 = vmatpush1.msra.mxu0 0.0
      %2730 = vmatprep.subr.mxu0 0.0
      %2731 = vmatpush1.msra.mxu0 0.0
      %2732 = vmatprep.subr.mxu0 0.0
      %2733 = vmatpush1.msra.mxu0 0.0
      %2734 = vmatprep.subr.mxu0 0.0
      %2735 = vmatpush1.msra.mxu0 0.0
      %2736 = vmatprep.subr.mxu0 0.0
      %2737 = vmatpush1.msra.mxu0 0.0
      %2738 = vmatprep.subr.mxu0 0.0
      %2739 = vmatpush1.msra.mxu0 0.0
      %2740 = vmatprep.mubr.f32.mxu0 0.0
      %2741 = vmatmul.mubr.f32.gmra.mrb[0].mxu0 %v2674
      %v2742 = vpop.f32.mrb[0].mxu0
      %v2743 = vadd.f32 0.0, %v2742
      %v2744 = vpop.f32.mrb[0].mxu0
      %v2745 = vadd.f32 0.0, %v2744
      %2746 = vdwg.mxu0
      %v2747 = vadd.f32 %v2653, %v2743
      %v2748 = vadd.f32 %v2654, %v2745
      %s2749 = scalar_lea.vmem %s2, 192
      %v2750 = vld [vmem:[%s2749] sm:$0xff]
      %2751 = vrot.lane.b32.xlu0 %v2655, 96
      %v2752 = vpop.permute.xlu0 %2751
      %2753 = vrot.lane.b32.xlu0 %v2656, 96
      %v2754 = vpop.permute.xlu0 %2753
      %2755 = vrot.lane.b32.xlu0 %v2657, 96
      %v2756 = vpop.permute.xlu0 %2755
      %vm2757 = vcmask 785408
      %v2758 = vsel %vm2757, %v2752, %v2754
      %v2759 = vsel %vm2757, %v2754, %v2756
      %v2763 = vsel %vm440, %v2750, 0
      %2765 = vmatprep.subr.mxu0 %v2759
      %2766 = vmatpush1.msra.mxu0 %v2758
      %2767 = vmatprep.subr.mxu0 0.0
      %2768 = vmatpush1.msra.mxu0 0.0
      %2769 = vmatprep.subr.mxu0 0.0
      %2770 = vmatpush1.msra.mxu0 0.0
      %2771 = vmatprep.subr.mxu0 0.0
      %2772 = vmatpush1.msra.mxu0 0.0
      %2773 = vmatprep.subr.mxu0 0.0
      %2774 = vmatpush1.msra.mxu0 0.0
      %2775 = vmatprep.subr.mxu0 0.0
      %2776 = vmatpush1.msra.mxu0 0.0
      %2777 = vmatprep.subr.mxu0 0.0
      %2778 = vmatpush1.msra.mxu0 0.0
      %2779 = vmatprep.subr.mxu0 0.0
      %2780 = vmatpush1.msra.mxu0 0.0
      %2781 = vmatprep.subr.mxu0 0.0
      %2782 = vmatpush1.msra.mxu0 0.0
      %2783 = vmatprep.subr.mxu0 0.0
      %2784 = vmatpush1.msra.mxu0 0.0
      %2785 = vmatprep.subr.mxu0 0.0
      %2786 = vmatpush1.msra.mxu0 0.0
      %2787 = vmatprep.subr.mxu0 0.0
      %2788 = vmatpush1.msra.mxu0 0.0
      %2789 = vmatprep.subr.mxu0 0.0
      %2790 = vmatpush1.msra.mxu0 0.0
      %2791 = vmatprep.subr.mxu0 0.0
      %2792 = vmatpush1.msra.mxu0 0.0
      %2793 = vmatprep.subr.mxu0 0.0
      %2794 = vmatpush1.msra.mxu0 0.0
      %2795 = vmatprep.subr.mxu0 0.0
      %2796 = vmatpush1.msra.mxu0 0.0
      %2797 = vmatprep.subr.mxu0 0.0
      %2798 = vmatpush1.msra.mxu0 0.0
      %2799 = vmatprep.subr.mxu0 0.0
      %2800 = vmatpush1.msra.mxu0 0.0
      %2801 = vmatprep.subr.mxu0 0.0
      %2802 = vmatpush1.msra.mxu0 0.0
      %2803 = vmatprep.subr.mxu0 0.0
      %2804 = vmatpush1.msra.mxu0 0.0
      %2805 = vmatprep.subr.mxu0 0.0
      %2806 = vmatpush1.msra.mxu0 0.0
      %2807 = vmatprep.subr.mxu0 0.0
      %2808 = vmatpush1.msra.mxu0 0.0
      %2809 = vmatprep.subr.mxu0 0.0
      %2810 = vmatpush1.msra.mxu0 0.0
      %2811 = vmatprep.subr.mxu0 0.0
      %2812 = vmatpush1.msra.mxu0 0.0
      %2813 = vmatprep.subr.mxu0 0.0
      %2814 = vmatpush1.msra.mxu0 0.0
      %2815 = vmatprep.subr.mxu0 0.0
      %2816 = vmatpush1.msra.mxu0 0.0
      %2817 = vmatprep.subr.mxu0 0.0
      %2818 = vmatpush1.msra.mxu0 0.0
      %2819 = vmatprep.subr.mxu0 0.0
      %2820 = vmatpush1.msra.mxu0 0.0
      %2821 = vmatprep.subr.mxu0 0.0
      %2822 = vmatpush1.msra.mxu0 0.0
      %2823 = vmatprep.subr.mxu0 0.0
      %2824 = vmatpush1.msra.mxu0 0.0
      %2825 = vmatprep.subr.mxu0 0.0
      %2826 = vmatpush1.msra.mxu0 0.0
      %2827 = vmatprep.subr.mxu0 0.0
      %2828 = vmatpush1.msra.mxu0 0.0
      %2829 = vmatprep.mubr.f32.mxu0 0.0
      %2830 = vmatmul.mubr.f32.gmra.mrb[0].mxu0 %v2763
      %v2831 = vpop.f32.mrb[0].mxu0
      %v2832 = vadd.f32 0.0, %v2831
      %v2833 = vpop.f32.mrb[0].mxu0
      %v2834 = vadd.f32 0.0, %v2833
      %2835 = vdwg.mxu0
      %v2836 = vadd.f32 %v2747, %v2832
      %v2837 = vadd.f32 %v2748, %v2834
      %v2838 = vld [vmem:[%s4 + $0x48] sm:$0xff]
      %2840 = vset.pattern.permute.xlu0 0
      %2841 = vperm.xlu0 %2840, %v2838
      %v2842 = vpop.permute.xlu0 %2841
      %v2844 = vadd.f32 %v2836, %v2842
      %v2845 = vadd.f32 %v2837, %v2842
      %2846 = vst [vmem:[#allocation2 + $0x8] sm:$0xff] %v2844
      %2847 = vst [vmem:[#allocation2 + $0x10] sm:$0xff] %v2845
      %v2848 = vld [vmem:[#allocation2] sm:$0xff]
      %v2849 = vld [vmem:[#allocation2 + $0x8] sm:$0xff]
      %v2850 = vld [vmem:[#allocation2 + $0x10] sm:$0xff]
      %vm2851 = vcmp.ge.s32.totalorder %v258, 5
      %vm2852 = vcmp.ge.s32.totalorder %v259, 5
      %v2853 = vsel %vm2851, 1.0, 0.0
      %v2854 = vsel %vm2852, 1.0, 0.0
      %2857 = vrot.lane.b32.xlu0 %v2853, 43
      %v2858 = vpop.permute.xlu0 %2857
      %2859 = vrot.lane.b32.xlu0 %v2854, 43
      %v2860 = vpop.permute.xlu0 %2859
      %vm2861 = vcmask 351232
      %v2862 = vsel %vm2861, %v2858, %v2860
      %v2866 = vmul.f32 %v2848, %v2858
      %v2867 = vmul.f32 %v2849, %v2862
      %v2868 = vmul.f32 %v2850, %v2860
      %s2869 = scalar_lea.vmem %s2, 200
      %v2870 = vld [vmem:[%s2869] sm:$0xff]
      %s2871 = scalar_lea.vmem %s2, 208
      %v2872 = vld [vmem:[%s2871] sm:$0xff]
      %2876 = vrot.lane.b32.xlu0 %v2848, 80
      %v2877 = vpop.permute.xlu0 %2876
      %2878 = vrot.lane.b32.xlu0 %v2849, 80
      %v2879 = vpop.permute.xlu0 %2878
      %2880 = vrot.lane.b32.xlu0 %v2850, 80
      %v2881 = vpop.permute.xlu0 %2880
      %v2882 = vsel %vm1709, %v2877, %v2879
      %v2883 = vsel %vm1709, %v2879, %v2881
      %v2887 = vsel %vm440, %v2872, 0
      %2889 = vmatprep.subr.mxu0 %v2883
      %2890 = vmatpush1.msra.mxu0 %v2882
      %2891 = vmatprep.subr.mxu0 0.0
      %2892 = vmatpush1.msra.mxu0 0.0
      %2893 = vmatprep.subr.mxu0 0.0
      %2894 = vmatpush1.msra.mxu0 0.0
      %2895 = vmatprep.subr.mxu0 0.0
      %2896 = vmatpush1.msra.mxu0 0.0
      %2897 = vmatprep.subr.mxu0 0.0
      %2898 = vmatpush1.msra.mxu0 0.0
      %2899 = vmatprep.subr.mxu0 0.0
      %2900 = vmatpush1.msra.mxu0 0.0
      %2901 = vmatprep.subr.mxu0 0.0
      %2902 = vmatpush1.msra.mxu0 0.0
      %2903 = vmatprep.subr.mxu0 0.0
      %2904 = vmatpush1.msra.mxu0 0.0
      %2905 = vmatprep.subr.mxu0 0.0
      %2906 = vmatpush1.msra.mxu0 0.0
      %2907 = vmatprep.subr.mxu0 0.0
      %2908 = vmatpush1.msra.mxu0 0.0
      %2909 = vmatprep.subr.mxu0 0.0
      %2910 = vmatpush1.msra.mxu0 0.0
      %2911 = vmatprep.subr.mxu0 0.0
      %2912 = vmatpush1.msra.mxu0 0.0
      %2913 = vmatprep.subr.mxu0 0.0
      %2914 = vmatpush1.msra.mxu0 0.0
      %2915 = vmatprep.subr.mxu0 0.0
      %2916 = vmatpush1.msra.mxu0 0.0
      %2917 = vmatprep.subr.mxu0 0.0
      %2918 = vmatpush1.msra.mxu0 0.0
      %2919 = vmatprep.subr.mxu0 0.0
      %2920 = vmatpush1.msra.mxu0 0.0
      %2921 = vmatprep.subr.mxu0 0.0
      %2922 = vmatpush1.msra.mxu0 0.0
      %2923 = vmatprep.subr.mxu0 0.0
      %2924 = vmatpush1.msra.mxu0 0.0
      %2925 = vmatprep.subr.mxu0 0.0
      %2926 = vmatpush1.msra.mxu0 0.0
      %2927 = vmatprep.subr.mxu0 0.0
      %2928 = vmatpush1.msra.mxu0 0.0
      %2929 = vmatprep.subr.mxu0 0.0
      %2930 = vmatpush1.msra.mxu0 0.0
      %2931 = vmatprep.subr.mxu0 0.0
      %2932 = vmatpush1.msra.mxu0 0.0
      %2933 = vmatprep.subr.mxu0 0.0
      %2934 = vmatpush1.msra.mxu0 0.0
      %2935 = vmatprep.subr.mxu0 0.0
      %2936 = vmatpush1.msra.mxu0 0.0
      %2937 = vmatprep.subr.mxu0 0.0
      %2938 = vmatpush1.msra.mxu0 0.0
      %2939 = vmatprep.subr.mxu0 0.0
      %2940 = vmatpush1.msra.mxu0 0.0
      %2941 = vmatprep.subr.mxu0 0.0
      %2942 = vmatpush1.msra.mxu0 0.0
      %2943 = vmatprep.subr.mxu0 0.0
      %2944 = vmatpush1.msra.mxu0 0.0
      %2945 = vmatprep.subr.mxu0 0.0
      %2946 = vmatpush1.msra.mxu0 0.0
      %2947 = vmatprep.subr.mxu0 0.0
      %2948 = vmatpush1.msra.mxu0 0.0
      %2949 = vmatprep.subr.mxu0 0.0
      %2950 = vmatpush1.msra.mxu0 0.0
      %2951 = vmatprep.subr.mxu0 0.0
      %2952 = vmatpush1.msra.mxu0 0.0
      %2953 = vmatprep.mubr.f32.mxu0 0.0
      %2954 = vmatmul.mubr.f32.gmra.mrb[0].mxu0 %v2887
      %v2955 = vpop.f32.mrb[0].mxu0
      %v2956 = vadd.f32 0.0, %v2955
      %v2957 = vpop.f32.mrb[0].mxu0
      %v2958 = vadd.f32 0.0, %v2957
      %2959 = vdwg.mxu0
      %2963 = vrot.lane.b32.xlu0 %v2866, 85
      %v2964 = vpop.permute.xlu0 %2963
      %2965 = vrot.lane.b32.xlu0 %v2867, 85
      %v2966 = vpop.permute.xlu0 %2965
      %2967 = vrot.lane.b32.xlu0 %v2868, 85
      %v2968 = vpop.permute.xlu0 %2967
      %vm2969 = vcmask 695296
      %v2970 = vsel %vm2969, %v2964, %v2966
      %v2971 = vsel %vm2969, %v2966, %v2968
      %v2975 = vsel %vm440, %v2870, 0
      %2977 = vmatprep.subr.mxu0 %v2971
      %2978 = vmatpush1.msra.mxu0 %v2970
      %2979 = vmatprep.subr.mxu0 0.0
      %2980 = vmatpush1.msra.mxu0 0.0
      %2981 = vmatprep.subr.mxu0 0.0
      %2982 = vmatpush1.msra.mxu0 0.0
      %2983 = vmatprep.subr.mxu0 0.0
      %2984 = vmatpush1.msra.mxu0 0.0
      %2985 = vmatprep.subr.mxu0 0.0
      %2986 = vmatpush1.msra.mxu0 0.0
      %2987 = vmatprep.subr.mxu0 0.0
      %2988 = vmatpush1.msra.mxu0 0.0
      %2989 = vmatprep.subr.mxu0 0.0
      %2990 = vmatpush1.msra.mxu0 0.0
      %2991 = vmatprep.subr.mxu0 0.0
      %2992 = vmatpush1.msra.mxu0 0.0
      %2993 = vmatprep.subr.mxu0 0.0
      %2994 = vmatpush1.msra.mxu0 0.0
      %2995 = vmatprep.subr.mxu0 0.0
      %2996 = vmatpush1.msra.mxu0 0.0
      %2997 = vmatprep.subr.mxu0 0.0
      %2998 = vmatpush1.msra.mxu0 0.0
      %2999 = vmatprep.subr.mxu0 0.0
      %3000 = vmatpush1.msra.mxu0 0.0
      %3001 = vmatprep.subr.mxu0 0.0
      %3002 = vmatpush1.msra.mxu0 0.0
      %3003 = vmatprep.subr.mxu0 0.0
      %3004 = vmatpush1.msra.mxu0 0.0
      %3005 = vmatprep.subr.mxu0 0.0
      %3006 = vmatpush1.msra.mxu0 0.0
      %3007 = vmatprep.subr.mxu0 0.0
      %3008 = vmatpush1.msra.mxu0 0.0
      %3009 = vmatprep.subr.mxu0 0.0
      %3010 = vmatpush1.msra.mxu0 0.0
      %3011 = vmatprep.subr.mxu0 0.0
      %3012 = vmatpush1.msra.mxu0 0.0
      %3013 = vmatprep.subr.mxu0 0.0
      %3014 = vmatpush1.msra.mxu0 0.0
      %3015 = vmatprep.subr.mxu0 0.0
      %3016 = vmatpush1.msra.mxu0 0.0
      %3017 = vmatprep.subr.mxu0 0.0
      %3018 = vmatpush1.msra.mxu0 0.0
      %3019 = vmatprep.subr.mxu0 0.0
      %3020 = vmatpush1.msra.mxu0 0.0
      %3021 = vmatprep.subr.mxu0 0.0
      %3022 = vmatpush1.msra.mxu0 0.0
      %3023 = vmatprep.subr.mxu0 0.0
      %3024 = vmatpush1.msra.mxu0 0.0
      %3025 = vmatprep.subr.mxu0 0.0
      %3026 = vmatpush1.msra.mxu0 0.0
      %3027 = vmatprep.subr.mxu0 0.0
      %3028 = vmatpush1.msra.mxu0 0.0
      %3029 = vmatprep.subr.mxu0 0.0
      %3030 = vmatpush1.msra.mxu0 0.0
      %3031 = vmatprep.subr.mxu0 0.0
      %3032 = vmatpush1.msra.mxu0 0.0
      %3033 = vmatprep.subr.mxu0 0.0
      %3034 = vmatpush1.msra.mxu0 0.0
      %3035 = vmatprep.subr.mxu0 0.0
      %3036 = vmatpush1.msra.mxu0 0.0
      %3037 = vmatprep.subr.mxu0 0.0
      %3038 = vmatpush1.msra.mxu0 0.0
      %3039 = vmatprep.subr.mxu0 0.0
      %3040 = vmatpush1.msra.mxu0 0.0
      %3041 = vmatprep.mubr.f32.mxu0 0.0
      %3042 = vmatmul.mubr.f32.gmra.mrb[0].mxu0 %v2975
      %v3043 = vpop.f32.mrb[0].mxu0
      %v3044 = vadd.f32 %v2956, %v3043
      %v3045 = vpop.f32.mrb[0].mxu0
      %v3046 = vadd.f32 %v2958, %v3045
      %3047 = vdwg.mxu0
      %vm3048 = vcmp.lt.s32.totalorder %v258, 11
      %vm3049 = vcmp.lt.s32.totalorder %v259, 11
      %v3050 = vsel %vm3048, 1.0, 0.0
      %v3051 = vsel %vm3049, 1.0, 0.0
      %3054 = vrot.lane.b32.xlu0 %v3050, 53
      %v3055 = vpop.permute.xlu0 %3054
      %3056 = vrot.lane.b32.xlu0 %v3051, 53
      %v3057 = vpop.permute.xlu0 %3056
      %vm3058 = vcmask 433152
      %v3059 = vsel %vm3058, %v3055, %v3057
      %v3063 = vmul.f32 %v2848, %v3055
      %v3064 = vmul.f32 %v2849, %v3059
      %v3065 = vmul.f32 %v2850, %v3057
      %s3066 = scalar_lea.vmem %s2, 216
      %v3067 = vld [vmem:[%s3066] sm:$0xff]
      %3071 = vrot.lane.b32.xlu0 %v3063, 75
      %v3072 = vpop.permute.xlu0 %3071
      %3073 = vrot.lane.b32.xlu0 %v3064, 75
      %v3074 = vpop.permute.xlu0 %3073
      %3075 = vrot.lane.b32.xlu0 %v3065, 75
      %v3076 = vpop.permute.xlu0 %3075
      %vm3077 = vcmask 613376
      %v3078 = vsel %vm3077, %v3072, %v3074
      %v3079 = vsel %vm3077, %v3074, %v3076
      %v3083 = vsel %vm440, %v3067, 0
      %3085 = vmatprep.subr.mxu0 %v3079
      %3086 = vmatpush1.msra.mxu0 %v3078
      %3087 = vmatprep.subr.mxu0 0.0
      %3088 = vmatpush1.msra.mxu0 0.0
      %3089 = vmatprep.subr.mxu0 0.0
      %3090 = vmatpush1.msra.mxu0 0.0
      %3091 = vmatprep.subr.mxu0 0.0
      %3092 = vmatpush1.msra.mxu0 0.0
      %3093 = vmatprep.subr.mxu0 0.0
      %3094 = vmatpush1.msra.mxu0 0.0
      %3095 = vmatprep.subr.mxu0 0.0
      %3096 = vmatpush1.msra.mxu0 0.0
      %3097 = vmatprep.subr.mxu0 0.0
      %3098 = vmatpush1.msra.mxu0 0.0
      %3099 = vmatprep.subr.mxu0 0.0
      %3100 = vmatpush1.msra.mxu0 0.0
      %3101 = vmatprep.subr.mxu0 0.0
      %3102 = vmatpush1.msra.mxu0 0.0
      %3103 = vmatprep.subr.mxu0 0.0
      %3104 = vmatpush1.msra.mxu0 0.0
      %3105 = vmatprep.subr.mxu0 0.0
      %3106 = vmatpush1.msra.mxu0 0.0
      %3107 = vmatprep.subr.mxu0 0.0
      %3108 = vmatpush1.msra.mxu0 0.0
      %3109 = vmatprep.subr.mxu0 0.0
      %3110 = vmatpush1.msra.mxu0 0.0
      %3111 = vmatprep.subr.mxu0 0.0
      %3112 = vmatpush1.msra.mxu0 0.0
      %3113 = vmatprep.subr.mxu0 0.0
      %3114 = vmatpush1.msra.mxu0 0.0
      %3115 = vmatprep.subr.mxu0 0.0
      %3116 = vmatpush1.msra.mxu0 0.0
      %3117 = vmatprep.subr.mxu0 0.0
      %3118 = vmatpush1.msra.mxu0 0.0
      %3119 = vmatprep.subr.mxu0 0.0
      %3120 = vmatpush1.msra.mxu0 0.0
      %3121 = vmatprep.subr.mxu0 0.0
      %3122 = vmatpush1.msra.mxu0 0.0
      %3123 = vmatprep.subr.mxu0 0.0
      %3124 = vmatpush1.msra.mxu0 0.0
      %3125 = vmatprep.subr.mxu0 0.0
      %3126 = vmatpush1.msra.mxu0 0.0
      %3127 = vmatprep.subr.mxu0 0.0
      %3128 = vmatpush1.msra.mxu0 0.0
      %3129 = vmatprep.subr.mxu0 0.0
      %3130 = vmatpush1.msra.mxu0 0.0
      %3131 = vmatprep.subr.mxu0 0.0
      %3132 = vmatpush1.msra.mxu0 0.0
      %3133 = vmatprep.subr.mxu0 0.0
      %3134 = vmatpush1.msra.mxu0 0.0
      %3135 = vmatprep.subr.mxu0 0.0
      %3136 = vmatpush1.msra.mxu0 0.0
      %3137 = vmatprep.subr.mxu0 0.0
      %3138 = vmatpush1.msra.mxu0 0.0
      %3139 = vmatprep.subr.mxu0 0.0
      %3140 = vmatpush1.msra.mxu0 0.0
      %3141 = vmatprep.subr.mxu0 0.0
      %3142 = vmatpush1.msra.mxu0 0.0
      %3143 = vmatprep.subr.mxu0 0.0
      %3144 = vmatpush1.msra.mxu0 0.0
      %3145 = vmatprep.subr.mxu0 0.0
      %3146 = vmatpush1.msra.mxu0 0.0
      %3147 = vmatprep.subr.mxu0 0.0
      %3148 = vmatpush1.msra.mxu0 0.0
      %3149 = vmatprep.mubr.f32.mxu0 0.0
      %3150 = vmatmul.mubr.f32.gmra.mrb[0].mxu0 %v3083
      %v3151 = vpop.f32.mrb[0].mxu0
      %v3152 = vadd.f32 0.0, %v3151
      %v3153 = vpop.f32.mrb[0].mxu0
      %v3154 = vadd.f32 0.0, %v3153
      %3155 = vdwg.mxu0
      %v3156 = vadd.f32 %v3044, %v3152
      %v3157 = vadd.f32 %v3046, %v3154
      %3158 = vrot.lane.b32.xlu0 %v2853, 123
      %v3159 = vpop.permute.xlu0 %3158
      %3160 = vrot.lane.b32.xlu0 %v2854, 123
      %v3161 = vpop.permute.xlu0 %3160
      %vm3162 = vcmask 1006592
      %v3163 = vsel %vm3162, %v3159, %v3161
      %v3167 = vmul.f32 %v2848, %v3159
      %v3168 = vmul.f32 %v2849, %v3163
      %v3169 = vmul.f32 %v2850, %v3161
      %s3170 = scalar_lea.vmem %s2, 224
      %v3171 = vld [vmem:[%s3170] sm:$0xff]
      %3175 = vrot.lane.b32.xlu0 %v3167, 5
      %v3176 = vpop.permute.xlu0 %3175
      %3177 = vrot.lane.b32.xlu0 %v3168, 5
      %v3178 = vpop.permute.xlu0 %3177
      %3179 = vrot.lane.b32.xlu0 %v3169, 5
      %v3180 = vpop.permute.xlu0 %3179
      %vm3181 = vcmask 39936
      %v3182 = vsel %vm3181, %v3176, %v3178
      %v3183 = vsel %vm3181, %v3178, %v3180
      %v3187 = vsel %vm440, %v3171, 0
      %3189 = vmatprep.subr.mxu0 %v3183
      %3190 = vmatpush1.msra.mxu0 %v3182
      %3191 = vmatprep.subr.mxu0 0.0
      %3192 = vmatpush1.msra.mxu0 0.0
      %3193 = vmatprep.subr.mxu0 0.0
      %3194 = vmatpush1.msra.mxu0 0.0
      %3195 = vmatprep.subr.mxu0 0.0
      %3196 = vmatpush1.msra.mxu0 0.0
      %3197 = vmatprep.subr.mxu0 0.0
      %3198 = vmatpush1.msra.mxu0 0.0
      %3199 = vmatprep.subr.mxu0 0.0
      %3200 = vmatpush1.msra.mxu0 0.0
      %3201 = vmatprep.subr.mxu0 0.0
      %3202 = vmatpush1.msra.mxu0 0.0
      %3203 = vmatprep.subr.mxu0 0.0
      %3204 = vmatpush1.msra.mxu0 0.0
      %3205 = vmatprep.subr.mxu0 0.0
      %3206 = vmatpush1.msra.mxu0 0.0
      %3207 = vmatprep.subr.mxu0 0.0
      %3208 = vmatpush1.msra.mxu0 0.0
      %3209 = vmatprep.subr.mxu0 0.0
      %3210 = vmatpush1.msra.mxu0 0.0
      %3211 = vmatprep.subr.mxu0 0.0
      %3212 = vmatpush1.msra.mxu0 0.0
      %3213 = vmatprep.subr.mxu0 0.0
      %3214 = vmatpush1.msra.mxu0 0.0
      %3215 = vmatprep.subr.mxu0 0.0
      %3216 = vmatpush1.msra.mxu0 0.0
      %3217 = vmatprep.subr.mxu0 0.0
      %3218 = vmatpush1.msra.mxu0 0.0
      %3219 = vmatprep.subr.mxu0 0.0
      %3220 = vmatpush1.msra.mxu0 0.0
      %3221 = vmatprep.subr.mxu0 0.0
      %3222 = vmatpush1.msra.mxu0 0.0
      %3223 = vmatprep.subr.mxu0 0.0
      %3224 = vmatpush1.msra.mxu0 0.0
      %3225 = vmatprep.subr.mxu0 0.0
      %3226 = vmatpush1.msra.mxu0 0.0
      %3227 = vmatprep.subr.mxu0 0.0
      %3228 = vmatpush1.msra.mxu0 0.0
      %3229 = vmatprep.subr.mxu0 0.0
      %3230 = vmatpush1.msra.mxu0 0.0
      %3231 = vmatprep.subr.mxu0 0.0
      %3232 = vmatpush1.msra.mxu0 0.0
      %3233 = vmatprep.subr.mxu0 0.0
      %3234 = vmatpush1.msra.mxu0 0.0
      %3235 = vmatprep.subr.mxu0 0.0
      %3236 = vmatpush1.msra.mxu0 0.0
      %3237 = vmatprep.subr.mxu0 0.0
      %3238 = vmatpush1.msra.mxu0 0.0
      %3239 = vmatprep.subr.mxu0 0.0
      %3240 = vmatpush1.msra.mxu0 0.0
      %3241 = vmatprep.subr.mxu0 0.0
      %3242 = vmatpush1.msra.mxu0 0.0
      %3243 = vmatprep.subr.mxu0 0.0
      %3244 = vmatpush1.msra.mxu0 0.0
      %3245 = vmatprep.subr.mxu0 0.0
      %3246 = vmatpush1.msra.mxu0 0.0
      %3247 = vmatprep.subr.mxu0 0.0
      %3248 = vmatpush1.msra.mxu0 0.0
      %3249 = vmatprep.subr.mxu0 0.0
      %3250 = vmatpush1.msra.mxu0 0.0
      %3251 = vmatprep.subr.mxu0 0.0
      %3252 = vmatpush1.msra.mxu0 0.0
      %3253 = vmatprep.mubr.f32.mxu0 0.0
      %3254 = vmatmul.mubr.f32.gmra.mrb[0].mxu0 %v3187
      %v3255 = vpop.f32.mrb[0].mxu0
      %v3256 = vadd.f32 0.0, %v3255
      %v3257 = vpop.f32.mrb[0].mxu0
      %v3258 = vadd.f32 0.0, %v3257
      %3259 = vdwg.mxu0
      %v3260 = vadd.f32 %v3156, %v3256
      %v3261 = vadd.f32 %v3157, %v3258
      %s3262 = scalar_lea.vmem %s2, 232
      %v3263 = vld [vmem:[%s3262] sm:$0xff]
      %v3265 = vsel %vm440, %v3263, 0
      %3267 = vmatprep.subr.mxu0 %v2850
      %3268 = vmatpush1.msra.mxu0 %v2849
      %3269 = vmatprep.subr.mxu0 0.0
      %3270 = vmatpush1.msra.mxu0 0.0
      %3271 = vmatprep.subr.mxu0 0.0
      %3272 = vmatpush1.msra.mxu0 0.0
      %3273 = vmatprep.subr.mxu0 0.0
      %3274 = vmatpush1.msra.mxu0 0.0
      %3275 = vmatprep.subr.mxu0 0.0
      %3276 = vmatpush1.msra.mxu0 0.0
      %3277 = vmatprep.subr.mxu0 0.0
      %3278 = vmatpush1.msra.mxu0 0.0
      %3279 = vmatprep.subr.mxu0 0.0
      %3280 = vmatpush1.msra.mxu0 0.0
      %3281 = vmatprep.subr.mxu0 0.0
      %3282 = vmatpush1.msra.mxu0 0.0
      %3283 = vmatprep.subr.mxu0 0.0
      %3284 = vmatpush1.msra.mxu0 0.0
      %3285 = vmatprep.subr.mxu0 0.0
      %3286 = vmatpush1.msra.mxu0 0.0
      %3287 = vmatprep.subr.mxu0 0.0
      %3288 = vmatpush1.msra.mxu0 0.0
      %3289 = vmatprep.subr.mxu0 0.0
      %3290 = vmatpush1.msra.mxu0 0.0
      %3291 = vmatprep.subr.mxu0 0.0
      %3292 = vmatpush1.msra.mxu0 0.0
      %3293 = vmatprep.subr.mxu0 0.0
      %3294 = vmatpush1.msra.mxu0 0.0
      %3295 = vmatprep.subr.mxu0 0.0
      %3296 = vmatpush1.msra.mxu0 0.0
      %3297 = vmatprep.subr.mxu0 0.0
      %3298 = vmatpush1.msra.mxu0 0.0
      %3299 = vmatprep.subr.mxu0 0.0
      %3300 = vmatpush1.msra.mxu0 0.0
      %3301 = vmatprep.subr.mxu0 0.0
      %3302 = vmatpush1.msra.mxu0 0.0
      %3303 = vmatprep.subr.mxu0 0.0
      %3304 = vmatpush1.msra.mxu0 0.0
      %3305 = vmatprep.subr.mxu0 0.0
      %3306 = vmatpush1.msra.mxu0 0.0
      %3307 = vmatprep.subr.mxu0 0.0
      %3308 = vmatpush1.msra.mxu0 0.0
      %3309 = vmatprep.subr.mxu0 0.0
      %3310 = vmatpush1.msra.mxu0 0.0
      %3311 = vmatprep.subr.mxu0 0.0
      %3312 = vmatpush1.msra.mxu0 0.0
      %3313 = vmatprep.subr.mxu0 0.0
      %3314 = vmatpush1.msra.mxu0 0.0
      %3315 = vmatprep.subr.mxu0 0.0
      %3316 = vmatpush1.msra.mxu0 0.0
      %3317 = vmatprep.subr.mxu0 0.0
      %3318 = vmatpush1.msra.mxu0 0.0
      %3319 = vmatprep.subr.mxu0 0.0
      %3320 = vmatpush1.msra.mxu0 0.0
      %3321 = vmatprep.subr.mxu0 0.0
      %3322 = vmatpush1.msra.mxu0 0.0
      %3323 = vmatprep.subr.mxu0 0.0
      %3324 = vmatpush1.msra.mxu0 0.0
      %3325 = vmatprep.subr.mxu0 0.0
      %3326 = vmatpush1.msra.mxu0 0.0
      %3327 = vmatprep.subr.mxu0 0.0
      %3328 = vmatpush1.msra.mxu0 0.0
      %3329 = vmatprep.subr.mxu0 0.0
      %3330 = vmatpush1.msra.mxu0 0.0
      %3331 = vmatprep.mubr.f32.mxu0 0.0
      %3332 = vmatmul.mubr.f32.gmra.mrb[0].mxu0 %v3265
      %v3333 = vpop.f32.mrb[0].mxu0
      %v3334 = vadd.f32 0.0, %v3333
      %v3335 = vpop.f32.mrb[0].mxu0
      %v3336 = vadd.f32 0.0, %v3335
      %3337 = vdwg.mxu0
      %v3338 = vadd.f32 %v3260, %v3334
      %v3339 = vadd.f32 %v3261, %v3336
      %v3340 = vld [vmem:[#allocation2 + $0x8] sm:$0xff]
      %v3341 = vld [vmem:[#allocation2 + $0x10] sm:$0xff]
      %v3342 = vld [vmem:[#allocation2 + $0x18] sm:$0xff]
      %3343 = vrot.lane.b32.xlu0 %v3050, 5
      %v3344 = vpop.permute.xlu0 %3343
      %3345 = vrot.lane.b32.xlu0 %v3051, 5
      %v3346 = vpop.permute.xlu0 %3345
      %v3347 = vsel %vm3181, %v3344, %v3346
      %v3351 = vmul.f32 %v3340, %v3344
      %v3352 = vmul.f32 %v3341, %v3347
      %v3353 = vmul.f32 %v3342, %v3346
      %s3354 = scalar_lea.vmem %s2, 240
      %v3355 = vld [vmem:[%s3354] sm:$0xff]
      %3359 = vrot.lane.b32.xlu0 %v3351, 123
      %v3360 = vpop.permute.xlu0 %3359
      %3361 = vrot.lane.b32.xlu0 %v3352, 123
      %v3362 = vpop.permute.xlu0 %3361
      %3363 = vrot.lane.b32.xlu0 %v3353, 123
      %v3364 = vpop.permute.xlu0 %3363
      %v3365 = vsel %vm3162, %v3360, %v3362
      %v3366 = vsel %vm3162, %v3362, %v3364
      %v3370 = vsel %vm440, %v3355, 0
      %3372 = vmatprep.subr.mxu0 %v3366
      %3373 = vmatpush1.msra.mxu0 %v3365
      %3374 = vmatprep.subr.mxu0 0.0
      %3375 = vmatpush1.msra.mxu0 0.0
      %3376 = vmatprep.subr.mxu0 0.0
      %3377 = vmatpush1.msra.mxu0 0.0
      %3378 = vmatprep.subr.mxu0 0.0
      %3379 = vmatpush1.msra.mxu0 0.0
      %3380 = vmatprep.subr.mxu0 0.0
      %3381 = vmatpush1.msra.mxu0 0.0
      %3382 = vmatprep.subr.mxu0 0.0
      %3383 = vmatpush1.msra.mxu0 0.0
      %3384 = vmatprep.subr.mxu0 0.0
      %3385 = vmatpush1.msra.mxu0 0.0
      %3386 = vmatprep.subr.mxu0 0.0
      %3387 = vmatpush1.msra.mxu0 0.0
      %3388 = vmatprep.subr.mxu0 0.0
      %3389 = vmatpush1.msra.mxu0 0.0
      %3390 = vmatprep.subr.mxu0 0.0
      %3391 = vmatpush1.msra.mxu0 0.0
      %3392 = vmatprep.subr.mxu0 0.0
      %3393 = vmatpush1.msra.mxu0 0.0
      %3394 = vmatprep.subr.mxu0 0.0
      %3395 = vmatpush1.msra.mxu0 0.0
      %3396 = vmatprep.subr.mxu0 0.0
      %3397 = vmatpush1.msra.mxu0 0.0
      %3398 = vmatprep.subr.mxu0 0.0
      %3399 = vmatpush1.msra.mxu0 0.0
      %3400 = vmatprep.subr.mxu0 0.0
      %3401 = vmatpush1.msra.mxu0 0.0
      %3402 = vmatprep.subr.mxu0 0.0
      %3403 = vmatpush1.msra.mxu0 0.0
      %3404 = vmatprep.subr.mxu0 0.0
      %3405 = vmatpush1.msra.mxu0 0.0
      %3406 = vmatprep.subr.mxu0 0.0
      %3407 = vmatpush1.msra.mxu0 0.0
      %3408 = vmatprep.subr.mxu0 0.0
      %3409 = vmatpush1.msra.mxu0 0.0
      %3410 = vmatprep.subr.mxu0 0.0
      %3411 = vmatpush1.msra.mxu0 0.0
      %3412 = vmatprep.subr.mxu0 0.0
      %3413 = vmatpush1.msra.mxu0 0.0
      %3414 = vmatprep.subr.mxu0 0.0
      %3415 = vmatpush1.msra.mxu0 0.0
      %3416 = vmatprep.subr.mxu0 0.0
      %3417 = vmatpush1.msra.mxu0 0.0
      %3418 = vmatprep.subr.mxu0 0.0
      %3419 = vmatpush1.msra.mxu0 0.0
      %3420 = vmatprep.subr.mxu0 0.0
      %3421 = vmatpush1.msra.mxu0 0.0
      %3422 = vmatprep.subr.mxu0 0.0
      %3423 = vmatpush1.msra.mxu0 0.0
      %3424 = vmatprep.subr.mxu0 0.0
      %3425 = vmatpush1.msra.mxu0 0.0
      %3426 = vmatprep.subr.mxu0 0.0
      %3427 = vmatpush1.msra.mxu0 0.0
      %3428 = vmatprep.subr.mxu0 0.0
      %3429 = vmatpush1.msra.mxu0 0.0
      %3430 = vmatprep.subr.mxu0 0.0
      %3431 = vmatpush1.msra.mxu0 0.0
      %3432 = vmatprep.subr.mxu0 0.0
      %3433 = vmatpush1.msra.mxu0 0.0
      %3434 = vmatprep.subr.mxu0 0.0
      %3435 = vmatpush1.msra.mxu0 0.0
      %3436 = vmatprep.mubr.f32.mxu0 0.0
      %3437 = vmatmul.mubr.f32.gmra.mrb[0].mxu0 %v3370
      %v3438 = vpop.f32.mrb[0].mxu0
      %v3439 = vadd.f32 0.0, %v3438
      %v3440 = vpop.f32.mrb[0].mxu0
      %v3441 = vadd.f32 0.0, %v3440
      %3442 = vdwg.mxu0
      %v3443 = vadd.f32 %v3338, %v3439
      %v3444 = vadd.f32 %v3339, %v3441
      %3445 = vrot.lane.b32.xlu0 %v2853, 75
      %v3446 = vpop.permute.xlu0 %3445
      %3447 = vrot.lane.b32.xlu0 %v2854, 75
      %v3448 = vpop.permute.xlu0 %3447
      %v3449 = vsel %vm3077, %v3446, %v3448
      %v3453 = vmul.f32 %v3340, %v3446
      %v3454 = vmul.f32 %v3341, %v3449
      %v3455 = vmul.f32 %v3342, %v3448
      %s3456 = scalar_lea.vmem %s2, 248
      %v3457 = vld [vmem:[%s3456] sm:$0xff]
      %3461 = vrot.lane.b32.xlu0 %v3453, 53
      %v3462 = vpop.permute.xlu0 %3461
      %3463 = vrot.lane.b32.xlu0 %v3454, 53
      %v3464 = vpop.permute.xlu0 %3463
      %3465 = vrot.lane.b32.xlu0 %v3455, 53
      %v3466 = vpop.permute.xlu0 %3465
      %v3467 = vsel %vm3058, %v3462, %v3464
      %v3468 = vsel %vm3058, %v3464, %v3466
      %v3472 = vsel %vm440, %v3457, 0
      %3474 = vmatprep.subr.mxu0 %v3468
      %3475 = vmatpush1.msra.mxu0 %v3467
      %3476 = vmatprep.subr.mxu0 0.0
      %3477 = vmatpush1.msra.mxu0 0.0
      %3478 = vmatprep.subr.mxu0 0.0
      %3479 = vmatpush1.msra.mxu0 0.0
      %3480 = vmatprep.subr.mxu0 0.0
      %3481 = vmatpush1.msra.mxu0 0.0
      %3482 = vmatprep.subr.mxu0 0.0
      %3483 = vmatpush1.msra.mxu0 0.0
      %3484 = vmatprep.subr.mxu0 0.0
      %3485 = vmatpush1.msra.mxu0 0.0
      %3486 = vmatprep.subr.mxu0 0.0
      %3487 = vmatpush1.msra.mxu0 0.0
      %3488 = vmatprep.subr.mxu0 0.0
      %3489 = vmatpush1.msra.mxu0 0.0
      %3490 = vmatprep.subr.mxu0 0.0
      %3491 = vmatpush1.msra.mxu0 0.0
      %3492 = vmatprep.subr.mxu0 0.0
      %3493 = vmatpush1.msra.mxu0 0.0
      %3494 = vmatprep.subr.mxu0 0.0
      %3495 = vmatpush1.msra.mxu0 0.0
      %3496 = vmatprep.subr.mxu0 0.0
      %3497 = vmatpush1.msra.mxu0 0.0
      %3498 = vmatprep.subr.mxu0 0.0
      %3499 = vmatpush1.msra.mxu0 0.0
      %3500 = vmatprep.subr.mxu0 0.0
      %3501 = vmatpush1.msra.mxu0 0.0
      %3502 = vmatprep.subr.mxu0 0.0
      %3503 = vmatpush1.msra.mxu0 0.0
      %3504 = vmatprep.subr.mxu0 0.0
      %3505 = vmatpush1.msra.mxu0 0.0
      %3506 = vmatprep.subr.mxu0 0.0
      %3507 = vmatpush1.msra.mxu0 0.0
      %3508 = vmatprep.subr.mxu0 0.0
      %3509 = vmatpush1.msra.mxu0 0.0
      %3510 = vmatprep.subr.mxu0 0.0
      %3511 = vmatpush1.msra.mxu0 0.0
      %3512 = vmatprep.subr.mxu0 0.0
      %3513 = vmatpush1.msra.mxu0 0.0
      %3514 = vmatprep.subr.mxu0 0.0
      %3515 = vmatpush1.msra.mxu0 0.0
      %3516 = vmatprep.subr.mxu0 0.0
      %3517 = vmatpush1.msra.mxu0 0.0
      %3518 = vmatprep.subr.mxu0 0.0
      %3519 = vmatpush1.msra.mxu0 0.0
      %3520 = vmatprep.subr.mxu0 0.0
      %3521 = vmatpush1.msra.mxu0 0.0
      %3522 = vmatprep.subr.mxu0 0.0
      %3523 = vmatpush1.msra.mxu0 0.0
      %3524 = vmatprep.subr.mxu0 0.0
      %3525 = vmatpush1.msra.mxu0 0.0
      %3526 = vmatprep.subr.mxu0 0.0
      %3527 = vmatpush1.msra.mxu0 0.0
      %3528 = vmatprep.subr.mxu0 0.0
      %3529 = vmatpush1.msra.mxu0 0.0
      %3530 = vmatprep.subr.mxu0 0.0
      %3531 = vmatpush1.msra.mxu0 0.0
      %3532 = vmatprep.subr.mxu0 0.0
      %3533 = vmatpush1.msra.mxu0 0.0
      %3534 = vmatprep.subr.mxu0 0.0
      %3535 = vmatpush1.msra.mxu0 0.0
      %3536 = vmatprep.subr.mxu0 0.0
      %3537 = vmatpush1.msra.mxu0 0.0
      %3538 = vmatprep.mubr.f32.mxu0 0.0
      %3539 = vmatmul.mubr.f32.gmra.mrb[0].mxu0 %v3472
      %v3540 = vpop.f32.mrb[0].mxu0
      %v3541 = vadd.f32 0.0, %v3540
      %v3542 = vpop.f32.mrb[0].mxu0
      %v3543 = vadd.f32 0.0, %v3542
      %3544 = vdwg.mxu0
      %v3545 = vadd.f32 %v3443, %v3541
      %v3546 = vadd.f32 %v3444, %v3543
      %s3547 = scalar_lea.vmem %s2, 256
      %v3548 = vld [vmem:[%s3547] sm:$0xff]
      %3552 = vrot.lane.b32.xlu0 %v3340, 48
      %v3553 = vpop.permute.xlu0 %3552
      %3554 = vrot.lane.b32.xlu0 %v3341, 48
      %v3555 = vpop.permute.xlu0 %3554
      %3556 = vrot.lane.b32.xlu0 %v3342, 48
      %v3557 = vpop.permute.xlu0 %3556
      %v3558 = vsel %vm1032, %v3553, %v3555
      %v3559 = vsel %vm1032, %v3555, %v3557
      %v3563 = vsel %vm440, %v3548, 0
      %3565 = vmatprep.subr.mxu0 %v3559
      %3566 = vmatpush1.msra.mxu0 %v3558
      %3567 = vmatprep.subr.mxu0 0.0
      %3568 = vmatpush1.msra.mxu0 0.0
      %3569 = vmatprep.subr.mxu0 0.0
      %3570 = vmatpush1.msra.mxu0 0.0
      %3571 = vmatprep.subr.mxu0 0.0
      %3572 = vmatpush1.msra.mxu0 0.0
      %3573 = vmatprep.subr.mxu0 0.0
      %3574 = vmatpush1.msra.mxu0 0.0
      %3575 = vmatprep.subr.mxu0 0.0
      %3576 = vmatpush1.msra.mxu0 0.0
      %3577 = vmatprep.subr.mxu0 0.0
      %3578 = vmatpush1.msra.mxu0 0.0
      %3579 = vmatprep.subr.mxu0 0.0
      %3580 = vmatpush1.msra.mxu0 0.0
      %3581 = vmatprep.subr.mxu0 0.0
      %3582 = vmatpush1.msra.mxu0 0.0
      %3583 = vmatprep.subr.mxu0 0.0
      %3584 = vmatpush1.msra.mxu0 0.0
      %3585 = vmatprep.subr.mxu0 0.0
      %3586 = vmatpush1.msra.mxu0 0.0
      %3587 = vmatprep.subr.mxu0 0.0
      %3588 = vmatpush1.msra.mxu0 0.0
      %3589 = vmatprep.subr.mxu0 0.0
      %3590 = vmatpush1.msra.mxu0 0.0
      %3591 = vmatprep.subr.mxu0 0.0
      %3592 = vmatpush1.msra.mxu0 0.0
      %3593 = vmatprep.subr.mxu0 0.0
      %3594 = vmatpush1.msra.mxu0 0.0
      %3595 = vmatprep.subr.mxu0 0.0
      %3596 = vmatpush1.msra.mxu0 0.0
      %3597 = vmatprep.subr.mxu0 0.0
      %3598 = vmatpush1.msra.mxu0 0.0
      %3599 = vmatprep.subr.mxu0 0.0
      %3600 = vmatpush1.msra.mxu0 0.0
      %3601 = vmatprep.subr.mxu0 0.0
      %3602 = vmatpush1.msra.mxu0 0.0
      %3603 = vmatprep.subr.mxu0 0.0
      %3604 = vmatpush1.msra.mxu0 0.0
      %3605 = vmatprep.subr.mxu0 0.0
      %3606 = vmatpush1.msra.mxu0 0.0
      %3607 = vmatprep.subr.mxu0 0.0
      %3608 = vmatpush1.msra.mxu0 0.0
      %3609 = vmatprep.subr.mxu0 0.0
      %3610 = vmatpush1.msra.mxu0 0.0
      %3611 = vmatprep.subr.mxu0 0.0
      %3612 = vmatpush1.msra.mxu0 0.0
      %3613 = vmatprep.subr.mxu0 0.0
      %3614 = vmatpush1.msra.mxu0 0.0
      %3615 = vmatprep.subr.mxu0 0.0
      %3616 = vmatpush1.msra.mxu0 0.0
      %3617 = vmatprep.subr.mxu0 0.0
      %3618 = vmatpush1.msra.mxu0 0.0
      %3619 = vmatprep.subr.mxu0 0.0
      %3620 = vmatpush1.msra.mxu0 0.0
      %3621 = vmatprep.subr.mxu0 0.0
      %3622 = vmatpush1.msra.mxu0 0.0
      %3623 = vmatprep.subr.mxu0 0.0
      %3624 = vmatpush1.msra.mxu0 0.0
      %3625 = vmatprep.subr.mxu0 0.0
      %3626 = vmatpush1.msra.mxu0 0.0
      %3627 = vmatprep.subr.mxu0 0.0
      %3628 = vmatpush1.msra.mxu0 0.0
      %3629 = vmatprep.mubr.f32.mxu0 0.0
      %3630 = vmatmul.mubr.f32.gmra.mrb[0].mxu0 %v3563
      %v3631 = vpop.f32.mrb[0].mxu0
      %v3632 = vadd.f32 0.0, %v3631
      %v3633 = vpop.f32.mrb[0].mxu0
      %v3634 = vadd.f32 0.0, %v3633
      %3635 = vdwg.mxu0
      %v3636 = vadd.f32 %v3545, %v3632
      %v3637 = vadd.f32 %v3546, %v3634
      %3638 = vrot.lane.b32.xlu0 %v3050, 85
      %v3639 = vpop.permute.xlu0 %3638
      %3640 = vrot.lane.b32.xlu0 %v3051, 85
      %v3641 = vpop.permute.xlu0 %3640
      %v3642 = vsel %vm2969, %v3639, %v3641
      %v3646 = vmul.f32 %v3340, %v3639
      %v3647 = vmul.f32 %v3341, %v3642
      %v3648 = vmul.f32 %v3342, %v3641
      %s3649 = scalar_lea.vmem %s2, 264
      %v3650 = vld [vmem:[%s3649] sm:$0xff]
      %3654 = vrot.lane.b32.xlu0 %v3646, 43
      %v3655 = vpop.permute.xlu0 %3654
      %3656 = vrot.lane.b32.xlu0 %v3647, 43
      %v3657 = vpop.permute.xlu0 %3656
      %3658 = vrot.lane.b32.xlu0 %v3648, 43
      %v3659 = vpop.permute.xlu0 %3658
      %v3660 = vsel %vm2861, %v3655, %v3657
      %v3661 = vsel %vm2861, %v3657, %v3659
      %v3665 = vsel %vm440, %v3650, 0
      %3667 = vmatprep.subr.mxu0 %v3661
      %3668 = vmatpush1.msra.mxu0 %v3660
      %3669 = vmatprep.subr.mxu0 0.0
      %3670 = vmatpush1.msra.mxu0 0.0
      %3671 = vmatprep.subr.mxu0 0.0
      %3672 = vmatpush1.msra.mxu0 0.0
      %3673 = vmatprep.subr.mxu0 0.0
      %3674 = vmatpush1.msra.mxu0 0.0
      %3675 = vmatprep.subr.mxu0 0.0
      %3676 = vmatpush1.msra.mxu0 0.0
      %3677 = vmatprep.subr.mxu0 0.0
      %3678 = vmatpush1.msra.mxu0 0.0
      %3679 = vmatprep.subr.mxu0 0.0
      %3680 = vmatpush1.msra.mxu0 0.0
      %3681 = vmatprep.subr.mxu0 0.0
      %3682 = vmatpush1.msra.mxu0 0.0
      %3683 = vmatprep.subr.mxu0 0.0
      %3684 = vmatpush1.msra.mxu0 0.0
      %3685 = vmatprep.subr.mxu0 0.0
      %3686 = vmatpush1.msra.mxu0 0.0
      %3687 = vmatprep.subr.mxu0 0.0
      %3688 = vmatpush1.msra.mxu0 0.0
      %3689 = vmatprep.subr.mxu0 0.0
      %3690 = vmatpush1.msra.mxu0 0.0
      %3691 = vmatprep.subr.mxu0 0.0
      %3692 = vmatpush1.msra.mxu0 0.0
      %3693 = vmatprep.subr.mxu0 0.0
      %3694 = vmatpush1.msra.mxu0 0.0
      %3695 = vmatprep.subr.mxu0 0.0
      %3696 = vmatpush1.msra.mxu0 0.0
      %3697 = vmatprep.subr.mxu0 0.0
      %3698 = vmatpush1.msra.mxu0 0.0
      %3699 = vmatprep.subr.mxu0 0.0
      %3700 = vmatpush1.msra.mxu0 0.0
      %3701 = vmatprep.subr.mxu0 0.0
      %3702 = vmatpush1.msra.mxu0 0.0
      %3703 = vmatprep.subr.mxu0 0.0
      %3704 = vmatpush1.msra.mxu0 0.0
      %3705 = vmatprep.subr.mxu0 0.0
      %3706 = vmatpush1.msra.mxu0 0.0
      %3707 = vmatprep.subr.mxu0 0.0
      %3708 = vmatpush1.msra.mxu0 0.0
      %3709 = vmatprep.subr.mxu0 0.0
      %3710 = vmatpush1.msra.mxu0 0.0
      %3711 = vmatprep.subr.mxu0 0.0
      %3712 = vmatpush1.msra.mxu0 0.0
      %3713 = vmatprep.subr.mxu0 0.0
      %3714 = vmatpush1.msra.mxu0 0.0
      %3715 = vmatprep.subr.mxu0 0.0
      %3716 = vmatpush1.msra.mxu0 0.0
      %3717 = vmatprep.subr.mxu0 0.0
      %3718 = vmatpush1.msra.mxu0 0.0
      %3719 = vmatprep.subr.mxu0 0.0
      %3720 = vmatpush1.msra.mxu0 0.0
      %3721 = vmatprep.subr.mxu0 0.0
      %3722 = vmatpush1.msra.mxu0 0.0
      %3723 = vmatprep.subr.mxu0 0.0
      %3724 = vmatpush1.msra.mxu0 0.0
      %3725 = vmatprep.subr.mxu0 0.0
      %3726 = vmatpush1.msra.mxu0 0.0
      %3727 = vmatprep.subr.mxu0 0.0
      %3728 = vmatpush1.msra.mxu0 0.0
      %3729 = vmatprep.subr.mxu0 0.0
      %3730 = vmatpush1.msra.mxu0 0.0
      %3731 = vmatprep.mubr.f32.mxu0 0.0
      %3732 = vmatmul.mubr.f32.gmra.mrb[0].mxu0 %v3665
      %v3733 = vpop.f32.mrb[0].mxu0
      %v3734 = vadd.f32 0.0, %v3733
      %v3735 = vpop.f32.mrb[0].mxu0
      %v3736 = vadd.f32 0.0, %v3735
      %3737 = vdwg.mxu0
      %v3738 = vadd.f32 %v3636, %v3734
      %v3739 = vadd.f32 %v3637, %v3736
      %v3740 = vld [vmem:[%s4 + $0x50] sm:$0xff]
      %3742 = vset.pattern.permute.xlu0 0
      %3743 = vperm.xlu0 %3742, %v3740
      %v3744 = vpop.permute.xlu0 %3743
      %v3746 = vadd.f32 %v3738, %v3744
      %v3747 = vadd.f32 %v3739, %v3744
      %3748 = vst [vmem:[#allocation2 + $0x8] sm:$0xff] %v404
      %3749 = vst [vmem:[#allocation2 + $0x10] sm:$0xff] %v406
      %v3750 = vld [vmem:[#allocation2] sm:$0xff]
      %v3751 = vld [vmem:[#allocation2 + $0x8] sm:$0xff]
      %v3752 = vld [vmem:[#allocation2 + $0x10] sm:$0xff]
      %v3753 = vmul.f32 %v3750, %v1310
      %v3754 = vmul.f32 %v3751, %v1314
      %v3755 = vmul.f32 %v3752, %v1312
      %s3756 = scalar_lea.vmem %s2, 272
      %v3757 = vld [vmem:[%s3756] sm:$0xff]
      %v3758 = vmul.f32 %v3750, %v1912
      %v3759 = vmul.f32 %v3751, %v1916
      %v3760 = vmul.f32 %v3752, %v1914
      %s3761 = scalar_lea.vmem %s2, 280
      %v3762 = vld [vmem:[%s3761] sm:$0xff]
      %3766 = vrot.lane.b32.xlu0 %v3758, 2
      %v3767 = vpop.permute.xlu0 %3766
      %3768 = vrot.lane.b32.xlu0 %v3759, 2
      %v3769 = vpop.permute.xlu0 %3768
      %3770 = vrot.lane.b32.xlu0 %v3760, 2
      %v3771 = vpop.permute.xlu0 %3770
      %v3772 = vsel %vm2026, %v3767, %v3769
      %v3773 = vsel %vm2026, %v3769, %v3771
      %v3777 = vsel %vm440, %v3762, 0
      %3779 = vmatprep.subr.mxu0 %v3773
      %3780 = vmatpush1.msra.mxu0 %v3772
      %3781 = vmatprep.subr.mxu0 0.0
      %3782 = vmatpush1.msra.mxu0 0.0
      %3783 = vmatprep.subr.mxu0 0.0
      %3784 = vmatpush1.msra.mxu0 0.0
      %3785 = vmatprep.subr.mxu0 0.0
      %3786 = vmatpush1.msra.mxu0 0.0
      %3787 = vmatprep.subr.mxu0 0.0
      %3788 = vmatpush1.msra.mxu0 0.0
      %3789 = vmatprep.subr.mxu0 0.0
      %3790 = vmatpush1.msra.mxu0 0.0
      %3791 = vmatprep.subr.mxu0 0.0
      %3792 = vmatpush1.msra.mxu0 0.0
      %3793 = vmatprep.subr.mxu0 0.0
      %3794 = vmatpush1.msra.mxu0 0.0
      %3795 = vmatprep.subr.mxu0 0.0
      %3796 = vmatpush1.msra.mxu0 0.0
      %3797 = vmatprep.subr.mxu0 0.0
      %3798 = vmatpush1.msra.mxu0 0.0
      %3799 = vmatprep.subr.mxu0 0.0
      %3800 = vmatpush1.msra.mxu0 0.0
      %3801 = vmatprep.subr.mxu0 0.0
      %3802 = vmatpush1.msra.mxu0 0.0
      %3803 = vmatprep.subr.mxu0 0.0
      %3804 = vmatpush1.msra.mxu0 0.0
      %3805 = vmatprep.subr.mxu0 0.0
      %3806 = vmatpush1.msra.mxu0 0.0
      %3807 = vmatprep.subr.mxu0 0.0
      %3808 = vmatpush1.msra.mxu0 0.0
      %3809 = vmatprep.subr.mxu0 0.0
      %3810 = vmatpush1.msra.mxu0 0.0
      %3811 = vmatprep.subr.mxu0 0.0
      %3812 = vmatpush1.msra.mxu0 0.0
      %3813 = vmatprep.subr.mxu0 0.0
      %3814 = vmatpush1.msra.mxu0 0.0
      %3815 = vmatprep.subr.mxu0 0.0
      %3816 = vmatpush1.msra.mxu0 0.0
      %3817 = vmatprep.subr.mxu0 0.0
      %3818 = vmatpush1.msra.mxu0 0.0
      %3819 = vmatprep.subr.mxu0 0.0
      %3820 = vmatpush1.msra.mxu0 0.0
      %3821 = vmatprep.subr.mxu0 0.0
      %3822 = vmatpush1.msra.mxu0 0.0
      %3823 = vmatprep.subr.mxu0 0.0
      %3824 = vmatpush1.msra.mxu0 0.0
      %3825 = vmatprep.subr.mxu0 0.0
      %3826 = vmatpush1.msra.mxu0 0.0
      %3827 = vmatprep.subr.mxu0 0.0
      %3828 = vmatpush1.msra.mxu0 0.0
      %3829 = vmatprep.subr.mxu0 0.0
      %3830 = vmatpush1.msra.mxu0 0.0
      %3831 = vmatprep.subr.mxu0 0.0
      %3832 = vmatpush1.msra.mxu0 0.0
      %3833 = vmatprep.subr.mxu0 0.0
      %3834 = vmatpush1.msra.mxu0 0.0
      %3835 = vmatprep.subr.mxu0 0.0
      %3836 = vmatpush1.msra.mxu0 0.0
      %3837 = vmatprep.subr.mxu0 0.0
      %3838 = vmatpush1.msra.mxu0 0.0
      %3839 = vmatprep.subr.mxu0 0.0
      %3840 = vmatpush1.msra.mxu0 0.0
      %3841 = vmatprep.subr.mxu0 0.0
      %3842 = vmatpush1.msra.mxu0 0.0
      %3843 = vmatprep.mubr.f32.mxu0 0.0
      %3844 = vmatmul.mubr.f32.gmra.mrb[0].mxu0 %v3777
      %v3845 = vpop.f32.mrb[0].mxu0
      %v3846 = vadd.f32 0.0, %v3845
      %v3847 = vpop.f32.mrb[0].mxu0
      %v3848 = vadd.f32 0.0, %v3847
      %3849 = vdwg.mxu0
      %3853 = vrot.lane.b32.xlu0 %v3753, 3
      %v3854 = vpop.permute.xlu0 %3853
      %3855 = vrot.lane.b32.xlu0 %v3754, 3
      %v3856 = vpop.permute.xlu0 %3855
      %3857 = vrot.lane.b32.xlu0 %v3755, 3
      %v3858 = vpop.permute.xlu0 %3857
      %v3859 = vsel %vm1332, %v3854, %v3856
      %v3860 = vsel %vm1332, %v3856, %v3858
      %v3864 = vsel %vm440, %v3757, 0
      %3866 = vmatprep.subr.mxu0 %v3860
      %3867 = vmatpush1.msra.mxu0 %v3859
      %3868 = vmatprep.subr.mxu0 0.0
      %3869 = vmatpush1.msra.mxu0 0.0
      %3870 = vmatprep.subr.mxu0 0.0
      %3871 = vmatpush1.msra.mxu0 0.0
      %3872 = vmatprep.subr.mxu0 0.0
      %3873 = vmatpush1.msra.mxu0 0.0
      %3874 = vmatprep.subr.mxu0 0.0
      %3875 = vmatpush1.msra.mxu0 0.0
      %3876 = vmatprep.subr.mxu0 0.0
      %3877 = vmatpush1.msra.mxu0 0.0
      %3878 = vmatprep.subr.mxu0 0.0
      %3879 = vmatpush1.msra.mxu0 0.0
      %3880 = vmatprep.subr.mxu0 0.0
      %3881 = vmatpush1.msra.mxu0 0.0
      %3882 = vmatprep.subr.mxu0 0.0
      %3883 = vmatpush1.msra.mxu0 0.0
      %3884 = vmatprep.subr.mxu0 0.0
      %3885 = vmatpush1.msra.mxu0 0.0
      %3886 = vmatprep.subr.mxu0 0.0
      %3887 = vmatpush1.msra.mxu0 0.0
      %3888 = vmatprep.subr.mxu0 0.0
      %3889 = vmatpush1.msra.mxu0 0.0
      %3890 = vmatprep.subr.mxu0 0.0
      %3891 = vmatpush1.msra.mxu0 0.0
      %3892 = vmatprep.subr.mxu0 0.0
      %3893 = vmatpush1.msra.mxu0 0.0
      %3894 = vmatprep.subr.mxu0 0.0
      %3895 = vmatpush1.msra.mxu0 0.0
      %3896 = vmatprep.subr.mxu0 0.0
      %3897 = vmatpush1.msra.mxu0 0.0
      %3898 = vmatprep.subr.mxu0 0.0
      %3899 = vmatpush1.msra.mxu0 0.0
      %3900 = vmatprep.subr.mxu0 0.0
      %3901 = vmatpush1.msra.mxu0 0.0
      %3902 = vmatprep.subr.mxu0 0.0
      %3903 = vmatpush1.msra.mxu0 0.0
      %3904 = vmatprep.subr.mxu0 0.0
      %3905 = vmatpush1.msra.mxu0 0.0
      %3906 = vmatprep.subr.mxu0 0.0
      %3907 = vmatpush1.msra.mxu0 0.0
      %3908 = vmatprep.subr.mxu0 0.0
      %3909 = vmatpush1.msra.mxu0 0.0
      %3910 = vmatprep.subr.mxu0 0.0
      %3911 = vmatpush1.msra.mxu0 0.0
      %3912 = vmatprep.subr.mxu0 0.0
      %3913 = vmatpush1.msra.mxu0 0.0
      %3914 = vmatprep.subr.mxu0 0.0
      %3915 = vmatpush1.msra.mxu0 0.0
      %3916 = vmatprep.subr.mxu0 0.0
      %3917 = vmatpush1.msra.mxu0 0.0
      %3918 = vmatprep.subr.mxu0 0.0
      %3919 = vmatpush1.msra.mxu0 0.0
      %3920 = vmatprep.subr.mxu0 0.0
      %3921 = vmatpush1.msra.mxu0 0.0
      %3922 = vmatprep.subr.mxu0 0.0
      %3923 = vmatpush1.msra.mxu0 0.0
      %3924 = vmatprep.subr.mxu0 0.0
      %3925 = vmatpush1.msra.mxu0 0.0
      %3926 = vmatprep.subr.mxu0 0.0
      %3927 = vmatpush1.msra.mxu0 0.0
      %3928 = vmatprep.subr.mxu0 0.0
      %3929 = vmatpush1.msra.mxu0 0.0
      %3930 = vmatprep.mubr.f32.mxu0 0.0
      %3931 = vmatmul.mubr.f32.gmra.mrb[0].mxu0 %v3864
      %v3932 = vpop.f32.mrb[0].mxu0
      %v3933 = vadd.f32 %v3846, %v3932
      %v3934 = vpop.f32.mrb[0].mxu0
      %v3935 = vadd.f32 %v3848, %v3934
      %3936 = vdwg.mxu0
      %v3937 = vmul.f32 %v3750, %v426
      %v3938 = vmul.f32 %v3751, %v430
      %v3939 = vmul.f32 %v3752, %v428
      %s3940 = scalar_lea.vmem %s2, 288
      %v3941 = vld [vmem:[%s3940] sm:$0xff]
      %3945 = vrot.lane.b32.xlu0 %v3937, 1
      %v3946 = vpop.permute.xlu0 %3945
      %3947 = vrot.lane.b32.xlu0 %v3938, 1
      %v3948 = vpop.permute.xlu0 %3947
      %3949 = vrot.lane.b32.xlu0 %v3939, 1
      %v3950 = vpop.permute.xlu0 %3949
      %v3951 = vsel %vm524, %v3946, %v3948
      %v3952 = vsel %vm524, %v3948, %v3950
      %v3956 = vsel %vm440, %v3941, 0
      %3958 = vmatprep.subr.mxu0 %v3952
      %3959 = vmatpush1.msra.mxu0 %v3951
      %3960 = vmatprep.subr.mxu0 0.0
      %3961 = vmatpush1.msra.mxu0 0.0
      %3962 = vmatprep.subr.mxu0 0.0
      %3963 = vmatpush1.msra.mxu0 0.0
      %3964 = vmatprep.subr.mxu0 0.0
      %3965 = vmatpush1.msra.mxu0 0.0
      %3966 = vmatprep.subr.mxu0 0.0
      %3967 = vmatpush1.msra.mxu0 0.0
      %3968 = vmatprep.subr.mxu0 0.0
      %3969 = vmatpush1.msra.mxu0 0.0
      %3970 = vmatprep.subr.mxu0 0.0
      %3971 = vmatpush1.msra.mxu0 0.0
      %3972 = vmatprep.subr.mxu0 0.0
      %3973 = vmatpush1.msra.mxu0 0.0
      %3974 = vmatprep.subr.mxu0 0.0
      %3975 = vmatpush1.msra.mxu0 0.0
      %3976 = vmatprep.subr.mxu0 0.0
      %3977 = vmatpush1.msra.mxu0 0.0
      %3978 = vmatprep.subr.mxu0 0.0
      %3979 = vmatpush1.msra.mxu0 0.0
      %3980 = vmatprep.subr.mxu0 0.0
      %3981 = vmatpush1.msra.mxu0 0.0
      %3982 = vmatprep.subr.mxu0 0.0
      %3983 = vmatpush1.msra.mxu0 0.0
      %3984 = vmatprep.subr.mxu0 0.0
      %3985 = vmatpush1.msra.mxu0 0.0
      %3986 = vmatprep.subr.mxu0 0.0
      %3987 = vmatpush1.msra.mxu0 0.0
      %3988 = vmatprep.subr.mxu0 0.0
      %3989 = vmatpush1.msra.mxu0 0.0
      %3990 = vmatprep.subr.mxu0 0.0
      %3991 = vmatpush1.msra.mxu0 0.0
      %3992 = vmatprep.subr.mxu0 0.0
      %3993 = vmatpush1.msra.mxu0 0.0
      %3994 = vmatprep.subr.mxu0 0.0
      %3995 = vmatpush1.msra.mxu0 0.0
      %3996 = vmatprep.subr.mxu0 0.0
      %3997 = vmatpush1.msra.mxu0 0.0
      %3998 = vmatprep.subr.mxu0 0.0
      %3999 = vmatpush1.msra.mxu0 0.0
      %4000 = vmatprep.subr.mxu0 0.0
      %4001 = vmatpush1.msra.mxu0 0.0
      %4002 = vmatprep.subr.mxu0 0.0
      %4003 = vmatpush1.msra.mxu0 0.0
      %4004 = vmatprep.subr.mxu0 0.0
      %4005 = vmatpush1.msra.mxu0 0.0
      %4006 = vmatprep.subr.mxu0 0.0
      %4007 = vmatpush1.msra.mxu0 0.0
      %4008 = vmatprep.subr.mxu0 0.0
      %4009 = vmatpush1.msra.mxu0 0.0
      %4010 = vmatprep.subr.mxu0 0.0
      %4011 = vmatpush1.msra.mxu0 0.0
      %4012 = vmatprep.subr.mxu0 0.0
      %4013 = vmatpush1.msra.mxu0 0.0
      %4014 = vmatprep.subr.mxu0 0.0
      %4015 = vmatpush1.msra.mxu0 0.0
      %4016 = vmatprep.subr.mxu0 0.0
      %4017 = vmatpush1.msra.mxu0 0.0
      %4018 = vmatprep.subr.mxu0 0.0
      %4019 = vmatpush1.msra.mxu0 0.0
      %4020 = vmatprep.subr.mxu0 0.0
      %4021 = vmatpush1.msra.mxu0 0.0
      %4022 = vmatprep.mubr.f32.mxu0 0.0
      %4023 = vmatmul.mubr.f32.gmra.mrb[0].mxu0 %v3956
      %v4024 = vpop.f32.mrb[0].mxu0
      %v4025 = vadd.f32 0.0, %v4024
      %v4026 = vpop.f32.mrb[0].mxu0
      %v4027 = vadd.f32 0.0, %v4026
      %4028 = vdwg.mxu0
      %v4029 = vadd.f32 %v3933, %v4025
      %v4030 = vadd.f32 %v3935, %v4027
      %s4031 = scalar_lea.vmem %s2, 296
      %v4032 = vld [vmem:[%s4031] sm:$0xff]
      %v4034 = vsel %vm440, %v4032, 0
      %4036 = vmatprep.subr.mxu0 %v3752
      %4037 = vmatpush1.msra.mxu0 %v3751
      %4038 = vmatprep.subr.mxu0 0.0
      %4039 = vmatpush1.msra.mxu0 0.0
      %4040 = vmatprep.subr.mxu0 0.0
      %4041 = vmatpush1.msra.mxu0 0.0
      %4042 = vmatprep.subr.mxu0 0.0
      %4043 = vmatpush1.msra.mxu0 0.0
      %4044 = vmatprep.subr.mxu0 0.0
      %4045 = vmatpush1.msra.mxu0 0.0
      %4046 = vmatprep.subr.mxu0 0.0
      %4047 = vmatpush1.msra.mxu0 0.0
      %4048 = vmatprep.subr.mxu0 0.0
      %4049 = vmatpush1.msra.mxu0 0.0
      %4050 = vmatprep.subr.mxu0 0.0
      %4051 = vmatpush1.msra.mxu0 0.0
      %4052 = vmatprep.subr.mxu0 0.0
      %4053 = vmatpush1.msra.mxu0 0.0
      %4054 = vmatprep.subr.mxu0 0.0
      %4055 = vmatpush1.msra.mxu0 0.0
      %4056 = vmatprep.subr.mxu0 0.0
      %4057 = vmatpush1.msra.mxu0 0.0
      %4058 = vmatprep.subr.mxu0 0.0
      %4059 = vmatpush1.msra.mxu0 0.0
      %4060 = vmatprep.subr.mxu0 0.0
      %4061 = vmatpush1.msra.mxu0 0.0
      %4062 = vmatprep.subr.mxu0 0.0
      %4063 = vmatpush1.msra.mxu0 0.0
      %4064 = vmatprep.subr.mxu0 0.0
      %4065 = vmatpush1.msra.mxu0 0.0
      %4066 = vmatprep.subr.mxu0 0.0
      %4067 = vmatpush1.msra.mxu0 0.0
      %4068 = vmatprep.subr.mxu0 0.0
      %4069 = vmatpush1.msra.mxu0 0.0
      %4070 = vmatprep.subr.mxu0 0.0
      %4071 = vmatpush1.msra.mxu0 0.0
      %4072 = vmatprep.subr.mxu0 0.0
      %4073 = vmatpush1.msra.mxu0 0.0
      %4074 = vmatprep.subr.mxu0 0.0
      %4075 = vmatpush1.msra.mxu0 0.0
      %4076 = vmatprep.subr.mxu0 0.0
      %4077 = vmatpush1.msra.mxu0 0.0
      %4078 = vmatprep.subr.mxu0 0.0
      %4079 = vmatpush1.msra.mxu0 0.0
      %4080 = vmatprep.subr.mxu0 0.0
      %4081 = vmatpush1.msra.mxu0 0.0
      %4082 = vmatprep.subr.mxu0 0.0
      %4083 = vmatpush1.msra.mxu0 0.0
      %4084 = vmatprep.subr.mxu0 0.0
      %4085 = vmatpush1.msra.mxu0 0.0
      %4086 = vmatprep.subr.mxu0 0.0
      %4087 = vmatpush1.msra.mxu0 0.0
      %4088 = vmatprep.subr.mxu0 0.0
      %4089 = vmatpush1.msra.mxu0 0.0
      %4090 = vmatprep.subr.mxu0 0.0
      %4091 = vmatpush1.msra.mxu0 0.0
      %4092 = vmatprep.subr.mxu0 0.0
      %4093 = vmatpush1.msra.mxu0 0.0
      %4094 = vmatprep.subr.mxu0 0.0
      %4095 = vmatpush1.msra.mxu0 0.0
      %4096 = vmatprep.subr.mxu0 0.0
      %4097 = vmatpush1.msra.mxu0 0.0
      %4098 = vmatprep.subr.mxu0 0.0
      %4099 = vmatpush1.msra.mxu0 0.0
      %4100 = vmatprep.mubr.f32.mxu0 0.0
      %4101 = vmatmul.mubr.f32.gmra.mrb[0].mxu0 %v4034
      %v4102 = vpop.f32.mrb[0].mxu0
      %v4103 = vadd.f32 0.0, %v4102
      %v4104 = vpop.f32.mrb[0].mxu0
      %v4105 = vadd.f32 0.0, %v4104
      %4106 = vdwg.mxu0
      %v4107 = vadd.f32 %v4029, %v4103
      %v4108 = vadd.f32 %v4030, %v4105
      %v4109 = vld [vmem:[#allocation2 + $0x8] sm:$0xff]
      %v4110 = vld [vmem:[#allocation2 + $0x10] sm:$0xff]
      %v4111 = vld [vmem:[#allocation2 + $0x18] sm:$0xff]
      %v4112 = vmul.f32 %v4109, %v613
      %v4113 = vmul.f32 %v4110, %v616
      %v4114 = vmul.f32 %v4111, %v615
      %s4115 = scalar_lea.vmem %s2, 304
      %v4116 = vld [vmem:[%s4115] sm:$0xff]
      %4120 = vrot.lane.b32.xlu0 %v4112, 127
      %v4121 = vpop.permute.xlu0 %4120
      %4122 = vrot.lane.b32.xlu0 %v4113, 127
      %v4123 = vpop.permute.xlu0 %4122
      %4124 = vrot.lane.b32.xlu0 %v4114, 127
      %v4125 = vpop.permute.xlu0 %4124
      %v4126 = vsel %vm429, %v4121, %v4123
      %v4127 = vsel %vm429, %v4123, %v4125
      %v4131 = vsel %vm440, %v4116, 0
      %4133 = vmatprep.subr.mxu0 %v4127
      %4134 = vmatpush1.msra.mxu0 %v4126
      %4135 = vmatprep.subr.mxu0 0.0
      %4136 = vmatpush1.msra.mxu0 0.0
      %4137 = vmatprep.subr.mxu0 0.0
      %4138 = vmatpush1.msra.mxu0 0.0
      %4139 = vmatprep.subr.mxu0 0.0
      %4140 = vmatpush1.msra.mxu0 0.0
      %4141 = vmatprep.subr.mxu0 0.0
      %4142 = vmatpush1.msra.mxu0 0.0
      %4143 = vmatprep.subr.mxu0 0.0
      %4144 = vmatpush1.msra.mxu0 0.0
      %4145 = vmatprep.subr.mxu0 0.0
      %4146 = vmatpush1.msra.mxu0 0.0
      %4147 = vmatprep.subr.mxu0 0.0
      %4148 = vmatpush1.msra.mxu0 0.0
      %4149 = vmatprep.subr.mxu0 0.0
      %4150 = vmatpush1.msra.mxu0 0.0
      %4151 = vmatprep.subr.mxu0 0.0
      %4152 = vmatpush1.msra.mxu0 0.0
      %4153 = vmatprep.subr.mxu0 0.0
      %4154 = vmatpush1.msra.mxu0 0.0
      %4155 = vmatprep.subr.mxu0 0.0
      %4156 = vmatpush1.msra.mxu0 0.0
      %4157 = vmatprep.subr.mxu0 0.0
      %4158 = vmatpush1.msra.mxu0 0.0
      %4159 = vmatprep.subr.mxu0 0.0
      %4160 = vmatpush1.msra.mxu0 0.0
      %4161 = vmatprep.subr.mxu0 0.0
      %4162 = vmatpush1.msra.mxu0 0.0
      %4163 = vmatprep.subr.mxu0 0.0
      %4164 = vmatpush1.msra.mxu0 0.0
      %4165 = vmatprep.subr.mxu0 0.0
      %4166 = vmatpush1.msra.mxu0 0.0
      %4167 = vmatprep.subr.mxu0 0.0
      %4168 = vmatpush1.msra.mxu0 0.0
      %4169 = vmatprep.subr.mxu0 0.0
      %4170 = vmatpush1.msra.mxu0 0.0
      %4171 = vmatprep.subr.mxu0 0.0
      %4172 = vmatpush1.msra.mxu0 0.0
      %4173 = vmatprep.subr.mxu0 0.0
      %4174 = vmatpush1.msra.mxu0 0.0
      %4175 = vmatprep.subr.mxu0 0.0
      %4176 = vmatpush1.msra.mxu0 0.0
      %4177 = vmatprep.subr.mxu0 0.0
      %4178 = vmatpush1.msra.mxu0 0.0
      %4179 = vmatprep.subr.mxu0 0.0
      %4180 = vmatpush1.msra.mxu0 0.0
      %4181 = vmatprep.subr.mxu0 0.0
      %4182 = vmatpush1.msra.mxu0 0.0
      %4183 = vmatprep.subr.mxu0 0.0
      %4184 = vmatpush1.msra.mxu0 0.0
      %4185 = vmatprep.subr.mxu0 0.0
      %4186 = vmatpush1.msra.mxu0 0.0
      %4187 = vmatprep.subr.mxu0 0.0
      %4188 = vmatpush1.msra.mxu0 0.0
      %4189 = vmatprep.subr.mxu0 0.0
      %4190 = vmatpush1.msra.mxu0 0.0
      %4191 = vmatprep.subr.mxu0 0.0
      %4192 = vmatpush1.msra.mxu0 0.0
      %4193 = vmatprep.subr.mxu0 0.0
      %4194 = vmatpush1.msra.mxu0 0.0
      %4195 = vmatprep.subr.mxu0 0.0
      %4196 = vmatpush1.msra.mxu0 0.0
      %4197 = vmatprep.mubr.f32.mxu0 0.0
      %4198 = vmatmul.mubr.f32.gmra.mrb[0].mxu0 %v4131
      %v4199 = vpop.f32.mrb[0].mxu0
      %v4200 = vadd.f32 0.0, %v4199
      %v4201 = vpop.f32.mrb[0].mxu0
      %v4202 = vadd.f32 0.0, %v4201
      %4203 = vdwg.mxu0
      %v4204 = vadd.f32 %v4107, %v4200
      %v4205 = vadd.f32 %v4108, %v4202
      %v4206 = vmul.f32 %v4109, %v2287
      %v4207 = vmul.f32 %v4110, %v2290
      %v4208 = vmul.f32 %v4111, %v2289
      %s4209 = scalar_lea.vmem %s2, 312
      %v4210 = vld [vmem:[%s4209] sm:$0xff]
      %4214 = vrot.lane.b32.xlu0 %v4206, 126
      %v4215 = vpop.permute.xlu0 %4214
      %4216 = vrot.lane.b32.xlu0 %v4207, 126
      %v4217 = vpop.permute.xlu0 %4216
      %4218 = vrot.lane.b32.xlu0 %v4208, 126
      %v4219 = vpop.permute.xlu0 %4218
      %v4220 = vsel %vm1915, %v4215, %v4217
      %v4221 = vsel %vm1915, %v4217, %v4219
      %v4225 = vsel %vm440, %v4210, 0
      %4227 = vmatprep.subr.mxu0 %v4221
      %4228 = vmatpush1.msra.mxu0 %v4220
      %4229 = vmatprep.subr.mxu0 0.0
      %4230 = vmatpush1.msra.mxu0 0.0
      %4231 = vmatprep.subr.mxu0 0.0
      %4232 = vmatpush1.msra.mxu0 0.0
      %4233 = vmatprep.subr.mxu0 0.0
      %4234 = vmatpush1.msra.mxu0 0.0
      %4235 = vmatprep.subr.mxu0 0.0
      %4236 = vmatpush1.msra.mxu0 0.0
      %4237 = vmatprep.subr.mxu0 0.0
      %4238 = vmatpush1.msra.mxu0 0.0
      %4239 = vmatprep.subr.mxu0 0.0
      %4240 = vmatpush1.msra.mxu0 0.0
      %4241 = vmatprep.subr.mxu0 0.0
      %4242 = vmatpush1.msra.mxu0 0.0
      %4243 = vmatprep.subr.mxu0 0.0
      %4244 = vmatpush1.msra.mxu0 0.0
      %4245 = vmatprep.subr.mxu0 0.0
      %4246 = vmatpush1.msra.mxu0 0.0
      %4247 = vmatprep.subr.mxu0 0.0
      %4248 = vmatpush1.msra.mxu0 0.0
      %4249 = vmatprep.subr.mxu0 0.0
      %4250 = vmatpush1.msra.mxu0 0.0
      %4251 = vmatprep.subr.mxu0 0.0
      %4252 = vmatpush1.msra.mxu0 0.0
      %4253 = vmatprep.subr.mxu0 0.0
      %4254 = vmatpush1.msra.mxu0 0.0
      %4255 = vmatprep.subr.mxu0 0.0
      %4256 = vmatpush1.msra.mxu0 0.0
      %4257 = vmatprep.subr.mxu0 0.0
      %4258 = vmatpush1.msra.mxu0 0.0
      %4259 = vmatprep.subr.mxu0 0.0
      %4260 = vmatpush1.msra.mxu0 0.0
      %4261 = vmatprep.subr.mxu0 0.0
      %4262 = vmatpush1.msra.mxu0 0.0
      %4263 = vmatprep.subr.mxu0 0.0
      %4264 = vmatpush1.msra.mxu0 0.0
      %4265 = vmatprep.subr.mxu0 0.0
      %4266 = vmatpush1.msra.mxu0 0.0
      %4267 = vmatprep.subr.mxu0 0.0
      %4268 = vmatpush1.msra.mxu0 0.0
      %4269 = vmatprep.subr.mxu0 0.0
      %4270 = vmatpush1.msra.mxu0 0.0
      %4271 = vmatprep.subr.mxu0 0.0
      %4272 = vmatpush1.msra.mxu0 0.0
      %4273 = vmatprep.subr.mxu0 0.0
      %4274 = vmatpush1.msra.mxu0 0.0
      %4275 = vmatprep.subr.mxu0 0.0
      %4276 = vmatpush1.msra.mxu0 0.0
      %4277 = vmatprep.subr.mxu0 0.0
      %4278 = vmatpush1.msra.mxu0 0.0
      %4279 = vmatprep.subr.mxu0 0.0
      %4280 = vmatpush1.msra.mxu0 0.0
      %4281 = vmatprep.subr.mxu0 0.0
      %4282 = vmatpush1.msra.mxu0 0.0
      %4283 = vmatprep.subr.mxu0 0.0
      %4284 = vmatpush1.msra.mxu0 0.0
      %4285 = vmatprep.subr.mxu0 0.0
      %4286 = vmatpush1.msra.mxu0 0.0
      %4287 = vmatprep.subr.mxu0 0.0
      %4288 = vmatpush1.msra.mxu0 0.0
      %4289 = vmatprep.subr.mxu0 0.0
      %4290 = vmatpush1.msra.mxu0 0.0
      %4291 = vmatprep.mubr.f32.mxu0 0.0
      %4292 = vmatmul.mubr.f32.gmra.mrb[0].mxu0 %v4225
      %v4293 = vpop.f32.mrb[0].mxu0
      %v4294 = vadd.f32 0.0, %v4293
      %v4295 = vpop.f32.mrb[0].mxu0
      %v4296 = vadd.f32 0.0, %v4295
      %4297 = vdwg.mxu0
      %v4298 = vadd.f32 %v4204, %v4294
      %v4299 = vadd.f32 %v4205, %v4296
      %v4300 = vmul.f32 %v4109, %v1495
      %v4301 = vmul.f32 %v4110, %v1498
      %v4302 = vmul.f32 %v4111, %v1497
      %s4303 = scalar_lea.vmem %s2, 320
      %v4304 = vld [vmem:[%s4303] sm:$0xff]
      %4308 = vrot.lane.b32.xlu0 %v4300, 125
      %v4309 = vpop.permute.xlu0 %4308
      %4310 = vrot.lane.b32.xlu0 %v4301, 125
      %v4311 = vpop.permute.xlu0 %4310
      %4312 = vrot.lane.b32.xlu0 %v4302, 125
      %v4313 = vpop.permute.xlu0 %4312
      %v4314 = vsel %vm1313, %v4309, %v4311
      %v4315 = vsel %vm1313, %v4311, %v4313
      %v4319 = vsel %vm440, %v4304, 0
      %4321 = vmatprep.subr.mxu0 %v4315
      %4322 = vmatpush1.msra.mxu0 %v4314
      %4323 = vmatprep.subr.mxu0 0.0
      %4324 = vmatpush1.msra.mxu0 0.0
      %4325 = vmatprep.subr.mxu0 0.0
      %4326 = vmatpush1.msra.mxu0 0.0
      %4327 = vmatprep.subr.mxu0 0.0
      %4328 = vmatpush1.msra.mxu0 0.0
      %4329 = vmatprep.subr.mxu0 0.0
      %4330 = vmatpush1.msra.mxu0 0.0
      %4331 = vmatprep.subr.mxu0 0.0
      %4332 = vmatpush1.msra.mxu0 0.0
      %4333 = vmatprep.subr.mxu0 0.0
      %4334 = vmatpush1.msra.mxu0 0.0
      %4335 = vmatprep.subr.mxu0 0.0
      %4336 = vmatpush1.msra.mxu0 0.0
      %4337 = vmatprep.subr.mxu0 0.0
      %4338 = vmatpush1.msra.mxu0 0.0
      %4339 = vmatprep.subr.mxu0 0.0
      %4340 = vmatpush1.msra.mxu0 0.0
      %4341 = vmatprep.subr.mxu0 0.0
      %4342 = vmatpush1.msra.mxu0 0.0
      %4343 = vmatprep.subr.mxu0 0.0
      %4344 = vmatpush1.msra.mxu0 0.0
      %4345 = vmatprep.subr.mxu0 0.0
      %4346 = vmatpush1.msra.mxu0 0.0
      %4347 = vmatprep.subr.mxu0 0.0
      %4348 = vmatpush1.msra.mxu0 0.0
      %4349 = vmatprep.subr.mxu0 0.0
      %4350 = vmatpush1.msra.mxu0 0.0
      %4351 = vmatprep.subr.mxu0 0.0
      %4352 = vmatpush1.msra.mxu0 0.0
      %4353 = vmatprep.subr.mxu0 0.0
      %4354 = vmatpush1.msra.mxu0 0.0
      %4355 = vmatprep.subr.mxu0 0.0
      %4356 = vmatpush1.msra.mxu0 0.0
      %4357 = vmatprep.subr.mxu0 0.0
      %4358 = vmatpush1.msra.mxu0 0.0
      %4359 = vmatprep.subr.mxu0 0.0
      %4360 = vmatpush1.msra.mxu0 0.0
      %4361 = vmatprep.subr.mxu0 0.0
      %4362 = vmatpush1.msra.mxu0 0.0
      %4363 = vmatprep.subr.mxu0 0.0
      %4364 = vmatpush1.msra.mxu0 0.0
      %4365 = vmatprep.subr.mxu0 0.0
      %4366 = vmatpush1.msra.mxu0 0.0
      %4367 = vmatprep.subr.mxu0 0.0
      %4368 = vmatpush1.msra.mxu0 0.0
      %4369 = vmatprep.subr.mxu0 0.0
      %4370 = vmatpush1.msra.mxu0 0.0
      %4371 = vmatprep.subr.mxu0 0.0
      %4372 = vmatpush1.msra.mxu0 0.0
      %4373 = vmatprep.subr.mxu0 0.0
      %4374 = vmatpush1.msra.mxu0 0.0
      %4375 = vmatprep.subr.mxu0 0.0
      %4376 = vmatpush1.msra.mxu0 0.0
      %4377 = vmatprep.subr.mxu0 0.0
      %4378 = vmatpush1.msra.mxu0 0.0
      %4379 = vmatprep.subr.mxu0 0.0
      %4380 = vmatpush1.msra.mxu0 0.0
      %4381 = vmatprep.subr.mxu0 0.0
      %4382 = vmatpush1.msra.mxu0 0.0
      %4383 = vmatprep.subr.mxu0 0.0
      %4384 = vmatpush1.msra.mxu0 0.0
      %4385 = vmatprep.mubr.f32.mxu0 0.0
      %4386 = vmatmul.mubr.f32.gmra.mrb[0].mxu0 %v4319
      %v4387 = vpop.f32.mrb[0].mxu0
      %v4388 = vadd.f32 0.0, %v4387
      %v4389 = vpop.f32.mrb[0].mxu0
      %v4390 = vadd.f32 0.0, %v4389
      %4391 = vdwg.mxu0
      %v4392 = vadd.f32 %v4298, %v4388
      %v4393 = vadd.f32 %v4299, %v4390
      %v4394 = vld [vmem:[%s4 + $0x58] sm:$0xff]
      %4396 = vset.pattern.permute.xlu0 0
      %4397 = vperm.xlu0 %4396, %v4394
      %v4398 = vpop.permute.xlu0 %4397
      %v4400 = vadd.f32 %v4392, %v4398
      %v4401 = vadd.f32 %v4393, %v4398
      %4402 = vst [vmem:[#allocation2 + $0x8] sm:$0xff] %v4400
      %4403 = vst [vmem:[#allocation2 + $0x10] sm:$0xff] %v4401
      %v4404 = vld [vmem:[#allocation2] sm:$0xff]
      %v4405 = vld [vmem:[#allocation2 + $0x8] sm:$0xff]
      %v4406 = vld [vmem:[#allocation2 + $0x10] sm:$0xff]
      %s4407 = scalar_lea.vmem %s2, 328
      %v4408 = vld [vmem:[%s4407] sm:$0xff]
      %s4409 = scalar_lea.vmem %s2, 336
      %v4410 = vld [vmem:[%s4409] sm:$0xff]
      %4414 = vrot.lane.b32.xlu0 %v4404, 32
      %v4415 = vpop.permute.xlu0 %4414
      %4416 = vrot.lane.b32.xlu0 %v4405, 32
      %v4417 = vpop.permute.xlu0 %4416
      %4418 = vrot.lane.b32.xlu0 %v4406, 32
      %v4419 = vpop.permute.xlu0 %4418
      %v4420 = vsel %vm2498, %v4415, %v4417
      %v4421 = vsel %vm2498, %v4417, %v4419
      %v4425 = vsel %vm440, %v4410, 0
      %4427 = vmatprep.subr.mxu0 %v4421
      %4428 = vmatpush1.msra.mxu0 %v4420
      %4429 = vmatprep.subr.mxu0 0.0
      %4430 = vmatpush1.msra.mxu0 0.0
      %4431 = vmatprep.subr.mxu0 0.0
      %4432 = vmatpush1.msra.mxu0 0.0
      %4433 = vmatprep.subr.mxu0 0.0
      %4434 = vmatpush1.msra.mxu0 0.0
      %4435 = vmatprep.subr.mxu0 0.0
      %4436 = vmatpush1.msra.mxu0 0.0
      %4437 = vmatprep.subr.mxu0 0.0
      %4438 = vmatpush1.msra.mxu0 0.0
      %4439 = vmatprep.subr.mxu0 0.0
      %4440 = vmatpush1.msra.mxu0 0.0
      %4441 = vmatprep.subr.mxu0 0.0
      %4442 = vmatpush1.msra.mxu0 0.0
      %4443 = vmatprep.subr.mxu0 0.0
      %4444 = vmatpush1.msra.mxu0 0.0
      %4445 = vmatprep.subr.mxu0 0.0
      %4446 = vmatpush1.msra.mxu0 0.0
      %4447 = vmatprep.subr.mxu0 0.0
      %4448 = vmatpush1.msra.mxu0 0.0
      %4449 = vmatprep.subr.mxu0 0.0
      %4450 = vmatpush1.msra.mxu0 0.0
      %4451 = vmatprep.subr.mxu0 0.0
      %4452 = vmatpush1.msra.mxu0 0.0
      %4453 = vmatprep.subr.mxu0 0.0
      %4454 = vmatpush1.msra.mxu0 0.0
      %4455 = vmatprep.subr.mxu0 0.0
      %4456 = vmatpush1.msra.mxu0 0.0
      %4457 = vmatprep.subr.mxu0 0.0
      %4458 = vmatpush1.msra.mxu0 0.0
      %4459 = vmatprep.subr.mxu0 0.0
      %4460 = vmatpush1.msra.mxu0 0.0
      %4461 = vmatprep.subr.mxu0 0.0
      %4462 = vmatpush1.msra.mxu0 0.0
      %4463 = vmatprep.subr.mxu0 0.0
      %4464 = vmatpush1.msra.mxu0 0.0
      %4465 = vmatprep.subr.mxu0 0.0
      %4466 = vmatpush1.msra.mxu0 0.0
      %4467 = vmatprep.subr.mxu0 0.0
      %4468 = vmatpush1.msra.mxu0 0.0
      %4469 = vmatprep.subr.mxu0 0.0
      %4470 = vmatpush1.msra.mxu0 0.0
      %4471 = vmatprep.subr.mxu0 0.0
      %4472 = vmatpush1.msra.mxu0 0.0
      %4473 = vmatprep.subr.mxu0 0.0
      %4474 = vmatpush1.msra.mxu0 0.0
      %4475 = vmatprep.subr.mxu0 0.0
      %4476 = vmatpush1.msra.mxu0 0.0
      %4477 = vmatprep.subr.mxu0 0.0
      %4478 = vmatpush1.msra.mxu0 0.0
      %4479 = vmatprep.subr.mxu0 0.0
      %4480 = vmatpush1.msra.mxu0 0.0
      %4481 = vmatprep.subr.mxu0 0.0
      %4482 = vmatpush1.msra.mxu0 0.0
      %4483 = vmatprep.subr.mxu0 0.0
      %4484 = vmatpush1.msra.mxu0 0.0
      %4485 = vmatprep.subr.mxu0 0.0
      %4486 = vmatpush1.msra.mxu0 0.0
      %4487 = vmatprep.subr.mxu0 0.0
      %4488 = vmatpush1.msra.mxu0 0.0
      %4489 = vmatprep.subr.mxu0 0.0
      %4490 = vmatpush1.msra.mxu0 0.0
      %4491 = vmatprep.mubr.f32.mxu0 0.0
      %4492 = vmatmul.mubr.f32.gmra.mrb[0].mxu0 %v4425
      %v4493 = vpop.f32.mrb[0].mxu0
      %v4494 = vadd.f32 0.0, %v4493
      %v4495 = vpop.f32.mrb[0].mxu0
      %v4496 = vadd.f32 0.0, %v4495
      %4497 = vdwg.mxu0
      %4498 = vrot.lane.b32.xlu0 %v4404, 48
      %v4499 = vpop.permute.xlu0 %4498
      %4500 = vrot.lane.b32.xlu0 %v4405, 48
      %v4501 = vpop.permute.xlu0 %4500
      %4502 = vrot.lane.b32.xlu0 %v4406, 48
      %v4503 = vpop.permute.xlu0 %4502
      %v4504 = vsel %vm1032, %v4499, %v4501
      %v4505 = vsel %vm1032, %v4501, %v4503
      %v4509 = vsel %vm440, %v4408, 0
      %4511 = vmatprep.subr.mxu0 %v4505
      %4512 = vmatpush1.msra.mxu0 %v4504
      %4513 = vmatprep.subr.mxu0 0.0
      %4514 = vmatpush1.msra.mxu0 0.0
      %4515 = vmatprep.subr.mxu0 0.0
      %4516 = vmatpush1.msra.mxu0 0.0
      %4517 = vmatprep.subr.mxu0 0.0
      %4518 = vmatpush1.msra.mxu0 0.0
      %4519 = vmatprep.subr.mxu0 0.0
      %4520 = vmatpush1.msra.mxu0 0.0
      %4521 = vmatprep.subr.mxu0 0.0
      %4522 = vmatpush1.msra.mxu0 0.0
      %4523 = vmatprep.subr.mxu0 0.0
      %4524 = vmatpush1.msra.mxu0 0.0
      %4525 = vmatprep.subr.mxu0 0.0
      %4526 = vmatpush1.msra.mxu0 0.0
      %4527 = vmatprep.subr.mxu0 0.0
      %4528 = vmatpush1.msra.mxu0 0.0
      %4529 = vmatprep.subr.mxu0 0.0
      %4530 = vmatpush1.msra.mxu0 0.0
      %4531 = vmatprep.subr.mxu0 0.0
      %4532 = vmatpush1.msra.mxu0 0.0
      %4533 = vmatprep.subr.mxu0 0.0
      %4534 = vmatpush1.msra.mxu0 0.0
      %4535 = vmatprep.subr.mxu0 0.0
      %4536 = vmatpush1.msra.mxu0 0.0
      %4537 = vmatprep.subr.mxu0 0.0
      %4538 = vmatpush1.msra.mxu0 0.0
      %4539 = vmatprep.subr.mxu0 0.0
      %4540 = vmatpush1.msra.mxu0 0.0
      %4541 = vmatprep.subr.mxu0 0.0
      %4542 = vmatpush1.msra.mxu0 0.0
      %4543 = vmatprep.subr.mxu0 0.0
      %4544 = vmatpush1.msra.mxu0 0.0
      %4545 = vmatprep.subr.mxu0 0.0
      %4546 = vmatpush1.msra.mxu0 0.0
      %4547 = vmatprep.subr.mxu0 0.0
      %4548 = vmatpush1.msra.mxu0 0.0
      %4549 = vmatprep.subr.mxu0 0.0
      %4550 = vmatpush1.msra.mxu0 0.0
      %4551 = vmatprep.subr.mxu0 0.0
      %4552 = vmatpush1.msra.mxu0 0.0
      %4553 = vmatprep.subr.mxu0 0.0
      %4554 = vmatpush1.msra.mxu0 0.0
      %4555 = vmatprep.subr.mxu0 0.0
      %4556 = vmatpush1.msra.mxu0 0.0
      %4557 = vmatprep.subr.mxu0 0.0
      %4558 = vmatpush1.msra.mxu0 0.0
      %4559 = vmatprep.subr.mxu0 0.0
      %4560 = vmatpush1.msra.mxu0 0.0
      %4561 = vmatprep.subr.mxu0 0.0
      %4562 = vmatpush1.msra.mxu0 0.0
      %4563 = vmatprep.subr.mxu0 0.0
      %4564 = vmatpush1.msra.mxu0 0.0
      %4565 = vmatprep.subr.mxu0 0.0
      %4566 = vmatpush1.msra.mxu0 0.0
      %4567 = vmatprep.subr.mxu0 0.0
      %4568 = vmatpush1.msra.mxu0 0.0
      %4569 = vmatprep.subr.mxu0 0.0
      %4570 = vmatpush1.msra.mxu0 0.0
      %4571 = vmatprep.subr.mxu0 0.0
      %4572 = vmatpush1.msra.mxu0 0.0
      %4573 = vmatprep.subr.mxu0 0.0
      %4574 = vmatpush1.msra.mxu0 0.0
      %4575 = vmatprep.mubr.f32.mxu0 0.0
      %4576 = vmatmul.mubr.f32.gmra.mrb[0].mxu0 %v4509
      %v4577 = vpop.f32.mrb[0].mxu0
      %v4578 = vadd.f32 %v4494, %v4577
      %v4579 = vpop.f32.mrb[0].mxu0
      %v4580 = vadd.f32 %v4496, %v4579
      %4581 = vdwg.mxu0
      %s4582 = scalar_lea.vmem %s2, 344
      %v4583 = vld [vmem:[%s4582] sm:$0xff]
      %4584 = vrot.lane.b32.xlu0 %v4404, 16
      %v4585 = vpop.permute.xlu0 %4584
      %4586 = vrot.lane.b32.xlu0 %v4405, 16
      %v4587 = vpop.permute.xlu0 %4586
      %4588 = vrot.lane.b32.xlu0 %v4406, 16
      %v4589 = vpop.permute.xlu0 %4588
      %v4590 = vsel %vm814, %v4585, %v4587
      %v4591 = vsel %vm814, %v4587, %v4589
      %v4595 = vsel %vm440, %v4583, 0
      %4597 = vmatprep.subr.mxu0 %v4591
      %4598 = vmatpush1.msra.mxu0 %v4590
      %4599 = vmatprep.subr.mxu0 0.0
      %4600 = vmatpush1.msra.mxu0 0.0
      %4601 = vmatprep.subr.mxu0 0.0
      %4602 = vmatpush1.msra.mxu0 0.0
      %4603 = vmatprep.subr.mxu0 0.0
      %4604 = vmatpush1.msra.mxu0 0.0
      %4605 = vmatprep.subr.mxu0 0.0
      %4606 = vmatpush1.msra.mxu0 0.0
      %4607 = vmatprep.subr.mxu0 0.0
      %4608 = vmatpush1.msra.mxu0 0.0
      %4609 = vmatprep.subr.mxu0 0.0
      %4610 = vmatpush1.msra.mxu0 0.0
      %4611 = vmatprep.subr.mxu0 0.0
      %4612 = vmatpush1.msra.mxu0 0.0
      %4613 = vmatprep.subr.mxu0 0.0
      %4614 = vmatpush1.msra.mxu0 0.0
      %4615 = vmatprep.subr.mxu0 0.0
      %4616 = vmatpush1.msra.mxu0 0.0
      %4617 = vmatprep.subr.mxu0 0.0
      %4618 = vmatpush1.msra.mxu0 0.0
      %4619 = vmatprep.subr.mxu0 0.0
      %4620 = vmatpush1.msra.mxu0 0.0
      %4621 = vmatprep.subr.mxu0 0.0
      %4622 = vmatpush1.msra.mxu0 0.0
      %4623 = vmatprep.subr.mxu0 0.0
      %4624 = vmatpush1.msra.mxu0 0.0
      %4625 = vmatprep.subr.mxu0 0.0
      %4626 = vmatpush1.msra.mxu0 0.0
      %4627 = vmatprep.subr.mxu0 0.0
      %4628 = vmatpush1.msra.mxu0 0.0
      %4629 = vmatprep.subr.mxu0 0.0
      %4630 = vmatpush1.msra.mxu0 0.0
      %4631 = vmatprep.subr.mxu0 0.0
      %4632 = vmatpush1.msra.mxu0 0.0
      %4633 = vmatprep.subr.mxu0 0.0
      %4634 = vmatpush1.msra.mxu0 0.0
      %4635 = vmatprep.subr.mxu0 0.0
      %4636 = vmatpush1.msra.mxu0 0.0
      %4637 = vmatprep.subr.mxu0 0.0
      %4638 = vmatpush1.msra.mxu0 0.0
      %4639 = vmatprep.subr.mxu0 0.0
      %4640 = vmatpush1.msra.mxu0 0.0
      %4641 = vmatprep.subr.mxu0 0.0
      %4642 = vmatpush1.msra.mxu0 0.0
      %4643 = vmatprep.subr.mxu0 0.0
      %4644 = vmatpush1.msra.mxu0 0.0
      %4645 = vmatprep.subr.mxu0 0.0
      %4646 = vmatpush1.msra.mxu0 0.0
      %4647 = vmatprep.subr.mxu0 0.0
      %4648 = vmatpush1.msra.mxu0 0.0
      %4649 = vmatprep.subr.mxu0 0.0
      %4650 = vmatpush1.msra.mxu0 0.0
      %4651 = vmatprep.subr.mxu0 0.0
      %4652 = vmatpush1.msra.mxu0 0.0
      %4653 = vmatprep.subr.mxu0 0.0
      %4654 = vmatpush1.msra.mxu0 0.0
      %4655 = vmatprep.subr.mxu0 0.0
      %4656 = vmatpush1.msra.mxu0 0.0
      %4657 = vmatprep.subr.mxu0 0.0
      %4658 = vmatpush1.msra.mxu0 0.0
      %4659 = vmatprep.subr.mxu0 0.0
      %4660 = vmatpush1.msra.mxu0 0.0
      %4661 = vmatprep.mubr.f32.mxu0 0.0
      %4662 = vmatmul.mubr.f32.gmra.mrb[0].mxu0 %v4595
      %v4663 = vpop.f32.mrb[0].mxu0
      %v4664 = vadd.f32 0.0, %v4663
      %v4665 = vpop.f32.mrb[0].mxu0
      %v4666 = vadd.f32 0.0, %v4665
      %4667 = vdwg.mxu0
      %v4668 = vadd.f32 %v4578, %v4664
      %v4669 = vadd.f32 %v4580, %v4666
      %s4670 = scalar_lea.vmem %s2, 352
      %v4671 = vld [vmem:[%s4670] sm:$0xff]
      %v4673 = vsel %vm440, %v4671, 0
      %4675 = vmatprep.subr.mxu0 %v4406
      %4676 = vmatpush1.msra.mxu0 %v4405
      %4677 = vmatprep.subr.mxu0 0.0
      %4678 = vmatpush1.msra.mxu0 0.0
      %4679 = vmatprep.subr.mxu0 0.0
      %4680 = vmatpush1.msra.mxu0 0.0
      %4681 = vmatprep.subr.mxu0 0.0
      %4682 = vmatpush1.msra.mxu0 0.0
      %4683 = vmatprep.subr.mxu0 0.0
      %4684 = vmatpush1.msra.mxu0 0.0
      %4685 = vmatprep.subr.mxu0 0.0
      %4686 = vmatpush1.msra.mxu0 0.0
      %4687 = vmatprep.subr.mxu0 0.0
      %4688 = vmatpush1.msra.mxu0 0.0
      %4689 = vmatprep.subr.mxu0 0.0
      %4690 = vmatpush1.msra.mxu0 0.0
      %4691 = vmatprep.subr.mxu0 0.0
      %4692 = vmatpush1.msra.mxu0 0.0
      %4693 = vmatprep.subr.mxu0 0.0
      %4694 = vmatpush1.msra.mxu0 0.0
      %4695 = vmatprep.subr.mxu0 0.0
      %4696 = vmatpush1.msra.mxu0 0.0
      %4697 = vmatprep.subr.mxu0 0.0
      %4698 = vmatpush1.msra.mxu0 0.0
      %4699 = vmatprep.subr.mxu0 0.0
      %4700 = vmatpush1.msra.mxu0 0.0
      %4701 = vmatprep.subr.mxu0 0.0
      %4702 = vmatpush1.msra.mxu0 0.0
      %4703 = vmatprep.subr.mxu0 0.0
      %4704 = vmatpush1.msra.mxu0 0.0
      %4705 = vmatprep.subr.mxu0 0.0
      %4706 = vmatpush1.msra.mxu0 0.0
      %4707 = vmatprep.subr.mxu0 0.0
      %4708 = vmatpush1.msra.mxu0 0.0
      %4709 = vmatprep.subr.mxu0 0.0
      %4710 = vmatpush1.msra.mxu0 0.0
      %4711 = vmatprep.subr.mxu0 0.0
      %4712 = vmatpush1.msra.mxu0 0.0
      %4713 = vmatprep.subr.mxu0 0.0
      %4714 = vmatpush1.msra.mxu0 0.0
      %4715 = vmatprep.subr.mxu0 0.0
      %4716 = vmatpush1.msra.mxu0 0.0
      %4717 = vmatprep.subr.mxu0 0.0
      %4718 = vmatpush1.msra.mxu0 0.0
      %4719 = vmatprep.subr.mxu0 0.0
      %4720 = vmatpush1.msra.mxu0 0.0
      %4721 = vmatprep.subr.mxu0 0.0
      %4722 = vmatpush1.msra.mxu0 0.0
      %4723 = vmatprep.subr.mxu0 0.0
      %4724 = vmatpush1.msra.mxu0 0.0
      %4725 = vmatprep.subr.mxu0 0.0
      %4726 = vmatpush1.msra.mxu0 0.0
      %4727 = vmatprep.subr.mxu0 0.0
      %4728 = vmatpush1.msra.mxu0 0.0
      %4729 = vmatprep.subr.mxu0 0.0
      %4730 = vmatpush1.msra.mxu0 0.0
      %4731 = vmatprep.subr.mxu0 0.0
      %4732 = vmatpush1.msra.mxu0 0.0
      %4733 = vmatprep.subr.mxu0 0.0
      %4734 = vmatpush1.msra.mxu0 0.0
      %4735 = vmatprep.subr.mxu0 0.0
      %4736 = vmatpush1.msra.mxu0 0.0
      %4737 = vmatprep.subr.mxu0 0.0
      %4738 = vmatpush1.msra.mxu0 0.0
      %4739 = vmatprep.mubr.f32.mxu0 0.0
      %4740 = vmatmul.mubr.f32.gmra.mrb[0].mxu0 %v4673
      %v4741 = vpop.f32.mrb[0].mxu0
      %v4742 = vadd.f32 0.0, %v4741
      %v4743 = vpop.f32.mrb[0].mxu0
      %v4744 = vadd.f32 0.0, %v4743
      %4745 = vdwg.mxu0
      %v4746 = vadd.f32 %v4668, %v4742
      %v4747 = vadd.f32 %v4669, %v4744
      %v4748 = vld [vmem:[#allocation2 + $0x8] sm:$0xff]
      %v4749 = vld [vmem:[#allocation2 + $0x10] sm:$0xff]
      %v4750 = vld [vmem:[#allocation2 + $0x18] sm:$0xff]
      %s4751 = scalar_lea.vmem %s2, 360
      %v4752 = vld [vmem:[%s4751] sm:$0xff]
      %4756 = vrot.lane.b32.xlu0 %v4748, 112
      %v4757 = vpop.permute.xlu0 %4756
      %4758 = vrot.lane.b32.xlu0 %v4749, 112
      %v4759 = vpop.permute.xlu0 %4758
      %4760 = vrot.lane.b32.xlu0 %v4750, 112
      %v4761 = vpop.permute.xlu0 %4760
      %v4762 = vsel %vm907, %v4757, %v4759
      %v4763 = vsel %vm907, %v4759, %v4761
      %v4767 = vsel %vm440, %v4752, 0
      %4769 = vmatprep.subr.mxu0 %v4763
      %4770 = vmatpush1.msra.mxu0 %v4762
      %4771 = vmatprep.subr.mxu0 0.0
      %4772 = vmatpush1.msra.mxu0 0.0
      %4773 = vmatprep.subr.mxu0 0.0
      %4774 = vmatpush1.msra.mxu0 0.0
      %4775 = vmatprep.subr.mxu0 0.0
      %4776 = vmatpush1.msra.mxu0 0.0
      %4777 = vmatprep.subr.mxu0 0.0
      %4778 = vmatpush1.msra.mxu0 0.0
      %4779 = vmatprep.subr.mxu0 0.0
      %4780 = vmatpush1.msra.mxu0 0.0
      %4781 = vmatprep.subr.mxu0 0.0
      %4782 = vmatpush1.msra.mxu0 0.0
      %4783 = vmatprep.subr.mxu0 0.0
      %4784 = vmatpush1.msra.mxu0 0.0
      %4785 = vmatprep.subr.mxu0 0.0
      %4786 = vmatpush1.msra.mxu0 0.0
      %4787 = vmatprep.subr.mxu0 0.0
      %4788 = vmatpush1.msra.mxu0 0.0
      %4789 = vmatprep.subr.mxu0 0.0
      %4790 = vmatpush1.msra.mxu0 0.0
      %4791 = vmatprep.subr.mxu0 0.0
      %4792 = vmatpush1.msra.mxu0 0.0
      %4793 = vmatprep.subr.mxu0 0.0
      %4794 = vmatpush1.msra.mxu0 0.0
      %4795 = vmatprep.subr.mxu0 0.0
      %4796 = vmatpush1.msra.mxu0 0.0
      %4797 = vmatprep.subr.mxu0 0.0
      %4798 = vmatpush1.msra.mxu0 0.0
      %4799 = vmatprep.subr.mxu0 0.0
      %4800 = vmatpush1.msra.mxu0 0.0
      %4801 = vmatprep.subr.mxu0 0.0
      %4802 = vmatpush1.msra.mxu0 0.0
      %4803 = vmatprep.subr.mxu0 0.0
      %4804 = vmatpush1.msra.mxu0 0.0
      %4805 = vmatprep.subr.mxu0 0.0
      %4806 = vmatpush1.msra.mxu0 0.0
      %4807 = vmatprep.subr.mxu0 0.0
      %4808 = vmatpush1.msra.mxu0 0.0
      %4809 = vmatprep.subr.mxu0 0.0
      %4810 = vmatpush1.msra.mxu0 0.0
      %4811 = vmatprep.subr.mxu0 0.0
      %4812 = vmatpush1.msra.mxu0 0.0
      %4813 = vmatprep.subr.mxu0 0.0
      %4814 = vmatpush1.msra.mxu0 0.0
      %4815 = vmatprep.subr.mxu0 0.0
      %4816 = vmatpush1.msra.mxu0 0.0
      %4817 = vmatprep.subr.mxu0 0.0
      %4818 = vmatpush1.msra.mxu0 0.0
      %4819 = vmatprep.subr.mxu0 0.0
      %4820 = vmatpush1.msra.mxu0 0.0
      %4821 = vmatprep.subr.mxu0 0.0
      %4822 = vmatpush1.msra.mxu0 0.0
      %4823 = vmatprep.subr.mxu0 0.0
      %4824 = vmatpush1.msra.mxu0 0.0
      %4825 = vmatprep.subr.mxu0 0.0
      %4826 = vmatpush1.msra.mxu0 0.0
      %4827 = vmatprep.subr.mxu0 0.0
      %4828 = vmatpush1.msra.mxu0 0.0
      %4829 = vmatprep.subr.mxu0 0.0
      %4830 = vmatpush1.msra.mxu0 0.0
      %4831 = vmatprep.subr.mxu0 0.0
      %4832 = vmatpush1.msra.mxu0 0.0
      %4833 = vmatprep.mubr.f32.mxu0 0.0
      %4834 = vmatmul.mubr.f32.gmra.mrb[0].mxu0 %v4767
      %v4835 = vpop.f32.mrb[0].mxu0
      %v4836 = vadd.f32 0.0, %v4835
      %v4837 = vpop.f32.mrb[0].mxu0
      %v4838 = vadd.f32 0.0, %v4837
      %4839 = vdwg.mxu0
      %v4840 = vadd.f32 %v4746, %v4836
      %v4841 = vadd.f32 %v4747, %v4838
      %s4842 = scalar_lea.vmem %s2, 368
      %v4843 = vld [vmem:[%s4842] sm:$0xff]
      %4844 = vrot.lane.b32.xlu0 %v4748, 96
      %v4845 = vpop.permute.xlu0 %4844
      %4846 = vrot.lane.b32.xlu0 %v4749, 96
      %v4847 = vpop.permute.xlu0 %4846
      %4848 = vrot.lane.b32.xlu0 %v4750, 96
      %v4849 = vpop.permute.xlu0 %4848
      %v4850 = vsel %vm2757, %v4845, %v4847
      %v4851 = vsel %vm2757, %v4847, %v4849
      %v4855 = vsel %vm440, %v4843, 0
      %4857 = vmatprep.subr.mxu0 %v4851
      %4858 = vmatpush1.msra.mxu0 %v4850
      %4859 = vmatprep.subr.mxu0 0.0
      %4860 = vmatpush1.msra.mxu0 0.0
      %4861 = vmatprep.subr.mxu0 0.0
      %4862 = vmatpush1.msra.mxu0 0.0
      %4863 = vmatprep.subr.mxu0 0.0
      %4864 = vmatpush1.msra.mxu0 0.0
      %4865 = vmatprep.subr.mxu0 0.0
      %4866 = vmatpush1.msra.mxu0 0.0
      %4867 = vmatprep.subr.mxu0 0.0
      %4868 = vmatpush1.msra.mxu0 0.0
      %4869 = vmatprep.subr.mxu0 0.0
      %4870 = vmatpush1.msra.mxu0 0.0
      %4871 = vmatprep.subr.mxu0 0.0
      %4872 = vmatpush1.msra.mxu0 0.0
      %4873 = vmatprep.subr.mxu0 0.0
      %4874 = vmatpush1.msra.mxu0 0.0
      %4875 = vmatprep.subr.mxu0 0.0
      %4876 = vmatpush1.msra.mxu0 0.0
      %4877 = vmatprep.subr.mxu0 0.0
      %4878 = vmatpush1.msra.mxu0 0.0
      %4879 = vmatprep.subr.mxu0 0.0
      %4880 = vmatpush1.msra.mxu0 0.0
      %4881 = vmatprep.subr.mxu0 0.0
      %4882 = vmatpush1.msra.mxu0 0.0
      %4883 = vmatprep.subr.mxu0 0.0
      %4884 = vmatpush1.msra.mxu0 0.0
      %4885 = vmatprep.subr.mxu0 0.0
      %4886 = vmatpush1.msra.mxu0 0.0
      %4887 = vmatprep.subr.mxu0 0.0
      %4888 = vmatpush1.msra.mxu0 0.0
      %4889 = vmatprep.subr.mxu0 0.0
      %4890 = vmatpush1.msra.mxu0 0.0
      %4891 = vmatprep.subr.mxu0 0.0
      %4892 = vmatpush1.msra.mxu0 0.0
      %4893 = vmatprep.subr.mxu0 0.0
      %4894 = vmatpush1.msra.mxu0 0.0
      %4895 = vmatprep.subr.mxu0 0.0
      %4896 = vmatpush1.msra.mxu0 0.0
      %4897 = vmatprep.subr.mxu0 0.0
      %4898 = vmatpush1.msra.mxu0 0.0
      %4899 = vmatprep.subr.mxu0 0.0
      %4900 = vmatpush1.msra.mxu0 0.0
      %4901 = vmatprep.subr.mxu0 0.0
      %4902 = vmatpush1.msra.mxu0 0.0
      %4903 = vmatprep.subr.mxu0 0.0
      %4904 = vmatpush1.msra.mxu0 0.0
      %4905 = vmatprep.subr.mxu0 0.0
      %4906 = vmatpush1.msra.mxu0 0.0
      %4907 = vmatprep.subr.mxu0 0.0
      %4908 = vmatpush1.msra.mxu0 0.0
      %4909 = vmatprep.subr.mxu0 0.0
      %4910 = vmatpush1.msra.mxu0 0.0
      %4911 = vmatprep.subr.mxu0 0.0
      %4912 = vmatpush1.msra.mxu0 0.0
      %4913 = vmatprep.subr.mxu0 0.0
      %4914 = vmatpush1.msra.mxu0 0.0
      %4915 = vmatprep.subr.mxu0 0.0
      %4916 = vmatpush1.msra.mxu0 0.0
      %4917 = vmatprep.subr.mxu0 0.0
      %4918 = vmatpush1.msra.mxu0 0.0
      %4919 = vmatprep.subr.mxu0 0.0
      %4920 = vmatpush1.msra.mxu0 0.0
      %4921 = vmatprep.mubr.f32.mxu0 0.0
      %4922 = vmatmul.mubr.f32.gmra.mrb[0].mxu0 %v4855
      %v4923 = vpop.f32.mrb[0].mxu0
      %v4924 = vadd.f32 0.0, %v4923
      %v4925 = vpop.f32.mrb[0].mxu0
      %v4926 = vadd.f32 0.0, %v4925
      %4927 = vdwg.mxu0
      %v4928 = vadd.f32 %v4840, %v4924
      %v4929 = vadd.f32 %v4841, %v4926
      %s4930 = scalar_lea.vmem %s2, 376
      %v4931 = vld [vmem:[%s4930] sm:$0xff]
      %4932 = vrot.lane.b32.xlu0 %v4748, 80
      %v4933 = vpop.permute.xlu0 %4932
      %4934 = vrot.lane.b32.xlu0 %v4749, 80
      %v4935 = vpop.permute.xlu0 %4934
      %4936 = vrot.lane.b32.xlu0 %v4750, 80
      %v4937 = vpop.permute.xlu0 %4936
      %v4938 = vsel %vm1709, %v4933, %v4935
      %v4939 = vsel %vm1709, %v4935, %v4937
      %v4943 = vsel %vm440, %v4931, 0
      %4945 = vmatprep.subr.mxu0 %v4939
      %4946 = vmatpush1.msra.mxu0 %v4938
      %4947 = vmatprep.subr.mxu0 0.0
      %4948 = vmatpush1.msra.mxu0 0.0
      %4949 = vmatprep.subr.mxu0 0.0
      %4950 = vmatpush1.msra.mxu0 0.0
      %4951 = vmatprep.subr.mxu0 0.0
      %4952 = vmatpush1.msra.mxu0 0.0
      %4953 = vmatprep.subr.mxu0 0.0
      %4954 = vmatpush1.msra.mxu0 0.0
      %4955 = vmatprep.subr.mxu0 0.0
      %4956 = vmatpush1.msra.mxu0 0.0
      %4957 = vmatprep.subr.mxu0 0.0
      %4958 = vmatpush1.msra.mxu0 0.0
      %4959 = vmatprep.subr.mxu0 0.0
      %4960 = vmatpush1.msra.mxu0 0.0
      %4961 = vmatprep.subr.mxu0 0.0
      %4962 = vmatpush1.msra.mxu0 0.0
      %4963 = vmatprep.subr.mxu0 0.0
      %4964 = vmatpush1.msra.mxu0 0.0
      %4965 = vmatprep.subr.mxu0 0.0
      %4966 = vmatpush1.msra.mxu0 0.0
      %4967 = vmatprep.subr.mxu0 0.0
      %4968 = vmatpush1.msra.mxu0 0.0
      %4969 = vmatprep.subr.mxu0 0.0
      %4970 = vmatpush1.msra.mxu0 0.0
      %4971 = vmatprep.subr.mxu0 0.0
      %4972 = vmatpush1.msra.mxu0 0.0
      %4973 = vmatprep.subr.mxu0 0.0
      %4974 = vmatpush1.msra.mxu0 0.0
      %4975 = vmatprep.subr.mxu0 0.0
      %4976 = vmatpush1.msra.mxu0 0.0
      %4977 = vmatprep.subr.mxu0 0.0
      %4978 = vmatpush1.msra.mxu0 0.0
      %4979 = vmatprep.subr.mxu0 0.0
      %4980 = vmatpush1.msra.mxu0 0.0
      %4981 = vmatprep.subr.mxu0 0.0
      %4982 = vmatpush1.msra.mxu0 0.0
      %4983 = vmatprep.subr.mxu0 0.0
      %4984 = vmatpush1.msra.mxu0 0.0
      %4985 = vmatprep.subr.mxu0 0.0
      %4986 = vmatpush1.msra.mxu0 0.0
      %4987 = vmatprep.subr.mxu0 0.0
      %4988 = vmatpush1.msra.mxu0 0.0
      %4989 = vmatprep.subr.mxu0 0.0
      %4990 = vmatpush1.msra.mxu0 0.0
      %4991 = vmatprep.subr.mxu0 0.0
      %4992 = vmatpush1.msra.mxu0 0.0
      %4993 = vmatprep.subr.mxu0 0.0
      %4994 = vmatpush1.msra.mxu0 0.0
      %4995 = vmatprep.subr.mxu0 0.0
      %4996 = vmatpush1.msra.mxu0 0.0
      %4997 = vmatprep.subr.mxu0 0.0
      %4998 = vmatpush1.msra.mxu0 0.0
      %4999 = vmatprep.subr.mxu0 0.0
      %5000 = vmatpush1.msra.mxu0 0.0
      %5001 = vmatprep.subr.mxu0 0.0
      %5002 = vmatpush1.msra.mxu0 0.0
      %5003 = vmatprep.subr.mxu0 0.0
      %5004 = vmatpush1.msra.mxu0 0.0
      %5005 = vmatprep.subr.mxu0 0.0
      %5006 = vmatpush1.msra.mxu0 0.0
      %5007 = vmatprep.subr.mxu0 0.0
      %5008 = vmatpush1.msra.mxu0 0.0
      %5009 = vmatprep.mubr.f32.mxu0 0.0
      %5010 = vmatmul.mubr.f32.gmra.mrb[0].mxu0 %v4943
      %v5011 = vpop.f32.mrb[0].mxu0
      %v5012 = vadd.f32 0.0, %v5011
      %v5013 = vpop.f32.mrb[0].mxu0
      %v5014 = vadd.f32 0.0, %v5013
      %5015 = vdwg.mxu0
      %v5016 = vadd.f32 %v4928, %v5012
      %v5017 = vadd.f32 %v4929, %v5014
      %v5018 = vld [vmem:[%s4 + $0x60] sm:$0xff]
      %5020 = vset.pattern.permute.xlu0 0
      %5021 = vperm.xlu0 %5020, %v5018
      %v5022 = vpop.permute.xlu0 %5021
      %v5024 = vadd.f32 %v5016, %v5022
      %v5025 = vadd.f32 %v5017, %v5022
      %5026 = vst [vmem:[#allocation2 + $0x8] sm:$0xff] %v5024
      %5027 = vst [vmem:[#allocation2 + $0x10] sm:$0xff] %v5025
      %v5028 = vld [vmem:[#allocation2] sm:$0xff]
      %v5029 = vld [vmem:[#allocation2 + $0x8] sm:$0xff]
      %v5030 = vld [vmem:[#allocation2 + $0x10] sm:$0xff]
      %vm5031 = vcmp.ge.s32.totalorder %v258, 7
      %vm5032 = vcmp.ge.s32.totalorder %v259, 7
      %v5033 = vsel %vm5031, 1.0, 0.0
      %v5034 = vsel %vm5032, 1.0, 0.0
      %5037 = vrot.lane.b32.xlu0 %v5033, 9
      %v5038 = vpop.permute.xlu0 %5037
      %5039 = vrot.lane.b32.xlu0 %v5034, 9
      %v5040 = vpop.permute.xlu0 %5039
      %vm5041 = vcmask 72704
      %v5042 = vsel %vm5041, %v5038, %v5040
      %v5046 = vmul.f32 %v5028, %v5038
      %v5047 = vmul.f32 %v5029, %v5042
      %v5048 = vmul.f32 %v5030, %v5040
      %s5049 = scalar_lea.vmem %s2, 384
      %v5050 = vld [vmem:[%s5049] sm:$0xff]
      %s5051 = scalar_lea.vmem %s2, 392
      %v5052 = vld [vmem:[%s5051] sm:$0xff]
      %5056 = vrot.lane.b32.xlu0 %v5028, 112
      %v5057 = vpop.permute.xlu0 %5056
      %5058 = vrot.lane.b32.xlu0 %v5029, 112
      %v5059 = vpop.permute.xlu0 %5058
      %5060 = vrot.lane.b32.xlu0 %v5030, 112
      %v5061 = vpop.permute.xlu0 %5060
      %v5062 = vsel %vm907, %v5057, %v5059
      %v5063 = vsel %vm907, %v5059, %v5061
      %v5067 = vsel %vm440, %v5052, 0
      %5069 = vmatprep.subr.mxu0 %v5063
      %5070 = vmatpush1.msra.mxu0 %v5062
      %5071 = vmatprep.subr.mxu0 0.0
      %5072 = vmatpush1.msra.mxu0 0.0
      %5073 = vmatprep.subr.mxu0 0.0
      %5074 = vmatpush1.msra.mxu0 0.0
      %5075 = vmatprep.subr.mxu0 0.0
      %5076 = vmatpush1.msra.mxu0 0.0
      %5077 = vmatprep.subr.mxu0 0.0
      %5078 = vmatpush1.msra.mxu0 0.0
      %5079 = vmatprep.subr.mxu0 0.0
      %5080 = vmatpush1.msra.mxu0 0.0
      %5081 = vmatprep.subr.mxu0 0.0
      %5082 = vmatpush1.msra.mxu0 0.0
      %5083 = vmatprep.subr.mxu0 0.0
      %5084 = vmatpush1.msra.mxu0 0.0
      %5085 = vmatprep.subr.mxu0 0.0
      %5086 = vmatpush1.msra.mxu0 0.0
      %5087 = vmatprep.subr.mxu0 0.0
      %5088 = vmatpush1.msra.mxu0 0.0
      %5089 = vmatprep.subr.mxu0 0.0
      %5090 = vmatpush1.msra.mxu0 0.0
      %5091 = vmatprep.subr.mxu0 0.0
      %5092 = vmatpush1.msra.mxu0 0.0
      %5093 = vmatprep.subr.mxu0 0.0
      %5094 = vmatpush1.msra.mxu0 0.0
      %5095 = vmatprep.subr.mxu0 0.0
      %5096 = vmatpush1.msra.mxu0 0.0
      %5097 = vmatprep.subr.mxu0 0.0
      %5098 = vmatpush1.msra.mxu0 0.0
      %5099 = vmatprep.subr.mxu0 0.0
      %5100 = vmatpush1.msra.mxu0 0.0
      %5101 = vmatprep.subr.mxu0 0.0
      %5102 = vmatpush1.msra.mxu0 0.0
      %5103 = vmatprep.subr.mxu0 0.0
      %5104 = vmatpush1.msra.mxu0 0.0
      %5105 = vmatprep.subr.mxu0 0.0
      %5106 = vmatpush1.msra.mxu0 0.0
      %5107 = vmatprep.subr.mxu0 0.0
      %5108 = vmatpush1.msra.mxu0 0.0
      %5109 = vmatprep.subr.mxu0 0.0
      %5110 = vmatpush1.msra.mxu0 0.0
      %5111 = vmatprep.subr.mxu0 0.0
      %5112 = vmatpush1.msra.mxu0 0.0
      %5113 = vmatprep.subr.mxu0 0.0
      %5114 = vmatpush1.msra.mxu0 0.0
      %5115 = vmatprep.subr.mxu0 0.0
      %5116 = vmatpush1.msra.mxu0 0.0
      %5117 = vmatprep.subr.mxu0 0.0
      %5118 = vmatpush1.msra.mxu0 0.0
      %5119 = vmatprep.subr.mxu0 0.0
      %5120 = vmatpush1.msra.mxu0 0.0
      %5121 = vmatprep.subr.mxu0 0.0
      %5122 = vmatpush1.msra.mxu0 0.0
      %5123 = vmatprep.subr.mxu0 0.0
      %5124 = vmatpush1.msra.mxu0 0.0
      %5125 = vmatprep.subr.mxu0 0.0
      %5126 = vmatpush1.msra.mxu0 0.0
      %5127 = vmatprep.subr.mxu0 0.0
      %5128 = vmatpush1.msra.mxu0 0.0
      %5129 = vmatprep.subr.mxu0 0.0
      %5130 = vmatpush1.msra.mxu0 0.0
      %5131 = vmatprep.subr.mxu0 0.0
      %5132 = vmatpush1.msra.mxu0 0.0
      %5133 = vmatprep.mubr.f32.mxu0 0.0
      %5134 = vmatmul.mubr.f32.gmra.mrb[0].mxu0 %v5067
      %v5135 = vpop.f32.mrb[0].mxu0
      %v5136 = vadd.f32 0.0, %v5135
      %v5137 = vpop.f32.mrb[0].mxu0
      %v5138 = vadd.f32 0.0, %v5137
      %5139 = vdwg.mxu0
      %5143 = vrot.lane.b32.xlu0 %v5046, 119
      %v5144 = vpop.permute.xlu0 %5143
      %5145 = vrot.lane.b32.xlu0 %v5047, 119
      %v5146 = vpop.permute.xlu0 %5145
      %5147 = vrot.lane.b32.xlu0 %v5048, 119
      %v5148 = vpop.permute.xlu0 %5147
      %vm5149 = vcmask 973824
      %v5150 = vsel %vm5149, %v5144, %v5146
      %v5151 = vsel %vm5149, %v5146, %v5148
      %v5155 = vsel %vm440, %v5050, 0
      %5157 = vmatprep.subr.mxu0 %v5151
      %5158 = vmatpush1.msra.mxu0 %v5150
      %5159 = vmatprep.subr.mxu0 0.0
      %5160 = vmatpush1.msra.mxu0 0.0
      %5161 = vmatprep.subr.mxu0 0.0
      %5162 = vmatpush1.msra.mxu0 0.0
      %5163 = vmatprep.subr.mxu0 0.0
      %5164 = vmatpush1.msra.mxu0 0.0
      %5165 = vmatprep.subr.mxu0 0.0
      %5166 = vmatpush1.msra.mxu0 0.0
      %5167 = vmatprep.subr.mxu0 0.0
      %5168 = vmatpush1.msra.mxu0 0.0
      %5169 = vmatprep.subr.mxu0 0.0
      %5170 = vmatpush1.msra.mxu0 0.0
      %5171 = vmatprep.subr.mxu0 0.0
      %5172 = vmatpush1.msra.mxu0 0.0
      %5173 = vmatprep.subr.mxu0 0.0
      %5174 = vmatpush1.msra.mxu0 0.0
      %5175 = vmatprep.subr.mxu0 0.0
      %5176 = vmatpush1.msra.mxu0 0.0
      %5177 = vmatprep.subr.mxu0 0.0
      %5178 = vmatpush1.msra.mxu0 0.0
      %5179 = vmatprep.subr.mxu0 0.0
      %5180 = vmatpush1.msra.mxu0 0.0
      %5181 = vmatprep.subr.mxu0 0.0
      %5182 = vmatpush1.msra.mxu0 0.0
      %5183 = vmatprep.subr.mxu0 0.0
      %5184 = vmatpush1.msra.mxu0 0.0
      %5185 = vmatprep.subr.mxu0 0.0
      %5186 = vmatpush1.msra.mxu0 0.0
      %5187 = vmatprep.subr.mxu0 0.0
      %5188 = vmatpush1.msra.mxu0 0.0
      %5189 = vmatprep.subr.mxu0 0.0
      %5190 = vmatpush1.msra.mxu0 0.0
      %5191 = vmatprep.subr.mxu0 0.0
      %5192 = vmatpush1.msra.mxu0 0.0
      %5193 = vmatprep.subr.mxu0 0.0
      %5194 = vmatpush1.msra.mxu0 0.0
      %5195 = vmatprep.subr.mxu0 0.0
      %5196 = vmatpush1.msra.mxu0 0.0
      %5197 = vmatprep.subr.mxu0 0.0
      %5198 = vmatpush1.msra.mxu0 0.0
      %5199 = vmatprep.subr.mxu0 0.0
      %5200 = vmatpush1.msra.mxu0 0.0
      %5201 = vmatprep.subr.mxu0 0.0
      %5202 = vmatpush1.msra.mxu0 0.0
      %5203 = vmatprep.subr.mxu0 0.0
      %5204 = vmatpush1.msra.mxu0 0.0
      %5205 = vmatprep.subr.mxu0 0.0
      %5206 = vmatpush1.msra.mxu0 0.0
      %5207 = vmatprep.subr.mxu0 0.0
      %5208 = vmatpush1.msra.mxu0 0.0
      %5209 = vmatprep.subr.mxu0 0.0
      %5210 = vmatpush1.msra.mxu0 0.0
      %5211 = vmatprep.subr.mxu0 0.0
      %5212 = vmatpush1.msra.mxu0 0.0
      %5213 = vmatprep.subr.mxu0 0.0
      %5214 = vmatpush1.msra.mxu0 0.0
      %5215 = vmatprep.subr.mxu0 0.0
      %5216 = vmatpush1.msra.mxu0 0.0
      %5217 = vmatprep.subr.mxu0 0.0
      %5218 = vmatpush1.msra.mxu0 0.0
      %5219 = vmatprep.subr.mxu0 0.0
      %5220 = vmatpush1.msra.mxu0 0.0
      %5221 = vmatprep.mubr.f32.mxu0 0.0
      %5222 = vmatmul.mubr.f32.gmra.mrb[0].mxu0 %v5155
      %v5223 = vpop.f32.mrb[0].mxu0
      %v5224 = vadd.f32 %v5136, %v5223
      %v5225 = vpop.f32.mrb[0].mxu0
      %v5226 = vadd.f32 %v5138, %v5225
      %5227 = vdwg.mxu0
      %vm5228 = vcmp.lt.s32.totalorder %v258, 9
      %vm5229 = vcmp.lt.s32.totalorder %v259, 9
      %v5230 = vsel %vm5228, 1.0, 0.0
      %v5231 = vsel %vm5229, 1.0, 0.0
      %5234 = vrot.lane.b32.xlu0 %v5230, 23
      %v5235 = vpop.permute.xlu0 %5234
      %5236 = vrot.lane.b32.xlu0 %v5231, 23
      %v5237 = vpop.permute.xlu0 %5236
      %vm5238 = vcmask 187392
      %v5239 = vsel %vm5238, %v5235, %v5237
      %v5243 = vmul.f32 %v5028, %v5235
      %v5244 = vmul.f32 %v5029, %v5239
      %v5245 = vmul.f32 %v5030, %v5237
      %s5246 = scalar_lea.vmem %s2, 400
      %v5247 = vld [vmem:[%s5246] sm:$0xff]
      %5251 = vrot.lane.b32.xlu0 %v5243, 105
      %v5252 = vpop.permute.xlu0 %5251
      %5253 = vrot.lane.b32.xlu0 %v5244, 105
      %v5254 = vpop.permute.xlu0 %5253
      %5255 = vrot.lane.b32.xlu0 %v5245, 105
      %v5256 = vpop.permute.xlu0 %5255
      %vm5257 = vcmask 859136
      %v5258 = vsel %vm5257, %v5252, %v5254
      %v5259 = vsel %vm5257, %v5254, %v5256
      %v5263 = vsel %vm440, %v5247, 0
      %5265 = vmatprep.subr.mxu0 %v5259
      %5266 = vmatpush1.msra.mxu0 %v5258
      %5267 = vmatprep.subr.mxu0 0.0
      %5268 = vmatpush1.msra.mxu0 0.0
      %5269 = vmatprep.subr.mxu0 0.0
      %5270 = vmatpush1.msra.mxu0 0.0
      %5271 = vmatprep.subr.mxu0 0.0
      %5272 = vmatpush1.msra.mxu0 0.0
      %5273 = vmatprep.subr.mxu0 0.0
      %5274 = vmatpush1.msra.mxu0 0.0
      %5275 = vmatprep.subr.mxu0 0.0
      %5276 = vmatpush1.msra.mxu0 0.0
      %5277 = vmatprep.subr.mxu0 0.0
      %5278 = vmatpush1.msra.mxu0 0.0
      %5279 = vmatprep.subr.mxu0 0.0
      %5280 = vmatpush1.msra.mxu0 0.0
      %5281 = vmatprep.subr.mxu0 0.0
      %5282 = vmatpush1.msra.mxu0 0.0
      %5283 = vmatprep.subr.mxu0 0.0
      %5284 = vmatpush1.msra.mxu0 0.0
      %5285 = vmatprep.subr.mxu0 0.0
      %5286 = vmatpush1.msra.mxu0 0.0
      %5287 = vmatprep.subr.mxu0 0.0
      %5288 = vmatpush1.msra.mxu0 0.0
      %5289 = vmatprep.subr.mxu0 0.0
      %5290 = vmatpush1.msra.mxu0 0.0
      %5291 = vmatprep.subr.mxu0 0.0
      %5292 = vmatpush1.msra.mxu0 0.0
      %5293 = vmatprep.subr.mxu0 0.0
      %5294 = vmatpush1.msra.mxu0 0.0
      %5295 = vmatprep.subr.mxu0 0.0
      %5296 = vmatpush1.msra.mxu0 0.0
      %5297 = vmatprep.subr.mxu0 0.0
      %5298 = vmatpush1.msra.mxu0 0.0
      %5299 = vmatprep.subr.mxu0 0.0
      %5300 = vmatpush1.msra.mxu0 0.0
      %5301 = vmatprep.subr.mxu0 0.0
      %5302 = vmatpush1.msra.mxu0 0.0
      %5303 = vmatprep.subr.mxu0 0.0
      %5304 = vmatpush1.msra.mxu0 0.0
      %5305 = vmatprep.subr.mxu0 0.0
      %5306 = vmatpush1.msra.mxu0 0.0
      %5307 = vmatprep.subr.mxu0 0.0
      %5308 = vmatpush1.msra.mxu0 0.0
      %5309 = vmatprep.subr.mxu0 0.0
      %5310 = vmatpush1.msra.mxu0 0.0
      %5311 = vmatprep.subr.mxu0 0.0
      %5312 = vmatpush1.msra.mxu0 0.0
      %5313 = vmatprep.subr.mxu0 0.0
      %5314 = vmatpush1.msra.mxu0 0.0
      %5315 = vmatprep.subr.mxu0 0.0
      %5316 = vmatpush1.msra.mxu0 0.0
      %5317 = vmatprep.subr.mxu0 0.0
      %5318 = vmatpush1.msra.mxu0 0.0
      %5319 = vmatprep.subr.mxu0 0.0
      %5320 = vmatpush1.msra.mxu0 0.0
      %5321 = vmatprep.subr.mxu0 0.0
      %5322 = vmatpush1.msra.mxu0 0.0
      %5323 = vmatprep.subr.mxu0 0.0
      %5324 = vmatpush1.msra.mxu0 0.0
      %5325 = vmatprep.subr.mxu0 0.0
      %5326 = vmatpush1.msra.mxu0 0.0
      %5327 = vmatprep.subr.mxu0 0.0
      %5328 = vmatpush1.msra.mxu0 0.0
      %5329 = vmatprep.mubr.f32.mxu0 0.0
      %5330 = vmatmul.mubr.f32.gmra.mrb[0].mxu0 %v5263
      %v5331 = vpop.f32.mrb[0].mxu0
      %v5332 = vadd.f32 0.0, %v5331
      %v5333 = vpop.f32.mrb[0].mxu0
      %v5334 = vadd.f32 0.0, %v5333
      %5335 = vdwg.mxu0
      %v5336 = vadd.f32 %v5224, %v5332
      %v5337 = vadd.f32 %v5226, %v5334
      %5338 = vrot.lane.b32.xlu0 %v5033, 121
      %v5339 = vpop.permute.xlu0 %5338
      %5340 = vrot.lane.b32.xlu0 %v5034, 121
      %v5341 = vpop.permute.xlu0 %5340
      %vm5342 = vcmask 990208
      %v5343 = vsel %vm5342, %v5339, %v5341
      %v5347 = vmul.f32 %v5028, %v5339
      %v5348 = vmul.f32 %v5029, %v5343
      %v5349 = vmul.f32 %v5030, %v5341
      %s5350 = scalar_lea.vmem %s2, 408
      %v5351 = vld [vmem:[%s5350] sm:$0xff]
      %5355 = vrot.lane.b32.xlu0 %v5347, 7
      %v5356 = vpop.permute.xlu0 %5355
      %5357 = vrot.lane.b32.xlu0 %v5348, 7
      %v5358 = vpop.permute.xlu0 %5357
      %5359 = vrot.lane.b32.xlu0 %v5349, 7
      %v5360 = vpop.permute.xlu0 %5359
      %vm5361 = vcmask 56320
      %v5362 = vsel %vm5361, %v5356, %v5358
      %v5363 = vsel %vm5361, %v5358, %v5360
      %v5367 = vsel %vm440, %v5351, 0
      %5369 = vmatprep.subr.mxu0 %v5363
      %5370 = vmatpush1.msra.mxu0 %v5362
      %5371 = vmatprep.subr.mxu0 0.0
      %5372 = vmatpush1.msra.mxu0 0.0
      %5373 = vmatprep.subr.mxu0 0.0
      %5374 = vmatpush1.msra.mxu0 0.0
      %5375 = vmatprep.subr.mxu0 0.0
      %5376 = vmatpush1.msra.mxu0 0.0
      %5377 = vmatprep.subr.mxu0 0.0
      %5378 = vmatpush1.msra.mxu0 0.0
      %5379 = vmatprep.subr.mxu0 0.0
      %5380 = vmatpush1.msra.mxu0 0.0
      %5381 = vmatprep.subr.mxu0 0.0
      %5382 = vmatpush1.msra.mxu0 0.0
      %5383 = vmatprep.subr.mxu0 0.0
      %5384 = vmatpush1.msra.mxu0 0.0
      %5385 = vmatprep.subr.mxu0 0.0
      %5386 = vmatpush1.msra.mxu0 0.0
      %5387 = vmatprep.subr.mxu0 0.0
      %5388 = vmatpush1.msra.mxu0 0.0
      %5389 = vmatprep.subr.mxu0 0.0
      %5390 = vmatpush1.msra.mxu0 0.0
      %5391 = vmatprep.subr.mxu0 0.0
      %5392 = vmatpush1.msra.mxu0 0.0
      %5393 = vmatprep.subr.mxu0 0.0
      %5394 = vmatpush1.msra.mxu0 0.0
      %5395 = vmatprep.subr.mxu0 0.0
      %5396 = vmatpush1.msra.mxu0 0.0
      %5397 = vmatprep.subr.mxu0 0.0
      %5398 = vmatpush1.msra.mxu0 0.0
      %5399 = vmatprep.subr.mxu0 0.0
      %5400 = vmatpush1.msra.mxu0 0.0
      %5401 = vmatprep.subr.mxu0 0.0
      %5402 = vmatpush1.msra.mxu0 0.0
      %5403 = vmatprep.subr.mxu0 0.0
      %5404 = vmatpush1.msra.mxu0 0.0
      %5405 = vmatprep.subr.mxu0 0.0
      %5406 = vmatpush1.msra.mxu0 0.0
      %5407 = vmatprep.subr.mxu0 0.0
      %5408 = vmatpush1.msra.mxu0 0.0
      %5409 = vmatprep.subr.mxu0 0.0
      %5410 = vmatpush1.msra.mxu0 0.0
      %5411 = vmatprep.subr.mxu0 0.0
      %5412 = vmatpush1.msra.mxu0 0.0
      %5413 = vmatprep.subr.mxu0 0.0
      %5414 = vmatpush1.msra.mxu0 0.0
      %5415 = vmatprep.subr.mxu0 0.0
      %5416 = vmatpush1.msra.mxu0 0.0
      %5417 = vmatprep.subr.mxu0 0.0
      %5418 = vmatpush1.msra.mxu0 0.0
      %5419 = vmatprep.subr.mxu0 0.0
      %5420 = vmatpush1.msra.mxu0 0.0
      %5421 = vmatprep.subr.mxu0 0.0
      %5422 = vmatpush1.msra.mxu0 0.0
      %5423 = vmatprep.subr.mxu0 0.0
      %5424 = vmatpush1.msra.mxu0 0.0
      %5425 = vmatprep.subr.mxu0 0.0
      %5426 = vmatpush1.msra.mxu0 0.0
      %5427 = vmatprep.subr.mxu0 0.0
      %5428 = vmatpush1.msra.mxu0 0.0
      %5429 = vmatprep.subr.mxu0 0.0
      %5430 = vmatpush1.msra.mxu0 0.0
      %5431 = vmatprep.subr.mxu0 0.0
      %5432 = vmatpush1.msra.mxu0 0.0
      %5433 = vmatprep.mubr.f32.mxu0 0.0
      %5434 = vmatmul.mubr.f32.gmra.mrb[0].mxu0 %v5367
      %v5435 = vpop.f32.mrb[0].mxu0
      %v5436 = vadd.f32 0.0, %v5435
      %v5437 = vpop.f32.mrb[0].mxu0
      %v5438 = vadd.f32 0.0, %v5437
      %5439 = vdwg.mxu0
      %v5440 = vadd.f32 %v5336, %v5436
      %v5441 = vadd.f32 %v5337, %v5438
      %s5442 = scalar_lea.vmem %s2, 416
      %v5443 = vld [vmem:[%s5442] sm:$0xff]
      %v5445 = vsel %vm440, %v5443, 0
      %5447 = vmatprep.subr.mxu0 %v5030
      %5448 = vmatpush1.msra.mxu0 %v5029
      %5449 = vmatprep.subr.mxu0 0.0
      %5450 = vmatpush1.msra.mxu0 0.0
      %5451 = vmatprep.subr.mxu0 0.0
      %5452 = vmatpush1.msra.mxu0 0.0
      %5453 = vmatprep.subr.mxu0 0.0
      %5454 = vmatpush1.msra.mxu0 0.0
      %5455 = vmatprep.subr.mxu0 0.0
      %5456 = vmatpush1.msra.mxu0 0.0
      %5457 = vmatprep.subr.mxu0 0.0
      %5458 = vmatpush1.msra.mxu0 0.0
      %5459 = vmatprep.subr.mxu0 0.0
      %5460 = vmatpush1.msra.mxu0 0.0
      %5461 = vmatprep.subr.mxu0 0.0
      %5462 = vmatpush1.msra.mxu0 0.0
      %5463 = vmatprep.subr.mxu0 0.0
      %5464 = vmatpush1.msra.mxu0 0.0
      %5465 = vmatprep.subr.mxu0 0.0
      %5466 = vmatpush1.msra.mxu0 0.0
      %5467 = vmatprep.subr.mxu0 0.0
      %5468 = vmatpush1.msra.mxu0 0.0
      %5469 = vmatprep.subr.mxu0 0.0
      %5470 = vmatpush1.msra.mxu0 0.0
      %5471 = vmatprep.subr.mxu0 0.0
      %5472 = vmatpush1.msra.mxu0 0.0
      %5473 = vmatprep.subr.mxu0 0.0
      %5474 = vmatpush1.msra.mxu0 0.0
      %5475 = vmatprep.subr.mxu0 0.0
      %5476 = vmatpush1.msra.mxu0 0.0
      %5477 = vmatprep.subr.mxu0 0.0
      %5478 = vmatpush1.msra.mxu0 0.0
      %5479 = vmatprep.subr.mxu0 0.0
      %5480 = vmatpush1.msra.mxu0 0.0
      %5481 = vmatprep.subr.mxu0 0.0
      %5482 = vmatpush1.msra.mxu0 0.0
      %5483 = vmatprep.subr.mxu0 0.0
      %5484 = vmatpush1.msra.mxu0 0.0
      %5485 = vmatprep.subr.mxu0 0.0
      %5486 = vmatpush1.msra.mxu0 0.0
      %5487 = vmatprep.subr.mxu0 0.0
      %5488 = vmatpush1.msra.mxu0 0.0
      %5489 = vmatprep.subr.mxu0 0.0
      %5490 = vmatpush1.msra.mxu0 0.0
      %5491 = vmatprep.subr.mxu0 0.0
      %5492 = vmatpush1.msra.mxu0 0.0
      %5493 = vmatprep.subr.mxu0 0.0
      %5494 = vmatpush1.msra.mxu0 0.0
      %5495 = vmatprep.subr.mxu0 0.0
      %5496 = vmatpush1.msra.mxu0 0.0
      %5497 = vmatprep.subr.mxu0 0.0
      %5498 = vmatpush1.msra.mxu0 0.0
      %5499 = vmatprep.subr.mxu0 0.0
      %5500 = vmatpush1.msra.mxu0 0.0
      %5501 = vmatprep.subr.mxu0 0.0
      %5502 = vmatpush1.msra.mxu0 0.0
      %5503 = vmatprep.subr.mxu0 0.0
      %5504 = vmatpush1.msra.mxu0 0.0
      %5505 = vmatprep.subr.mxu0 0.0
      %5506 = vmatpush1.msra.mxu0 0.0
      %5507 = vmatprep.subr.mxu0 0.0
      %5508 = vmatpush1.msra.mxu0 0.0
      %5509 = vmatprep.subr.mxu0 0.0
      %5510 = vmatpush1.msra.mxu0 0.0
      %5511 = vmatprep.mubr.f32.mxu0 0.0
      %5512 = vmatmul.mubr.f32.gmra.mrb[0].mxu0 %v5445
      %v5513 = vpop.f32.mrb[0].mxu0
      %v5514 = vadd.f32 0.0, %v5513
      %v5515 = vpop.f32.mrb[0].mxu0
      %v5516 = vadd.f32 0.0, %v5515
      %5517 = vdwg.mxu0
      %v5518 = vadd.f32 %v5440, %v5514
      %v5519 = vadd.f32 %v5441, %v5516
      %v5520 = vld [vmem:[#allocation2 + $0x8] sm:$0xff]
      %v5521 = vld [vmem:[#allocation2 + $0x10] sm:$0xff]
      %v5522 = vld [vmem:[#allocation2 + $0x18] sm:$0xff]
      %5523 = vrot.lane.b32.xlu0 %v5230, 7
      %v5524 = vpop.permute.xlu0 %5523
      %5525 = vrot.lane.b32.xlu0 %v5231, 7
      %v5526 = vpop.permute.xlu0 %5525
      %v5527 = vsel %vm5361, %v5524, %v5526
      %v5531 = vmul.f32 %v5520, %v5524
      %v5532 = vmul.f32 %v5521, %v5527
      %v5533 = vmul.f32 %v5522, %v5526
      %s5534 = scalar_lea.vmem %s2, 424
      %v5535 = vld [vmem:[%s5534] sm:$0xff]
      %5539 = vrot.lane.b32.xlu0 %v5531, 121
      %v5540 = vpop.permute.xlu0 %5539
      %5541 = vrot.lane.b32.xlu0 %v5532, 121
      %v5542 = vpop.permute.xlu0 %5541
      %5543 = vrot.lane.b32.xlu0 %v5533, 121
      %v5544 = vpop.permute.xlu0 %5543
      %v5545 = vsel %vm5342, %v5540, %v5542
      %v5546 = vsel %vm5342, %v5542, %v5544
      %v5550 = vsel %vm440, %v5535, 0
      %5552 = vmatprep.subr.mxu0 %v5546
      %5553 = vmatpush1.msra.mxu0 %v5545
      %5554 = vmatprep.subr.mxu0 0.0
      %5555 = vmatpush1.msra.mxu0 0.0
      %5556 = vmatprep.subr.mxu0 0.0
      %5557 = vmatpush1.msra.mxu0 0.0
      %5558 = vmatprep.subr.mxu0 0.0
      %5559 = vmatpush1.msra.mxu0 0.0
      %5560 = vmatprep.subr.mxu0 0.0
      %5561 = vmatpush1.msra.mxu0 0.0
      %5562 = vmatprep.subr.mxu0 0.0
      %5563 = vmatpush1.msra.mxu0 0.0
      %5564 = vmatprep.subr.mxu0 0.0
      %5565 = vmatpush1.msra.mxu0 0.0
      %5566 = vmatprep.subr.mxu0 0.0
      %5567 = vmatpush1.msra.mxu0 0.0
      %5568 = vmatprep.subr.mxu0 0.0
      %5569 = vmatpush1.msra.mxu0 0.0
      %5570 = vmatprep.subr.mxu0 0.0
      %5571 = vmatpush1.msra.mxu0 0.0
      %5572 = vmatprep.subr.mxu0 0.0
      %5573 = vmatpush1.msra.mxu0 0.0
      %5574 = vmatprep.subr.mxu0 0.0
      %5575 = vmatpush1.msra.mxu0 0.0
      %5576 = vmatprep.subr.mxu0 0.0
      %5577 = vmatpush1.msra.mxu0 0.0
      %5578 = vmatprep.subr.mxu0 0.0
      %5579 = vmatpush1.msra.mxu0 0.0
      %5580 = vmatprep.subr.mxu0 0.0
      %5581 = vmatpush1.msra.mxu0 0.0
      %5582 = vmatprep.subr.mxu0 0.0
      %5583 = vmatpush1.msra.mxu0 0.0
      %5584 = vmatprep.subr.mxu0 0.0
      %5585 = vmatpush1.msra.mxu0 0.0
      %5586 = vmatprep.subr.mxu0 0.0
      %5587 = vmatpush1.msra.mxu0 0.0
      %5588 = vmatprep.subr.mxu0 0.0
      %5589 = vmatpush1.msra.mxu0 0.0
      %5590 = vmatprep.subr.mxu0 0.0
      %5591 = vmatpush1.msra.mxu0 0.0
      %5592 = vmatprep.subr.mxu0 0.0
      %5593 = vmatpush1.msra.mxu0 0.0
      %5594 = vmatprep.subr.mxu0 0.0
      %5595 = vmatpush1.msra.mxu0 0.0
      %5596 = vmatprep.subr.mxu0 0.0
      %5597 = vmatpush1.msra.mxu0 0.0
      %5598 = vmatprep.subr.mxu0 0.0
      %5599 = vmatpush1.msra.mxu0 0.0
      %5600 = vmatprep.subr.mxu0 0.0
      %5601 = vmatpush1.msra.mxu0 0.0
      %5602 = vmatprep.subr.mxu0 0.0
      %5603 = vmatpush1.msra.mxu0 0.0
      %5604 = vmatprep.subr.mxu0 0.0
      %5605 = vmatpush1.msra.mxu0 0.0
      %5606 = vmatprep.subr.mxu0 0.0
      %5607 = vmatpush1.msra.mxu0 0.0
      %5608 = vmatprep.subr.mxu0 0.0
      %5609 = vmatpush1.msra.mxu0 0.0
      %5610 = vmatprep.subr.mxu0 0.0
      %5611 = vmatpush1.msra.mxu0 0.0
      %5612 = vmatprep.subr.mxu0 0.0
      %5613 = vmatpush1.msra.mxu0 0.0
      %5614 = vmatprep.subr.mxu0 0.0
      %5615 = vmatpush1.msra.mxu0 0.0
      %5616 = vmatprep.mubr.f32.mxu0 0.0
      %5617 = vmatmul.mubr.f32.gmra.mrb[0].mxu0 %v5550
      %v5618 = vpop.f32.mrb[0].mxu0
      %v5619 = vadd.f32 0.0, %v5618
      %v5620 = vpop.f32.mrb[0].mxu0
      %v5621 = vadd.f32 0.0, %v5620
      %5622 = vdwg.mxu0
      %v5623 = vadd.f32 %v5518, %v5619
      %v5624 = vadd.f32 %v5519, %v5621
      %5625 = vrot.lane.b32.xlu0 %v5033, 105
      %v5626 = vpop.permute.xlu0 %5625
      %5627 = vrot.lane.b32.xlu0 %v5034, 105
      %v5628 = vpop.permute.xlu0 %5627
      %v5629 = vsel %vm5257, %v5626, %v5628
      %v5633 = vmul.f32 %v5520, %v5626
      %v5634 = vmul.f32 %v5521, %v5629
      %v5635 = vmul.f32 %v5522, %v5628
      %s5636 = scalar_lea.vmem %s2, 432
      %v5637 = vld [vmem:[%s5636] sm:$0xff]
      %5641 = vrot.lane.b32.xlu0 %v5633, 23
      %v5642 = vpop.permute.xlu0 %5641
      %5643 = vrot.lane.b32.xlu0 %v5634, 23
      %v5644 = vpop.permute.xlu0 %5643
      %5645 = vrot.lane.b32.xlu0 %v5635, 23
      %v5646 = vpop.permute.xlu0 %5645
      %v5647 = vsel %vm5238, %v5642, %v5644
      %v5648 = vsel %vm5238, %v5644, %v5646
      %v5652 = vsel %vm440, %v5637, 0
      %5654 = vmatprep.subr.mxu0 %v5648
      %5655 = vmatpush1.msra.mxu0 %v5647
      %5656 = vmatprep.subr.mxu0 0.0
      %5657 = vmatpush1.msra.mxu0 0.0
      %5658 = vmatprep.subr.mxu0 0.0
      %5659 = vmatpush1.msra.mxu0 0.0
      %5660 = vmatprep.subr.mxu0 0.0
      %5661 = vmatpush1.msra.mxu0 0.0
      %5662 = vmatprep.subr.mxu0 0.0
      %5663 = vmatpush1.msra.mxu0 0.0
      %5664 = vmatprep.subr.mxu0 0.0
      %5665 = vmatpush1.msra.mxu0 0.0
      %5666 = vmatprep.subr.mxu0 0.0
      %5667 = vmatpush1.msra.mxu0 0.0
      %5668 = vmatprep.subr.mxu0 0.0
      %5669 = vmatpush1.msra.mxu0 0.0
      %5670 = vmatprep.subr.mxu0 0.0
      %5671 = vmatpush1.msra.mxu0 0.0
      %5672 = vmatprep.subr.mxu0 0.0
      %5673 = vmatpush1.msra.mxu0 0.0
      %5674 = vmatprep.subr.mxu0 0.0
      %5675 = vmatpush1.msra.mxu0 0.0
      %5676 = vmatprep.subr.mxu0 0.0
      %5677 = vmatpush1.msra.mxu0 0.0
      %5678 = vmatprep.subr.mxu0 0.0
      %5679 = vmatpush1.msra.mxu0 0.0
      %5680 = vmatprep.subr.mxu0 0.0
      %5681 = vmatpush1.msra.mxu0 0.0
      %5682 = vmatprep.subr.mxu0 0.0
      %5683 = vmatpush1.msra.mxu0 0.0
      %5684 = vmatprep.subr.mxu0 0.0
      %5685 = vmatpush1.msra.mxu0 0.0
      %5686 = vmatprep.subr.mxu0 0.0
      %5687 = vmatpush1.msra.mxu0 0.0
      %5688 = vmatprep.subr.mxu0 0.0
      %5689 = vmatpush1.msra.mxu0 0.0
      %5690 = vmatprep.subr.mxu0 0.0
      %5691 = vmatpush1.msra.mxu0 0.0
      %5692 = vmatprep.subr.mxu0 0.0
      %5693 = vmatpush1.msra.mxu0 0.0
      %5694 = vmatprep.subr.mxu0 0.0
      %5695 = vmatpush1.msra.mxu0 0.0
      %5696 = vmatprep.subr.mxu0 0.0
      %5697 = vmatpush1.msra.mxu0 0.0
      %5698 = vmatprep.subr.mxu0 0.0
      %5699 = vmatpush1.msra.mxu0 0.0
      %5700 = vmatprep.subr.mxu0 0.0
      %5701 = vmatpush1.msra.mxu0 0.0
      %5702 = vmatprep.subr.mxu0 0.0
      %5703 = vmatpush1.msra.mxu0 0.0
      %5704 = vmatprep.subr.mxu0 0.0
      %5705 = vmatpush1.msra.mxu0 0.0
      %5706 = vmatprep.subr.mxu0 0.0
      %5707 = vmatpush1.msra.mxu0 0.0
      %5708 = vmatprep.subr.mxu0 0.0
      %5709 = vmatpush1.msra.mxu0 0.0
      %5710 = vmatprep.subr.mxu0 0.0
      %5711 = vmatpush1.msra.mxu0 0.0
      %5712 = vmatprep.subr.mxu0 0.0
      %5713 = vmatpush1.msra.mxu0 0.0
      %5714 = vmatprep.subr.mxu0 0.0
      %5715 = vmatpush1.msra.mxu0 0.0
      %5716 = vmatprep.subr.mxu0 0.0
      %5717 = vmatpush1.msra.mxu0 0.0
      %5718 = vmatprep.mubr.f32.mxu0 0.0
      %5719 = vmatmul.mubr.f32.gmra.mrb[0].mxu0 %v5652
      %v5720 = vpop.f32.mrb[0].mxu0
      %v5721 = vadd.f32 0.0, %v5720
      %v5722 = vpop.f32.mrb[0].mxu0
      %v5723 = vadd.f32 0.0, %v5722
      %5724 = vdwg.mxu0
      %v5725 = vadd.f32 %v5623, %v5721
      %v5726 = vadd.f32 %v5624, %v5723
      %s5727 = scalar_lea.vmem %s2, 440
      %v5728 = vld [vmem:[%s5727] sm:$0xff]
      %5732 = vrot.lane.b32.xlu0 %v5520, 16
      %v5733 = vpop.permute.xlu0 %5732
      %5734 = vrot.lane.b32.xlu0 %v5521, 16
      %v5735 = vpop.permute.xlu0 %5734
      %5736 = vrot.lane.b32.xlu0 %v5522, 16
      %v5737 = vpop.permute.xlu0 %5736
      %v5738 = vsel %vm814, %v5733, %v5735
      %v5739 = vsel %vm814, %v5735, %v5737
      %v5743 = vsel %vm440, %v5728, 0
      %5745 = vmatprep.subr.mxu0 %v5739
      %5746 = vmatpush1.msra.mxu0 %v5738
      %5747 = vmatprep.subr.mxu0 0.0
      %5748 = vmatpush1.msra.mxu0 0.0
      %5749 = vmatprep.subr.mxu0 0.0
      %5750 = vmatpush1.msra.mxu0 0.0
      %5751 = vmatprep.subr.mxu0 0.0
      %5752 = vmatpush1.msra.mxu0 0.0
      %5753 = vmatprep.subr.mxu0 0.0
      %5754 = vmatpush1.msra.mxu0 0.0
      %5755 = vmatprep.subr.mxu0 0.0
      %5756 = vmatpush1.msra.mxu0 0.0
      %5757 = vmatprep.subr.mxu0 0.0
      %5758 = vmatpush1.msra.mxu0 0.0
      %5759 = vmatprep.subr.mxu0 0.0
      %5760 = vmatpush1.msra.mxu0 0.0
      %5761 = vmatprep.subr.mxu0 0.0
      %5762 = vmatpush1.msra.mxu0 0.0
      %5763 = vmatprep.subr.mxu0 0.0
      %5764 = vmatpush1.msra.mxu0 0.0
      %5765 = vmatprep.subr.mxu0 0.0
      %5766 = vmatpush1.msra.mxu0 0.0
      %5767 = vmatprep.subr.mxu0 0.0
      %5768 = vmatpush1.msra.mxu0 0.0
      %5769 = vmatprep.subr.mxu0 0.0
      %5770 = vmatpush1.msra.mxu0 0.0
      %5771 = vmatprep.subr.mxu0 0.0
      %5772 = vmatpush1.msra.mxu0 0.0
      %5773 = vmatprep.subr.mxu0 0.0
      %5774 = vmatpush1.msra.mxu0 0.0
      %5775 = vmatprep.subr.mxu0 0.0
      %5776 = vmatpush1.msra.mxu0 0.0
      %5777 = vmatprep.subr.mxu0 0.0
      %5778 = vmatpush1.msra.mxu0 0.0
      %5779 = vmatprep.subr.mxu0 0.0
      %5780 = vmatpush1.msra.mxu0 0.0
      %5781 = vmatprep.subr.mxu0 0.0
      %5782 = vmatpush1.msra.mxu0 0.0
      %5783 = vmatprep.subr.mxu0 0.0
      %5784 = vmatpush1.msra.mxu0 0.0
      %5785 = vmatprep.subr.mxu0 0.0
      %5786 = vmatpush1.msra.mxu0 0.0
      %5787 = vmatprep.subr.mxu0 0.0
      %5788 = vmatpush1.msra.mxu0 0.0
      %5789 = vmatprep.subr.mxu0 0.0
      %5790 = vmatpush1.msra.mxu0 0.0
      %5791 = vmatprep.subr.mxu0 0.0
      %5792 = vmatpush1.msra.mxu0 0.0
      %5793 = vmatprep.subr.mxu0 0.0
      %5794 = vmatpush1.msra.mxu0 0.0
      %5795 = vmatprep.subr.mxu0 0.0
      %5796 = vmatpush1.msra.mxu0 0.0
      %5797 = vmatprep.subr.mxu0 0.0
      %5798 = vmatpush1.msra.mxu0 0.0
      %5799 = vmatprep.subr.mxu0 0.0
      %5800 = vmatpush1.msra.mxu0 0.0
      %5801 = vmatprep.subr.mxu0 0.0
      %5802 = vmatpush1.msra.mxu0 0.0
      %5803 = vmatprep.subr.mxu0 0.0
      %5804 = vmatpush1.msra.mxu0 0.0
      %5805 = vmatprep.subr.mxu0 0.0
      %5806 = vmatpush1.msra.mxu0 0.0
      %5807 = vmatprep.subr.mxu0 0.0
      %5808 = vmatpush1.msra.mxu0 0.0
      %5809 = vmatprep.mubr.f32.mxu0 0.0
      %5810 = vmatmul.mubr.f32.gmra.mrb[0].mxu0 %v5743
      %v5811 = vpop.f32.mrb[0].mxu0
      %v5812 = vadd.f32 0.0, %v5811
      %v5813 = vpop.f32.mrb[0].mxu0
      %v5814 = vadd.f32 0.0, %v5813
      %5815 = vdwg.mxu0
      %v5816 = vadd.f32 %v5725, %v5812
      %v5817 = vadd.f32 %v5726, %v5814
      %5818 = vrot.lane.b32.xlu0 %v5230, 119
      %v5819 = vpop.permute.xlu0 %5818
      %5820 = vrot.lane.b32.xlu0 %v5231, 119
      %v5821 = vpop.permute.xlu0 %5820
      %v5822 = vsel %vm5149, %v5819, %v5821
      %v5826 = vmul.f32 %v5520, %v5819
      %v5827 = vmul.f32 %v5521, %v5822
      %v5828 = vmul.f32 %v5522, %v5821
      %s5829 = scalar_lea.vmem %s2, 448
      %v5830 = vld [vmem:[%s5829] sm:$0xff]
      %5834 = vrot.lane.b32.xlu0 %v5826, 9
      %v5835 = vpop.permute.xlu0 %5834
      %5836 = vrot.lane.b32.xlu0 %v5827, 9
      %v5837 = vpop.permute.xlu0 %5836
      %5838 = vrot.lane.b32.xlu0 %v5828, 9
      %v5839 = vpop.permute.xlu0 %5838
      %v5840 = vsel %vm5041, %v5835, %v5837
      %v5841 = vsel %vm5041, %v5837, %v5839
      %v5845 = vsel %vm440, %v5830, 0
      %5847 = vmatprep.subr.mxu0 %v5841
      %5848 = vmatpush1.msra.mxu0 %v5840
      %5849 = vmatprep.subr.mxu0 0.0
      %5850 = vmatpush1.msra.mxu0 0.0
      %5851 = vmatprep.subr.mxu0 0.0
      %5852 = vmatpush1.msra.mxu0 0.0
      %5853 = vmatprep.subr.mxu0 0.0
      %5854 = vmatpush1.msra.mxu0 0.0
      %5855 = vmatprep.subr.mxu0 0.0
      %5856 = vmatpush1.msra.mxu0 0.0
      %5857 = vmatprep.subr.mxu0 0.0
      %5858 = vmatpush1.msra.mxu0 0.0
      %5859 = vmatprep.subr.mxu0 0.0
      %5860 = vmatpush1.msra.mxu0 0.0
      %5861 = vmatprep.subr.mxu0 0.0
      %5862 = vmatpush1.msra.mxu0 0.0
      %5863 = vmatprep.subr.mxu0 0.0
      %5864 = vmatpush1.msra.mxu0 0.0
      %5865 = vmatprep.subr.mxu0 0.0
      %5866 = vmatpush1.msra.mxu0 0.0
      %5867 = vmatprep.subr.mxu0 0.0
      %5868 = vmatpush1.msra.mxu0 0.0
      %5869 = vmatprep.subr.mxu0 0.0
      %5870 = vmatpush1.msra.mxu0 0.0
      %5871 = vmatprep.subr.mxu0 0.0
      %5872 = vmatpush1.msra.mxu0 0.0
      %5873 = vmatprep.subr.mxu0 0.0
      %5874 = vmatpush1.msra.mxu0 0.0
      %5875 = vmatprep.subr.mxu0 0.0
      %5876 = vmatpush1.msra.mxu0 0.0
      %5877 = vmatprep.subr.mxu0 0.0
      %5878 = vmatpush1.msra.mxu0 0.0
      %5879 = vmatprep.subr.mxu0 0.0
      %5880 = vmatpush1.msra.mxu0 0.0
      %5881 = vmatprep.subr.mxu0 0.0
      %5882 = vmatpush1.msra.mxu0 0.0
      %5883 = vmatprep.subr.mxu0 0.0
      %5884 = vmatpush1.msra.mxu0 0.0
      %5885 = vmatprep.subr.mxu0 0.0
      %5886 = vmatpush1.msra.mxu0 0.0
      %5887 = vmatprep.subr.mxu0 0.0
      %5888 = vmatpush1.msra.mxu0 0.0
      %5889 = vmatprep.subr.mxu0 0.0
      %5890 = vmatpush1.msra.mxu0 0.0
      %5891 = vmatprep.subr.mxu0 0.0
      %5892 = vmatpush1.msra.mxu0 0.0
      %5893 = vmatprep.subr.mxu0 0.0
      %5894 = vmatpush1.msra.mxu0 0.0
      %5895 = vmatprep.subr.mxu0 0.0
      %5896 = vmatpush1.msra.mxu0 0.0
      %5897 = vmatprep.subr.mxu0 0.0
      %5898 = vmatpush1.msra.mxu0 0.0
      %5899 = vmatprep.subr.mxu0 0.0
      %5900 = vmatpush1.msra.mxu0 0.0
      %5901 = vmatprep.subr.mxu0 0.0
      %5902 = vmatpush1.msra.mxu0 0.0
      %5903 = vmatprep.subr.mxu0 0.0
      %5904 = vmatpush1.msra.mxu0 0.0
      %5905 = vmatprep.subr.mxu0 0.0
      %5906 = vmatpush1.msra.mxu0 0.0
      %5907 = vmatprep.subr.mxu0 0.0
      %5908 = vmatpush1.msra.mxu0 0.0
      %5909 = vmatprep.subr.mxu0 0.0
      %5910 = vmatpush1.msra.mxu0 0.0
      %5911 = vmatprep.mubr.f32.mxu0 0.0
      %5912 = vmatmul.mubr.f32.gmra.mrb[0].mxu0 %v5845
      %v5913 = vpop.f32.mrb[0].mxu0
      %v5914 = vadd.f32 0.0, %v5913
      %v5915 = vpop.f32.mrb[0].mxu0
      %v5916 = vadd.f32 0.0, %v5915
      %5917 = vdwg.mxu0
      %v5918 = vadd.f32 %v5816, %v5914
      %v5919 = vadd.f32 %v5817, %v5916
      %v5920 = vld [vmem:[%s4 + $0x68] sm:$0xff]
      %5922 = vset.pattern.permute.xlu0 0
      %5923 = vperm.xlu0 %5922, %v5920
      %v5924 = vpop.permute.xlu0 %5923
      %v5926 = vadd.f32 %v5918, %v5924
      %v5927 = vadd.f32 %v5919, %v5924
      %5928 = vst [vmem:[#allocation2 + $0x8] sm:$0xff] %v386
      %5929 = vst [vmem:[#allocation2 + $0x10] sm:$0xff] %v388
      %5930 = vst [vmem:[#allocation2 + $0x28] sm:$0xff] %v1898
      %5931 = vst [vmem:[#allocation2 + $0x30] sm:$0xff] %v1899
      %5932 = vst [vmem:[#allocation2 + $0x48] sm:$0xff] %v3746
      %5933 = vst [vmem:[#allocation2 + $0x50] sm:$0xff] %v3747
      %5934 = vst [vmem:[#allocation2 + $0x68] sm:$0xff] %v5926
      %5935 = vst [vmem:[#allocation2 + $0x70] sm:$0xff] %v5927
      %v5936 = vld [vmem:[#allocation2] sm:$0xff]
      %v5937 = vld [vmem:[#allocation2 + $0x8] sm:$0xff]
      %v5938 = vld [vmem:[#allocation2 + $0x10] sm:$0xff]
      %v5939 = vld [vmem:[#allocation2 + $0x20] sm:$0xff]
      %v5940 = vld [vmem:[#allocation2 + $0x28] sm:$0xff]
      %v5941 = vld [vmem:[#allocation2 + $0x30] sm:$0xff]
      %v5942 = vld [vmem:[#allocation2 + $0x40] sm:$0xff]
      %v5943 = vld [vmem:[#allocation2 + $0x48] sm:$0xff]
      %v5944 = vld [vmem:[#allocation2 + $0x50] sm:$0xff]
      %v5945 = vld [vmem:[#allocation2 + $0x60] sm:$0xff]
      %v5946 = vld [vmem:[#allocation2 + $0x68] sm:$0xff]
      %v5947 = vld [vmem:[#allocation2 + $0x70] sm:$0xff]
      %5948 = vrot.lane.b32.xlu0 %v421, 111
      %v5949 = vpop.permute.xlu0 %5948
      %5950 = vrot.lane.b32.xlu0 %v422, 111
      %v5951 = vpop.permute.xlu0 %5950
      %vm5952 = vcmask 908288
      %v5953 = vsel %vm5952, %v5949, %v5951
      %v5957 = vmul.f32 %v5936, %v5949
      %v5958 = vmul.f32 %v5937, %v5953
      %v5959 = vmul.f32 %v5938, %v5951
      %v5960 = vmul.f32 %v5939, %v5949
      %v5961 = vmul.f32 %v5940, %v5953
      %v5962 = vmul.f32 %v5941, %v5951
      %v5963 = vmul.f32 %v5942, %v5949
      %v5964 = vmul.f32 %v5943, %v5953
      %v5965 = vmul.f32 %v5944, %v5951
      %v5966 = vmul.f32 %v5945, %v5949
      %v5967 = vmul.f32 %v5946, %v5953
      %v5968 = vmul.f32 %v5947, %v5951
      %v5969 = vld [vmem:[%s3] sm:$0xff]
      %s5970 = scalar_lea.vmem %s3, 8
      %v5971 = vld [vmem:[%s5970] sm:$0xff]
      %5984 = vrot.lane.b32.xlu0 %v5936, 16
      %v5985 = vpop.permute.xlu0 %5984
      %5986 = vrot.lane.b32.xlu0 %v5937, 16
      %v5987 = vpop.permute.xlu0 %5986
      %5988 = vrot.lane.b32.xlu0 %v5938, 16
      %v5989 = vpop.permute.xlu0 %5988
      %5990 = vrot.lane.b32.xlu0 %v5939, 16
      %v5991 = vpop.permute.xlu0 %5990
      %5992 = vrot.lane.b32.xlu0 %v5940, 16
      %v5993 = vpop.permute.xlu0 %5992
      %5994 = vrot.lane.b32.xlu0 %v5941, 16
      %v5995 = vpop.permute.xlu0 %5994
      %5996 = vrot.lane.b32.xlu0 %v5942, 16
      %v5997 = vpop.permute.xlu0 %5996
      %5998 = vrot.lane.b32.xlu0 %v5943, 16
      %v5999 = vpop.permute.xlu0 %5998
      %6000 = vrot.lane.b32.xlu0 %v5944, 16
      %v6001 = vpop.permute.xlu0 %6000
      %6002 = vrot.lane.b32.xlu0 %v5945, 16
      %v6003 = vpop.permute.xlu0 %6002
      %6004 = vrot.lane.b32.xlu0 %v5946, 16
      %v6005 = vpop.permute.xlu0 %6004
      %6006 = vrot.lane.b32.xlu0 %v5947, 16
      %v6007 = vpop.permute.xlu0 %6006
      %v6008 = vsel %vm814, %v5985, %v5987
      %v6009 = vsel %vm814, %v5987, %v5989
      %v6010 = vsel %vm814, %v5991, %v5993
      %v6011 = vsel %vm814, %v5993, %v5995
      %v6012 = vsel %vm814, %v5997, %v5999
      %v6013 = vsel %vm814, %v5999, %v6001
      %v6014 = vsel %vm814, %v6003, %v6005
      %v6015 = vsel %vm814, %v6005, %v6007
      %v6025 = vsel %vm2498, %v5971, 0
      %6027 = vmatprep.subr.mxu0 %v6009
      %6028 = vmatpush1.msra.mxu0 %v6008
      %6029 = vmatprep.subr.mxu0 %v6011
      %6030 = vmatpush1.msra.mxu0 %v6010
      %6031 = vmatprep.subr.mxu0 %v6013
      %6032 = vmatpush1.msra.mxu0 %v6012
      %6033 = vmatprep.subr.mxu0 %v6015
      %6034 = vmatpush1.msra.mxu0 %v6014
      %6035 = vmatprep.subr.mxu0 0.0
      %6036 = vmatpush1.msra.mxu0 0.0
      %6037 = vmatprep.subr.mxu0 0.0
      %6038 = vmatpush1.msra.mxu0 0.0
      %6039 = vmatprep.subr.mxu0 0.0
      %6040 = vmatpush1.msra.mxu0 0.0
      %6041 = vmatprep.subr.mxu0 0.0
      %6042 = vmatpush1.msra.mxu0 0.0
      %6043 = vmatprep.subr.mxu0 0.0
      %6044 = vmatpush1.msra.mxu0 0.0
      %6045 = vmatprep.subr.mxu0 0.0
      %6046 = vmatpush1.msra.mxu0 0.0
      %6047 = vmatprep.subr.mxu0 0.0
      %6048 = vmatpush1.msra.mxu0 0.0
      %6049 = vmatprep.subr.mxu0 0.0
      %6050 = vmatpush1.msra.mxu0 0.0
      %6051 = vmatprep.subr.mxu0 0.0
      %6052 = vmatpush1.msra.mxu0 0.0
      %6053 = vmatprep.subr.mxu0 0.0
      %6054 = vmatpush1.msra.mxu0 0.0
      %6055 = vmatprep.subr.mxu0 0.0
      %6056 = vmatpush1.msra.mxu0 0.0
      %6057 = vmatprep.subr.mxu0 0.0
      %6058 = vmatpush1.msra.mxu0 0.0
      %6059 = vmatprep.subr.mxu0 0.0
      %6060 = vmatpush1.msra.mxu0 0.0
      %6061 = vmatprep.subr.mxu0 0.0
      %6062 = vmatpush1.msra.mxu0 0.0
      %6063 = vmatprep.subr.mxu0 0.0
      %6064 = vmatpush1.msra.mxu0 0.0
      %6065 = vmatprep.subr.mxu0 0.0
      %6066 = vmatpush1.msra.mxu0 0.0
      %6067 = vmatprep.subr.mxu0 0.0
      %6068 = vmatpush1.msra.mxu0 0.0
      %6069 = vmatprep.subr.mxu0 0.0
      %6070 = vmatpush1.msra.mxu0 0.0
      %6071 = vmatprep.subr.mxu0 0.0
      %6072 = vmatpush1.msra.mxu0 0.0
      %6073 = vmatprep.subr.mxu0 0.0
      %6074 = vmatpush1.msra.mxu0 0.0
      %6075 = vmatprep.subr.mxu0 0.0
      %6076 = vmatpush1.msra.mxu0 0.0
      %6077 = vmatprep.subr.mxu0 0.0
      %6078 = vmatpush1.msra.mxu0 0.0
      %6079 = vmatprep.subr.mxu0 0.0
      %6080 = vmatpush1.msra.mxu0 0.0
      %6081 = vmatprep.subr.mxu0 0.0
      %6082 = vmatpush1.msra.mxu0 0.0
      %6083 = vmatprep.subr.mxu0 0.0
      %6084 = vmatpush1.msra.mxu0 0.0
      %6085 = vmatprep.subr.mxu0 0.0
      %6086 = vmatpush1.msra.mxu0 0.0
      %6087 = vmatprep.subr.mxu0 0.0
      %6088 = vmatpush1.msra.mxu0 0.0
      %6089 = vmatprep.subr.mxu0 0.0
      %6090 = vmatpush1.msra.mxu0 0.0
      %6091 = vmatprep.mubr.f32.mxu0 0.0
      %6092 = vmatmul.mubr.f32.gmra.mrb[0].mxu0 %v6025
      %v6093 = vpop.f32.mrb[0].mxu0
      %v6094 = vadd.f32 0.0, %v6093
      %v6095 = vpop.f32.mrb[0].mxu0
      %v6096 = vadd.f32 0.0, %v6095
      %6097 = vdwg.mxu0
      %6110 = vrot.lane.b32.xlu0 %v5957, 17
      %v6111 = vpop.permute.xlu0 %6110
      %6112 = vrot.lane.b32.xlu0 %v5958, 17
      %v6113 = vpop.permute.xlu0 %6112
      %6114 = vrot.lane.b32.xlu0 %v5959, 17
      %v6115 = vpop.permute.xlu0 %6114
      %6116 = vrot.lane.b32.xlu0 %v5960, 17
      %v6117 = vpop.permute.xlu0 %6116
      %6118 = vrot.lane.b32.xlu0 %v5961, 17
      %v6119 = vpop.permute.xlu0 %6118
      %6120 = vrot.lane.b32.xlu0 %v5962, 17
      %v6121 = vpop.permute.xlu0 %6120
      %6122 = vrot.lane.b32.xlu0 %v5963, 17
      %v6123 = vpop.permute.xlu0 %6122
      %6124 = vrot.lane.b32.xlu0 %v5964, 17
      %v6125 = vpop.permute.xlu0 %6124
      %6126 = vrot.lane.b32.xlu0 %v5965, 17
      %v6127 = vpop.permute.xlu0 %6126
      %6128 = vrot.lane.b32.xlu0 %v5966, 17
      %v6129 = vpop.permute.xlu0 %6128
      %6130 = vrot.lane.b32.xlu0 %v5967, 17
      %v6131 = vpop.permute.xlu0 %6130
      %6132 = vrot.lane.b32.xlu0 %v5968, 17
      %v6133 = vpop.permute.xlu0 %6132
      %vm6134 = vcmask 138240
      %v6135 = vsel %vm6134, %v6111, %v6113
      %v6136 = vsel %vm6134, %v6113, %v6115
      %v6137 = vsel %vm6134, %v6117, %v6119
      %v6138 = vsel %vm6134, %v6119, %v6121
      %v6139 = vsel %vm6134, %v6123, %v6125
      %v6140 = vsel %vm6134, %v6125, %v6127
      %v6141 = vsel %vm6134, %v6129, %v6131
      %v6142 = vsel %vm6134, %v6131, %v6133
      %v6152 = vsel %vm2498, %v5969, 0
      %6154 = vmatprep.subr.mxu0 %v6136
      %6155 = vmatpush1.msra.mxu0 %v6135
      %6156 = vmatprep.subr.mxu0 %v6138
      %6157 = vmatpush1.msra.mxu0 %v6137
      %6158 = vmatprep.subr.mxu0 %v6140
      %6159 = vmatpush1.msra.mxu0 %v6139
      %6160 = vmatprep.subr.mxu0 %v6142
      %6161 = vmatpush1.msra.mxu0 %v6141
      %6162 = vmatprep.subr.mxu0 0.0
      %6163 = vmatpush1.msra.mxu0 0.0
      %6164 = vmatprep.subr.mxu0 0.0
      %6165 = vmatpush1.msra.mxu0 0.0
      %6166 = vmatprep.subr.mxu0 0.0
      %6167 = vmatpush1.msra.mxu0 0.0
      %6168 = vmatprep.subr.mxu0 0.0
      %6169 = vmatpush1.msra.mxu0 0.0
      %6170 = vmatprep.subr.mxu0 0.0
      %6171 = vmatpush1.msra.mxu0 0.0
      %6172 = vmatprep.subr.mxu0 0.0
      %6173 = vmatpush1.msra.mxu0 0.0
      %6174 = vmatprep.subr.mxu0 0.0
      %6175 = vmatpush1.msra.mxu0 0.0
      %6176 = vmatprep.subr.mxu0 0.0
      %6177 = vmatpush1.msra.mxu0 0.0
      %6178 = vmatprep.subr.mxu0 0.0
      %6179 = vmatpush1.msra.mxu0 0.0
      %6180 = vmatprep.subr.mxu0 0.0
      %6181 = vmatpush1.msra.mxu0 0.0
      %6182 = vmatprep.subr.mxu0 0.0
      %6183 = vmatpush1.msra.mxu0 0.0
      %6184 = vmatprep.subr.mxu0 0.0
      %6185 = vmatpush1.msra.mxu0 0.0
      %6186 = vmatprep.subr.mxu0 0.0
      %6187 = vmatpush1.msra.mxu0 0.0
      %6188 = vmatprep.subr.mxu0 0.0
      %6189 = vmatpush1.msra.mxu0 0.0
      %6190 = vmatprep.subr.mxu0 0.0
      %6191 = vmatpush1.msra.mxu0 0.0
      %6192 = vmatprep.subr.mxu0 0.0
      %6193 = vmatpush1.msra.mxu0 0.0
      %6194 = vmatprep.subr.mxu0 0.0
      %6195 = vmatpush1.msra.mxu0 0.0
      %6196 = vmatprep.subr.mxu0 0.0
      %6197 = vmatpush1.msra.mxu0 0.0
      %6198 = vmatprep.subr.mxu0 0.0
      %6199 = vmatpush1.msra.mxu0 0.0
      %6200 = vmatprep.subr.mxu0 0.0
      %6201 = vmatpush1.msra.mxu0 0.0
      %6202 = vmatprep.subr.mxu0 0.0
      %6203 = vmatpush1.msra.mxu0 0.0
      %6204 = vmatprep.subr.mxu0 0.0
      %6205 = vmatpush1.msra.mxu0 0.0
      %6206 = vmatprep.subr.mxu0 0.0
      %6207 = vmatpush1.msra.mxu0 0.0
      %6208 = vmatprep.subr.mxu0 0.0
      %6209 = vmatpush1.msra.mxu0 0.0
      %6210 = vmatprep.subr.mxu0 0.0
      %6211 = vmatpush1.msra.mxu0 0.0
      %6212 = vmatprep.subr.mxu0 0.0
      %6213 = vmatpush1.msra.mxu0 0.0
      %6214 = vmatprep.subr.mxu0 0.0
      %6215 = vmatpush1.msra.mxu0 0.0
      %6216 = vmatprep.subr.mxu0 0.0
      %6217 = vmatpush1.msra.mxu0 0.0
      %6218 = vmatprep.mubr.f32.mxu0 0.0
      %6219 = vmatmul.mubr.f32.gmra.mrb[0].mxu0 %v6152
      %v6220 = vpop.f32.mrb[0].mxu0
      %v6221 = vadd.f32 %v6094, %v6220
      %v6222 = vpop.f32.mrb[0].mxu0
      %v6223 = vadd.f32 %v6096, %v6222
      %6224 = vdwg.mxu0
      %6225 = vrot.lane.b32.xlu0 %v608, 113
      %v6226 = vpop.permute.xlu0 %6225
      %6227 = vrot.lane.b32.xlu0 %v609, 113
      %v6228 = vpop.permute.xlu0 %6227
      %vm6229 = vcmask 924672
      %v6230 = vsel %vm6229, %v6226, %v6228
      %v6234 = vmul.f32 %v5936, %v6226
      %v6235 = vmul.f32 %v5937, %v6230
      %v6236 = vmul.f32 %v5938, %v6228
      %v6237 = vmul.f32 %v5939, %v6226
      %v6238 = vmul.f32 %v5940, %v6230
      %v6239 = vmul.f32 %v5941, %v6228
      %v6240 = vmul.f32 %v5942, %v6226
      %v6241 = vmul.f32 %v5943, %v6230
      %v6242 = vmul.f32 %v5944, %v6228
      %v6243 = vmul.f32 %v5945, %v6226
      %v6244 = vmul.f32 %v5946, %v6230
      %v6245 = vmul.f32 %v5947, %v6228
      %s6246 = scalar_lea.vmem %s3, 16
      %v6247 = vld [vmem:[%s6246] sm:$0xff]
      %6260 = vrot.lane.b32.xlu0 %v6234, 15
      %v6261 = vpop.permute.xlu0 %6260
      %6262 = vrot.lane.b32.xlu0 %v6235, 15
      %v6263 = vpop.permute.xlu0 %6262
      %6264 = vrot.lane.b32.xlu0 %v6236, 15
      %v6265 = vpop.permute.xlu0 %6264
      %6266 = vrot.lane.b32.xlu0 %v6237, 15
      %v6267 = vpop.permute.xlu0 %6266
      %6268 = vrot.lane.b32.xlu0 %v6238, 15
      %v6269 = vpop.permute.xlu0 %6268
      %6270 = vrot.lane.b32.xlu0 %v6239, 15
      %v6271 = vpop.permute.xlu0 %6270
      %6272 = vrot.lane.b32.xlu0 %v6240, 15
      %v6273 = vpop.permute.xlu0 %6272
      %6274 = vrot.lane.b32.xlu0 %v6241, 15
      %v6275 = vpop.permute.xlu0 %6274
      %6276 = vrot.lane.b32.xlu0 %v6242, 15
      %v6277 = vpop.permute.xlu0 %6276
      %6278 = vrot.lane.b32.xlu0 %v6243, 15
      %v6279 = vpop.permute.xlu0 %6278
      %6280 = vrot.lane.b32.xlu0 %v6244, 15
      %v6281 = vpop.permute.xlu0 %6280
      %6282 = vrot.lane.b32.xlu0 %v6245, 15
      %v6283 = vpop.permute.xlu0 %6282
      %vm6284 = vcmask 121856
      %v6285 = vsel %vm6284, %v6261, %v6263
      %v6286 = vsel %vm6284, %v6263, %v6265
      %v6287 = vsel %vm6284, %v6267, %v6269
      %v6288 = vsel %vm6284, %v6269, %v6271
      %v6289 = vsel %vm6284, %v6273, %v6275
      %v6290 = vsel %vm6284, %v6275, %v6277
      %v6291 = vsel %vm6284, %v6279, %v6281
      %v6292 = vsel %vm6284, %v6281, %v6283
      %v6302 = vsel %vm2498, %v6247, 0
      %6304 = vmatprep.subr.mxu0 %v6286
      %6305 = vmatpush1.msra.mxu0 %v6285
      %6306 = vmatprep.subr.mxu0 %v6288
      %6307 = vmatpush1.msra.mxu0 %v6287
      %6308 = vmatprep.subr.mxu0 %v6290
      %6309 = vmatpush1.msra.mxu0 %v6289
      %6310 = vmatprep.subr.mxu0 %v6292
      %6311 = vmatpush1.msra.mxu0 %v6291
      %6312 = vmatprep.subr.mxu0 0.0
      %6313 = vmatpush1.msra.mxu0 0.0
      %6314 = vmatprep.subr.mxu0 0.0
      %6315 = vmatpush1.msra.mxu0 0.0
      %6316 = vmatprep.subr.mxu0 0.0
      %6317 = vmatpush1.msra.mxu0 0.0
      %6318 = vmatprep.subr.mxu0 0.0
      %6319 = vmatpush1.msra.mxu0 0.0
      %6320 = vmatprep.subr.mxu0 0.0
      %6321 = vmatpush1.msra.mxu0 0.0
      %6322 = vmatprep.subr.mxu0 0.0
      %6323 = vmatpush1.msra.mxu0 0.0
      %6324 = vmatprep.subr.mxu0 0.0
      %6325 = vmatpush1.msra.mxu0 0.0
      %6326 = vmatprep.subr.mxu0 0.0
      %6327 = vmatpush1.msra.mxu0 0.0
      %6328 = vmatprep.subr.mxu0 0.0
      %6329 = vmatpush1.msra.mxu0 0.0
      %6330 = vmatprep.subr.mxu0 0.0
      %6331 = vmatpush1.msra.mxu0 0.0
      %6332 = vmatprep.subr.mxu0 0.0
      %6333 = vmatpush1.msra.mxu0 0.0
      %6334 = vmatprep.subr.mxu0 0.0
      %6335 = vmatpush1.msra.mxu0 0.0
      %6336 = vmatprep.subr.mxu0 0.0
      %6337 = vmatpush1.msra.mxu0 0.0
      %6338 = vmatprep.subr.mxu0 0.0
      %6339 = vmatpush1.msra.mxu0 0.0
      %6340 = vmatprep.subr.mxu0 0.0
      %6341 = vmatpush1.msra.mxu0 0.0
      %6342 = vmatprep.subr.mxu0 0.0
      %6343 = vmatpush1.msra.mxu0 0.0
      %6344 = vmatprep.subr.mxu0 0.0
      %6345 = vmatpush1.msra.mxu0 0.0
      %6346 = vmatprep.subr.mxu0 0.0
      %6347 = vmatpush1.msra.mxu0 0.0
      %6348 = vmatprep.subr.mxu0 0.0
      %6349 = vmatpush1.msra.mxu0 0.0
      %6350 = vmatprep.subr.mxu0 0.0
      %6351 = vmatpush1.msra.mxu0 0.0
      %6352 = vmatprep.subr.mxu0 0.0
      %6353 = vmatpush1.msra.mxu0 0.0
      %6354 = vmatprep.subr.mxu0 0.0
      %6355 = vmatpush1.msra.mxu0 0.0
      %6356 = vmatprep.subr.mxu0 0.0
      %6357 = vmatpush1.msra.mxu0 0.0
      %6358 = vmatprep.subr.mxu0 0.0
      %6359 = vmatpush1.msra.mxu0 0.0
      %6360 = vmatprep.subr.mxu0 0.0
      %6361 = vmatpush1.msra.mxu0 0.0
      %6362 = vmatprep.subr.mxu0 0.0
      %6363 = vmatpush1.msra.mxu0 0.0
      %6364 = vmatprep.subr.mxu0 0.0
      %6365 = vmatpush1.msra.mxu0 0.0
      %6366 = vmatprep.subr.mxu0 0.0
      %6367 = vmatpush1.msra.mxu0 0.0
      %6368 = vmatprep.mubr.f32.mxu0 0.0
      %6369 = vmatmul.mubr.f32.gmra.mrb[0].mxu0 %v6302
      %v6370 = vpop.f32.mrb[0].mxu0
      %v6371 = vadd.f32 0.0, %v6370
      %v6372 = vpop.f32.mrb[0].mxu0
      %v6373 = vadd.f32 0.0, %v6372
      %6374 = vdwg.mxu0
      %v6375 = vadd.f32 %v6221, %v6371
      %v6376 = vadd.f32 %v6223, %v6373
      %v6377 = vmul.f32 %v5936, %v426
      %v6378 = vmul.f32 %v5937, %v430
      %v6379 = vmul.f32 %v5938, %v428
      %v6380 = vmul.f32 %v5939, %v426
      %v6381 = vmul.f32 %v5940, %v430
      %v6382 = vmul.f32 %v5941, %v428
      %v6383 = vmul.f32 %v5942, %v426
      %v6384 = vmul.f32 %v5943, %v430
      %v6385 = vmul.f32 %v5944, %v428
      %v6386 = vmul.f32 %v5945, %v426
      %v6387 = vmul.f32 %v5946, %v430
      %v6388 = vmul.f32 %v5947, %v428
      %s6389 = scalar_lea.vmem %s3, 24
      %v6390 = vld [vmem:[%s6389] sm:$0xff]
      %6403 = vrot.lane.b32.xlu0 %v6377, 1
      %v6404 = vpop.permute.xlu0 %6403
      %6405 = vrot.lane.b32.xlu0 %v6378, 1
      %v6406 = vpop.permute.xlu0 %6405
      %6407 = vrot.lane.b32.xlu0 %v6379, 1
      %v6408 = vpop.permute.xlu0 %6407
      %6409 = vrot.lane.b32.xlu0 %v6380, 1
      %v6410 = vpop.permute.xlu0 %6409
      %6411 = vrot.lane.b32.xlu0 %v6381, 1
      %v6412 = vpop.permute.xlu0 %6411
      %6413 = vrot.lane.b32.xlu0 %v6382, 1
      %v6414 = vpop.permute.xlu0 %6413
      %6415 = vrot.lane.b32.xlu0 %v6383, 1
      %v6416 = vpop.permute.xlu0 %6415
      %6417 = vrot.lane.b32.xlu0 %v6384, 1
      %v6418 = vpop.permute.xlu0 %6417
      %6419 = vrot.lane.b32.xlu0 %v6385, 1
      %v6420 = vpop.permute.xlu0 %6419
      %6421 = vrot.lane.b32.xlu0 %v6386, 1
      %v6422 = vpop.permute.xlu0 %6421
      %6423 = vrot.lane.b32.xlu0 %v6387, 1
      %v6424 = vpop.permute.xlu0 %6423
      %6425 = vrot.lane.b32.xlu0 %v6388, 1
      %v6426 = vpop.permute.xlu0 %6425
      %v6427 = vsel %vm524, %v6404, %v6406
      %v6428 = vsel %vm524, %v6406, %v6408
      %v6429 = vsel %vm524, %v6410, %v6412
      %v6430 = vsel %vm524, %v6412, %v6414
      %v6431 = vsel %vm524, %v6416, %v6418
      %v6432 = vsel %vm524, %v6418, %v6420
      %v6433 = vsel %vm524, %v6422, %v6424
      %v6434 = vsel %vm524, %v6424, %v6426
      %v6444 = vsel %vm2498, %v6390, 0
      %6446 = vmatprep.subr.mxu0 %v6428
      %6447 = vmatpush1.msra.mxu0 %v6427
      %6448 = vmatprep.subr.mxu0 %v6430
      %6449 = vmatpush1.msra.mxu0 %v6429
      %6450 = vmatprep.subr.mxu0 %v6432
      %6451 = vmatpush1.msra.mxu0 %v6431
      %6452 = vmatprep.subr.mxu0 %v6434
      %6453 = vmatpush1.msra.mxu0 %v6433
      %6454 = vmatprep.subr.mxu0 0.0
      %6455 = vmatpush1.msra.mxu0 0.0
      %6456 = vmatprep.subr.mxu0 0.0
      %6457 = vmatpush1.msra.mxu0 0.0
      %6458 = vmatprep.subr.mxu0 0.0
      %6459 = vmatpush1.msra.mxu0 0.0
      %6460 = vmatprep.subr.mxu0 0.0
      %6461 = vmatpush1.msra.mxu0 0.0
      %6462 = vmatprep.subr.mxu0 0.0
      %6463 = vmatpush1.msra.mxu0 0.0
      %6464 = vmatprep.subr.mxu0 0.0
      %6465 = vmatpush1.msra.mxu0 0.0
      %6466 = vmatprep.subr.mxu0 0.0
      %6467 = vmatpush1.msra.mxu0 0.0
      %6468 = vmatprep.subr.mxu0 0.0
      %6469 = vmatpush1.msra.mxu0 0.0
      %6470 = vmatprep.subr.mxu0 0.0
      %6471 = vmatpush1.msra.mxu0 0.0
      %6472 = vmatprep.subr.mxu0 0.0
      %6473 = vmatpush1.msra.mxu0 0.0
      %6474 = vmatprep.subr.mxu0 0.0
      %6475 = vmatpush1.msra.mxu0 0.0
      %6476 = vmatprep.subr.mxu0 0.0
      %6477 = vmatpush1.msra.mxu0 0.0
      %6478 = vmatprep.subr.mxu0 0.0
      %6479 = vmatpush1.msra.mxu0 0.0
      %6480 = vmatprep.subr.mxu0 0.0
      %6481 = vmatpush1.msra.mxu0 0.0
      %6482 = vmatprep.subr.mxu0 0.0
      %6483 = vmatpush1.msra.mxu0 0.0
      %6484 = vmatprep.subr.mxu0 0.0
      %6485 = vmatpush1.msra.mxu0 0.0
      %6486 = vmatprep.subr.mxu0 0.0
      %6487 = vmatpush1.msra.mxu0 0.0
      %6488 = vmatprep.subr.mxu0 0.0
      %6489 = vmatpush1.msra.mxu0 0.0
      %6490 = vmatprep.subr.mxu0 0.0
      %6491 = vmatpush1.msra.mxu0 0.0
      %6492 = vmatprep.subr.mxu0 0.0
      %6493 = vmatpush1.msra.mxu0 0.0
      %6494 = vmatprep.subr.mxu0 0.0
      %6495 = vmatpush1.msra.mxu0 0.0
      %6496 = vmatprep.subr.mxu0 0.0
      %6497 = vmatpush1.msra.mxu0 0.0
      %6498 = vmatprep.subr.mxu0 0.0
      %6499 = vmatpush1.msra.mxu0 0.0
      %6500 = vmatprep.subr.mxu0 0.0
      %6501 = vmatpush1.msra.mxu0 0.0
      %6502 = vmatprep.subr.mxu0 0.0
      %6503 = vmatpush1.msra.mxu0 0.0
      %6504 = vmatprep.subr.mxu0 0.0
      %6505 = vmatpush1.msra.mxu0 0.0
      %6506 = vmatprep.subr.mxu0 0.0
      %6507 = vmatpush1.msra.mxu0 0.0
      %6508 = vmatprep.subr.mxu0 0.0
      %6509 = vmatpush1.msra.mxu0 0.0
      %6510 = vmatprep.mubr.f32.mxu0 0.0
      %6511 = vmatmul.mubr.f32.gmra.mrb[0].mxu0 %v6444
      %v6512 = vpop.f32.mrb[0].mxu0
      %v6513 = vadd.f32 0.0, %v6512
      %v6514 = vpop.f32.mrb[0].mxu0
      %v6515 = vadd.f32 0.0, %v6514
      %6516 = vdwg.mxu0
      %v6517 = vadd.f32 %v6375, %v6513
      %v6518 = vadd.f32 %v6376, %v6515
      %s6519 = scalar_lea.vmem %s3, 32
      %v6520 = vld [vmem:[%s6519] sm:$0xff]
      %v6522 = vsel %vm2498, %v6520, 0
      %6524 = vmatprep.subr.mxu0 %v5938
      %6525 = vmatpush1.msra.mxu0 %v5937
      %6526 = vmatprep.subr.mxu0 %v5941
      %6527 = vmatpush1.msra.mxu0 %v5940
      %6528 = vmatprep.subr.mxu0 %v5944
      %6529 = vmatpush1.msra.mxu0 %v5943
      %6530 = vmatprep.subr.mxu0 %v5947
      %6531 = vmatpush1.msra.mxu0 %v5946
      %6532 = vmatprep.subr.mxu0 0.0
      %6533 = vmatpush1.msra.mxu0 0.0
      %6534 = vmatprep.subr.mxu0 0.0
      %6535 = vmatpush1.msra.mxu0 0.0
      %6536 = vmatprep.subr.mxu0 0.0
      %6537 = vmatpush1.msra.mxu0 0.0
      %6538 = vmatprep.subr.mxu0 0.0
      %6539 = vmatpush1.msra.mxu0 0.0
      %6540 = vmatprep.subr.mxu0 0.0
      %6541 = vmatpush1.msra.mxu0 0.0
      %6542 = vmatprep.subr.mxu0 0.0
      %6543 = vmatpush1.msra.mxu0 0.0
      %6544 = vmatprep.subr.mxu0 0.0
      %6545 = vmatpush1.msra.mxu0 0.0
      %6546 = vmatprep.subr.mxu0 0.0
      %6547 = vmatpush1.msra.mxu0 0.0
      %6548 = vmatprep.subr.mxu0 0.0
      %6549 = vmatpush1.msra.mxu0 0.0
      %6550 = vmatprep.subr.mxu0 0.0
      %6551 = vmatpush1.msra.mxu0 0.0
      %6552 = vmatprep.subr.mxu0 0.0
      %6553 = vmatpush1.msra.mxu0 0.0
      %6554 = vmatprep.subr.mxu0 0.0
      %6555 = vmatpush1.msra.mxu0 0.0
      %6556 = vmatprep.subr.mxu0 0.0
      %6557 = vmatpush1.msra.mxu0 0.0
      %6558 = vmatprep.subr.mxu0 0.0
      %6559 = vmatpush1.msra.mxu0 0.0
      %6560 = vmatprep.subr.mxu0 0.0
      %6561 = vmatpush1.msra.mxu0 0.0
      %6562 = vmatprep.subr.mxu0 0.0
      %6563 = vmatpush1.msra.mxu0 0.0
      %6564 = vmatprep.subr.mxu0 0.0
      %6565 = vmatpush1.msra.mxu0 0.0
      %6566 = vmatprep.subr.mxu0 0.0
      %6567 = vmatpush1.msra.mxu0 0.0
      %6568 = vmatprep.subr.mxu0 0.0
      %6569 = vmatpush1.msra.mxu0 0.0
      %6570 = vmatprep.subr.mxu0 0.0
      %6571 = vmatpush1.msra.mxu0 0.0
      %6572 = vmatprep.subr.mxu0 0.0
      %6573 = vmatpush1.msra.mxu0 0.0
      %6574 = vmatprep.subr.mxu0 0.0
      %6575 = vmatpush1.msra.mxu0 0.0
      %6576 = vmatprep.subr.mxu0 0.0
      %6577 = vmatpush1.msra.mxu0 0.0
      %6578 = vmatprep.subr.mxu0 0.0
      %6579 = vmatpush1.msra.mxu0 0.0
      %6580 = vmatprep.subr.mxu0 0.0
      %6581 = vmatpush1.msra.mxu0 0.0
      %6582 = vmatprep.subr.mxu0 0.0
      %6583 = vmatpush1.msra.mxu0 0.0
      %6584 = vmatprep.subr.mxu0 0.0
      %6585 = vmatpush1.msra.mxu0 0.0
      %6586 = vmatprep.subr.mxu0 0.0
      %6587 = vmatpush1.msra.mxu0 0.0
      %6588 = vmatprep.mubr.f32.mxu0 0.0
      %6589 = vmatmul.mubr.f32.gmra.mrb[0].mxu0 %v6522
      %v6590 = vpop.f32.mrb[0].mxu0
      %v6591 = vadd.f32 0.0, %v6590
      %v6592 = vpop.f32.mrb[0].mxu0
      %v6593 = vadd.f32 0.0, %v6592
      %6594 = vdwg.mxu0
      %v6595 = vadd.f32 %v6517, %v6591
      %v6596 = vadd.f32 %v6518, %v6593
      %v6597 = vld [vmem:[#allocation2 + $0x8] sm:$0xff]
      %v6598 = vld [vmem:[#allocation2 + $0x10] sm:$0xff]
      %v6599 = vld [vmem:[#allocation2 + $0x18] sm:$0xff]
      %v6600 = vld [vmem:[#allocation2 + $0x28] sm:$0xff]
      %v6601 = vld [vmem:[#allocation2 + $0x30] sm:$0xff]
      %v6602 = vld [vmem:[#allocation2 + $0x38] sm:$0xff]
      %v6603 = vld [vmem:[#allocation2 + $0x48] sm:$0xff]
      %v6604 = vld [vmem:[#allocation2 + $0x50] sm:$0xff]
      %v6605 = vld [vmem:[#allocation2 + $0x58] sm:$0xff]
      %v6606 = vld [vmem:[#allocation2 + $0x68] sm:$0xff]
      %v6607 = vld [vmem:[#allocation2 + $0x70] sm:$0xff]
      %v6608 = vld [vmem:[#allocation2 + $0x78] sm:$0xff]
      %v6609 = vmul.f32 %v6597, %v613
      %v6610 = vmul.f32 %v6598, %v616
      %v6611 = vmul.f32 %v6599, %v615
      %v6612 = vmul.f32 %v6600, %v613
      %v6613 = vmul.f32 %v6601, %v616
      %v6614 = vmul.f32 %v6602, %v615
      %v6615 = vmul.f32 %v6603, %v613
      %v6616 = vmul.f32 %v6604, %v616
      %v6617 = vmul.f32 %v6605, %v615
      %v6618 = vmul.f32 %v6606, %v613
      %v6619 = vmul.f32 %v6607, %v616
      %v6620 = vmul.f32 %v6608, %v615
      %s6621 = scalar_lea.vmem %s3, 40
      %v6622 = vld [vmem:[%s6621] sm:$0xff]
      %6635 = vrot.lane.b32.xlu0 %v6609, 127
      %v6636 = vpop.permute.xlu0 %6635
      %6637 = vrot.lane.b32.xlu0 %v6610, 127
      %v6638 = vpop.permute.xlu0 %6637
      %6639 = vrot.lane.b32.xlu0 %v6611, 127
      %v6640 = vpop.permute.xlu0 %6639
      %6641 = vrot.lane.b32.xlu0 %v6612, 127
      %v6642 = vpop.permute.xlu0 %6641
      %6643 = vrot.lane.b32.xlu0 %v6613, 127
      %v6644 = vpop.permute.xlu0 %6643
      %6645 = vrot.lane.b32.xlu0 %v6614, 127
      %v6646 = vpop.permute.xlu0 %6645
      %6647 = vrot.lane.b32.xlu0 %v6615, 127
      %v6648 = vpop.permute.xlu0 %6647
      %6649 = vrot.lane.b32.xlu0 %v6616, 127
      %v6650 = vpop.permute.xlu0 %6649
      %6651 = vrot.lane.b32.xlu0 %v6617, 127
      %v6652 = vpop.permute.xlu0 %6651
      %6653 = vrot.lane.b32.xlu0 %v6618, 127
      %v6654 = vpop.permute.xlu0 %6653
      %6655 = vrot.lane.b32.xlu0 %v6619, 127
      %v6656 = vpop.permute.xlu0 %6655
      %6657 = vrot.lane.b32.xlu0 %v6620, 127
      %v6658 = vpop.permute.xlu0 %6657
      %v6659 = vsel %vm429, %v6636, %v6638
      %v6660 = vsel %vm429, %v6638, %v6640
      %v6661 = vsel %vm429, %v6642, %v6644
      %v6662 = vsel %vm429, %v6644, %v6646
      %v6663 = vsel %vm429, %v6648, %v6650
      %v6664 = vsel %vm429, %v6650, %v6652
      %v6665 = vsel %vm429, %v6654, %v6656
      %v6666 = vsel %vm429, %v6656, %v6658
      %v6676 = vsel %vm2498, %v6622, 0
      %6678 = vmatprep.subr.mxu0 %v6660
      %6679 = vmatpush1.msra.mxu0 %v6659
      %6680 = vmatprep.subr.mxu0 %v6662
      %6681 = vmatpush1.msra.mxu0 %v6661
      %6682 = vmatprep.subr.mxu0 %v6664
      %6683 = vmatpush1.msra.mxu0 %v6663
      %6684 = vmatprep.subr.mxu0 %v6666
      %6685 = vmatpush1.msra.mxu0 %v6665
      %6686 = vmatprep.subr.mxu0 0.0
      %6687 = vmatpush1.msra.mxu0 0.0
      %6688 = vmatprep.subr.mxu0 0.0
      %6689 = vmatpush1.msra.mxu0 0.0
      %6690 = vmatprep.subr.mxu0 0.0
      %6691 = vmatpush1.msra.mxu0 0.0
      %6692 = vmatprep.subr.mxu0 0.0
      %6693 = vmatpush1.msra.mxu0 0.0
      %6694 = vmatprep.subr.mxu0 0.0
      %6695 = vmatpush1.msra.mxu0 0.0
      %6696 = vmatprep.subr.mxu0 0.0
      %6697 = vmatpush1.msra.mxu0 0.0
      %6698 = vmatprep.subr.mxu0 0.0
      %6699 = vmatpush1.msra.mxu0 0.0
      %6700 = vmatprep.subr.mxu0 0.0
      %6701 = vmatpush1.msra.mxu0 0.0
      %6702 = vmatprep.subr.mxu0 0.0
      %6703 = vmatpush1.msra.mxu0 0.0
      %6704 = vmatprep.subr.mxu0 0.0
      %6705 = vmatpush1.msra.mxu0 0.0
      %6706 = vmatprep.subr.mxu0 0.0
      %6707 = vmatpush1.msra.mxu0 0.0
      %6708 = vmatprep.subr.mxu0 0.0
      %6709 = vmatpush1.msra.mxu0 0.0
      %6710 = vmatprep.subr.mxu0 0.0
      %6711 = vmatpush1.msra.mxu0 0.0
      %6712 = vmatprep.subr.mxu0 0.0
      %6713 = vmatpush1.msra.mxu0 0.0
      %6714 = vmatprep.subr.mxu0 0.0
      %6715 = vmatpush1.msra.mxu0 0.0
      %6716 = vmatprep.subr.mxu0 0.0
      %6717 = vmatpush1.msra.mxu0 0.0
      %6718 = vmatprep.subr.mxu0 0.0
      %6719 = vmatpush1.msra.mxu0 0.0
      %6720 = vmatprep.subr.mxu0 0.0
      %6721 = vmatpush1.msra.mxu0 0.0
      %6722 = vmatprep.subr.mxu0 0.0
      %6723 = vmatpush1.msra.mxu0 0.0
      %6724 = vmatprep.subr.mxu0 0.0
      %6725 = vmatpush1.msra.mxu0 0.0
      %6726 = vmatprep.subr.mxu0 0.0
      %6727 = vmatpush1.msra.mxu0 0.0
      %6728 = vmatprep.subr.mxu0 0.0
      %6729 = vmatpush1.msra.mxu0 0.0
      %6730 = vmatprep.subr.mxu0 0.0
      %6731 = vmatpush1.msra.mxu0 0.0
      %6732 = vmatprep.subr.mxu0 0.0
      %6733 = vmatpush1.msra.mxu0 0.0
      %6734 = vmatprep.subr.mxu0 0.0
      %6735 = vmatpush1.msra.mxu0 0.0
      %6736 = vmatprep.subr.mxu0 0.0
      %6737 = vmatpush1.msra.mxu0 0.0
      %6738 = vmatprep.subr.mxu0 0.0
      %6739 = vmatpush1.msra.mxu0 0.0
      %6740 = vmatprep.subr.mxu0 0.0
      %6741 = vmatpush1.msra.mxu0 0.0
      %6742 = vmatprep.mubr.f32.mxu0 0.0
      %6743 = vmatmul.mubr.f32.gmra.mrb[0].mxu0 %v6676
      %v6744 = vpop.f32.mrb[0].mxu0
      %v6745 = vadd.f32 0.0, %v6744
      %v6746 = vpop.f32.mrb[0].mxu0
      %v6747 = vadd.f32 0.0, %v6746
      %6748 = vdwg.mxu0
      %v6749 = vadd.f32 %v6595, %v6745
      %v6750 = vadd.f32 %v6596, %v6747
      %6751 = vrot.lane.b32.xlu0 %v421, 15
      %v6752 = vpop.permute.xlu0 %6751
      %6753 = vrot.lane.b32.xlu0 %v422, 15
      %v6754 = vpop.permute.xlu0 %6753
      %v6755 = vsel %vm6284, %v6752, %v6754
      %v6759 = vmul.f32 %v6597, %v6752
      %v6760 = vmul.f32 %v6598, %v6755
      %v6761 = vmul.f32 %v6599, %v6754
      %v6762 = vmul.f32 %v6600, %v6752
      %v6763 = vmul.f32 %v6601, %v6755
      %v6764 = vmul.f32 %v6602, %v6754
      %v6765 = vmul.f32 %v6603, %v6752
      %v6766 = vmul.f32 %v6604, %v6755
      %v6767 = vmul.f32 %v6605, %v6754
      %v6768 = vmul.f32 %v6606, %v6752
      %v6769 = vmul.f32 %v6607, %v6755
      %v6770 = vmul.f32 %v6608, %v6754
      %s6771 = scalar_lea.vmem %s3, 48
      %v6772 = vld [vmem:[%s6771] sm:$0xff]
      %6785 = vrot.lane.b32.xlu0 %v6759, 113
      %v6786 = vpop.permute.xlu0 %6785
      %6787 = vrot.lane.b32.xlu0 %v6760, 113
      %v6788 = vpop.permute.xlu0 %6787
      %6789 = vrot.lane.b32.xlu0 %v6761, 113
      %v6790 = vpop.permute.xlu0 %6789
      %6791 = vrot.lane.b32.xlu0 %v6762, 113
      %v6792 = vpop.permute.xlu0 %6791
      %6793 = vrot.lane.b32.xlu0 %v6763, 113
      %v6794 = vpop.permute.xlu0 %6793
      %6795 = vrot.lane.b32.xlu0 %v6764, 113
      %v6796 = vpop.permute.xlu0 %6795
      %6797 = vrot.lane.b32.xlu0 %v6765, 113
      %v6798 = vpop.permute.xlu0 %6797
      %6799 = vrot.lane.b32.xlu0 %v6766, 113
      %v6800 = vpop.permute.xlu0 %6799
      %6801 = vrot.lane.b32.xlu0 %v6767, 113
      %v6802 = vpop.permute.xlu0 %6801
      %6803 = vrot.lane.b32.xlu0 %v6768, 113
      %v6804 = vpop.permute.xlu0 %6803
      %6805 = vrot.lane.b32.xlu0 %v6769, 113
      %v6806 = vpop.permute.xlu0 %6805
      %6807 = vrot.lane.b32.xlu0 %v6770, 113
      %v6808 = vpop.permute.xlu0 %6807
      %v6809 = vsel %vm6229, %v6786, %v6788
      %v6810 = vsel %vm6229, %v6788, %v6790
      %v6811 = vsel %vm6229, %v6792, %v6794
      %v6812 = vsel %vm6229, %v6794, %v6796
      %v6813 = vsel %vm6229, %v6798, %v6800
      %v6814 = vsel %vm6229, %v6800, %v6802
      %v6815 = vsel %vm6229, %v6804, %v6806
      %v6816 = vsel %vm6229, %v6806, %v6808
      %v6826 = vsel %vm2498, %v6772, 0
      %6828 = vmatprep.subr.mxu0 %v6810
      %6829 = vmatpush1.msra.mxu0 %v6809
      %6830 = vmatprep.subr.mxu0 %v6812
      %6831 = vmatpush1.msra.mxu0 %v6811
      %6832 = vmatprep.subr.mxu0 %v6814
      %6833 = vmatpush1.msra.mxu0 %v6813
      %6834 = vmatprep.subr.mxu0 %v6816
      %6835 = vmatpush1.msra.mxu0 %v6815
      %6836 = vmatprep.subr.mxu0 0.0
      %6837 = vmatpush1.msra.mxu0 0.0
      %6838 = vmatprep.subr.mxu0 0.0
      %6839 = vmatpush1.msra.mxu0 0.0
      %6840 = vmatprep.subr.mxu0 0.0
      %6841 = vmatpush1.msra.mxu0 0.0
      %6842 = vmatprep.subr.mxu0 0.0
      %6843 = vmatpush1.msra.mxu0 0.0
      %6844 = vmatprep.subr.mxu0 0.0
      %6845 = vmatpush1.msra.mxu0 0.0
      %6846 = vmatprep.subr.mxu0 0.0
      %6847 = vmatpush1.msra.mxu0 0.0
      %6848 = vmatprep.subr.mxu0 0.0
      %6849 = vmatpush1.msra.mxu0 0.0
      %6850 = vmatprep.subr.mxu0 0.0
      %6851 = vmatpush1.msra.mxu0 0.0
      %6852 = vmatprep.subr.mxu0 0.0
      %6853 = vmatpush1.msra.mxu0 0.0
      %6854 = vmatprep.subr.mxu0 0.0
      %6855 = vmatpush1.msra.mxu0 0.0
      %6856 = vmatprep.subr.mxu0 0.0
      %6857 = vmatpush1.msra.mxu0 0.0
      %6858 = vmatprep.subr.mxu0 0.0
      %6859 = vmatpush1.msra.mxu0 0.0
      %6860 = vmatprep.subr.mxu0 0.0
      %6861 = vmatpush1.msra.mxu0 0.0
      %6862 = vmatprep.subr.mxu0 0.0
      %6863 = vmatpush1.msra.mxu0 0.0
      %6864 = vmatprep.subr.mxu0 0.0
      %6865 = vmatpush1.msra.mxu0 0.0
      %6866 = vmatprep.subr.mxu0 0.0
      %6867 = vmatpush1.msra.mxu0 0.0
      %6868 = vmatprep.subr.mxu0 0.0
      %6869 = vmatpush1.msra.mxu0 0.0
      %6870 = vmatprep.subr.mxu0 0.0
      %6871 = vmatpush1.msra.mxu0 0.0
      %6872 = vmatprep.subr.mxu0 0.0
      %6873 = vmatpush1.msra.mxu0 0.0
      %6874 = vmatprep.subr.mxu0 0.0
      %6875 = vmatpush1.msra.mxu0 0.0
      %6876 = vmatprep.subr.mxu0 0.0
      %6877 = vmatpush1.msra.mxu0 0.0
      %6878 = vmatprep.subr.mxu0 0.0
      %6879 = vmatpush1.msra.mxu0 0.0
      %6880 = vmatprep.subr.mxu0 0.0
      %6881 = vmatpush1.msra.mxu0 0.0
      %6882 = vmatprep.subr.mxu0 0.0
      %6883 = vmatpush1.msra.mxu0 0.0
      %6884 = vmatprep.subr.mxu0 0.0
      %6885 = vmatpush1.msra.mxu0 0.0
      %6886 = vmatprep.subr.mxu0 0.0
      %6887 = vmatpush1.msra.mxu0 0.0
      %6888 = vmatprep.subr.mxu0 0.0
      %6889 = vmatpush1.msra.mxu0 0.0
      %6890 = vmatprep.subr.mxu0 0.0
      %6891 = vmatpush1.msra.mxu0 0.0
      %6892 = vmatprep.mubr.f32.mxu0 0.0
      %6893 = vmatmul.mubr.f32.gmra.mrb[0].mxu0 %v6826
      %v6894 = vpop.f32.mrb[0].mxu0
      %v6895 = vadd.f32 0.0, %v6894
      %v6896 = vpop.f32.mrb[0].mxu0
      %v6897 = vadd.f32 0.0, %v6896
      %6898 = vdwg.mxu0
      %v6899 = vadd.f32 %v6749, %v6895
      %v6900 = vadd.f32 %v6750, %v6897
      %s6901 = scalar_lea.vmem %s3, 56
      %v6902 = vld [vmem:[%s6901] sm:$0xff]
      %6915 = vrot.lane.b32.xlu0 %v6597, 112
      %v6916 = vpop.permute.xlu0 %6915
      %6917 = vrot.lane.b32.xlu0 %v6598, 112
      %v6918 = vpop.permute.xlu0 %6917
      %6919 = vrot.lane.b32.xlu0 %v6599, 112
      %v6920 = vpop.permute.xlu0 %6919
      %6921 = vrot.lane.b32.xlu0 %v6600, 112
      %v6922 = vpop.permute.xlu0 %6921
      %6923 = vrot.lane.b32.xlu0 %v6601, 112
      %v6924 = vpop.permute.xlu0 %6923
      %6925 = vrot.lane.b32.xlu0 %v6602, 112
      %v6926 = vpop.permute.xlu0 %6925
      %6927 = vrot.lane.b32.xlu0 %v6603, 112
      %v6928 = vpop.permute.xlu0 %6927
      %6929 = vrot.lane.b32.xlu0 %v6604, 112
      %v6930 = vpop.permute.xlu0 %6929
      %6931 = vrot.lane.b32.xlu0 %v6605, 112
      %v6932 = vpop.permute.xlu0 %6931
      %6933 = vrot.lane.b32.xlu0 %v6606, 112
      %v6934 = vpop.permute.xlu0 %6933
      %6935 = vrot.lane.b32.xlu0 %v6607, 112
      %v6936 = vpop.permute.xlu0 %6935
      %6937 = vrot.lane.b32.xlu0 %v6608, 112
      %v6938 = vpop.permute.xlu0 %6937
      %v6939 = vsel %vm907, %v6916, %v6918
      %v6940 = vsel %vm907, %v6918, %v6920
      %v6941 = vsel %vm907, %v6922, %v6924
      %v6942 = vsel %vm907, %v6924, %v6926
      %v6943 = vsel %vm907, %v6928, %v6930
      %v6944 = vsel %vm907, %v6930, %v6932
      %v6945 = vsel %vm907, %v6934, %v6936
      %v6946 = vsel %vm907, %v6936, %v6938
      %v6956 = vsel %vm2498, %v6902, 0
      %6958 = vmatprep.subr.mxu0 %v6940
      %6959 = vmatpush1.msra.mxu0 %v6939
      %6960 = vmatprep.subr.mxu0 %v6942
      %6961 = vmatpush1.msra.mxu0 %v6941
      %6962 = vmatprep.subr.mxu0 %v6944
      %6963 = vmatpush1.msra.mxu0 %v6943
      %6964 = vmatprep.subr.mxu0 %v6946
      %6965 = vmatpush1.msra.mxu0 %v6945
      %6966 = vmatprep.subr.mxu0 0.0
      %6967 = vmatpush1.msra.mxu0 0.0
      %6968 = vmatprep.subr.mxu0 0.0
      %6969 = vmatpush1.msra.mxu0 0.0
      %6970 = vmatprep.subr.mxu0 0.0
      %6971 = vmatpush1.msra.mxu0 0.0
      %6972 = vmatprep.subr.mxu0 0.0
      %6973 = vmatpush1.msra.mxu0 0.0
      %6974 = vmatprep.subr.mxu0 0.0
      %6975 = vmatpush1.msra.mxu0 0.0
      %6976 = vmatprep.subr.mxu0 0.0
      %6977 = vmatpush1.msra.mxu0 0.0
      %6978 = vmatprep.subr.mxu0 0.0
      %6979 = vmatpush1.msra.mxu0 0.0
      %6980 = vmatprep.subr.mxu0 0.0
      %6981 = vmatpush1.msra.mxu0 0.0
      %6982 = vmatprep.subr.mxu0 0.0
      %6983 = vmatpush1.msra.mxu0 0.0
      %6984 = vmatprep.subr.mxu0 0.0
      %6985 = vmatpush1.msra.mxu0 0.0
      %6986 = vmatprep.subr.mxu0 0.0
      %6987 = vmatpush1.msra.mxu0 0.0
      %6988 = vmatprep.subr.mxu0 0.0
      %6989 = vmatpush1.msra.mxu0 0.0
      %6990 = vmatprep.subr.mxu0 0.0
      %6991 = vmatpush1.msra.mxu0 0.0
      %6992 = vmatprep.subr.mxu0 0.0
      %6993 = vmatpush1.msra.mxu0 0.0
      %6994 = vmatprep.subr.mxu0 0.0
      %6995 = vmatpush1.msra.mxu0 0.0
      %6996 = vmatprep.subr.mxu0 0.0
      %6997 = vmatpush1.msra.mxu0 0.0
      %6998 = vmatprep.subr.mxu0 0.0
      %6999 = vmatpush1.msra.mxu0 0.0
      %7000 = vmatprep.subr.mxu0 0.0
      %7001 = vmatpush1.msra.mxu0 0.0
      %7002 = vmatprep.subr.mxu0 0.0
      %7003 = vmatpush1.msra.mxu0 0.0
      %7004 = vmatprep.subr.mxu0 0.0
      %7005 = vmatpush1.msra.mxu0 0.0
      %7006 = vmatprep.subr.mxu0 0.0
      %7007 = vmatpush1.msra.mxu0 0.0
      %7008 = vmatprep.subr.mxu0 0.0
      %7009 = vmatpush1.msra.mxu0 0.0
      %7010 = vmatprep.subr.mxu0 0.0
      %7011 = vmatpush1.msra.mxu0 0.0
      %7012 = vmatprep.subr.mxu0 0.0
      %7013 = vmatpush1.msra.mxu0 0.0
      %7014 = vmatprep.subr.mxu0 0.0
      %7015 = vmatpush1.msra.mxu0 0.0
      %7016 = vmatprep.subr.mxu0 0.0
      %7017 = vmatpush1.msra.mxu0 0.0
      %7018 = vmatprep.subr.mxu0 0.0
      %7019 = vmatpush1.msra.mxu0 0.0
      %7020 = vmatprep.subr.mxu0 0.0
      %7021 = vmatpush1.msra.mxu0 0.0
      %7022 = vmatprep.mubr.f32.mxu0 0.0
      %7023 = vmatmul.mubr.f32.gmra.mrb[0].mxu0 %v6956
      %v7024 = vpop.f32.mrb[0].mxu0
      %v7025 = vadd.f32 0.0, %v7024
      %v7026 = vpop.f32.mrb[0].mxu0
      %v7027 = vadd.f32 0.0, %v7026
      %7028 = vdwg.mxu0
      %v7029 = vadd.f32 %v6899, %v7025
      %v7030 = vadd.f32 %v6900, %v7027
      %7031 = vrot.lane.b32.xlu0 %v608, 17
      %v7032 = vpop.permute.xlu0 %7031
      %7033 = vrot.lane.b32.xlu0 %v609, 17
      %v7034 = vpop.permute.xlu0 %7033
      %v7035 = vsel %vm6134, %v7032, %v7034
      %v7039 = vmul.f32 %v6597, %v7032
      %v7040 = vmul.f32 %v6598, %v7035
      %v7041 = vmul.f32 %v6599, %v7034
      %v7042 = vmul.f32 %v6600, %v7032
      %v7043 = vmul.f32 %v6601, %v7035
      %v7044 = vmul.f32 %v6602, %v7034
      %v7045 = vmul.f32 %v6603, %v7032
      %v7046 = vmul.f32 %v6604, %v7035
      %v7047 = vmul.f32 %v6605, %v7034
      %v7048 = vmul.f32 %v6606, %v7032
      %v7049 = vmul.f32 %v6607, %v7035
      %v7050 = vmul.f32 %v6608, %v7034
      %s7051 = scalar_lea.vmem %s3, 64
      %v7052 = vld [vmem:[%s7051] sm:$0xff]
      %7065 = vrot.lane.b32.xlu0 %v7039, 111
      %v7066 = vpop.permute.xlu0 %7065
      %7067 = vrot.lane.b32.xlu0 %v7040, 111
      %v7068 = vpop.permute.xlu0 %7067
      %7069 = vrot.lane.b32.xlu0 %v7041, 111
      %v7070 = vpop.permute.xlu0 %7069
      %7071 = vrot.lane.b32.xlu0 %v7042, 111
      %v7072 = vpop.permute.xlu0 %7071
      %7073 = vrot.lane.b32.xlu0 %v7043, 111
      %v7074 = vpop.permute.xlu0 %7073
      %7075 = vrot.lane.b32.xlu0 %v7044, 111
      %v7076 = vpop.permute.xlu0 %7075
      %7077 = vrot.lane.b32.xlu0 %v7045, 111
      %v7078 = vpop.permute.xlu0 %7077
      %7079 = vrot.lane.b32.xlu0 %v7046, 111
      %v7080 = vpop.permute.xlu0 %7079
      %7081 = vrot.lane.b32.xlu0 %v7047, 111
      %v7082 = vpop.permute.xlu0 %7081
      %7083 = vrot.lane.b32.xlu0 %v7048, 111
      %v7084 = vpop.permute.xlu0 %7083
      %7085 = vrot.lane.b32.xlu0 %v7049, 111
      %v7086 = vpop.permute.xlu0 %7085
      %7087 = vrot.lane.b32.xlu0 %v7050, 111
      %v7088 = vpop.permute.xlu0 %7087
      %v7089 = vsel %vm5952, %v7066, %v7068
      %v7090 = vsel %vm5952, %v7068, %v7070
      %v7091 = vsel %vm5952, %v7072, %v7074
      %v7092 = vsel %vm5952, %v7074, %v7076
      %v7093 = vsel %vm5952, %v7078, %v7080
      %v7094 = vsel %vm5952, %v7080, %v7082
      %v7095 = vsel %vm5952, %v7084, %v7086
      %v7096 = vsel %vm5952, %v7086, %v7088
      %v7106 = vsel %vm2498, %v7052, 0
      %7108 = vmatprep.subr.mxu0 %v7090
      %7109 = vmatpush1.msra.mxu0 %v7089
      %7110 = vmatprep.subr.mxu0 %v7092
      %7111 = vmatpush1.msra.mxu0 %v7091
      %7112 = vmatprep.subr.mxu0 %v7094
      %7113 = vmatpush1.msra.mxu0 %v7093
      %7114 = vmatprep.subr.mxu0 %v7096
      %7115 = vmatpush1.msra.mxu0 %v7095
      %7116 = vmatprep.subr.mxu0 0.0
      %7117 = vmatpush1.msra.mxu0 0.0
      %7118 = vmatprep.subr.mxu0 0.0
      %7119 = vmatpush1.msra.mxu0 0.0
      %7120 = vmatprep.subr.mxu0 0.0
      %7121 = vmatpush1.msra.mxu0 0.0
      %7122 = vmatprep.subr.mxu0 0.0
      %7123 = vmatpush1.msra.mxu0 0.0
      %7124 = vmatprep.subr.mxu0 0.0
      %7125 = vmatpush1.msra.mxu0 0.0
      %7126 = vmatprep.subr.mxu0 0.0
      %7127 = vmatpush1.msra.mxu0 0.0
      %7128 = vmatprep.subr.mxu0 0.0
      %7129 = vmatpush1.msra.mxu0 0.0
      %7130 = vmatprep.subr.mxu0 0.0
      %7131 = vmatpush1.msra.mxu0 0.0
      %7132 = vmatprep.subr.mxu0 0.0
      %7133 = vmatpush1.msra.mxu0 0.0
      %7134 = vmatprep.subr.mxu0 0.0
      %7135 = vmatpush1.msra.mxu0 0.0
      %7136 = vmatprep.subr.mxu0 0.0
      %7137 = vmatpush1.msra.mxu0 0.0
      %7138 = vmatprep.subr.mxu0 0.0
      %7139 = vmatpush1.msra.mxu0 0.0
      %7140 = vmatprep.subr.mxu0 0.0
      %7141 = vmatpush1.msra.mxu0 0.0
      %7142 = vmatprep.subr.mxu0 0.0
      %7143 = vmatpush1.msra.mxu0 0.0
      %7144 = vmatprep.subr.mxu0 0.0
      %7145 = vmatpush1.msra.mxu0 0.0
      %7146 = vmatprep.subr.mxu0 0.0
      %7147 = vmatpush1.msra.mxu0 0.0
      %7148 = vmatprep.subr.mxu0 0.0
      %7149 = vmatpush1.msra.mxu0 0.0
      %7150 = vmatprep.subr.mxu0 0.0
      %7151 = vmatpush1.msra.mxu0 0.0
      %7152 = vmatprep.subr.mxu0 0.0
      %7153 = vmatpush1.msra.mxu0 0.0
      %7154 = vmatprep.subr.mxu0 0.0
      %7155 = vmatpush1.msra.mxu0 0.0
      %7156 = vmatprep.subr.mxu0 0.0
      %7157 = vmatpush1.msra.mxu0 0.0
      %7158 = vmatprep.subr.mxu0 0.0
      %7159 = vmatpush1.msra.mxu0 0.0
      %7160 = vmatprep.subr.mxu0 0.0
      %7161 = vmatpush1.msra.mxu0 0.0
      %7162 = vmatprep.subr.mxu0 0.0
      %7163 = vmatpush1.msra.mxu0 0.0
      %7164 = vmatprep.subr.mxu0 0.0
      %7165 = vmatpush1.msra.mxu0 0.0
      %7166 = vmatprep.subr.mxu0 0.0
      %7167 = vmatpush1.msra.mxu0 0.0
      %7168 = vmatprep.subr.mxu0 0.0
      %7169 = vmatpush1.msra.mxu0 0.0
      %7170 = vmatprep.subr.mxu0 0.0
      %7171 = vmatpush1.msra.mxu0 0.0
      %7172 = vmatprep.mubr.f32.mxu0 0.0
      %7173 = vmatmul.mubr.f32.gmra.mrb[0].mxu0 %v7106
      %v7174 = vpop.f32.mrb[0].mxu0
      %v7175 = vadd.f32 0.0, %v7174
      %v7176 = vpop.f32.mrb[0].mxu0
      %v7177 = vadd.f32 0.0, %v7176
      %7178 = vdwg.mxu0
      %v7179 = vadd.f32 %v7029, %v7175
      %v7180 = vadd.f32 %v7030, %v7177
      %v7181 = vld [vmem:[%s4 + $0x70] sm:$0xff]
      %7183 = vset.pattern.permute.xlu0 0
      %7184 = vperm.xlu0 %7183, %v7181
      %v7185 = vpop.permute.xlu0 %7184
      %v7187 = vadd.f32 %v7179, %v7185
      %v7188 = vadd.f32 %v7180, %v7185
      %v7189 = vadd.f32 %v7187, %v410
      %v7190 = vadd.f32 %v7188, %v412
      %v7191 = vmax.f32 %v7189, 0.0
      %v7192 = vmax.f32 %v7190, 0.0
      %7193 = vst [vmem:[%s224] sm:$0xff] %v7191
      %7194 = vst [vmem:[%s224 + $0x8] sm:$0xff] %v7192
      %p7195 = scmp.lt.s32.totalorder %s16, 1
      %s7196 = scalar_select %p7195, %s16, 1
      %s7197 = smul.addr %s7196, 2
      %s7198 = smul.addr %s7197, 8
      %s7199 = scalar_lea.vmem %s5, %s7198
      // Predicated region
      $region41: #{rfb_forward.1} parent=39 // pred_check
        %p7200 = pneg %p144
      $region42: #{rfb_forward.1} parent=39 // pred_check_branch
        %7202 = sbr.rel (%p7200) target = $region44
      $region43: #{rfb_forward.1} parent=39 // pred_region
        _
      $region44: #{rfb_forward.1} parent=39 // pred_fallthru
        _
    $region40: #{rfb_forward.1} parent=5 // pred_fallthru
      _
    %p7203 = scmp.le.s32.totalorder 2, %s11
    // Predicated region
    $region45: #{rfb_forward.1} parent=5 // pred_check
      %p7204 = pneg %p7203
    $region46: #{rfb_forward.1} parent=5 // pred_check_branch
      %7206 = sbr.rel (%p7204) target = $region48
    $region47: #{rfb_forward.1} parent=5 // pred_region
      %s7207 = ssub.s32 %s11, 2
      // Predicated region
      $region49: #{rfb_forward.1} parent=47 // pred_check
        %p7208 = pneg %p150
      $region50: #{rfb_forward.1} parent=47 // pred_check_branch
        %7210 = sbr.rel (%p7208) target = $region52
      $region51: #{rfb_forward.1} parent=47 // pred_region
        %p7211 = scmp.lt.s32.totalorder %s17, 1
        %s7212 = scalar_select %p7211, %s17, 1
        %s7213 = smul.addr %s7212, 2
        %s7214 = smul.addr %s7213, 8
        %s7215 = scalar_lea.vmem %s5, %s7214
      $region52: #{rfb_forward.1} parent=47 // pred_fallthru
        _
    $region48: #{rfb_forward.1} parent=5 // pred_fallthru
      _
  $region6: #{rfb_forward.1} parent=0 // loop_footer
    %s15 = sadd.s32 1, %s11
  $region7: #{rfb_forward.1} parent=0 // loop_footer_branch
    %10 = sbr.rel target = $region3
  $region8: #{rfb_forward.1} parent=0 // loop_exit
    _

</llo_original>
